<compile_context>
chip_gen: v7x
topology: tpu7x:2x2x1
jax: 0.10.0
libtpu: 0.0.40
codegen_flags: <defaults>
</compile_context>

<pallas_src>
import jax
import jax.numpy as jnp
from jax.experimental import pallas as pl
from jax.experimental.pallas import tpu as pltpu


# ----------------------------------------------------------------------------
# Pallas kernel: out = relu(A @ W + b), f32 accumulate, tiled over M
# ----------------------------------------------------------------------------
def _mm_bias_relu_kernel(a_ref, w_ref, b_ref, o_ref):
    acc = jnp.dot(a_ref[...], w_ref[...], preferred_element_type=jnp.float32)
    o_ref[...] = jnp.maximum(acc + b_ref[...], 0.0).astype(o_ref.dtype)


def _round_up(x, m):
    return (x + m - 1) // m * m


def matmul_bias_relu(a, w, b_row, out_dtype=jnp.float32, tm_max=512):
    """relu(a @ w + b) via a Pallas TPU kernel tiled over M.

    a: (M, K) float  -> cast to bf16
    w: (K, N) bf16   (pre-prepared, resident in VMEM across the grid)
    b_row: (1, N) f32
    returns (M, N) out_dtype
    """
    M, K = a.shape
    K2, N = w.shape
    assert K == K2, (K, K2)

    a = a.astype(jnp.bfloat16)

    # bf16 sublane packing wants multiples of 16; partial edge tiles are masked.
    tm = min(_round_up(max(M, 1), 16), tm_max)
    grid_m = pl.cdiv(M, tm)

    out_bytes = M * N * jnp.dtype(out_dtype).itemsize
    cost = pl.CostEstimate(
        flops=2 * M * K * N,
        transcendentals=0,
        bytes_accessed=M * K * 2 + K * N * 2 + N * 4 + out_bytes,
    )

    return pl.pallas_call(
        _mm_bias_relu_kernel,
        out_shape=jax.ShapeDtypeStruct((M, N), out_dtype),
        grid=(grid_m,),
        in_specs=[
            pl.BlockSpec((tm, K), lambda i: (i, 0)),   # A: streamed over M
            pl.BlockSpec((K, N), lambda i: (0, 0)),    # W: resident
            pl.BlockSpec((1, N), lambda i: (0, 0)),    # b: resident
        ],
        out_specs=pl.BlockSpec((tm, N), lambda i: (i, 0)),
        compiler_params=pltpu.CompilerParams(
            dimension_semantics=("parallel",),
            vmem_limit_bytes=48 * 1024 * 1024,
        ),
        cost_estimate=cost,
    )(a, w, b_row)


# ----------------------------------------------------------------------------
# Glue: NHWC im2col (pure JAX slicing, no transposes between layers)
# ----------------------------------------------------------------------------
def im2col_nhwc(x, kh, kw, stride):
    """x: (B, H, W, C) -> (B*OH*OW, kh*kw*C); column order (kh, kw, c)."""
    B, H, W, C = x.shape
    OH = (H - kh) // stride + 1
    OW = (W - kw) // stride + 1
    cols = []
    for i in range(kh):
        for j in range(kw):
            cols.append(x[:, i:i + stride * OH:stride, j:j + stride * OW:stride, :])
    p = jnp.stack(cols, axis=3)                       # (B, OH, OW, kh*kw, C)
    return p.reshape(B * OH * OW, kh * kw * C), OH, OW


def conv2d_relu_nhwc(x, w_mat, b_row, stride, kh, kw, out_dtype=jnp.bfloat16):
    """Conv2d(VALID, stride) + ReLU on NHWC activations.

    w_mat: (kh*kw*C, OC) bf16 (pre-flattened), b_row: (1, OC) f32.
    """
    B = x.shape[0]
    a, OH, OW = im2col_nhwc(x, kh, kw, stride)        # (B*OH*OW, kh*kw*C)
    y = matmul_bias_relu(a, w_mat, b_row, out_dtype=out_dtype)
    return y.reshape(B, OH, OW, -1)                   # stays NHWC, no transpose


# ----------------------------------------------------------------------------
# Parameters: PyTorch-layout init + one-time preparation for the kernels
# ----------------------------------------------------------------------------
def init_params(key, in_channels=4, feature_dim=512):
    """PyTorch-convention parameters (OIHW conv weights, fc weight stored as W.T
    with rows in PyTorch's (c, h, w) flatten order)."""
    ks = jax.random.split(key, 8)

    def winit(k, shape, fan_in):
        return (jax.random.normal(k, shape, jnp.float32) / jnp.sqrt(fan_in)).astype(jnp.float32)

    return {
        "w1": winit(ks[0], (32, in_channels, 8, 8), in_channels * 8 * 8),
        "b1": 0.01 * jax.random.normal(ks[1], (32,), jnp.float32),
        "w2": winit(ks[2], (64, 32, 4, 4), 32 * 4 * 4),
        "b2": 0.01 * jax.random.normal(ks[3], (64,), jnp.float32),
        "w3": winit(ks[4], (64, 64, 3, 3), 64 * 3 * 3),
        "b3": 0.01 * jax.random.normal(ks[5], (64,), jnp.float32),
        "wfc": winit(ks[6], (7 * 7 * 64, feature_dim), 7 * 7 * 64),  # rows: (c,h,w)
        "bfc": 0.01 * jax.random.normal(ks[7], (feature_dim,), jnp.float32),
    }


def prepare_params(params):
    """One-time (outside jit) re-layout to kernel-friendly form:
    conv weights -> (kh*kw*C, OC) bf16; fc weight rows permuted from PyTorch
    (c,h,w) flatten order to NHWC (h,w,c) order; biases -> (1, N) f32."""
    def conv_w(w):  # (OC, C, kh, kw) -> (kh, kw, C, OC) -> (kh*kw*C, OC)
        oc = w.shape[0]
        return jnp.transpose(w, (2, 3, 1, 0)).reshape(-1, oc).astype(jnp.bfloat16)

    def bias(b):
        return b.reshape(1, -1).astype(jnp.float32)

    fd = params["wfc"].shape[1]
    wfc = (params["wfc"].reshape(64, 7, 7, fd)      # (c, h, w, oc)
           .transpose(1, 2, 0, 3)                   # (h, w, c, oc)
           .reshape(7 * 7 * 64, fd).astype(jnp.bfloat16))

    return {
        "w1": conv_w(params["w1"]), "b1": bias(params["b1"]),
        "w2": conv_w(params["w2"]), "b2": bias(params["b2"]),
        "w3": conv_w(params["w3"]), "b3": bias(params["b3"]),
        "wfc": wfc, "bfc": bias(params["bfc"]),
    }


# ----------------------------------------------------------------------------
# NatureConvBody forward
# ----------------------------------------------------------------------------
@jax.jit
def nature_conv_body_forward(x, prep):
    """x: (B, in_channels, 84, 84) NCHW f32 -> (B, 512) f32."""
    B = x.shape[0]
    x = jnp.transpose(x, (0, 2, 3, 1)).astype(jnp.bfloat16)       # NCHW->NHWC once
    y = conv2d_relu_nhwc(x, prep["w1"], prep["b1"], 4, 8, 8)      # (B, 20, 20, 32)
    y = conv2d_relu_nhwc(y, prep["w2"], prep["b2"], 2, 4, 4)      # (B, 9, 9, 64)
    y = conv2d_relu_nhwc(y, prep["w3"], prep["b3"], 1, 3, 3)      # (B, 7, 7, 64)
    feat = y.reshape(B, -1)                # NHWC flatten; wfc rows pre-permuted to match
    return matmul_bias_relu(feat, prep["wfc"], prep["bfc"], out_dtype=jnp.float32)


# ----------------------------------------------------------------------------
# Pure-JAX f32 reference (PyTorch semantics) for a sanity check
# ----------------------------------------------------------------------------
def reference_forward(x, params):
    def conv(x, w, b, stride):
        y = jax.lax.conv_general_dilated(
            x, w, (stride, stride), "VALID",
            dimension_numbers=("NCHW", "OIHW", "NCHW"))
        return jax.nn.relu(y + b[None, :, None, None])

    y = conv(x, params["w1"], params["b1"], 4)
    y = conv(y, params["w2"], params["b2"], 2)
    y = conv(y, params["w3"], params["b3"], 1)
    y = y.reshape(y.shape[0], -1)          # PyTorch flatten: (c, h, w) order
    return jax.nn.relu(y @ params["wfc"] + params["bfc"])


if __name__ == "__main__":
    # NatureConvBody requires 84x84 input so conv3 output is 7x7 (fc expects 7*7*64).
    B, C, H, W = 2, 4, 84, 84
    x = jax.random.normal(jax.random.PRNGKey(0), (B, C, H, W), jnp.float32)
    params = init_params(jax.random.PRNGKey(42), in_channels=C)
    prep = prepare_params(params)

    out = jax.block_until_ready(nature_conv_body_forward(x, prep))
    assert out.shape == (B, 512), out.shape

    ref = jax.block_until_ready(reference_forward(x, params))
    max_err = float(jnp.max(jnp.abs(out - ref)))
    # bf16 MXU inputs / bf16 intermediate activations vs a pure-f32 reference.
    assert max_err < 1e-1, f"mismatch vs reference, max abs err = {max_err}"

    print("KERNEL_OK")
</pallas_src>

<mosaic_0001>
module attributes {stable_mosaic.version = 11 : i64} {
  func.func @_mm_bias_relu_kernel(%arg0: i32, %arg1: memref<512x256xbf16, #tpu.memory_space<vmem>>, %arg2: memref<256x32xbf16, #tpu.memory_space<vmem>>, %arg3: memref<1x32xf32, #tpu.memory_space<vmem>>, %arg4: memref<512x32xbf16, #tpu.memory_space<vmem>>) attributes {dimension_semantics = [#tpu.dimension_semantics<parallel>], iteration_bounds = array<i64: 2>, scalar_prefetch = 0 : i64, scratch_operands = 0 : i64, tpu.core_type = #tpu.core_type<tc>, window_params = [{transform_indices = @transform_0, window_bounds = array<i64: 512, 256>}, {pipeline_mode = #tpu.pipeline_mode<synchronous>, transform_indices = @transform_1, window_bounds = array<i64: 256, 32>}, {pipeline_mode = #tpu.pipeline_mode<synchronous>, transform_indices = @transform_2, window_bounds = array<i64: 1, 32>}, {transform_indices = @transform_3, window_bounds = array<i64: 512, 32>}]} {
    %c0 = arith.constant 0 : index
    %c0_0 = arith.constant 0 : index
    %0 = vector.load %arg1[%c0, %c0_0] : memref<512x256xbf16, #tpu.memory_space<vmem>>, vector<512x256xbf16>
    %c0_1 = arith.constant 0 : index
    %c0_2 = arith.constant 0 : index
    %1 = vector.load %arg2[%c0_1, %c0_2] : memref<256x32xbf16, #tpu.memory_space<vmem>>, vector<256x32xbf16>
    %cst = arith.constant dense<0.000000e+00> : vector<512x32xf32>
    %2 = tpu.matmul %0, %1, %cst {dimension_numbers = #tpu.dot_dimension_numbers<[1], [0], [0], [1], [0, 0, 1, 1], [], []>} : vector<512x256xbf16>, vector<256x32xbf16>, vector<512x32xf32> -> vector<512x32xf32>
    %c0_3 = arith.constant 0 : index
    %c0_4 = arith.constant 0 : index
    %3 = vector.load %arg3[%c0_3, %c0_4] : memref<1x32xf32, #tpu.memory_space<vmem>>, vector<1x32xf32>
    %4 = vector.broadcast %3 : vector<1x32xf32> to vector<512x32xf32>
    %5 = arith.addf %2, %4 : vector<512x32xf32>
    %cst_5 = arith.constant 0.000000e+00 : f32
    %6 = vector.broadcast %cst_5 : f32 to vector<512x32xf32>
    %7 = arith.maximumf %5, %6 : vector<512x32xf32>
    %8 = arith.truncf %7 : vector<512x32xf32> to vector<512x32xbf16>
    %c0_6 = arith.constant 0 : index
    %c0_7 = arith.constant 0 : index
    %9 = vector.load %arg4[%c0_6, %c0_7] : memref<512x32xbf16, #tpu.memory_space<vmem>>, vector<512x32xbf16>
    tpu.vector_store %arg4[%c0_6, %c0_7], %8 {strides = array<i32>} : memref<512x32xbf16, #tpu.memory_space<vmem>>, vector<512x32xbf16>,
    return
  }
  func.func @transform_0(%arg0: i32) -> (i32, i32) {
    %c0_i32 = arith.constant 0 : i32
    %c0_i32_0 = arith.constant 0 : i32
    return %arg0, %c0_i32 : i32, i32
  }
  func.func @transform_1(%arg0: i32) -> (i32, i32) {
    %c0_i32 = arith.constant 0 : i32
    %c0_i32_0 = arith.constant 0 : i32
    %c0_i32_1 = arith.constant 0 : i32
    return %c0_i32, %c0_i32_0 : i32, i32
  }
  func.func @transform_2(%arg0: i32) -> (i32, i32) {
    %c0_i32 = arith.constant 0 : i32
    %c0_i32_0 = arith.constant 0 : i32
    %c0_i32_1 = arith.constant 0 : i32
    return %c0_i32, %c0_i32_0 : i32, i32
  }
  func.func @transform_3(%arg0: i32) -> (i32, i32) {
    %c0_i32 = arith.constant 0 : i32
    %c0_i32_0 = arith.constant 0 : i32
    return %arg0, %c0_i32 : i32, i32
  }
}

module attributes {stable_mosaic.version = 11 : i64} {
  func.func @_mm_bias_relu_kernel(%arg0: i32, %arg1: memref<176x512xbf16, #tpu.memory_space<vmem>>, %arg2: memref<512x64xbf16, #tpu.memory_space<vmem>>, %arg3: memref<1x64xf32, #tpu.memory_space<vmem>>, %arg4: memref<176x64xbf16, #tpu.memory_space<vmem>>) attributes {dimension_semantics = [#tpu.dimension_semantics<parallel>], iteration_bounds = array<i64: 1>, scalar_prefetch = 0 : i64, scratch_operands = 0 : i64, tpu.core_type = #tpu.core_type<tc>, window_params = [{transform_indices = @transform_0, window_bounds = array<i64: 176, 512>}, {pipeline_mode = #tpu.pipeline_mode<synchronous>, transform_indices = @transform_1, window_bounds = array<i64: 512, 64>}, {pipeline_mode = #tpu.pipeline_mode<synchronous>, transform_indices = @transform_2, window_bounds = array<i64: 1, 64>}, {transform_indices = @transform_3, window_bounds = array<i64: 176, 64>}]} {
    %c0 = arith.constant 0 : index
    %c0_0 = arith.constant 0 : index
    %0 = vector.load %arg1[%c0, %c0_0] : memref<176x512xbf16, #tpu.memory_space<vmem>>, vector<176x512xbf16>
    %c0_1 = arith.constant 0 : index
    %c0_2 = arith.constant 0 : index
    %1 = vector.load %arg2[%c0_1, %c0_2] : memref<512x64xbf16, #tpu.memory_space<vmem>>, vector<512x64xbf16>
    %cst = arith.constant dense<0.000000e+00> : vector<176x64xf32>
    %2 = tpu.matmul %0, %1, %cst {dimension_numbers = #tpu.dot_dimension_numbers<[1], [0], [0], [1], [0, 0, 1, 1], [], []>} : vector<176x512xbf16>, vector<512x64xbf16>, vector<176x64xf32> -> vector<176x64xf32>
    %c0_3 = arith.constant 0 : index
    %c0_4 = arith.constant 0 : index
    %3 = vector.load %arg3[%c0_3, %c0_4] : memref<1x64xf32, #tpu.memory_space<vmem>>, vector<1x64xf32>
    %4 = vector.broadcast %3 : vector<1x64xf32> to vector<176x64xf32>
    %5 = arith.addf %2, %4 : vector<176x64xf32>
    %cst_5 = arith.constant 0.000000e+00 : f32
    %6 = vector.broadcast %cst_5 : f32 to vector<176x64xf32>
    %7 = arith.maximumf %5, %6 : vector<176x64xf32>
    %8 = arith.truncf %7 : vector<176x64xf32> to vector<176x64xbf16>
    %c0_6 = arith.constant 0 : index
    %c0_7 = arith.constant 0 : index
    %9 = vector.load %arg4[%c0_6, %c0_7] : memref<176x64xbf16, #tpu.memory_space<vmem>>, vector<176x64xbf16>
    tpu.vector_store %arg4[%c0_6, %c0_7], %8 {strides = array<i32>} : memref<176x64xbf16, #tpu.memory_space<vmem>>, vector<176x64xbf16>,
    return
  }
  func.func @transform_0(%arg0: i32) -> (i32, i32) {
    %c0_i32 = arith.constant 0 : i32
    %c0_i32_0 = arith.constant 0 : i32
    return %arg0, %c0_i32 : i32, i32
  }
  func.func @transform_1(%arg0: i32) -> (i32, i32) {
    %c0_i32 = arith.constant 0 : i32
    %c0_i32_0 = arith.constant 0 : i32
    %c0_i32_1 = arith.constant 0 : i32
    return %c0_i32, %c0_i32_0 : i32, i32
  }
  func.func @transform_2(%arg0: i32) -> (i32, i32) {
    %c0_i32 = arith.constant 0 : i32
    %c0_i32_0 = arith.constant 0 : i32
    %c0_i32_1 = arith.constant 0 : i32
    return %c0_i32, %c0_i32_0 : i32, i32
  }
  func.func @transform_3(%arg0: i32) -> (i32, i32) {
    %c0_i32 = arith.constant 0 : i32
    %c0_i32_0 = arith.constant 0 : i32
    return %arg0, %c0_i32 : i32, i32
  }
}

module attributes {stable_mosaic.version = 11 : i64} {
  func.func @_mm_bias_relu_kernel(%arg0: i32, %arg1: memref<112x576xbf16, #tpu.memory_space<vmem>>, %arg2: memref<576x64xbf16, #tpu.memory_space<vmem>>, %arg3: memref<1x64xf32, #tpu.memory_space<vmem>>, %arg4: memref<112x64xbf16, #tpu.memory_space<vmem>>) attributes {dimension_semantics = [#tpu.dimension_semantics<parallel>], iteration_bounds = array<i64: 1>, scalar_prefetch = 0 : i64, scratch_operands = 0 : i64, tpu.core_type = #tpu.core_type<tc>, window_params = [{transform_indices = @transform_0, window_bounds = array<i64: 112, 576>}, {pipeline_mode = #tpu.pipeline_mode<synchronous>, transform_indices = @transform_1, window_bounds = array<i64: 576, 64>}, {pipeline_mode = #tpu.pipeline_mode<synchronous>, transform_indices = @transform_2, window_bounds = array<i64: 1, 64>}, {transform_indices = @transform_3, window_bounds = array<i64: 112, 64>}]} {
    %c0 = arith.constant 0 : index
    %c0_0 = arith.constant 0 : index
    %0 = vector.load %arg1[%c0, %c0_0] : memref<112x576xbf16, #tpu.memory_space<vmem>>, vector<112x576xbf16>
    %c0_1 = arith.constant 0 : index
    %c0_2 = arith.constant 0 : index
    %1 = vector.load %arg2[%c0_1, %c0_2] : memref<576x64xbf16, #tpu.memory_space<vmem>>, vector<576x64xbf16>
    %cst = arith.constant dense<0.000000e+00> : vector<112x64xf32>
    %2 = tpu.matmul %0, %1, %cst {dimension_numbers = #tpu.dot_dimension_numbers<[1], [0], [0], [1], [0, 0, 1, 1], [], []>} : vector<112x576xbf16>, vector<576x64xbf16>, vector<112x64xf32> -> vector<112x64xf32>
    %c0_3 = arith.constant 0 : index
    %c0_4 = arith.constant 0 : index
    %3 = vector.load %arg3[%c0_3, %c0_4] : memref<1x64xf32, #tpu.memory_space<vmem>>, vector<1x64xf32>
    %4 = vector.broadcast %3 : vector<1x64xf32> to vector<112x64xf32>
    %5 = arith.addf %2, %4 : vector<112x64xf32>
    %cst_5 = arith.constant 0.000000e+00 : f32
    %6 = vector.broadcast %cst_5 : f32 to vector<112x64xf32>
    %7 = arith.maximumf %5, %6 : vector<112x64xf32>
    %8 = arith.truncf %7 : vector<112x64xf32> to vector<112x64xbf16>
    %c0_6 = arith.constant 0 : index
    %c0_7 = arith.constant 0 : index
    %9 = vector.load %arg4[%c0_6, %c0_7] : memref<112x64xbf16, #tpu.memory_space<vmem>>, vector<112x64xbf16>
    tpu.vector_store %arg4[%c0_6, %c0_7], %8 {strides = array<i32>} : memref<112x64xbf16, #tpu.memory_space<vmem>>, vector<112x64xbf16>,
    return
  }
  func.func @transform_0(%arg0: i32) -> (i32, i32) {
    %c0_i32 = arith.constant 0 : i32
    %c0_i32_0 = arith.constant 0 : i32
    return %arg0, %c0_i32 : i32, i32
  }
  func.func @transform_1(%arg0: i32) -> (i32, i32) {
    %c0_i32 = arith.constant 0 : i32
    %c0_i32_0 = arith.constant 0 : i32
    %c0_i32_1 = arith.constant 0 : i32
    return %c0_i32, %c0_i32_0 : i32, i32
  }
  func.func @transform_2(%arg0: i32) -> (i32, i32) {
    %c0_i32 = arith.constant 0 : i32
    %c0_i32_0 = arith.constant 0 : i32
    %c0_i32_1 = arith.constant 0 : i32
    return %c0_i32, %c0_i32_0 : i32, i32
  }
  func.func @transform_3(%arg0: i32) -> (i32, i32) {
    %c0_i32 = arith.constant 0 : i32
    %c0_i32_0 = arith.constant 0 : i32
    return %arg0, %c0_i32 : i32, i32
  }
}

module attributes {stable_mosaic.version = 11 : i64} {
  func.func @_mm_bias_relu_kernel(%arg0: i32, %arg1: memref<16x3136xbf16, #tpu.memory_space<vmem>>, %arg2: memref<3136x512xbf16, #tpu.memory_space<vmem>>, %arg3: memref<1x512xf32, #tpu.memory_space<vmem>>, %arg4: memref<16x512xf32, #tpu.memory_space<vmem>>) attributes {dimension_semantics = [#tpu.dimension_semantics<parallel>], iteration_bounds = array<i64: 1>, scalar_prefetch = 0 : i64, scratch_operands = 0 : i64, tpu.core_type = #tpu.core_type<tc>, window_params = [{transform_indices = @transform_0, window_bounds = array<i64: 16, 3136>}, {pipeline_mode = #tpu.pipeline_mode<synchronous>, transform_indices = @transform_1, window_bounds = array<i64: 3136, 512>}, {pipeline_mode = #tpu.pipeline_mode<synchronous>, transform_indices = @transform_2, window_bounds = array<i64: 1, 512>}, {transform_indices = @transform_3, window_bounds = array<i64: 16, 512>}]} {
    %c0 = arith.constant 0 : index
    %c0_0 = arith.constant 0 : index
    %0 = vector.load %arg1[%c0, %c0_0] : memref<16x3136xbf16, #tpu.memory_space<vmem>>, vector<16x3136xbf16>
    %c0_1 = arith.constant 0 : index
    %c0_2 = arith.constant 0 : index
    %1 = vector.load %arg2[%c0_1, %c0_2] : memref<3136x512xbf16, #tpu.memory_space<vmem>>, vector<3136x512xbf16>
    %cst = arith.constant dense<0.000000e+00> : vector<16x512xf32>
    %2 = tpu.matmul %0, %1, %cst {dimension_numbers = #tpu.dot_dimension_numbers<[1], [0], [0], [1], [0, 0, 1, 1], [], []>} : vector<16x3136xbf16>, vector<3136x512xbf16>, vector<16x512xf32> -> vector<16x512xf32>
    %c0_3 = arith.constant 0 : index
    %c0_4 = arith.constant 0 : index
    %3 = vector.load %arg3[%c0_3, %c0_4] : memref<1x512xf32, #tpu.memory_space<vmem>>, vector<1x512xf32>
    %4 = vector.broadcast %3 : vector<1x512xf32> to vector<16x512xf32>
    %5 = arith.addf %2, %4 : vector<16x512xf32>
    %cst_5 = arith.constant 0.000000e+00 : f32
    %6 = vector.broadcast %cst_5 : f32 to vector<16x512xf32>
    %7 = arith.maximumf %5, %6 : vector<16x512xf32>
    %c0_6 = arith.constant 0 : index
    %c0_7 = arith.constant 0 : index
    %8 = vector.load %arg4[%c0_6, %c0_7] : memref<16x512xf32, #tpu.memory_space<vmem>>, vector<16x512xf32>
    tpu.vector_store %arg4[%c0_6, %c0_7], %7 {strides = array<i32>} : memref<16x512xf32, #tpu.memory_space<vmem>>, vector<16x512xf32>,
    return
  }
  func.func @transform_0(%arg0: i32) -> (i32, i32) {
    %c0_i32 = arith.constant 0 : i32
    %c0_i32_0 = arith.constant 0 : i32
    return %arg0, %c0_i32 : i32, i32
  }
  func.func @transform_1(%arg0: i32) -> (i32, i32) {
    %c0_i32 = arith.constant 0 : i32
    %c0_i32_0 = arith.constant 0 : i32
    %c0_i32_1 = arith.constant 0 : i32
    return %c0_i32, %c0_i32_0 : i32, i32
  }
  func.func @transform_2(%arg0: i32) -> (i32, i32) {
    %c0_i32 = arith.constant 0 : i32
    %c0_i32_0 = arith.constant 0 : i32
    %c0_i32_1 = arith.constant 0 : i32
    return %c0_i32, %c0_i32_0 : i32, i32
  }
  func.func @transform_3(%arg0: i32) -> (i32, i32) {
    %c0_i32 = arith.constant 0 : i32
    %c0_i32_0 = arith.constant 0 : i32
    return %arg0, %c0_i32 : i32, i32
  }
}

</mosaic_0001>

<llo_original>
// kernel: nature_conv_body_forward.4
$region0: #{nature_conv_body_forward.4}
  #allocation0 [shape = 'u32[]', space=smem, size = 0x4, offset = 0x4, fixed_abs, tag = 'smem constant byte address 0x4 - core index']
  #allocation1 [shape = 'u32[144,128]{1,0:T(1,128)}', space=vmem, size = 0x12000, scoped, tag = 'internal scratch']
  %s0 = inlined_call_operand.vmem [shape: bf16[800,256], index: 0, kind: input, shape index: {}]
  %s1 = inlined_call_operand.vmem [shape: bf16[256,32], index: 1, kind: input, shape index: {}]
  %s2 = inlined_call_operand.vmem [shape: f32[1,32], index: 2, kind: input, shape index: {}]
  %s3 = inlined_call_operand.vmem [shape: bf16[800,32], index: 3, kind: output, shape index: {}]
  %s4 = sld [smem:[#allocation0]]
  $region89: #{nature_conv_body_forward.4} parent=0
    _
  %s6 = ssub.s32 1, %s4
  %s7 = scalar_select 0, %s6, %s4
  $region1: #{nature_conv_body_forward.4} parent=0
    #allocation2 [shape = 'u8[262144]{0}', space=vmem, size = 0x40000, scoped, tag = 'output window, operand 0']
    loop: start=0, step=1, limit=4
    $region2: #{nature_conv_body_forward.4} parent=1 // loop_pre_header
      _
    $region3: #{nature_conv_body_forward.4} parent=1 // loop_header
      %s9 = sphi 0, %s13
      %p10 = scmp.ge.s32.totalorder %s9, 4
      %s19 = sphi 0, %s21
      %s22 = sphi 0, %s19
      %s23 = sphi 0, %s22
      %s39 = sphi 0, %s23
      %s43 = sphi 0, %s43
      %s45 = sphi 0, %s43
      %s46 = sphi 0, %s45
      %s60 = sphi 0, %s46
      %s64 = sphi 0, %s64
      %s66 = sphi 0, %s64
      %s67 = sphi 0, %s66
      %s81 = sphi 0, %s67
      %s87 = sphi 0, %s89
      %s90 = sphi 0, %s87
      %s91 = sphi 0, %s90
      %s107 = sphi 0, %s91
    $region4: #{nature_conv_body_forward.4} parent=1 // loop_header_branch
      %12 = sbr.rel (%p10) target = $region8
    $region5: #{nature_conv_body_forward.4} parent=1 // loop_body
      %s14 = ssub.s32 %s9, 1
      %s15 = ssub.s32 %s9, 2
      %s16 = sadd.s32 %s9, 1
      %s17 = ssub.s32 %s9, %s16
      %p18 = scmp.eq.s32.totalorder %s17, 0
      %s20 = sadd.s32 %s19, 1
      %s21 = scalar_select %p18, %s19, %s20
      %p24 = pneg %p18
      %p25 = scmp.eq.s32.totalorder %s9, 1
      %p26 = por %p24, %p25
      %p27 = scmp.ne.s32.totalorder %s19, %s22
      %p28 = scmp.eq.s32.totalorder %s9, 0
      %p29 = por %p27, %p28
      %p30 = scmp.ne.s32.totalorder %s19, %s22
      %p31 = scmp.eq.s32.totalorder %s14, 1
      %p32 = por %p30, %p31
      %p33 = scmp.ne.s32.totalorder %s22, %s23
      %p34 = scmp.eq.s32.totalorder %s14, 0
      %p35 = por %p33, %p34
      %p36 = scmp.ne.s32.totalorder %s22, %s23
      %p37 = scmp.eq.s32.totalorder %s15, 1
      %p38 = por %p36, %p37
      %p40 = scmp.ne.s32.totalorder %s23, %s39
      %p41 = scmp.eq.s32.totalorder %s15, 0
      %p42 = por %p40, %p41
      %s44 = sadd.s32 %s43, 1
      %p47 = scmp.eq.s32.totalorder %s9, 1
      %p48 = scmp.ne.s32.totalorder %s43, %s45
      %p49 = scmp.eq.s32.totalorder %s9, 0
      %p50 = por %p48, %p49
      %p51 = scmp.ne.s32.totalorder %s43, %s45
      %p52 = scmp.eq.s32.totalorder %s14, 1
      %p53 = por %p51, %p52
      %p54 = scmp.ne.s32.totalorder %s45, %s46
      %p55 = scmp.eq.s32.totalorder %s14, 0
      %p56 = por %p54, %p55
      %p57 = scmp.ne.s32.totalorder %s45, %s46
      %p58 = scmp.eq.s32.totalorder %s15, 1
      %p59 = por %p57, %p58
      %p61 = scmp.ne.s32.totalorder %s46, %s60
      %p62 = scmp.eq.s32.totalorder %s15, 0
      %p63 = por %p61, %p62
      %s65 = sadd.s32 %s64, 1
      %p68 = scmp.eq.s32.totalorder %s9, 1
      %p69 = scmp.ne.s32.totalorder %s64, %s66
      %p70 = scmp.eq.s32.totalorder %s9, 0
      %p71 = por %p69, %p70
      %p72 = scmp.ne.s32.totalorder %s64, %s66
      %p73 = scmp.eq.s32.totalorder %s14, 1
      %p74 = por %p72, %p73
      %p75 = scmp.ne.s32.totalorder %s66, %s67
      %p76 = scmp.eq.s32.totalorder %s14, 0
      %p77 = por %p75, %p76
      %p78 = scmp.ne.s32.totalorder %s66, %s67
      %p79 = scmp.eq.s32.totalorder %s15, 1
      %p80 = por %p78, %p79
      %p82 = scmp.ne.s32.totalorder %s67, %s81
      %p83 = scmp.eq.s32.totalorder %s15, 0
      %p84 = por %p82, %p83
      %s85 = ssub.s32 %s9, %s16
      %p86 = scmp.eq.s32.totalorder %s85, 0
      %s88 = sadd.s32 %s87, 1
      %s89 = scalar_select %p86, %s87, %s88
      %p92 = pneg %p86
      %p93 = scmp.eq.s32.totalorder %s9, 1
      %p94 = por %p92, %p93
      %p95 = scmp.ne.s32.totalorder %s87, %s90
      %p96 = scmp.eq.s32.totalorder %s9, 0
      %p97 = por %p95, %p96
      %p98 = scmp.ne.s32.totalorder %s87, %s90
      %p99 = scmp.eq.s32.totalorder %s14, 1
      %p100 = por %p98, %p99
      %p101 = scmp.ne.s32.totalorder %s90, %s91
      %p102 = scmp.eq.s32.totalorder %s14, 0
      %p103 = por %p101, %p102
      %p104 = scmp.ne.s32.totalorder %s90, %s91
      %p105 = scmp.eq.s32.totalorder %s15, 1
      %p106 = por %p104, %p105
      %p108 = scmp.ne.s32.totalorder %s91, %s107
      %p109 = scmp.eq.s32.totalorder %s15, 0
      %p110 = por %p108, %p109
      %p111 = scmp.le.s32.totalorder 1, %s9
      %p112 = scmp.lt.s32.totalorder %s9, 3
      %p113 = pnand %p111, %p112
      %p114 = pneg %p113
      // Predicated region
      $region9: #{nature_conv_body_forward.4} parent=5 // pred_check
        _
      $region10: #{nature_conv_body_forward.4} parent=5 // pred_check_branch
        %116 = sbr.rel (%p113) target = $region12
      $region11: #{nature_conv_body_forward.4} parent=5 // pred_region
        %s117 = ssub.s32 %s9, 1
        // Predicated region
        $region13: #{nature_conv_body_forward.4} parent=11 // pred_check
          %p118 = pneg %p56
        $region14: #{nature_conv_body_forward.4} parent=11 // pred_check_branch
          %120 = sbr.rel (%p118) target = $region16
        $region15: #{nature_conv_body_forward.4} parent=11 // pred_region
          _
        $region16: #{nature_conv_body_forward.4} parent=11 // pred_fallthru
          _
        // Predicated region
        $region17: #{nature_conv_body_forward.4} parent=11 // pred_check
          %p121 = pneg %p77
        $region18: #{nature_conv_body_forward.4} parent=11 // pred_check_branch
          %123 = sbr.rel (%p121) target = $region20
        $region19: #{nature_conv_body_forward.4} parent=11 // pred_region
          _
        $region20: #{nature_conv_body_forward.4} parent=11 // pred_fallthru
          _
      $region12: #{nature_conv_body_forward.4} parent=5 // pred_fallthru
        _
      %p124 = scmp.lt.s32.totalorder %s9, 2
      // Predicated region
      $region21: #{nature_conv_body_forward.4} parent=5 // pred_check
        %p125 = pneg %p124
      $region22: #{nature_conv_body_forward.4} parent=5 // pred_check_branch
        %127 = sbr.rel (%p125) target = $region24
      $region23: #{nature_conv_body_forward.4} parent=5 // pred_region
        // Predicated region
        $region25: #{nature_conv_body_forward.4} parent=23 // pred_check
          %p128 = pneg %p29
        $region26: #{nature_conv_body_forward.4} parent=23 // pred_check_branch
          %130 = sbr.rel (%p128) target = $region28
        $region27: #{nature_conv_body_forward.4} parent=23 // pred_region
          %s131 = smul.u32 64, %s9
          %s132 = ssub.s32 100, %s131
          %p133 = scmp.lt.s32.totalorder %s132, 64
          %s134 = scalar_select %p133, %s132, 64
          %s135 = smul.u32 64, %s134
          %s136 = smul.u32 %s135, 2
          %p137 = scmp.lt.s32.totalorder %s131, 99
          %s138 = scalar_select %p137, %s131, 99
          %s139 = smul.addr %s138, 2
          %s140 = smul.addr %s139, 4
          %s141 = scalar_lea.vmem %s0, %s140
          %s142 = smul.u32 64, %s9
          %s143 = ssub.s32 100, %s142
          %p144 = scmp.lt.s32.totalorder %s143, 64
          %s145 = scalar_select %p144, %s143, 64
          %s146 = smul.u32 64, %s145
          %s147 = smul.u32 %s146, 2
        $region28: #{nature_conv_body_forward.4} parent=23 // pred_fallthru
          _
      $region24: #{nature_conv_body_forward.4} parent=5 // pred_fallthru
        _
      %p148 = scmp.le.s32.totalorder 1, %s9
      %p149 = scmp.lt.s32.totalorder %s9, 3
      %p150 = pnand %p148, %p149
      %p151 = pneg %p150
      // Predicated region
      $region29: #{nature_conv_body_forward.4} parent=5 // pred_check
        _
      $region30: #{nature_conv_body_forward.4} parent=5 // pred_check_branch
        %153 = sbr.rel (%p150) target = $region32
      $region31: #{nature_conv_body_forward.4} parent=5 // pred_region
        %s154 = ssub.s32 %s9, 1
        %s155 = smul.u32 64, %s14
        %s156 = ssub.s32 100, %s155
        %p157 = scmp.lt.s32.totalorder %s156, 64
        %s158 = scalar_select %p157, %s156, 64
        %s159 = smul.u32 64, %s158
        %s160 = smul.u32 %s159, 2
        %p161 = scmp.lt.s32.totalorder %s155, 99
        %s162 = scalar_select %p161, %s155, 99
        %s163 = smul.addr %s162, 2
        %s164 = smul.addr %s163, 4
        %s165 = scalar_lea.vmem %s0, %s164
        %p166 = pneg %p35
        %p167 = pneg %p32
        %p168 = pneg %p56
        %p169 = pneg %p53
        %p170 = pneg %p77
        %p171 = pneg %p74
        %p172 = pneg %p103
        %p173 = pneg %p100
        %s174 = sand.u32 %s90, 1
        %s175 = sand.u32 %s90, 1
        %s176 = smul.addr %s175, 256
        %s177 = scalar_lea.vmem [#allocation2], %s176
        %s178 = smul.u32 64, %s14
        %s179 = ssub.s32 100, %s178
        %p180 = scmp.lt.s32.totalorder %s179, 64
        %s181 = scalar_select %p180, %s179, 64
        %s182 = smul.u32 64, %s181
        %s183 = smul.u32 %s182, 2
        %p184 = scmp.lt.s32.totalorder %s178, 99
        %s185 = scalar_select %p184, %s178, 99
        %s186 = smul.addr %s185, 2
        %s187 = smul.addr %s186, 4
        %s188 = scalar_lea.vmem %s0, %s187
        %s189 = smul.u32 64, %s14
        %s190 = ssub.s32 100, %s189
        %p191 = scmp.lt.s32.totalorder %s190, 64
        %s192 = scalar_select %p191, %s190, 64
        %s193 = smul.u32 64, %s192
        %s194 = smul.u32 %s193, 2
        %s195 = smul.u32 64, %s14
        %s196 = ssub.s32 100, %s195
        %p197 = scmp.lt.s32.totalorder %s196, 64
        %s198 = scalar_select %p197, %s196, 64
        %s199 = smul.u32 64, %s198
        %v201 = vld [vmem:[%s188] sm:$0xff]
        %v202 = vld [vmem:[%s188 + $0x8] sm:$0xff]
        %v203 = vld [vmem:[%s188 + $0x10] sm:$0xff]
        %v204 = vld [vmem:[%s188 + $0x18] sm:$0xff]
        %v205 = vld [vmem:[%s188 + $0x20] sm:$0xff]
        %v206 = vld [vmem:[%s188 + $0x28] sm:$0xff]
        %v207 = vld [vmem:[%s188 + $0x30] sm:$0xff]
        %v208 = vld [vmem:[%s188 + $0x38] sm:$0xff]
        %v209 = vld [vmem:[%s188 + $0x40] sm:$0xff]
        %v210 = vld [vmem:[%s188 + $0x48] sm:$0xff]
        %v211 = vld [vmem:[%s188 + $0x50] sm:$0xff]
        %v212 = vld [vmem:[%s188 + $0x58] sm:$0xff]
        %v213 = vld [vmem:[%s188 + $0x60] sm:$0xff]
        %v214 = vld [vmem:[%s188 + $0x68] sm:$0xff]
        %v215 = vld [vmem:[%s188 + $0x70] sm:$0xff]
        %v216 = vld [vmem:[%s188 + $0x78] sm:$0xff]
        %v217 = vld [vmem:[%s188 + $0x80] sm:$0xff]
        %v218 = vld [vmem:[%s188 + $0x88] sm:$0xff]
        %v219 = vld [vmem:[%s188 + $0x90] sm:$0xff]
        %v220 = vld [vmem:[%s188 + $0x98] sm:$0xff]
        %v221 = vld [vmem:[%s188 + $0xa0] sm:$0xff]
        %v222 = vld [vmem:[%s188 + $0xa8] sm:$0xff]
        %v223 = vld [vmem:[%s188 + $0xb0] sm:$0xff]
        %v224 = vld [vmem:[%s188 + $0xb8] sm:$0xff]
        %v225 = vld [vmem:[%s188 + $0xc0] sm:$0xff]
        %v226 = vld [vmem:[%s188 + $0xc8] sm:$0xff]
        %v227 = vld [vmem:[%s188 + $0xd0] sm:$0xff]
        %v228 = vld [vmem:[%s188 + $0xd8] sm:$0xff]
        %v229 = vld [vmem:[%s188 + $0xe0] sm:$0xff]
        %v230 = vld [vmem:[%s188 + $0xe8] sm:$0xff]
        %v231 = vld [vmem:[%s188 + $0xf0] sm:$0xff]
        %v232 = vld [vmem:[%s188 + $0xf8] sm:$0xff]
        %v233 = vld [vmem:[%s188 + $0x100] sm:$0xff]
        %v234 = vld [vmem:[%s188 + $0x108] sm:$0xff]
        %v235 = vld [vmem:[%s188 + $0x110] sm:$0xff]
        %v236 = vld [vmem:[%s188 + $0x118] sm:$0xff]
        %v237 = vld [vmem:[%s188 + $0x120] sm:$0xff]
        %v238 = vld [vmem:[%s188 + $0x128] sm:$0xff]
        %v239 = vld [vmem:[%s188 + $0x130] sm:$0xff]
        %v240 = vld [vmem:[%s188 + $0x138] sm:$0xff]
        %v241 = vld [vmem:[%s188 + $0x140] sm:$0xff]
        %v242 = vld [vmem:[%s188 + $0x148] sm:$0xff]
        %v243 = vld [vmem:[%s188 + $0x150] sm:$0xff]
        %v244 = vld [vmem:[%s188 + $0x158] sm:$0xff]
        %v245 = vld [vmem:[%s188 + $0x160] sm:$0xff]
        %v246 = vld [vmem:[%s188 + $0x168] sm:$0xff]
        %v247 = vld [vmem:[%s188 + $0x170] sm:$0xff]
        %v248 = vld [vmem:[%s188 + $0x178] sm:$0xff]
        %v249 = vld [vmem:[%s188 + $0x180] sm:$0xff]
        %v250 = vld [vmem:[%s188 + $0x188] sm:$0xff]
        %v251 = vld [vmem:[%s188 + $0x190] sm:$0xff]
        %v252 = vld [vmem:[%s188 + $0x198] sm:$0xff]
        %v253 = vld [vmem:[%s188 + $0x1a0] sm:$0xff]
        %v254 = vld [vmem:[%s188 + $0x1a8] sm:$0xff]
        %v255 = vld [vmem:[%s188 + $0x1b0] sm:$0xff]
        %v256 = vld [vmem:[%s188 + $0x1b8] sm:$0xff]
        %v257 = vld [vmem:[%s188 + $0x1c0] sm:$0xff]
        %v258 = vld [vmem:[%s188 + $0x1c8] sm:$0xff]
        %v259 = vld [vmem:[%s188 + $0x1d0] sm:$0xff]
        %v260 = vld [vmem:[%s188 + $0x1d8] sm:$0xff]
        %v261 = vld [vmem:[%s188 + $0x1e0] sm:$0xff]
        %v262 = vld [vmem:[%s188 + $0x1e8] sm:$0xff]
        %v263 = vld [vmem:[%s188 + $0x1f0] sm:$0xff]
        %v264 = vld [vmem:[%s188 + $0x1f8] sm:$0xff]
        %v265 = vld [vmem:[%s1] sm:$0xf]
        %v266 = vld [vmem:[%s1 + $0x4] sm:$0xf]
        %v267 = vld [vmem:[%s1 + $0x8] sm:$0xf]
        %v268 = vld [vmem:[%s1 + $0xc] sm:$0xf]
        %v269 = vld [vmem:[%s1 + $0x10] sm:$0xf]
        %v270 = vld [vmem:[%s1 + $0x14] sm:$0xf]
        %v271 = vld [vmem:[%s1 + $0x18] sm:$0xf]
        %v272 = vld [vmem:[%s1 + $0x1c] sm:$0xf]
        %v273 = vld [vmem:[%s1 + $0x20] sm:$0xf]
        %v274 = vld [vmem:[%s1 + $0x24] sm:$0xf]
        %v275 = vld [vmem:[%s1 + $0x28] sm:$0xf]
        %v276 = vld [vmem:[%s1 + $0x2c] sm:$0xf]
        %v277 = vld [vmem:[%s1 + $0x30] sm:$0xf]
        %v278 = vld [vmem:[%s1 + $0x34] sm:$0xf]
        %v279 = vld [vmem:[%s1 + $0x38] sm:$0xf]
        %v280 = vld [vmem:[%s1 + $0x3c] sm:$0xf]
        %v281 = vld [vmem:[%s1 + $0x40] sm:$0xf]
        %v282 = vld [vmem:[%s1 + $0x44] sm:$0xf]
        %v283 = vld [vmem:[%s1 + $0x48] sm:$0xf]
        %v284 = vld [vmem:[%s1 + $0x4c] sm:$0xf]
        %v285 = vld [vmem:[%s1 + $0x50] sm:$0xf]
        %v286 = vld [vmem:[%s1 + $0x54] sm:$0xf]
        %v287 = vld [vmem:[%s1 + $0x58] sm:$0xf]
        %v288 = vld [vmem:[%s1 + $0x5c] sm:$0xf]
        %v289 = vld [vmem:[%s1 + $0x60] sm:$0xf]
        %v290 = vld [vmem:[%s1 + $0x64] sm:$0xf]
        %v291 = vld [vmem:[%s1 + $0x68] sm:$0xf]
        %v292 = vld [vmem:[%s1 + $0x6c] sm:$0xf]
        %v293 = vld [vmem:[%s1 + $0x70] sm:$0xf]
        %v294 = vld [vmem:[%s1 + $0x74] sm:$0xf]
        %v295 = vld [vmem:[%s1 + $0x78] sm:$0xf]
        %v296 = vld [vmem:[%s1 + $0x7c] sm:$0xf]
        %v297 = vld [vmem:[%s2] sm:$0x1]
        %v299 = vlaneseq
        %v300 = vshrl.u32 %v299, 7
        %v301 = vsub.s32 0, %v300
        %v302 = vrot.slane %v297, %v301
        %v368 = vunpack.c.l.b16 %v201
        %v369 = vunpack.c.h.b16 %v201
        %v370 = vunpack.c.l.b16 %v202
        %v371 = vunpack.c.h.b16 %v202
        %v372 = vunpack.c.l.b16 %v203
        %v373 = vunpack.c.h.b16 %v203
        %v374 = vunpack.c.l.b16 %v204
        %v375 = vunpack.c.h.b16 %v204
        %v376 = vunpack.c.l.b16 %v205
        %v377 = vunpack.c.h.b16 %v205
        %v378 = vunpack.c.l.b16 %v206
        %v379 = vunpack.c.h.b16 %v206
        %v380 = vunpack.c.l.b16 %v207
        %v381 = vunpack.c.h.b16 %v207
        %v382 = vunpack.c.l.b16 %v208
        %v383 = vunpack.c.h.b16 %v208
        %v384 = vunpack.c.l.b16 %v209
        %v385 = vunpack.c.h.b16 %v209
        %v386 = vunpack.c.l.b16 %v210
        %v387 = vunpack.c.h.b16 %v210
        %v388 = vunpack.c.l.b16 %v211
        %v389 = vunpack.c.h.b16 %v211
        %v390 = vunpack.c.l.b16 %v212
        %v391 = vunpack.c.h.b16 %v212
        %v392 = vunpack.c.l.b16 %v213
        %v393 = vunpack.c.h.b16 %v213
        %v394 = vunpack.c.l.b16 %v214
        %v395 = vunpack.c.h.b16 %v214
        %v396 = vunpack.c.l.b16 %v215
        %v397 = vunpack.c.h.b16 %v215
        %v398 = vunpack.c.l.b16 %v216
        %v399 = vunpack.c.h.b16 %v216
        %v400 = vunpack.c.l.b16 %v217
        %v401 = vunpack.c.h.b16 %v217
        %v402 = vunpack.c.l.b16 %v218
        %v403 = vunpack.c.h.b16 %v218
        %v404 = vunpack.c.l.b16 %v219
        %v405 = vunpack.c.h.b16 %v219
        %v406 = vunpack.c.l.b16 %v220
        %v407 = vunpack.c.h.b16 %v220
        %v408 = vunpack.c.l.b16 %v221
        %v409 = vunpack.c.h.b16 %v221
        %v410 = vunpack.c.l.b16 %v222
        %v411 = vunpack.c.h.b16 %v222
        %v412 = vunpack.c.l.b16 %v223
        %v413 = vunpack.c.h.b16 %v223
        %v414 = vunpack.c.l.b16 %v224
        %v415 = vunpack.c.h.b16 %v224
        %v416 = vunpack.c.l.b16 %v225
        %v417 = vunpack.c.h.b16 %v225
        %v418 = vunpack.c.l.b16 %v226
        %v419 = vunpack.c.h.b16 %v226
        %v420 = vunpack.c.l.b16 %v227
        %v421 = vunpack.c.h.b16 %v227
        %v422 = vunpack.c.l.b16 %v228
        %v423 = vunpack.c.h.b16 %v228
        %v424 = vunpack.c.l.b16 %v229
        %v425 = vunpack.c.h.b16 %v229
        %v426 = vunpack.c.l.b16 %v230
        %v427 = vunpack.c.h.b16 %v230
        %v428 = vunpack.c.l.b16 %v231
        %v429 = vunpack.c.h.b16 %v231
        %v430 = vunpack.c.l.b16 %v232
        %v431 = vunpack.c.h.b16 %v232
        %v432 = vunpack.c.l.b16 %v233
        %v433 = vunpack.c.h.b16 %v233
        %v434 = vunpack.c.l.b16 %v234
        %v435 = vunpack.c.h.b16 %v234
        %v436 = vunpack.c.l.b16 %v235
        %v437 = vunpack.c.h.b16 %v235
        %v438 = vunpack.c.l.b16 %v236
        %v439 = vunpack.c.h.b16 %v236
        %v440 = vunpack.c.l.b16 %v237
        %v441 = vunpack.c.h.b16 %v237
        %v442 = vunpack.c.l.b16 %v238
        %v443 = vunpack.c.h.b16 %v238
        %v444 = vunpack.c.l.b16 %v239
        %v445 = vunpack.c.h.b16 %v239
        %v446 = vunpack.c.l.b16 %v240
        %v447 = vunpack.c.h.b16 %v240
        %v448 = vunpack.c.l.b16 %v241
        %v449 = vunpack.c.h.b16 %v241
        %v450 = vunpack.c.l.b16 %v242
        %v451 = vunpack.c.h.b16 %v242
        %v452 = vunpack.c.l.b16 %v243
        %v453 = vunpack.c.h.b16 %v243
        %v454 = vunpack.c.l.b16 %v244
        %v455 = vunpack.c.h.b16 %v244
        %v456 = vunpack.c.l.b16 %v245
        %v457 = vunpack.c.h.b16 %v245
        %v458 = vunpack.c.l.b16 %v246
        %v459 = vunpack.c.h.b16 %v246
        %v460 = vunpack.c.l.b16 %v247
        %v461 = vunpack.c.h.b16 %v247
        %v462 = vunpack.c.l.b16 %v248
        %v463 = vunpack.c.h.b16 %v248
        %v464 = vunpack.c.l.b16 %v249
        %v465 = vunpack.c.h.b16 %v249
        %v466 = vunpack.c.l.b16 %v250
        %v467 = vunpack.c.h.b16 %v250
        %v468 = vunpack.c.l.b16 %v251
        %v469 = vunpack.c.h.b16 %v251
        %v470 = vunpack.c.l.b16 %v252
        %v471 = vunpack.c.h.b16 %v252
        %v472 = vunpack.c.l.b16 %v253
        %v473 = vunpack.c.h.b16 %v253
        %v474 = vunpack.c.l.b16 %v254
        %v475 = vunpack.c.h.b16 %v254
        %v476 = vunpack.c.l.b16 %v255
        %v477 = vunpack.c.h.b16 %v255
        %v478 = vunpack.c.l.b16 %v256
        %v479 = vunpack.c.h.b16 %v256
        %v480 = vunpack.c.l.b16 %v257
        %v481 = vunpack.c.h.b16 %v257
        %v482 = vunpack.c.l.b16 %v258
        %v483 = vunpack.c.h.b16 %v258
        %v484 = vunpack.c.l.b16 %v259
        %v485 = vunpack.c.h.b16 %v259
        %v486 = vunpack.c.l.b16 %v260
        %v487 = vunpack.c.h.b16 %v260
        %v488 = vunpack.c.l.b16 %v261
        %v489 = vunpack.c.h.b16 %v261
        %v490 = vunpack.c.l.b16 %v262
        %v491 = vunpack.c.h.b16 %v262
        %v492 = vunpack.c.l.b16 %v263
        %v493 = vunpack.c.h.b16 %v263
        %v494 = vunpack.c.l.b16 %v264
        %v495 = vunpack.c.h.b16 %v264
        %v496 = vpack.c.b16 %v370, %v368
        %v497 = vpack.c.b16 %v371, %v369
        %v498 = vpack.c.b16 %v374, %v372
        %v499 = vpack.c.b16 %v375, %v373
        %v500 = vpack.c.b16 %v378, %v376
        %v501 = vpack.c.b16 %v379, %v377
        %v502 = vpack.c.b16 %v382, %v380
        %v503 = vpack.c.b16 %v383, %v381
        %v504 = vpack.c.b16 %v386, %v384
        %v505 = vpack.c.b16 %v387, %v385
        %v506 = vpack.c.b16 %v390, %v388
        %v507 = vpack.c.b16 %v391, %v389
        %v508 = vpack.c.b16 %v394, %v392
        %v509 = vpack.c.b16 %v395, %v393
        %v510 = vpack.c.b16 %v398, %v396
        %v511 = vpack.c.b16 %v399, %v397
        %v512 = vpack.c.b16 %v402, %v400
        %v513 = vpack.c.b16 %v403, %v401
        %v514 = vpack.c.b16 %v406, %v404
        %v515 = vpack.c.b16 %v407, %v405
        %v516 = vpack.c.b16 %v410, %v408
        %v517 = vpack.c.b16 %v411, %v409
        %v518 = vpack.c.b16 %v414, %v412
        %v519 = vpack.c.b16 %v415, %v413
        %v520 = vpack.c.b16 %v418, %v416
        %v521 = vpack.c.b16 %v419, %v417
        %v522 = vpack.c.b16 %v422, %v420
        %v523 = vpack.c.b16 %v423, %v421
        %v524 = vpack.c.b16 %v426, %v424
        %v525 = vpack.c.b16 %v427, %v425
        %v526 = vpack.c.b16 %v430, %v428
        %v527 = vpack.c.b16 %v431, %v429
        %v528 = vpack.c.b16 %v434, %v432
        %v529 = vpack.c.b16 %v435, %v433
        %v530 = vpack.c.b16 %v438, %v436
        %v531 = vpack.c.b16 %v439, %v437
        %v532 = vpack.c.b16 %v442, %v440
        %v533 = vpack.c.b16 %v443, %v441
        %v534 = vpack.c.b16 %v446, %v444
        %v535 = vpack.c.b16 %v447, %v445
        %v536 = vpack.c.b16 %v450, %v448
        %v537 = vpack.c.b16 %v451, %v449
        %v538 = vpack.c.b16 %v454, %v452
        %v539 = vpack.c.b16 %v455, %v453
        %v540 = vpack.c.b16 %v458, %v456
        %v541 = vpack.c.b16 %v459, %v457
        %v542 = vpack.c.b16 %v462, %v460
        %v543 = vpack.c.b16 %v463, %v461
        %v544 = vpack.c.b16 %v466, %v464
        %v545 = vpack.c.b16 %v467, %v465
        %v546 = vpack.c.b16 %v470, %v468
        %v547 = vpack.c.b16 %v471, %v469
        %v548 = vpack.c.b16 %v474, %v472
        %v549 = vpack.c.b16 %v475, %v473
        %v550 = vpack.c.b16 %v478, %v476
        %v551 = vpack.c.b16 %v479, %v477
        %v552 = vpack.c.b16 %v482, %v480
        %v553 = vpack.c.b16 %v483, %v481
        %v554 = vpack.c.b16 %v486, %v484
        %v555 = vpack.c.b16 %v487, %v485
        %v556 = vpack.c.b16 %v490, %v488
        %v557 = vpack.c.b16 %v491, %v489
        %v558 = vpack.c.b16 %v494, %v492
        %v559 = vpack.c.b16 %v495, %v493
        %v656 = vunpack.c.l.b16 %v265
        %v657 = vunpack.c.l.b16 %v266
        %v658 = vunpack.c.l.b16 %v267
        %v659 = vunpack.c.l.b16 %v268
        %v660 = vunpack.c.l.b16 %v269
        %v661 = vunpack.c.l.b16 %v270
        %v662 = vunpack.c.l.b16 %v271
        %v663 = vunpack.c.l.b16 %v272
        %v664 = vunpack.c.l.b16 %v273
        %v665 = vunpack.c.l.b16 %v274
        %v666 = vunpack.c.l.b16 %v275
        %v667 = vunpack.c.l.b16 %v276
        %v668 = vunpack.c.l.b16 %v277
        %v669 = vunpack.c.l.b16 %v278
        %v670 = vunpack.c.l.b16 %v279
        %v671 = vunpack.c.l.b16 %v280
        %v672 = vunpack.c.l.b16 %v281
        %v673 = vunpack.c.l.b16 %v282
        %v674 = vunpack.c.l.b16 %v283
        %v675 = vunpack.c.l.b16 %v284
        %v676 = vunpack.c.l.b16 %v285
        %v677 = vunpack.c.l.b16 %v286
        %v678 = vunpack.c.l.b16 %v287
        %v679 = vunpack.c.l.b16 %v288
        %v680 = vunpack.c.l.b16 %v289
        %v681 = vunpack.c.l.b16 %v290
        %v682 = vunpack.c.l.b16 %v291
        %v683 = vunpack.c.l.b16 %v292
        %v684 = vunpack.c.l.b16 %v293
        %v685 = vunpack.c.l.b16 %v294
        %v686 = vunpack.c.l.b16 %v295
        %v687 = vunpack.c.l.b16 %v296
        %v688 = vpack.c.b16 %v657, %v656
        %v689 = vpack.c.b16 %v659, %v658
        %v690 = vpack.c.b16 %v661, %v660
        %v691 = vpack.c.b16 %v663, %v662
        %v692 = vpack.c.b16 %v665, %v664
        %v693 = vpack.c.b16 %v667, %v666
        %v694 = vpack.c.b16 %v669, %v668
        %v695 = vpack.c.b16 %v671, %v670
        %v696 = vpack.c.b16 %v673, %v672
        %v697 = vpack.c.b16 %v675, %v674
        %v698 = vpack.c.b16 %v677, %v676
        %v699 = vpack.c.b16 %v679, %v678
        %v700 = vpack.c.b16 %v681, %v680
        %v701 = vpack.c.b16 %v683, %v682
        %v702 = vpack.c.b16 %v685, %v684
        %v703 = vpack.c.b16 %v687, %v686
        %720 = vmatprep.subr.bf16.mxu0 0
        %721 = vmatpush1.bf16.msra.mxu0 %v688
        %722 = vmatprep.subr.bf16.mxu0 0
        %723 = vmatpush1.bf16.msra.mxu0 %v689
        %724 = vmatprep.subr.bf16.mxu0 0
        %725 = vmatpush1.bf16.msra.mxu0 %v690
        %726 = vmatprep.subr.bf16.mxu0 0
        %727 = vmatpush1.bf16.msra.mxu0 %v691
        %728 = vmatprep.subr.bf16.mxu0 0
        %729 = vmatpush1.bf16.msra.mxu0 %v692
        %730 = vmatprep.subr.bf16.mxu0 0
        %731 = vmatpush1.bf16.msra.mxu0 %v693
        %732 = vmatprep.subr.bf16.mxu0 0
        %733 = vmatpush1.bf16.msra.mxu0 %v694
        %734 = vmatprep.subr.bf16.mxu0 0
        %735 = vmatpush1.bf16.msra.mxu0 %v695
        %736 = vmatprep.subr.bf16.mxu0 0
        %737 = vmatpush1.bf16.msra.mxu0 %v696
        %738 = vmatprep.subr.bf16.mxu0 0
        %739 = vmatpush1.bf16.msra.mxu0 %v697
        %740 = vmatprep.subr.bf16.mxu0 0
        %741 = vmatpush1.bf16.msra.mxu0 %v698
        %742 = vmatprep.subr.bf16.mxu0 0
        %743 = vmatpush1.bf16.msra.mxu0 %v699
        %744 = vmatprep.subr.bf16.mxu0 0
        %745 = vmatpush1.bf16.msra.mxu0 %v700
        %746 = vmatprep.subr.bf16.mxu0 0
        %747 = vmatpush1.bf16.msra.mxu0 %v701
        %748 = vmatprep.subr.bf16.mxu0 0
        %749 = vmatpush1.bf16.msra.mxu0 %v702
        %750 = vmatprep.subr.bf16.mxu0 0
        %751 = vmatpush1.bf16.msra.mxu0 %v703
        %752 = vmatprep.mubr.bf16.mxu0 %v497
        %753 = vmatmul.mubr.bf16.gmra.mrb[0].mxu0 %v496
        %v754 = vpop.f32.mrb[0].mxu0
        %v755 = vadd.f32 %v302, %v754
        %v756 = vpop.f32.mrb[0].mxu0
        %v757 = vpop.f32.mrb[0].mxu0
        %v758 = vadd.f32 %v302, %v757
        %v759 = vpop.f32.mrb[0].mxu0
        %760 = vmatprep.mubr.bf16.mxu0 %v499
        %761 = vmatmul.mubr.bf16.gmra.mrb[0].mxu0 %v498
        %v762 = vpop.f32.mrb[0].mxu0
        %v763 = vadd.f32 %v302, %v762
        %v764 = vpop.f32.mrb[0].mxu0
        %v765 = vpop.f32.mrb[0].mxu0
        %v766 = vadd.f32 %v302, %v765
        %v767 = vpop.f32.mrb[0].mxu0
        %768 = vmatprep.mubr.bf16.mxu0 %v501
        %769 = vmatmul.mubr.bf16.gmra.mrb[0].mxu0 %v500
        %v770 = vpop.f32.mrb[0].mxu0
        %v771 = vadd.f32 %v302, %v770
        %v772 = vpop.f32.mrb[0].mxu0
        %v773 = vpop.f32.mrb[0].mxu0
        %v774 = vadd.f32 %v302, %v773
        %v775 = vpop.f32.mrb[0].mxu0
        %776 = vmatprep.mubr.bf16.mxu0 %v503
        %777 = vmatmul.mubr.bf16.gmra.mrb[0].mxu0 %v502
        %v778 = vpop.f32.mrb[0].mxu0
        %v779 = vadd.f32 %v302, %v778
        %v780 = vpop.f32.mrb[0].mxu0
        %v781 = vpop.f32.mrb[0].mxu0
        %v782 = vadd.f32 %v302, %v781
        %v783 = vpop.f32.mrb[0].mxu0
        %784 = vmatprep.mubr.bf16.mxu0 %v505
        %785 = vmatmul.mubr.bf16.gmra.mrb[0].mxu0 %v504
        %v786 = vpop.f32.mrb[0].mxu0
        %v787 = vadd.f32 %v302, %v786
        %v788 = vpop.f32.mrb[0].mxu0
        %v789 = vpop.f32.mrb[0].mxu0
        %v790 = vadd.f32 %v302, %v789
        %v791 = vpop.f32.mrb[0].mxu0
        %792 = vmatprep.mubr.bf16.mxu0 %v507
        %793 = vmatmul.mubr.bf16.gmra.mrb[0].mxu0 %v506
        %v794 = vpop.f32.mrb[0].mxu0
        %v795 = vadd.f32 %v302, %v794
        %v796 = vpop.f32.mrb[0].mxu0
        %v797 = vpop.f32.mrb[0].mxu0
        %v798 = vadd.f32 %v302, %v797
        %v799 = vpop.f32.mrb[0].mxu0
        %800 = vmatprep.mubr.bf16.mxu0 %v509
        %801 = vmatmul.mubr.bf16.gmra.mrb[0].mxu0 %v508
        %v802 = vpop.f32.mrb[0].mxu0
        %v803 = vadd.f32 %v302, %v802
        %v804 = vpop.f32.mrb[0].mxu0
        %v805 = vpop.f32.mrb[0].mxu0
        %v806 = vadd.f32 %v302, %v805
        %v807 = vpop.f32.mrb[0].mxu0
        %808 = vmatprep.mubr.bf16.mxu0 %v511
        %809 = vmatmul.mubr.bf16.gmra.mrb[0].mxu0 %v510
        %v810 = vpop.f32.mrb[0].mxu0
        %v811 = vadd.f32 %v302, %v810
        %v812 = vpop.f32.mrb[0].mxu0
        %v813 = vpop.f32.mrb[0].mxu0
        %v814 = vadd.f32 %v302, %v813
        %v815 = vpop.f32.mrb[0].mxu0
        %816 = vmatprep.mubr.bf16.mxu0 %v513
        %817 = vmatmul.mubr.bf16.gmra.mrb[0].mxu0 %v512
        %v818 = vpop.f32.mrb[0].mxu0
        %v819 = vadd.f32 %v302, %v818
        %v820 = vpop.f32.mrb[0].mxu0
        %v821 = vpop.f32.mrb[0].mxu0
        %v822 = vadd.f32 %v302, %v821
        %v823 = vpop.f32.mrb[0].mxu0
        %824 = vmatprep.mubr.bf16.mxu0 %v515
        %825 = vmatmul.mubr.bf16.gmra.mrb[0].mxu0 %v514
        %v826 = vpop.f32.mrb[0].mxu0
        %v827 = vadd.f32 %v302, %v826
        %v828 = vpop.f32.mrb[0].mxu0
        %v829 = vpop.f32.mrb[0].mxu0
        %v830 = vadd.f32 %v302, %v829
        %v831 = vpop.f32.mrb[0].mxu0
        %832 = vmatprep.mubr.bf16.mxu0 %v517
        %833 = vmatmul.mubr.bf16.gmra.mrb[0].mxu0 %v516
        %v834 = vpop.f32.mrb[0].mxu0
        %v835 = vadd.f32 %v302, %v834
        %v836 = vpop.f32.mrb[0].mxu0
        %v837 = vpop.f32.mrb[0].mxu0
        %v838 = vadd.f32 %v302, %v837
        %v839 = vpop.f32.mrb[0].mxu0
        %840 = vmatprep.mubr.bf16.mxu0 %v519
        %841 = vmatmul.mubr.bf16.gmra.mrb[0].mxu0 %v518
        %v842 = vpop.f32.mrb[0].mxu0
        %v843 = vadd.f32 %v302, %v842
        %v844 = vpop.f32.mrb[0].mxu0
        %v845 = vpop.f32.mrb[0].mxu0
        %v846 = vadd.f32 %v302, %v845
        %v847 = vpop.f32.mrb[0].mxu0
        %848 = vmatprep.mubr.bf16.mxu0 %v521
        %849 = vmatmul.mubr.bf16.gmra.mrb[0].mxu0 %v520
        %v850 = vpop.f32.mrb[0].mxu0
        %v851 = vadd.f32 %v302, %v850
        %v852 = vpop.f32.mrb[0].mxu0
        %v853 = vpop.f32.mrb[0].mxu0
        %v854 = vadd.f32 %v302, %v853
        %v855 = vpop.f32.mrb[0].mxu0
        %856 = vmatprep.mubr.bf16.mxu0 %v523
        %857 = vmatmul.mubr.bf16.gmra.mrb[0].mxu0 %v522
        %v858 = vpop.f32.mrb[0].mxu0
        %v859 = vadd.f32 %v302, %v858
        %v860 = vpop.f32.mrb[0].mxu0
        %v861 = vpop.f32.mrb[0].mxu0
        %v862 = vadd.f32 %v302, %v861
        %v863 = vpop.f32.mrb[0].mxu0
        %864 = vmatprep.mubr.bf16.mxu0 %v525
        %865 = vmatmul.mubr.bf16.gmra.mrb[0].mxu0 %v524
        %v866 = vpop.f32.mrb[0].mxu0
        %v867 = vadd.f32 %v302, %v866
        %v868 = vpop.f32.mrb[0].mxu0
        %v869 = vpop.f32.mrb[0].mxu0
        %v870 = vadd.f32 %v302, %v869
        %v871 = vpop.f32.mrb[0].mxu0
        %872 = vmatprep.mubr.bf16.mxu0 %v527
        %873 = vmatmul.mubr.bf16.gmra.mrb[0].mxu0 %v526
        %v874 = vpop.f32.mrb[0].mxu0
        %v875 = vadd.f32 %v302, %v874
        %v876 = vpop.f32.mrb[0].mxu0
        %v877 = vpop.f32.mrb[0].mxu0
        %v878 = vadd.f32 %v302, %v877
        %v879 = vpop.f32.mrb[0].mxu0
        %880 = vmatprep.mubr.bf16.mxu0 %v529
        %881 = vmatmul.mubr.bf16.gmra.mrb[0].mxu0 %v528
        %v882 = vpop.f32.mrb[0].mxu0
        %v883 = vadd.f32 %v302, %v882
        %v884 = vpop.f32.mrb[0].mxu0
        %v885 = vpop.f32.mrb[0].mxu0
        %v886 = vadd.f32 %v302, %v885
        %v887 = vpop.f32.mrb[0].mxu0
        %888 = vmatprep.mubr.bf16.mxu0 %v531
        %889 = vmatmul.mubr.bf16.gmra.mrb[0].mxu0 %v530
        %v890 = vpop.f32.mrb[0].mxu0
        %v891 = vadd.f32 %v302, %v890
        %v892 = vpop.f32.mrb[0].mxu0
        %v893 = vpop.f32.mrb[0].mxu0
        %v894 = vadd.f32 %v302, %v893
        %v895 = vpop.f32.mrb[0].mxu0
        %896 = vmatprep.mubr.bf16.mxu0 %v533
        %897 = vmatmul.mubr.bf16.gmra.mrb[0].mxu0 %v532
        %v898 = vpop.f32.mrb[0].mxu0
        %v899 = vadd.f32 %v302, %v898
        %v900 = vpop.f32.mrb[0].mxu0
        %v901 = vpop.f32.mrb[0].mxu0
        %v902 = vadd.f32 %v302, %v901
        %v903 = vpop.f32.mrb[0].mxu0
        %904 = vmatprep.mubr.bf16.mxu0 %v535
        %905 = vmatmul.mubr.bf16.gmra.mrb[0].mxu0 %v534
        %v906 = vpop.f32.mrb[0].mxu0
        %v907 = vadd.f32 %v302, %v906
        %v908 = vpop.f32.mrb[0].mxu0
        %v909 = vpop.f32.mrb[0].mxu0
        %v910 = vadd.f32 %v302, %v909
        %v911 = vpop.f32.mrb[0].mxu0
        %912 = vmatprep.mubr.bf16.mxu0 %v537
        %913 = vmatmul.mubr.bf16.gmra.mrb[0].mxu0 %v536
        %v914 = vpop.f32.mrb[0].mxu0
        %v915 = vadd.f32 %v302, %v914
        %v916 = vpop.f32.mrb[0].mxu0
        %v917 = vpop.f32.mrb[0].mxu0
        %v918 = vadd.f32 %v302, %v917
        %v919 = vpop.f32.mrb[0].mxu0
        %920 = vmatprep.mubr.bf16.mxu0 %v539
        %921 = vmatmul.mubr.bf16.gmra.mrb[0].mxu0 %v538
        %v922 = vpop.f32.mrb[0].mxu0
        %v923 = vadd.f32 %v302, %v922
        %v924 = vpop.f32.mrb[0].mxu0
        %v925 = vpop.f32.mrb[0].mxu0
        %v926 = vadd.f32 %v302, %v925
        %v927 = vpop.f32.mrb[0].mxu0
        %928 = vmatprep.mubr.bf16.mxu0 %v541
        %929 = vmatmul.mubr.bf16.gmra.mrb[0].mxu0 %v540
        %v930 = vpop.f32.mrb[0].mxu0
        %v931 = vadd.f32 %v302, %v930
        %v932 = vpop.f32.mrb[0].mxu0
        %v933 = vpop.f32.mrb[0].mxu0
        %v934 = vadd.f32 %v302, %v933
        %v935 = vpop.f32.mrb[0].mxu0
        %936 = vmatprep.mubr.bf16.mxu0 %v543
        %937 = vmatmul.mubr.bf16.gmra.mrb[0].mxu0 %v542
        %v938 = vpop.f32.mrb[0].mxu0
        %v939 = vadd.f32 %v302, %v938
        %v940 = vpop.f32.mrb[0].mxu0
        %v941 = vpop.f32.mrb[0].mxu0
        %v942 = vadd.f32 %v302, %v941
        %v943 = vpop.f32.mrb[0].mxu0
        %944 = vmatprep.mubr.bf16.mxu0 %v545
        %945 = vmatmul.mubr.bf16.gmra.mrb[0].mxu0 %v544
        %v946 = vpop.f32.mrb[0].mxu0
        %v947 = vadd.f32 %v302, %v946
        %v948 = vpop.f32.mrb[0].mxu0
        %v949 = vpop.f32.mrb[0].mxu0
        %v950 = vadd.f32 %v302, %v949
        %v951 = vpop.f32.mrb[0].mxu0
        %952 = vmatprep.mubr.bf16.mxu0 %v547
        %953 = vmatmul.mubr.bf16.gmra.mrb[0].mxu0 %v546
        %v954 = vpop.f32.mrb[0].mxu0
        %v955 = vadd.f32 %v302, %v954
        %v956 = vpop.f32.mrb[0].mxu0
        %v957 = vpop.f32.mrb[0].mxu0
        %v958 = vadd.f32 %v302, %v957
        %v959 = vpop.f32.mrb[0].mxu0
        %960 = vmatprep.mubr.bf16.mxu0 %v549
        %961 = vmatmul.mubr.bf16.gmra.mrb[0].mxu0 %v548
        %v962 = vpop.f32.mrb[0].mxu0
        %v963 = vadd.f32 %v302, %v962
        %v964 = vpop.f32.mrb[0].mxu0
        %v965 = vpop.f32.mrb[0].mxu0
        %v966 = vadd.f32 %v302, %v965
        %v967 = vpop.f32.mrb[0].mxu0
        %968 = vmatprep.mubr.bf16.mxu0 %v551
        %969 = vmatmul.mubr.bf16.gmra.mrb[0].mxu0 %v550
        %v970 = vpop.f32.mrb[0].mxu0
        %v971 = vadd.f32 %v302, %v970
        %v972 = vpop.f32.mrb[0].mxu0
        %v973 = vpop.f32.mrb[0].mxu0
        %v974 = vadd.f32 %v302, %v973
        %v975 = vpop.f32.mrb[0].mxu0
        %976 = vmatprep.mubr.bf16.mxu0 %v553
        %977 = vmatmul.mubr.bf16.gmra.mrb[0].mxu0 %v552
        %v978 = vpop.f32.mrb[0].mxu0
        %v979 = vadd.f32 %v302, %v978
        %v980 = vpop.f32.mrb[0].mxu0
        %v981 = vpop.f32.mrb[0].mxu0
        %v982 = vadd.f32 %v302, %v981
        %v983 = vpop.f32.mrb[0].mxu0
        %984 = vmatprep.mubr.bf16.mxu0 %v555
        %985 = vmatmul.mubr.bf16.gmra.mrb[0].mxu0 %v554
        %v986 = vpop.f32.mrb[0].mxu0
        %v987 = vadd.f32 %v302, %v986
        %v988 = vpop.f32.mrb[0].mxu0
        %v989 = vpop.f32.mrb[0].mxu0
        %v990 = vadd.f32 %v302, %v989
        %v991 = vpop.f32.mrb[0].mxu0
        %992 = vmatprep.mubr.bf16.mxu0 %v557
        %993 = vmatmul.mubr.bf16.gmra.mrb[0].mxu0 %v556
        %v994 = vpop.f32.mrb[0].mxu0
        %v995 = vadd.f32 %v302, %v994
        %v996 = vpop.f32.mrb[0].mxu0
        %v997 = vpop.f32.mrb[0].mxu0
        %v998 = vadd.f32 %v302, %v997
        %v999 = vpop.f32.mrb[0].mxu0
        %1000 = vmatprep.mubr.bf16.mxu0 %v559
        %1001 = vmatmul.mubr.bf16.gmra.mrb[0].mxu0 %v558
        %v1002 = vpop.f32.mrb[0].mxu0
        %v1003 = vadd.f32 %v302, %v1002
        %v1004 = vpop.f32.mrb[0].mxu0
        %v1005 = vpop.f32.mrb[0].mxu0
        %v1006 = vadd.f32 %v302, %v1005
        %v1007 = vpop.f32.mrb[0].mxu0
        %1008 = vdwg.mxu0
        %v1009 = vmax.f32 %v755, 0.0
        %v1010 = vmax.f32 %v758, 0.0
        %v1011 = vmax.f32 %v763, 0.0
        %v1012 = vmax.f32 %v766, 0.0
        %v1013 = vmax.f32 %v771, 0.0
        %v1014 = vmax.f32 %v774, 0.0
        %v1015 = vmax.f32 %v779, 0.0
        %v1016 = vmax.f32 %v782, 0.0
        %v1017 = vmax.f32 %v787, 0.0
        %v1018 = vmax.f32 %v790, 0.0
        %v1019 = vmax.f32 %v795, 0.0
        %v1020 = vmax.f32 %v798, 0.0
        %v1021 = vmax.f32 %v803, 0.0
        %v1022 = vmax.f32 %v806, 0.0
        %v1023 = vmax.f32 %v811, 0.0
        %v1024 = vmax.f32 %v814, 0.0
        %v1025 = vmax.f32 %v819, 0.0
        %v1026 = vmax.f32 %v822, 0.0
        %v1027 = vmax.f32 %v827, 0.0
        %v1028 = vmax.f32 %v830, 0.0
        %v1029 = vmax.f32 %v835, 0.0
        %v1030 = vmax.f32 %v838, 0.0
        %v1031 = vmax.f32 %v843, 0.0
        %v1032 = vmax.f32 %v846, 0.0
        %v1033 = vmax.f32 %v851, 0.0
        %v1034 = vmax.f32 %v854, 0.0
        %v1035 = vmax.f32 %v859, 0.0
        %v1036 = vmax.f32 %v862, 0.0
        %v1037 = vmax.f32 %v867, 0.0
        %v1038 = vmax.f32 %v870, 0.0
        %v1039 = vmax.f32 %v875, 0.0
        %v1040 = vmax.f32 %v878, 0.0
        %v1041 = vmax.f32 %v883, 0.0
        %v1042 = vmax.f32 %v886, 0.0
        %v1043 = vmax.f32 %v891, 0.0
        %v1044 = vmax.f32 %v894, 0.0
        %v1045 = vmax.f32 %v899, 0.0
        %v1046 = vmax.f32 %v902, 0.0
        %v1047 = vmax.f32 %v907, 0.0
        %v1048 = vmax.f32 %v910, 0.0
        %v1049 = vmax.f32 %v915, 0.0
        %v1050 = vmax.f32 %v918, 0.0
        %v1051 = vmax.f32 %v923, 0.0
        %v1052 = vmax.f32 %v926, 0.0
        %v1053 = vmax.f32 %v931, 0.0
        %v1054 = vmax.f32 %v934, 0.0
        %v1055 = vmax.f32 %v939, 0.0
        %v1056 = vmax.f32 %v942, 0.0
        %v1057 = vmax.f32 %v947, 0.0
        %v1058 = vmax.f32 %v950, 0.0
        %v1059 = vmax.f32 %v955, 0.0
        %v1060 = vmax.f32 %v958, 0.0
        %v1061 = vmax.f32 %v963, 0.0
        %v1062 = vmax.f32 %v966, 0.0
        %v1063 = vmax.f32 %v971, 0.0
        %v1064 = vmax.f32 %v974, 0.0
        %v1065 = vmax.f32 %v979, 0.0
        %v1066 = vmax.f32 %v982, 0.0
        %v1067 = vmax.f32 %v987, 0.0
        %v1068 = vmax.f32 %v990, 0.0
        %v1069 = vmax.f32 %v995, 0.0
        %v1070 = vmax.f32 %v998, 0.0
        %v1071 = vmax.f32 %v1003, 0.0
        %v1072 = vmax.f32 %v1006, 0.0
        %v1073 = vpack.c.bf16 %v1010, %v1009
        %v1074 = vpack.c.bf16 %v1012, %v1011
        %v1075 = vpack.c.bf16 %v1014, %v1013
        %v1076 = vpack.c.bf16 %v1016, %v1015
        %v1077 = vpack.c.bf16 %v1018, %v1017
        %v1078 = vpack.c.bf16 %v1020, %v1019
        %v1079 = vpack.c.bf16 %v1022, %v1021
        %v1080 = vpack.c.bf16 %v1024, %v1023
        %v1081 = vpack.c.bf16 %v1026, %v1025
        %v1082 = vpack.c.bf16 %v1028, %v1027
        %v1083 = vpack.c.bf16 %v1030, %v1029
        %v1084 = vpack.c.bf16 %v1032, %v1031
        %v1085 = vpack.c.bf16 %v1034, %v1033
        %v1086 = vpack.c.bf16 %v1036, %v1035
        %v1087 = vpack.c.bf16 %v1038, %v1037
        %v1088 = vpack.c.bf16 %v1040, %v1039
        %v1089 = vpack.c.bf16 %v1042, %v1041
        %v1090 = vpack.c.bf16 %v1044, %v1043
        %v1091 = vpack.c.bf16 %v1046, %v1045
        %v1092 = vpack.c.bf16 %v1048, %v1047
        %v1093 = vpack.c.bf16 %v1050, %v1049
        %v1094 = vpack.c.bf16 %v1052, %v1051
        %v1095 = vpack.c.bf16 %v1054, %v1053
        %v1096 = vpack.c.bf16 %v1056, %v1055
        %v1097 = vpack.c.bf16 %v1058, %v1057
        %v1098 = vpack.c.bf16 %v1060, %v1059
        %v1099 = vpack.c.bf16 %v1062, %v1061
        %v1100 = vpack.c.bf16 %v1064, %v1063
        %v1101 = vpack.c.bf16 %v1066, %v1065
        %v1102 = vpack.c.bf16 %v1068, %v1067
        %v1103 = vpack.c.bf16 %v1070, %v1069
        %v1104 = vpack.c.bf16 %v1072, %v1071
        %v1137 = vunpack.c.l.b16 %v1073
        %v1138 = vunpack.c.h.b16 %v1073
        %v1139 = vunpack.c.l.b16 %v1074
        %v1140 = vunpack.c.h.b16 %v1074
        %v1141 = vunpack.c.l.b16 %v1075
        %v1142 = vunpack.c.h.b16 %v1075
        %v1143 = vunpack.c.l.b16 %v1076
        %v1144 = vunpack.c.h.b16 %v1076
        %v1145 = vunpack.c.l.b16 %v1077
        %v1146 = vunpack.c.h.b16 %v1077
        %v1147 = vunpack.c.l.b16 %v1078
        %v1148 = vunpack.c.h.b16 %v1078
        %v1149 = vunpack.c.l.b16 %v1079
        %v1150 = vunpack.c.h.b16 %v1079
        %v1151 = vunpack.c.l.b16 %v1080
        %v1152 = vunpack.c.h.b16 %v1080
        %v1153 = vunpack.c.l.b16 %v1081
        %v1154 = vunpack.c.h.b16 %v1081
        %v1155 = vunpack.c.l.b16 %v1082
        %v1156 = vunpack.c.h.b16 %v1082
        %v1157 = vunpack.c.l.b16 %v1083
        %v1158 = vunpack.c.h.b16 %v1083
        %v1159 = vunpack.c.l.b16 %v1084
        %v1160 = vunpack.c.h.b16 %v1084
        %v1161 = vunpack.c.l.b16 %v1085
        %v1162 = vunpack.c.h.b16 %v1085
        %v1163 = vunpack.c.l.b16 %v1086
        %v1164 = vunpack.c.h.b16 %v1086
        %v1165 = vunpack.c.l.b16 %v1087
        %v1166 = vunpack.c.h.b16 %v1087
        %v1167 = vunpack.c.l.b16 %v1088
        %v1168 = vunpack.c.h.b16 %v1088
        %v1169 = vunpack.c.l.b16 %v1089
        %v1170 = vunpack.c.h.b16 %v1089
        %v1171 = vunpack.c.l.b16 %v1090
        %v1172 = vunpack.c.h.b16 %v1090
        %v1173 = vunpack.c.l.b16 %v1091
        %v1174 = vunpack.c.h.b16 %v1091
        %v1175 = vunpack.c.l.b16 %v1092
        %v1176 = vunpack.c.h.b16 %v1092
        %v1177 = vunpack.c.l.b16 %v1093
        %v1178 = vunpack.c.h.b16 %v1093
        %v1179 = vunpack.c.l.b16 %v1094
        %v1180 = vunpack.c.h.b16 %v1094
        %v1181 = vunpack.c.l.b16 %v1095
        %v1182 = vunpack.c.h.b16 %v1095
        %v1183 = vunpack.c.l.b16 %v1096
        %v1184 = vunpack.c.h.b16 %v1096
        %v1185 = vunpack.c.l.b16 %v1097
        %v1186 = vunpack.c.h.b16 %v1097
        %v1187 = vunpack.c.l.b16 %v1098
        %v1188 = vunpack.c.h.b16 %v1098
        %v1189 = vunpack.c.l.b16 %v1099
        %v1190 = vunpack.c.h.b16 %v1099
        %v1191 = vunpack.c.l.b16 %v1100
        %v1192 = vunpack.c.h.b16 %v1100
        %v1193 = vunpack.c.l.b16 %v1101
        %v1194 = vunpack.c.h.b16 %v1101
        %v1195 = vunpack.c.l.b16 %v1102
        %v1196 = vunpack.c.h.b16 %v1102
        %v1197 = vunpack.c.l.b16 %v1103
        %v1198 = vunpack.c.h.b16 %v1103
        %v1199 = vunpack.c.l.b16 %v1104
        %v1200 = vunpack.c.h.b16 %v1104
        %v1201 = vpack.c.b16 %v1137, %v1137
        %v1202 = vpack.c.b16 %v1138, %v1138
        %v1203 = vpack.c.b16 %v1139, %v1139
        %v1204 = vpack.c.b16 %v1140, %v1140
        %v1205 = vpack.c.b16 %v1141, %v1141
        %v1206 = vpack.c.b16 %v1142, %v1142
        %v1207 = vpack.c.b16 %v1143, %v1143
        %v1208 = vpack.c.b16 %v1144, %v1144
        %v1209 = vpack.c.b16 %v1145, %v1145
        %v1210 = vpack.c.b16 %v1146, %v1146
        %v1211 = vpack.c.b16 %v1147, %v1147
        %v1212 = vpack.c.b16 %v1148, %v1148
        %v1213 = vpack.c.b16 %v1149, %v1149
        %v1214 = vpack.c.b16 %v1150, %v1150
        %v1215 = vpack.c.b16 %v1151, %v1151
        %v1216 = vpack.c.b16 %v1152, %v1152
        %v1217 = vpack.c.b16 %v1153, %v1153
        %v1218 = vpack.c.b16 %v1154, %v1154
        %v1219 = vpack.c.b16 %v1155, %v1155
        %v1220 = vpack.c.b16 %v1156, %v1156
        %v1221 = vpack.c.b16 %v1157, %v1157
        %v1222 = vpack.c.b16 %v1158, %v1158
        %v1223 = vpack.c.b16 %v1159, %v1159
        %v1224 = vpack.c.b16 %v1160, %v1160
        %v1225 = vpack.c.b16 %v1161, %v1161
        %v1226 = vpack.c.b16 %v1162, %v1162
        %v1227 = vpack.c.b16 %v1163, %v1163
        %v1228 = vpack.c.b16 %v1164, %v1164
        %v1229 = vpack.c.b16 %v1165, %v1165
        %v1230 = vpack.c.b16 %v1166, %v1166
        %v1231 = vpack.c.b16 %v1167, %v1167
        %v1232 = vpack.c.b16 %v1168, %v1168
        %v1233 = vpack.c.b16 %v1169, %v1169
        %v1234 = vpack.c.b16 %v1170, %v1170
        %v1235 = vpack.c.b16 %v1171, %v1171
        %v1236 = vpack.c.b16 %v1172, %v1172
        %v1237 = vpack.c.b16 %v1173, %v1173
        %v1238 = vpack.c.b16 %v1174, %v1174
        %v1239 = vpack.c.b16 %v1175, %v1175
        %v1240 = vpack.c.b16 %v1176, %v1176
        %v1241 = vpack.c.b16 %v1177, %v1177
        %v1242 = vpack.c.b16 %v1178, %v1178
        %v1243 = vpack.c.b16 %v1179, %v1179
        %v1244 = vpack.c.b16 %v1180, %v1180
        %v1245 = vpack.c.b16 %v1181, %v1181
        %v1246 = vpack.c.b16 %v1182, %v1182
        %v1247 = vpack.c.b16 %v1183, %v1183
        %v1248 = vpack.c.b16 %v1184, %v1184
        %v1249 = vpack.c.b16 %v1185, %v1185
        %v1250 = vpack.c.b16 %v1186, %v1186
        %v1251 = vpack.c.b16 %v1187, %v1187
        %v1252 = vpack.c.b16 %v1188, %v1188
        %v1253 = vpack.c.b16 %v1189, %v1189
        %v1254 = vpack.c.b16 %v1190, %v1190
        %v1255 = vpack.c.b16 %v1191, %v1191
        %v1256 = vpack.c.b16 %v1192, %v1192
        %v1257 = vpack.c.b16 %v1193, %v1193
        %v1258 = vpack.c.b16 %v1194, %v1194
        %v1259 = vpack.c.b16 %v1195, %v1195
        %v1260 = vpack.c.b16 %v1196, %v1196
        %v1261 = vpack.c.b16 %v1197, %v1197
        %v1262 = vpack.c.b16 %v1198, %v1198
        %v1263 = vpack.c.b16 %v1199, %v1199
        %v1264 = vpack.c.b16 %v1200, %v1200
        %vm1329 = vcmask 257024
        %1330 = vst.msk [vmem:[%s177] sm:$0xf] %vm1329, %v1201
        %1331 = vst.msk [vmem:[%s177 + $0x4] sm:$0xf] %vm1329, %v1202
        %1332 = vst.msk [vmem:[%s177 + $0x8] sm:$0xf] %vm1329, %v1203
        %1333 = vst.msk [vmem:[%s177 + $0xc] sm:$0xf] %vm1329, %v1204
        %1334 = vst.msk [vmem:[%s177 + $0x10] sm:$0xf] %vm1329, %v1205
        %1335 = vst.msk [vmem:[%s177 + $0x14] sm:$0xf] %vm1329, %v1206
        %1336 = vst.msk [vmem:[%s177 + $0x18] sm:$0xf] %vm1329, %v1207
        %1337 = vst.msk [vmem:[%s177 + $0x1c] sm:$0xf] %vm1329, %v1208
        %1338 = vst.msk [vmem:[%s177 + $0x20] sm:$0xf] %vm1329, %v1209
        %1339 = vst.msk [vmem:[%s177 + $0x24] sm:$0xf] %vm1329, %v1210
        %1340 = vst.msk [vmem:[%s177 + $0x28] sm:$0xf] %vm1329, %v1211
        %1341 = vst.msk [vmem:[%s177 + $0x2c] sm:$0xf] %vm1329, %v1212
        %1342 = vst.msk [vmem:[%s177 + $0x30] sm:$0xf] %vm1329, %v1213
        %1343 = vst.msk [vmem:[%s177 + $0x34] sm:$0xf] %vm1329, %v1214
        %1344 = vst.msk [vmem:[%s177 + $0x38] sm:$0xf] %vm1329, %v1215
        %1345 = vst.msk [vmem:[%s177 + $0x3c] sm:$0xf] %vm1329, %v1216
        %1346 = vst.msk [vmem:[%s177 + $0x40] sm:$0xf] %vm1329, %v1217
        %1347 = vst.msk [vmem:[%s177 + $0x44] sm:$0xf] %vm1329, %v1218
        %1348 = vst.msk [vmem:[%s177 + $0x48] sm:$0xf] %vm1329, %v1219
        %1349 = vst.msk [vmem:[%s177 + $0x4c] sm:$0xf] %vm1329, %v1220
        %1350 = vst.msk [vmem:[%s177 + $0x50] sm:$0xf] %vm1329, %v1221
        %1351 = vst.msk [vmem:[%s177 + $0x54] sm:$0xf] %vm1329, %v1222
        %1352 = vst.msk [vmem:[%s177 + $0x58] sm:$0xf] %vm1329, %v1223
        %1353 = vst.msk [vmem:[%s177 + $0x5c] sm:$0xf] %vm1329, %v1224
        %1354 = vst.msk [vmem:[%s177 + $0x60] sm:$0xf] %vm1329, %v1225
        %1355 = vst.msk [vmem:[%s177 + $0x64] sm:$0xf] %vm1329, %v1226
        %1356 = vst.msk [vmem:[%s177 + $0x68] sm:$0xf] %vm1329, %v1227
        %1357 = vst.msk [vmem:[%s177 + $0x6c] sm:$0xf] %vm1329, %v1228
        %1358 = vst.msk [vmem:[%s177 + $0x70] sm:$0xf] %vm1329, %v1229
        %1359 = vst.msk [vmem:[%s177 + $0x74] sm:$0xf] %vm1329, %v1230
        %1360 = vst.msk [vmem:[%s177 + $0x78] sm:$0xf] %vm1329, %v1231
        %1361 = vst.msk [vmem:[%s177 + $0x7c] sm:$0xf] %vm1329, %v1232
        %1362 = vst.msk [vmem:[%s177 + $0x80] sm:$0xf] %vm1329, %v1233
        %1363 = vst.msk [vmem:[%s177 + $0x84] sm:$0xf] %vm1329, %v1234
        %1364 = vst.msk [vmem:[%s177 + $0x88] sm:$0xf] %vm1329, %v1235
        %1365 = vst.msk [vmem:[%s177 + $0x8c] sm:$0xf] %vm1329, %v1236
        %1366 = vst.msk [vmem:[%s177 + $0x90] sm:$0xf] %vm1329, %v1237
        %1367 = vst.msk [vmem:[%s177 + $0x94] sm:$0xf] %vm1329, %v1238
        %1368 = vst.msk [vmem:[%s177 + $0x98] sm:$0xf] %vm1329, %v1239
        %1369 = vst.msk [vmem:[%s177 + $0x9c] sm:$0xf] %vm1329, %v1240
        %1370 = vst.msk [vmem:[%s177 + $0xa0] sm:$0xf] %vm1329, %v1241
        %1371 = vst.msk [vmem:[%s177 + $0xa4] sm:$0xf] %vm1329, %v1242
        %1372 = vst.msk [vmem:[%s177 + $0xa8] sm:$0xf] %vm1329, %v1243
        %1373 = vst.msk [vmem:[%s177 + $0xac] sm:$0xf] %vm1329, %v1244
        %1374 = vst.msk [vmem:[%s177 + $0xb0] sm:$0xf] %vm1329, %v1245
        %1375 = vst.msk [vmem:[%s177 + $0xb4] sm:$0xf] %vm1329, %v1246
        %1376 = vst.msk [vmem:[%s177 + $0xb8] sm:$0xf] %vm1329, %v1247
        %1377 = vst.msk [vmem:[%s177 + $0xbc] sm:$0xf] %vm1329, %v1248
        %1378 = vst.msk [vmem:[%s177 + $0xc0] sm:$0xf] %vm1329, %v1249
        %1379 = vst.msk [vmem:[%s177 + $0xc4] sm:$0xf] %vm1329, %v1250
        %1380 = vst.msk [vmem:[%s177 + $0xc8] sm:$0xf] %vm1329, %v1251
        %1381 = vst.msk [vmem:[%s177 + $0xcc] sm:$0xf] %vm1329, %v1252
        %1382 = vst.msk [vmem:[%s177 + $0xd0] sm:$0xf] %vm1329, %v1253
        %1383 = vst.msk [vmem:[%s177 + $0xd4] sm:$0xf] %vm1329, %v1254
        %1384 = vst.msk [vmem:[%s177 + $0xd8] sm:$0xf] %vm1329, %v1255
        %1385 = vst.msk [vmem:[%s177 + $0xdc] sm:$0xf] %vm1329, %v1256
        %1386 = vst.msk [vmem:[%s177 + $0xe0] sm:$0xf] %vm1329, %v1257
        %1387 = vst.msk [vmem:[%s177 + $0xe4] sm:$0xf] %vm1329, %v1258
        %1388 = vst.msk [vmem:[%s177 + $0xe8] sm:$0xf] %vm1329, %v1259
        %1389 = vst.msk [vmem:[%s177 + $0xec] sm:$0xf] %vm1329, %v1260
        %1390 = vst.msk [vmem:[%s177 + $0xf0] sm:$0xf] %vm1329, %v1261
        %1391 = vst.msk [vmem:[%s177 + $0xf4] sm:$0xf] %vm1329, %v1262
        %1392 = vst.msk [vmem:[%s177 + $0xf8] sm:$0xf] %vm1329, %v1263
        %1393 = vst.msk [vmem:[%s177 + $0xfc] sm:$0xf] %vm1329, %v1264
        %s1394 = sand.u32 %s90, 1
        %s1395 = sand.u32 %s90, 1
        %s1396 = smul.addr %s1395, 256
        %s1397 = scalar_lea.vmem [#allocation2], %s1396
        // Predicated region
        $region33: #{nature_conv_body_forward.4} parent=31 // pred_check
          %p1398 = pneg %p100
        $region34: #{nature_conv_body_forward.4} parent=31 // pred_check_branch
          %1400 = sbr.rel (%p1398) target = $region36
        $region35: #{nature_conv_body_forward.4} parent=31 // pred_region
          %s1401 = smul.u32 64, %s14
          %s1402 = ssub.s32 100, %s1401
          %p1403 = scmp.lt.s32.totalorder %s1402, 64
          %s1404 = scalar_select %p1403, %s1402, 64
          %s1405 = smul.u32 64, %s1404
          %p1406 = scmp.ne.s32.totalorder 0, %s1405
          %s1407 = smul.addr %s1401, 4
          %s1408 = scalar_lea.vmem %s3, %s1407
          // Predicated region
          $region37: #{nature_conv_body_forward.4} parent=35 // pred_check
            %p1409 = pneg %p1406
          $region38: #{nature_conv_body_forward.4} parent=35 // pred_check_branch
            %1411 = sbr.rel (%p1409) target = $region40
          $region39: #{nature_conv_body_forward.4} parent=35 // pred_region
            // Predicated region
            $region41: #{nature_conv_body_forward.4} parent=39 // pred_check
              _
            $region42: #{nature_conv_body_forward.4} parent=39 // pred_check_branch
              %1413 = sbr.rel target = $region44
            $region43: #{nature_conv_body_forward.4} parent=39 // pred_region
              // Predicated region
              $region63: #{nature_conv_body_forward.4} parent=43 // pred_check
                _
              $region64: #{nature_conv_body_forward.4} parent=43 // pred_check_branch
                %1588 = sbr.rel (0) target = $region66
              $region65: #{nature_conv_body_forward.4} parent=43 // pred_region
                %s1590 = sshrl.u32 %s1404, 6
                // While loop
                $region67: #{nature_conv_body_forward.4} parent=65 // loop_pre_header
                  _
                $region68: #{nature_conv_body_forward.4} parent=65 // loop_header
                  %s1592 = sphi 0, %s1594
                  %p1593 = scmp.ge.s32.totalorder %s1592, %s1590
                  %s1597 = sphi 0, %s1730
                  %s1598 = sphi %s1397, %s1733
                  %s1599 = sphi %s1408, %s1734
                $region69: #{nature_conv_body_forward.4} parent=65 // loop_header_branch
                  %1596 = sbr.rel (%p1593) target = $region73
                $region70: #{nature_conv_body_forward.4} parent=65 // loop_body
                  %v1600 = vld [vmem:[%s1598] sm:$0xf]
                  %1601 = vst [vmem:[%s1599] sm:$0xf] %v1600
                  %v1602 = vld [vmem:[%s1598 + $0x4] sm:$0xf]
                  %1603 = vst [vmem:[%s1599 + $0x4] sm:$0xf] %v1602
                  %v1604 = vld [vmem:[%s1598 + $0x8] sm:$0xf]
                  %1605 = vst [vmem:[%s1599 + $0x8] sm:$0xf] %v1604
                  %v1606 = vld [vmem:[%s1598 + $0xc] sm:$0xf]
                  %1607 = vst [vmem:[%s1599 + $0xc] sm:$0xf] %v1606
                  %v1608 = vld [vmem:[%s1598 + $0x10] sm:$0xf]
                  %1609 = vst [vmem:[%s1599 + $0x10] sm:$0xf] %v1608
                  %v1610 = vld [vmem:[%s1598 + $0x14] sm:$0xf]
                  %1611 = vst [vmem:[%s1599 + $0x14] sm:$0xf] %v1610
                  %v1612 = vld [vmem:[%s1598 + $0x18] sm:$0xf]
                  %1613 = vst [vmem:[%s1599 + $0x18] sm:$0xf] %v1612
                  %v1614 = vld [vmem:[%s1598 + $0x1c] sm:$0xf]
                  %1615 = vst [vmem:[%s1599 + $0x1c] sm:$0xf] %v1614
                  %v1616 = vld [vmem:[%s1598 + $0x20] sm:$0xf]
                  %1617 = vst [vmem:[%s1599 + $0x20] sm:$0xf] %v1616
                  %v1618 = vld [vmem:[%s1598 + $0x24] sm:$0xf]
                  %1619 = vst [vmem:[%s1599 + $0x24] sm:$0xf] %v1618
                  %v1620 = vld [vmem:[%s1598 + $0x28] sm:$0xf]
                  %1621 = vst [vmem:[%s1599 + $0x28] sm:$0xf] %v1620
                  %v1622 = vld [vmem:[%s1598 + $0x2c] sm:$0xf]
                  %1623 = vst [vmem:[%s1599 + $0x2c] sm:$0xf] %v1622
                  %v1624 = vld [vmem:[%s1598 + $0x30] sm:$0xf]
                  %1625 = vst [vmem:[%s1599 + $0x30] sm:$0xf] %v1624
                  %v1626 = vld [vmem:[%s1598 + $0x34] sm:$0xf]
                  %1627 = vst [vmem:[%s1599 + $0x34] sm:$0xf] %v1626
                  %v1628 = vld [vmem:[%s1598 + $0x38] sm:$0xf]
                  %1629 = vst [vmem:[%s1599 + $0x38] sm:$0xf] %v1628
                  %v1630 = vld [vmem:[%s1598 + $0x3c] sm:$0xf]
                  %1631 = vst [vmem:[%s1599 + $0x3c] sm:$0xf] %v1630
                  %v1632 = vld [vmem:[%s1598 + $0x40] sm:$0xf]
                  %1633 = vst [vmem:[%s1599 + $0x40] sm:$0xf] %v1632
                  %v1634 = vld [vmem:[%s1598 + $0x44] sm:$0xf]
                  %1635 = vst [vmem:[%s1599 + $0x44] sm:$0xf] %v1634
                  %v1636 = vld [vmem:[%s1598 + $0x48] sm:$0xf]
                  %1637 = vst [vmem:[%s1599 + $0x48] sm:$0xf] %v1636
                  %v1638 = vld [vmem:[%s1598 + $0x4c] sm:$0xf]
                  %1639 = vst [vmem:[%s1599 + $0x4c] sm:$0xf] %v1638
                  %v1640 = vld [vmem:[%s1598 + $0x50] sm:$0xf]
                  %1641 = vst [vmem:[%s1599 + $0x50] sm:$0xf] %v1640
                  %v1642 = vld [vmem:[%s1598 + $0x54] sm:$0xf]
                  %1643 = vst [vmem:[%s1599 + $0x54] sm:$0xf] %v1642
                  %v1644 = vld [vmem:[%s1598 + $0x58] sm:$0xf]
                  %1645 = vst [vmem:[%s1599 + $0x58] sm:$0xf] %v1644
                  %v1646 = vld [vmem:[%s1598 + $0x5c] sm:$0xf]
                  %1647 = vst [vmem:[%s1599 + $0x5c] sm:$0xf] %v1646
                  %v1648 = vld [vmem:[%s1598 + $0x60] sm:$0xf]
                  %1649 = vst [vmem:[%s1599 + $0x60] sm:$0xf] %v1648
                  %v1650 = vld [vmem:[%s1598 + $0x64] sm:$0xf]
                  %1651 = vst [vmem:[%s1599 + $0x64] sm:$0xf] %v1650
                  %v1652 = vld [vmem:[%s1598 + $0x68] sm:$0xf]
                  %1653 = vst [vmem:[%s1599 + $0x68] sm:$0xf] %v1652
                  %v1654 = vld [vmem:[%s1598 + $0x6c] sm:$0xf]
                  %1655 = vst [vmem:[%s1599 + $0x6c] sm:$0xf] %v1654
                  %v1656 = vld [vmem:[%s1598 + $0x70] sm:$0xf]
                  %1657 = vst [vmem:[%s1599 + $0x70] sm:$0xf] %v1656
                  %v1658 = vld [vmem:[%s1598 + $0x74] sm:$0xf]
                  %1659 = vst [vmem:[%s1599 + $0x74] sm:$0xf] %v1658
                  %v1660 = vld [vmem:[%s1598 + $0x78] sm:$0xf]
                  %1661 = vst [vmem:[%s1599 + $0x78] sm:$0xf] %v1660
                  %v1662 = vld [vmem:[%s1598 + $0x7c] sm:$0xf]
                  %1663 = vst [vmem:[%s1599 + $0x7c] sm:$0xf] %v1662
                  %v1664 = vld [vmem:[%s1598 + $0x80] sm:$0xf]
                  %1665 = vst [vmem:[%s1599 + $0x80] sm:$0xf] %v1664
                  %v1666 = vld [vmem:[%s1598 + $0x84] sm:$0xf]
                  %1667 = vst [vmem:[%s1599 + $0x84] sm:$0xf] %v1666
                  %v1668 = vld [vmem:[%s1598 + $0x88] sm:$0xf]
                  %1669 = vst [vmem:[%s1599 + $0x88] sm:$0xf] %v1668
                  %v1670 = vld [vmem:[%s1598 + $0x8c] sm:$0xf]
                  %1671 = vst [vmem:[%s1599 + $0x8c] sm:$0xf] %v1670
                  %v1672 = vld [vmem:[%s1598 + $0x90] sm:$0xf]
                  %1673 = vst [vmem:[%s1599 + $0x90] sm:$0xf] %v1672
                  %v1674 = vld [vmem:[%s1598 + $0x94] sm:$0xf]
                  %1675 = vst [vmem:[%s1599 + $0x94] sm:$0xf] %v1674
                  %v1676 = vld [vmem:[%s1598 + $0x98] sm:$0xf]
                  %1677 = vst [vmem:[%s1599 + $0x98] sm:$0xf] %v1676
                  %v1678 = vld [vmem:[%s1598 + $0x9c] sm:$0xf]
                  %1679 = vst [vmem:[%s1599 + $0x9c] sm:$0xf] %v1678
                  %v1680 = vld [vmem:[%s1598 + $0xa0] sm:$0xf]
                  %1681 = vst [vmem:[%s1599 + $0xa0] sm:$0xf] %v1680
                  %v1682 = vld [vmem:[%s1598 + $0xa4] sm:$0xf]
                  %1683 = vst [vmem:[%s1599 + $0xa4] sm:$0xf] %v1682
                  %v1684 = vld [vmem:[%s1598 + $0xa8] sm:$0xf]
                  %1685 = vst [vmem:[%s1599 + $0xa8] sm:$0xf] %v1684
                  %v1686 = vld [vmem:[%s1598 + $0xac] sm:$0xf]
                  %1687 = vst [vmem:[%s1599 + $0xac] sm:$0xf] %v1686
                  %v1688 = vld [vmem:[%s1598 + $0xb0] sm:$0xf]
                  %1689 = vst [vmem:[%s1599 + $0xb0] sm:$0xf] %v1688
                  %v1690 = vld [vmem:[%s1598 + $0xb4] sm:$0xf]
                  %1691 = vst [vmem:[%s1599 + $0xb4] sm:$0xf] %v1690
                  %v1692 = vld [vmem:[%s1598 + $0xb8] sm:$0xf]
                  %1693 = vst [vmem:[%s1599 + $0xb8] sm:$0xf] %v1692
                  %v1694 = vld [vmem:[%s1598 + $0xbc] sm:$0xf]
                  %1695 = vst [vmem:[%s1599 + $0xbc] sm:$0xf] %v1694
                  %v1696 = vld [vmem:[%s1598 + $0xc0] sm:$0xf]
                  %1697 = vst [vmem:[%s1599 + $0xc0] sm:$0xf] %v1696
                  %v1698 = vld [vmem:[%s1598 + $0xc4] sm:$0xf]
                  %1699 = vst [vmem:[%s1599 + $0xc4] sm:$0xf] %v1698
                  %v1700 = vld [vmem:[%s1598 + $0xc8] sm:$0xf]
                  %1701 = vst [vmem:[%s1599 + $0xc8] sm:$0xf] %v1700
                  %v1702 = vld [vmem:[%s1598 + $0xcc] sm:$0xf]
                  %1703 = vst [vmem:[%s1599 + $0xcc] sm:$0xf] %v1702
                  %v1704 = vld [vmem:[%s1598 + $0xd0] sm:$0xf]
                  %1705 = vst [vmem:[%s1599 + $0xd0] sm:$0xf] %v1704
                  %v1706 = vld [vmem:[%s1598 + $0xd4] sm:$0xf]
                  %1707 = vst [vmem:[%s1599 + $0xd4] sm:$0xf] %v1706
                  %v1708 = vld [vmem:[%s1598 + $0xd8] sm:$0xf]
                  %1709 = vst [vmem:[%s1599 + $0xd8] sm:$0xf] %v1708
                  %v1710 = vld [vmem:[%s1598 + $0xdc] sm:$0xf]
                  %1711 = vst [vmem:[%s1599 + $0xdc] sm:$0xf] %v1710
                  %v1712 = vld [vmem:[%s1598 + $0xe0] sm:$0xf]
                  %1713 = vst [vmem:[%s1599 + $0xe0] sm:$0xf] %v1712
                  %v1714 = vld [vmem:[%s1598 + $0xe4] sm:$0xf]
                  %1715 = vst [vmem:[%s1599 + $0xe4] sm:$0xf] %v1714
                  %v1716 = vld [vmem:[%s1598 + $0xe8] sm:$0xf]
                  %1717 = vst [vmem:[%s1599 + $0xe8] sm:$0xf] %v1716
                  %v1718 = vld [vmem:[%s1598 + $0xec] sm:$0xf]
                  %1719 = vst [vmem:[%s1599 + $0xec] sm:$0xf] %v1718
                  %v1720 = vld [vmem:[%s1598 + $0xf0] sm:$0xf]
                  %1721 = vst [vmem:[%s1599 + $0xf0] sm:$0xf] %v1720
                  %v1722 = vld [vmem:[%s1598 + $0xf4] sm:$0xf]
                  %1723 = vst [vmem:[%s1599 + $0xf4] sm:$0xf] %v1722
                  %v1724 = vld [vmem:[%s1598 + $0xf8] sm:$0xf]
                  %1725 = vst [vmem:[%s1599 + $0xf8] sm:$0xf] %v1724
                  %v1726 = vld [vmem:[%s1598 + $0xfc] sm:$0xf]
                  %1727 = vst [vmem:[%s1599 + $0xfc] sm:$0xf] %v1726
                  %s1728 = sadd.s32 1, %s1597
                  %p1729 = scmp.ge.s32.totalorder %s1728, %s1590
                  %s1730 = scalar_select %p1729, 0, %s1728
                  %s1731 = smul.u32 %s1730, 256
                  %s1732 = smul.u32 %s1730, 256
                  %s1733 = scalar_lea.vmem %s1397, %s1731 [#allocation2]
                  %s1734 = scalar_lea.vmem %s1408, %s1732
                $region71: #{nature_conv_body_forward.4} parent=65 // loop_footer
                  %s1594 = sadd.s32 %s1592, 1
                $region72: #{nature_conv_body_forward.4} parent=65 // loop_footer_branch
                  %1591 = sbr.rel target = $region68
                $region73: #{nature_conv_body_forward.4} parent=65 // loop_exit
                  _
                %s1735 = sshrl.u32 %s1404, 6
                %s1736 = sand.u32 %s1404, 63
                %s1737 = smul.u32 %s1735, 64
                %s1738 = smul.u32 4, %s1737
                %s1739 = scalar_lea.vmem %s1397, %s1738 [#allocation2]
                %s1740 = smul.u32 4, %s1737
                %s1741 = scalar_lea.vmem %s1408, %s1740
                // While loop
                $region74: #{nature_conv_body_forward.4} parent=65 // loop_pre_header
                  _
                $region75: #{nature_conv_body_forward.4} parent=65 // loop_header
                  %s1743 = sphi 0, %s1745
                  %p1744 = scmp.ge.s32.totalorder %s1743, %s1736
                  %s1748 = sphi 0, %s1755
                  %s1749 = sphi %s1739, %s1758
                  %s1750 = sphi %s1741, %s1759
                $region76: #{nature_conv_body_forward.4} parent=65 // loop_header_branch
                  %1747 = sbr.rel (%p1744) target = $region80
                $region77: #{nature_conv_body_forward.4} parent=65 // loop_body
                  %v1751 = vld [vmem:[%s1749] sm:$0xf]
                  %1752 = vst [vmem:[%s1750] sm:$0xf] %v1751
                  %s1753 = sadd.s32 1, %s1748
                  %p1754 = scmp.ge.s32.totalorder %s1753, %s1736
                  %s1755 = scalar_select %p1754, 0, %s1753
                  %s1756 = smul.u32 %s1755, 4
                  %s1757 = smul.u32 %s1755, 4
                  %s1758 = scalar_lea.vmem %s1739, %s1756 [#allocation2]
                  %s1759 = scalar_lea.vmem %s1741, %s1757
                $region78: #{nature_conv_body_forward.4} parent=65 // loop_footer
                  %s1745 = sadd.s32 %s1743, 1
                $region79: #{nature_conv_body_forward.4} parent=65 // loop_footer_branch
                  %1742 = sbr.rel target = $region75
                $region80: #{nature_conv_body_forward.4} parent=65 // loop_exit
                  _
              $region66: #{nature_conv_body_forward.4} parent=43 // pred_fallthru
                _
            $region44: #{nature_conv_body_forward.4} parent=39 // pred_fallthru
              _
            // Predicated region
            $region45: #{nature_conv_body_forward.4} parent=39 // pred_check
              _
            $region46: #{nature_conv_body_forward.4} parent=39 // pred_check_branch
              %1415 = sbr.rel (0) target = $region48
            $region47: #{nature_conv_body_forward.4} parent=39 // pred_region
              %s1417 = sshrl.u32 %s1404, 6
              // While loop
              $region49: #{nature_conv_body_forward.4} parent=47 // loop_pre_header
                _
              $region50: #{nature_conv_body_forward.4} parent=47 // loop_header
                %s1419 = sphi 0, %s1421
                %p1420 = scmp.ge.s32.totalorder %s1419, %s1417
                %s1424 = sphi 0, %s1557
                %s1425 = sphi %s1397, %s1560
                %s1426 = sphi %s1408, %s1561
              $region51: #{nature_conv_body_forward.4} parent=47 // loop_header_branch
                %1423 = sbr.rel (%p1420) target = $region55
              $region52: #{nature_conv_body_forward.4} parent=47 // loop_body
                %v1427 = vld [vmem:[%s1425] sm:$0xf]
                %1428 = vst [vmem:[%s1426] sm:$0xf] %v1427
                %v1429 = vld [vmem:[%s1425 + $0x4] sm:$0xf]
                %1430 = vst [vmem:[%s1426 + $0x4] sm:$0xf] %v1429
                %v1431 = vld [vmem:[%s1425 + $0x8] sm:$0xf]
                %1432 = vst [vmem:[%s1426 + $0x8] sm:$0xf] %v1431
                %v1433 = vld [vmem:[%s1425 + $0xc] sm:$0xf]
                %1434 = vst [vmem:[%s1426 + $0xc] sm:$0xf] %v1433
                %v1435 = vld [vmem:[%s1425 + $0x10] sm:$0xf]
                %1436 = vst [vmem:[%s1426 + $0x10] sm:$0xf] %v1435
                %v1437 = vld [vmem:[%s1425 + $0x14] sm:$0xf]
                %1438 = vst [vmem:[%s1426 + $0x14] sm:$0xf] %v1437
                %v1439 = vld [vmem:[%s1425 + $0x18] sm:$0xf]
                %1440 = vst [vmem:[%s1426 + $0x18] sm:$0xf] %v1439
                %v1441 = vld [vmem:[%s1425 + $0x1c] sm:$0xf]
                %1442 = vst [vmem:[%s1426 + $0x1c] sm:$0xf] %v1441
                %v1443 = vld [vmem:[%s1425 + $0x20] sm:$0xf]
                %1444 = vst [vmem:[%s1426 + $0x20] sm:$0xf] %v1443
                %v1445 = vld [vmem:[%s1425 + $0x24] sm:$0xf]
                %1446 = vst [vmem:[%s1426 + $0x24] sm:$0xf] %v1445
                %v1447 = vld [vmem:[%s1425 + $0x28] sm:$0xf]
                %1448 = vst [vmem:[%s1426 + $0x28] sm:$0xf] %v1447
                %v1449 = vld [vmem:[%s1425 + $0x2c] sm:$0xf]
                %1450 = vst [vmem:[%s1426 + $0x2c] sm:$0xf] %v1449
                %v1451 = vld [vmem:[%s1425 + $0x30] sm:$0xf]
                %1452 = vst [vmem:[%s1426 + $0x30] sm:$0xf] %v1451
                %v1453 = vld [vmem:[%s1425 + $0x34] sm:$0xf]
                %1454 = vst [vmem:[%s1426 + $0x34] sm:$0xf] %v1453
                %v1455 = vld [vmem:[%s1425 + $0x38] sm:$0xf]
                %1456 = vst [vmem:[%s1426 + $0x38] sm:$0xf] %v1455
                %v1457 = vld [vmem:[%s1425 + $0x3c] sm:$0xf]
                %1458 = vst [vmem:[%s1426 + $0x3c] sm:$0xf] %v1457
                %v1459 = vld [vmem:[%s1425 + $0x40] sm:$0xf]
                %1460 = vst [vmem:[%s1426 + $0x40] sm:$0xf] %v1459
                %v1461 = vld [vmem:[%s1425 + $0x44] sm:$0xf]
                %1462 = vst [vmem:[%s1426 + $0x44] sm:$0xf] %v1461
                %v1463 = vld [vmem:[%s1425 + $0x48] sm:$0xf]
                %1464 = vst [vmem:[%s1426 + $0x48] sm:$0xf] %v1463
                %v1465 = vld [vmem:[%s1425 + $0x4c] sm:$0xf]
                %1466 = vst [vmem:[%s1426 + $0x4c] sm:$0xf] %v1465
                %v1467 = vld [vmem:[%s1425 + $0x50] sm:$0xf]
                %1468 = vst [vmem:[%s1426 + $0x50] sm:$0xf] %v1467
                %v1469 = vld [vmem:[%s1425 + $0x54] sm:$0xf]
                %1470 = vst [vmem:[%s1426 + $0x54] sm:$0xf] %v1469
                %v1471 = vld [vmem:[%s1425 + $0x58] sm:$0xf]
                %1472 = vst [vmem:[%s1426 + $0x58] sm:$0xf] %v1471
                %v1473 = vld [vmem:[%s1425 + $0x5c] sm:$0xf]
                %1474 = vst [vmem:[%s1426 + $0x5c] sm:$0xf] %v1473
                %v1475 = vld [vmem:[%s1425 + $0x60] sm:$0xf]
                %1476 = vst [vmem:[%s1426 + $0x60] sm:$0xf] %v1475
                %v1477 = vld [vmem:[%s1425 + $0x64] sm:$0xf]
                %1478 = vst [vmem:[%s1426 + $0x64] sm:$0xf] %v1477
                %v1479 = vld [vmem:[%s1425 + $0x68] sm:$0xf]
                %1480 = vst [vmem:[%s1426 + $0x68] sm:$0xf] %v1479
                %v1481 = vld [vmem:[%s1425 + $0x6c] sm:$0xf]
                %1482 = vst [vmem:[%s1426 + $0x6c] sm:$0xf] %v1481
                %v1483 = vld [vmem:[%s1425 + $0x70] sm:$0xf]
                %1484 = vst [vmem:[%s1426 + $0x70] sm:$0xf] %v1483
                %v1485 = vld [vmem:[%s1425 + $0x74] sm:$0xf]
                %1486 = vst [vmem:[%s1426 + $0x74] sm:$0xf] %v1485
                %v1487 = vld [vmem:[%s1425 + $0x78] sm:$0xf]
                %1488 = vst [vmem:[%s1426 + $0x78] sm:$0xf] %v1487
                %v1489 = vld [vmem:[%s1425 + $0x7c] sm:$0xf]
                %1490 = vst [vmem:[%s1426 + $0x7c] sm:$0xf] %v1489
                %v1491 = vld [vmem:[%s1425 + $0x80] sm:$0xf]
                %1492 = vst [vmem:[%s1426 + $0x80] sm:$0xf] %v1491
                %v1493 = vld [vmem:[%s1425 + $0x84] sm:$0xf]
                %1494 = vst [vmem:[%s1426 + $0x84] sm:$0xf] %v1493
                %v1495 = vld [vmem:[%s1425 + $0x88] sm:$0xf]
                %1496 = vst [vmem:[%s1426 + $0x88] sm:$0xf] %v1495
                %v1497 = vld [vmem:[%s1425 + $0x8c] sm:$0xf]
                %1498 = vst [vmem:[%s1426 + $0x8c] sm:$0xf] %v1497
                %v1499 = vld [vmem:[%s1425 + $0x90] sm:$0xf]
                %1500 = vst [vmem:[%s1426 + $0x90] sm:$0xf] %v1499
                %v1501 = vld [vmem:[%s1425 + $0x94] sm:$0xf]
                %1502 = vst [vmem:[%s1426 + $0x94] sm:$0xf] %v1501
                %v1503 = vld [vmem:[%s1425 + $0x98] sm:$0xf]
                %1504 = vst [vmem:[%s1426 + $0x98] sm:$0xf] %v1503
                %v1505 = vld [vmem:[%s1425 + $0x9c] sm:$0xf]
                %1506 = vst [vmem:[%s1426 + $0x9c] sm:$0xf] %v1505
                %v1507 = vld [vmem:[%s1425 + $0xa0] sm:$0xf]
                %1508 = vst [vmem:[%s1426 + $0xa0] sm:$0xf] %v1507
                %v1509 = vld [vmem:[%s1425 + $0xa4] sm:$0xf]
                %1510 = vst [vmem:[%s1426 + $0xa4] sm:$0xf] %v1509
                %v1511 = vld [vmem:[%s1425 + $0xa8] sm:$0xf]
                %1512 = vst [vmem:[%s1426 + $0xa8] sm:$0xf] %v1511
                %v1513 = vld [vmem:[%s1425 + $0xac] sm:$0xf]
                %1514 = vst [vmem:[%s1426 + $0xac] sm:$0xf] %v1513
                %v1515 = vld [vmem:[%s1425 + $0xb0] sm:$0xf]
                %1516 = vst [vmem:[%s1426 + $0xb0] sm:$0xf] %v1515
                %v1517 = vld [vmem:[%s1425 + $0xb4] sm:$0xf]
                %1518 = vst [vmem:[%s1426 + $0xb4] sm:$0xf] %v1517
                %v1519 = vld [vmem:[%s1425 + $0xb8] sm:$0xf]
                %1520 = vst [vmem:[%s1426 + $0xb8] sm:$0xf] %v1519
                %v1521 = vld [vmem:[%s1425 + $0xbc] sm:$0xf]
                %1522 = vst [vmem:[%s1426 + $0xbc] sm:$0xf] %v1521
                %v1523 = vld [vmem:[%s1425 + $0xc0] sm:$0xf]
                %1524 = vst [vmem:[%s1426 + $0xc0] sm:$0xf] %v1523
                %v1525 = vld [vmem:[%s1425 + $0xc4] sm:$0xf]
                %1526 = vst [vmem:[%s1426 + $0xc4] sm:$0xf] %v1525
                %v1527 = vld [vmem:[%s1425 + $0xc8] sm:$0xf]
                %1528 = vst [vmem:[%s1426 + $0xc8] sm:$0xf] %v1527
                %v1529 = vld [vmem:[%s1425 + $0xcc] sm:$0xf]
                %1530 = vst [vmem:[%s1426 + $0xcc] sm:$0xf] %v1529
                %v1531 = vld [vmem:[%s1425 + $0xd0] sm:$0xf]
                %1532 = vst [vmem:[%s1426 + $0xd0] sm:$0xf] %v1531
                %v1533 = vld [vmem:[%s1425 + $0xd4] sm:$0xf]
                %1534 = vst [vmem:[%s1426 + $0xd4] sm:$0xf] %v1533
                %v1535 = vld [vmem:[%s1425 + $0xd8] sm:$0xf]
                %1536 = vst [vmem:[%s1426 + $0xd8] sm:$0xf] %v1535
                %v1537 = vld [vmem:[%s1425 + $0xdc] sm:$0xf]
                %1538 = vst [vmem:[%s1426 + $0xdc] sm:$0xf] %v1537
                %v1539 = vld [vmem:[%s1425 + $0xe0] sm:$0xf]
                %1540 = vst [vmem:[%s1426 + $0xe0] sm:$0xf] %v1539
                %v1541 = vld [vmem:[%s1425 + $0xe4] sm:$0xf]
                %1542 = vst [vmem:[%s1426 + $0xe4] sm:$0xf] %v1541
                %v1543 = vld [vmem:[%s1425 + $0xe8] sm:$0xf]
                %1544 = vst [vmem:[%s1426 + $0xe8] sm:$0xf] %v1543
                %v1545 = vld [vmem:[%s1425 + $0xec] sm:$0xf]
                %1546 = vst [vmem:[%s1426 + $0xec] sm:$0xf] %v1545
                %v1547 = vld [vmem:[%s1425 + $0xf0] sm:$0xf]
                %1548 = vst [vmem:[%s1426 + $0xf0] sm:$0xf] %v1547
                %v1549 = vld [vmem:[%s1425 + $0xf4] sm:$0xf]
                %1550 = vst [vmem:[%s1426 + $0xf4] sm:$0xf] %v1549
                %v1551 = vld [vmem:[%s1425 + $0xf8] sm:$0xf]
                %1552 = vst [vmem:[%s1426 + $0xf8] sm:$0xf] %v1551
                %v1553 = vld [vmem:[%s1425 + $0xfc] sm:$0xf]
                %1554 = vst [vmem:[%s1426 + $0xfc] sm:$0xf] %v1553
                %s1555 = sadd.s32 1, %s1424
                %p1556 = scmp.ge.s32.totalorder %s1555, %s1417
                %s1557 = scalar_select %p1556, 0, %s1555
                %s1558 = smul.u32 %s1557, 256
                %s1559 = smul.u32 %s1557, 256
                %s1560 = scalar_lea.vmem %s1397, %s1558 [#allocation2]
                %s1561 = scalar_lea.vmem %s1408, %s1559
              $region53: #{nature_conv_body_forward.4} parent=47 // loop_footer
                %s1421 = sadd.s32 %s1419, 1
              $region54: #{nature_conv_body_forward.4} parent=47 // loop_footer_branch
                %1418 = sbr.rel target = $region50
              $region55: #{nature_conv_body_forward.4} parent=47 // loop_exit
                _
              %s1562 = sshrl.u32 %s1404, 6
              %s1563 = sand.u32 %s1404, 63
              %s1564 = smul.u32 %s1562, 64
              %s1565 = smul.u32 4, %s1564
              %s1566 = scalar_lea.vmem %s1397, %s1565 [#allocation2]
              %s1567 = smul.u32 4, %s1564
              %s1568 = scalar_lea.vmem %s1408, %s1567
              // While loop
              $region56: #{nature_conv_body_forward.4} parent=47 // loop_pre_header
                _
              $region57: #{nature_conv_body_forward.4} parent=47 // loop_header
                %s1570 = sphi 0, %s1572
                %p1571 = scmp.ge.s32.totalorder %s1570, %s1563
                %s1575 = sphi 0, %s1582
                %s1576 = sphi %s1566, %s1585
                %s1577 = sphi %s1568, %s1586
              $region58: #{nature_conv_body_forward.4} parent=47 // loop_header_branch
                %1574 = sbr.rel (%p1571) target = $region62
              $region59: #{nature_conv_body_forward.4} parent=47 // loop_body
                %v1578 = vld [vmem:[%s1576] sm:$0xf]
                %1579 = vst [vmem:[%s1577] sm:$0xf] %v1578
                %s1580 = sadd.s32 1, %s1575
                %p1581 = scmp.ge.s32.totalorder %s1580, %s1563
                %s1582 = scalar_select %p1581, 0, %s1580
                %s1583 = smul.u32 %s1582, 4
                %s1584 = smul.u32 %s1582, 4
                %s1585 = scalar_lea.vmem %s1566, %s1583 [#allocation2]
                %s1586 = scalar_lea.vmem %s1568, %s1584
              $region60: #{nature_conv_body_forward.4} parent=47 // loop_footer
                %s1572 = sadd.s32 %s1570, 1
              $region61: #{nature_conv_body_forward.4} parent=47 // loop_footer_branch
                %1569 = sbr.rel target = $region57
              $region62: #{nature_conv_body_forward.4} parent=47 // loop_exit
                _
            $region48: #{nature_conv_body_forward.4} parent=39 // pred_fallthru
              _
          $region40: #{nature_conv_body_forward.4} parent=35 // pred_fallthru
            _
          %1760 = vnop
        $region36: #{nature_conv_body_forward.4} parent=31 // pred_fallthru
          _
      $region32: #{nature_conv_body_forward.4} parent=5 // pred_fallthru
        _
      %p1761 = scmp.le.s32.totalorder 2, %s9
      // Predicated region
      $region81: #{nature_conv_body_forward.4} parent=5 // pred_check
        %p1762 = pneg %p1761
      $region82: #{nature_conv_body_forward.4} parent=5 // pred_check_branch
        %1764 = sbr.rel (%p1762) target = $region84
      $region83: #{nature_conv_body_forward.4} parent=5 // pred_region
        %s1765 = ssub.s32 %s9, 2
        // Predicated region
        $region85: #{nature_conv_body_forward.4} parent=83 // pred_check
          %p1766 = pneg %p106
        $region86: #{nature_conv_body_forward.4} parent=83 // pred_check_branch
          %1768 = sbr.rel (%p1766) target = $region88
        $region87: #{nature_conv_body_forward.4} parent=83 // pred_region
          %s1769 = sand.u32 %s91, 1
          %s1770 = sand.u32 %s91, 1
          %s1771 = smul.addr %s1770, 256
          %s1772 = scalar_lea.vmem [#allocation2], %s1771
        $region88: #{nature_conv_body_forward.4} parent=83 // pred_fallthru
          _
      $region84: #{nature_conv_body_forward.4} parent=5 // pred_fallthru
        _
    $region6: #{nature_conv_body_forward.4} parent=1 // loop_footer
      %s13 = sadd.s32 1, %s9
    $region7: #{nature_conv_body_forward.4} parent=1 // loop_footer_branch
      %8 = sbr.rel target = $region3
    $region8: #{nature_conv_body_forward.4} parent=1 // loop_exit
      _

// kernel: nature_conv_body_forward.5
$region0: #{nature_conv_body_forward.5}
  #allocation0 [shape = 'u32[]', space=smem, size = 0x4, offset = 0x4, fixed_abs, tag = 'smem constant byte address 0x4 - core index']
  #allocation1 [shape = 'u32[144,128]{1,0:T(1,128)}', space=vmem, size = 0x12000, scoped, tag = 'internal scratch']
  %s0 = inlined_call_operand.vmem [shape: bf16[162,512], index: 0, kind: input, shape index: {}]
  %s1 = inlined_call_operand.vmem [shape: bf16[512,64], index: 1, kind: input, shape index: {}]
  %s2 = inlined_call_operand.vmem [shape: f32[1,64], index: 2, kind: input, shape index: {}]
  %s3 = inlined_call_operand.vmem [shape: bf16[162,64], index: 3, kind: output, shape index: {}]
  %s4 = sld [smem:[#allocation0]]
  $region59: #{nature_conv_body_forward.5} parent=0
    _
  %s6 = ssub.s32 1, %s4
  %s7 = scalar_select 0, %s6, %s4
  $region1: #{nature_conv_body_forward.5} parent=0
    #allocation2 [shape = 'u8[45056]{0}', space=vmem, size = 0xb000, scoped, tag = 'output window, operand 0, single buffered']
    // Predicated region
    $region2: #{nature_conv_body_forward.5} parent=1 // pred_check
      _
    $region3: #{nature_conv_body_forward.5} parent=1 // pred_check_branch
      %9 = sbr.rel (0) target = $region5
    $region4: #{nature_conv_body_forward.5} parent=1 // pred_region
      _
    $region5: #{nature_conv_body_forward.5} parent=1 // pred_fallthru
      _
    // Predicated region
    $region6: #{nature_conv_body_forward.5} parent=1 // pred_check
      _
    $region7: #{nature_conv_body_forward.5} parent=1 // pred_check_branch
      %11 = sbr.rel (0) target = $region9
    $region8: #{nature_conv_body_forward.5} parent=1 // pred_region
      _
    $region9: #{nature_conv_body_forward.5} parent=1 // pred_fallthru
      _
    // Predicated region
    $region10: #{nature_conv_body_forward.5} parent=1 // pred_check
      _
    $region11: #{nature_conv_body_forward.5} parent=1 // pred_check_branch
      %13 = sbr.rel (0) target = $region13
    $region12: #{nature_conv_body_forward.5} parent=1 // pred_region
      _
    $region13: #{nature_conv_body_forward.5} parent=1 // pred_fallthru
      _
    %v15 = vld [vmem:[%s0] sm:$0xff]
    %v16 = vld [vmem:[%s0 + $0x8] sm:$0xff]
    %v17 = vld [vmem:[%s0 + $0x10] sm:$0xff]
    %v18 = vld [vmem:[%s0 + $0x18] sm:$0xff]
    %v19 = vld [vmem:[%s0 + $0x20] sm:$0xff]
    %v20 = vld [vmem:[%s0 + $0x28] sm:$0xff]
    %v21 = vld [vmem:[%s0 + $0x30] sm:$0xff]
    %v22 = vld [vmem:[%s0 + $0x38] sm:$0xff]
    %v23 = vld [vmem:[%s0 + $0x40] sm:$0xff]
    %v24 = vld [vmem:[%s0 + $0x48] sm:$0xff]
    %v25 = vld [vmem:[%s0 + $0x50] sm:$0xff]
    %v26 = vld [vmem:[%s0 + $0x58] sm:$0xff]
    %v27 = vld [vmem:[%s0 + $0x60] sm:$0xff]
    %v28 = vld [vmem:[%s0 + $0x68] sm:$0xff]
    %v29 = vld [vmem:[%s0 + $0x70] sm:$0xff]
    %v30 = vld [vmem:[%s0 + $0x78] sm:$0xff]
    %v31 = vld [vmem:[%s0 + $0x80] sm:$0xff]
    %v32 = vld [vmem:[%s0 + $0x88] sm:$0xff]
    %v33 = vld [vmem:[%s0 + $0x90] sm:$0xff]
    %v34 = vld [vmem:[%s0 + $0x98] sm:$0xff]
    %v35 = vld [vmem:[%s0 + $0xa0] sm:$0xff]
    %v36 = vld [vmem:[%s0 + $0xa8] sm:$0xff]
    %v37 = vld [vmem:[%s0 + $0xb0] sm:$0xff]
    %v38 = vld [vmem:[%s0 + $0xb8] sm:$0xff]
    %v39 = vld [vmem:[%s0 + $0xc0] sm:$0xff]
    %v40 = vld [vmem:[%s0 + $0xc8] sm:$0xff]
    %v41 = vld [vmem:[%s0 + $0xd0] sm:$0xff]
    %v42 = vld [vmem:[%s0 + $0xd8] sm:$0xff]
    %v43 = vld [vmem:[%s0 + $0xe0] sm:$0xff]
    %v44 = vld [vmem:[%s0 + $0xe8] sm:$0xff]
    %v45 = vld [vmem:[%s0 + $0xf0] sm:$0xff]
    %v46 = vld [vmem:[%s0 + $0xf8] sm:$0xff]
    %v47 = vld [vmem:[%s0 + $0x100] sm:$0xff]
    %v48 = vld [vmem:[%s0 + $0x108] sm:$0xff]
    %v49 = vld [vmem:[%s0 + $0x110] sm:$0xff]
    %v50 = vld [vmem:[%s0 + $0x118] sm:$0xff]
    %v51 = vld [vmem:[%s0 + $0x120] sm:$0xff]
    %v52 = vld [vmem:[%s0 + $0x128] sm:$0xff]
    %v53 = vld [vmem:[%s0 + $0x130] sm:$0xff]
    %v54 = vld [vmem:[%s0 + $0x138] sm:$0xff]
    %v55 = vld [vmem:[%s0 + $0x140] sm:$0xff]
    %v56 = vld [vmem:[%s0 + $0x148] sm:$0xff]
    %v57 = vld [vmem:[%s0 + $0x150] sm:$0xff]
    %v58 = vld [vmem:[%s0 + $0x158] sm:$0xff]
    %v59 = vld [vmem:[%s1] sm:$0xf]
    %v60 = vld [vmem:[%s1 + $0x4] sm:$0xf]
    %v61 = vld [vmem:[%s1 + $0x8] sm:$0xf]
    %v62 = vld [vmem:[%s1 + $0xc] sm:$0xf]
    %v63 = vld [vmem:[%s1 + $0x10] sm:$0xf]
    %v64 = vld [vmem:[%s1 + $0x14] sm:$0xf]
    %v65 = vld [vmem:[%s1 + $0x18] sm:$0xf]
    %v66 = vld [vmem:[%s1 + $0x1c] sm:$0xf]
    %v67 = vld [vmem:[%s1 + $0x20] sm:$0xf]
    %v68 = vld [vmem:[%s1 + $0x24] sm:$0xf]
    %v69 = vld [vmem:[%s1 + $0x28] sm:$0xf]
    %v70 = vld [vmem:[%s1 + $0x2c] sm:$0xf]
    %v71 = vld [vmem:[%s1 + $0x30] sm:$0xf]
    %v72 = vld [vmem:[%s1 + $0x34] sm:$0xf]
    %v73 = vld [vmem:[%s1 + $0x38] sm:$0xf]
    %v74 = vld [vmem:[%s1 + $0x3c] sm:$0xf]
    %v75 = vld [vmem:[%s1 + $0x40] sm:$0xf]
    %v76 = vld [vmem:[%s1 + $0x44] sm:$0xf]
    %v77 = vld [vmem:[%s1 + $0x48] sm:$0xf]
    %v78 = vld [vmem:[%s1 + $0x4c] sm:$0xf]
    %v79 = vld [vmem:[%s1 + $0x50] sm:$0xf]
    %v80 = vld [vmem:[%s1 + $0x54] sm:$0xf]
    %v81 = vld [vmem:[%s1 + $0x58] sm:$0xf]
    %v82 = vld [vmem:[%s1 + $0x5c] sm:$0xf]
    %v83 = vld [vmem:[%s1 + $0x60] sm:$0xf]
    %v84 = vld [vmem:[%s1 + $0x64] sm:$0xf]
    %v85 = vld [vmem:[%s1 + $0x68] sm:$0xf]
    %v86 = vld [vmem:[%s1 + $0x6c] sm:$0xf]
    %v87 = vld [vmem:[%s1 + $0x70] sm:$0xf]
    %v88 = vld [vmem:[%s1 + $0x74] sm:$0xf]
    %v89 = vld [vmem:[%s1 + $0x78] sm:$0xf]
    %v90 = vld [vmem:[%s1 + $0x7c] sm:$0xf]
    %v91 = vld [vmem:[%s1 + $0x80] sm:$0xf]
    %v92 = vld [vmem:[%s1 + $0x84] sm:$0xf]
    %v93 = vld [vmem:[%s1 + $0x88] sm:$0xf]
    %v94 = vld [vmem:[%s1 + $0x8c] sm:$0xf]
    %v95 = vld [vmem:[%s1 + $0x90] sm:$0xf]
    %v96 = vld [vmem:[%s1 + $0x94] sm:$0xf]
    %v97 = vld [vmem:[%s1 + $0x98] sm:$0xf]
    %v98 = vld [vmem:[%s1 + $0x9c] sm:$0xf]
    %v99 = vld [vmem:[%s1 + $0xa0] sm:$0xf]
    %v100 = vld [vmem:[%s1 + $0xa4] sm:$0xf]
    %v101 = vld [vmem:[%s1 + $0xa8] sm:$0xf]
    %v102 = vld [vmem:[%s1 + $0xac] sm:$0xf]
    %v103 = vld [vmem:[%s1 + $0xb0] sm:$0xf]
    %v104 = vld [vmem:[%s1 + $0xb4] sm:$0xf]
    %v105 = vld [vmem:[%s1 + $0xb8] sm:$0xf]
    %v106 = vld [vmem:[%s1 + $0xbc] sm:$0xf]
    %v107 = vld [vmem:[%s1 + $0xc0] sm:$0xf]
    %v108 = vld [vmem:[%s1 + $0xc4] sm:$0xf]
    %v109 = vld [vmem:[%s1 + $0xc8] sm:$0xf]
    %v110 = vld [vmem:[%s1 + $0xcc] sm:$0xf]
    %v111 = vld [vmem:[%s1 + $0xd0] sm:$0xf]
    %v112 = vld [vmem:[%s1 + $0xd4] sm:$0xf]
    %v113 = vld [vmem:[%s1 + $0xd8] sm:$0xf]
    %v114 = vld [vmem:[%s1 + $0xdc] sm:$0xf]
    %v115 = vld [vmem:[%s1 + $0xe0] sm:$0xf]
    %v116 = vld [vmem:[%s1 + $0xe4] sm:$0xf]
    %v117 = vld [vmem:[%s1 + $0xe8] sm:$0xf]
    %v118 = vld [vmem:[%s1 + $0xec] sm:$0xf]
    %v119 = vld [vmem:[%s1 + $0xf0] sm:$0xf]
    %v120 = vld [vmem:[%s1 + $0xf4] sm:$0xf]
    %v121 = vld [vmem:[%s1 + $0xf8] sm:$0xf]
    %v122 = vld [vmem:[%s1 + $0xfc] sm:$0xf]
    %v123 = vld [vmem:[%s2] sm:$0x1]
    %v125 = vlaneseq
    %v126 = vshrl.u32 %v125, 7
    %v127 = vsub.s32 0, %v126
    %v128 = vrot.slane %v123, %v127
    %v174 = vunpack.c.l.b16 %v15
    %v175 = vunpack.c.h.b16 %v15
    %v176 = vunpack.c.l.b16 %v16
    %v177 = vunpack.c.h.b16 %v16
    %v178 = vunpack.c.l.b16 %v17
    %v179 = vunpack.c.h.b16 %v17
    %v180 = vunpack.c.l.b16 %v18
    %v181 = vunpack.c.h.b16 %v18
    %v182 = vunpack.c.l.b16 %v19
    %v183 = vunpack.c.h.b16 %v19
    %v184 = vunpack.c.l.b16 %v20
    %v185 = vunpack.c.h.b16 %v20
    %v186 = vunpack.c.l.b16 %v21
    %v187 = vunpack.c.h.b16 %v21
    %v188 = vunpack.c.l.b16 %v22
    %v189 = vunpack.c.h.b16 %v22
    %v190 = vunpack.c.l.b16 %v23
    %v191 = vunpack.c.h.b16 %v23
    %v192 = vunpack.c.l.b16 %v24
    %v193 = vunpack.c.h.b16 %v24
    %v194 = vunpack.c.l.b16 %v25
    %v195 = vunpack.c.h.b16 %v25
    %v196 = vunpack.c.l.b16 %v26
    %v197 = vunpack.c.h.b16 %v26
    %v198 = vunpack.c.l.b16 %v27
    %v199 = vunpack.c.h.b16 %v27
    %v200 = vunpack.c.l.b16 %v28
    %v201 = vunpack.c.h.b16 %v28
    %v202 = vunpack.c.l.b16 %v29
    %v203 = vunpack.c.h.b16 %v29
    %v204 = vunpack.c.l.b16 %v30
    %v205 = vunpack.c.h.b16 %v30
    %v206 = vunpack.c.l.b16 %v31
    %v207 = vunpack.c.h.b16 %v31
    %v208 = vunpack.c.l.b16 %v32
    %v209 = vunpack.c.h.b16 %v32
    %v210 = vunpack.c.l.b16 %v33
    %v211 = vunpack.c.h.b16 %v33
    %v212 = vunpack.c.l.b16 %v34
    %v213 = vunpack.c.h.b16 %v34
    %v214 = vunpack.c.l.b16 %v35
    %v215 = vunpack.c.h.b16 %v35
    %v216 = vunpack.c.l.b16 %v36
    %v217 = vunpack.c.h.b16 %v36
    %v218 = vunpack.c.l.b16 %v37
    %v219 = vunpack.c.h.b16 %v37
    %v220 = vunpack.c.l.b16 %v38
    %v221 = vunpack.c.h.b16 %v38
    %v222 = vunpack.c.l.b16 %v39
    %v223 = vunpack.c.h.b16 %v39
    %v224 = vunpack.c.l.b16 %v40
    %v225 = vunpack.c.h.b16 %v40
    %v226 = vunpack.c.l.b16 %v41
    %v227 = vunpack.c.h.b16 %v41
    %v228 = vunpack.c.l.b16 %v42
    %v229 = vunpack.c.h.b16 %v42
    %v230 = vunpack.c.l.b16 %v43
    %v231 = vunpack.c.h.b16 %v43
    %v232 = vunpack.c.l.b16 %v44
    %v233 = vunpack.c.h.b16 %v44
    %v234 = vunpack.c.l.b16 %v45
    %v235 = vunpack.c.h.b16 %v45
    %v236 = vunpack.c.l.b16 %v46
    %v237 = vunpack.c.h.b16 %v46
    %v238 = vunpack.c.l.b16 %v47
    %v239 = vunpack.c.h.b16 %v47
    %v240 = vunpack.c.l.b16 %v48
    %v241 = vunpack.c.h.b16 %v48
    %v242 = vunpack.c.l.b16 %v49
    %v243 = vunpack.c.h.b16 %v49
    %v244 = vunpack.c.l.b16 %v50
    %v245 = vunpack.c.h.b16 %v50
    %v246 = vunpack.c.l.b16 %v51
    %v247 = vunpack.c.h.b16 %v51
    %v248 = vunpack.c.l.b16 %v52
    %v249 = vunpack.c.h.b16 %v52
    %v250 = vunpack.c.l.b16 %v53
    %v251 = vunpack.c.h.b16 %v53
    %v252 = vunpack.c.l.b16 %v54
    %v253 = vunpack.c.h.b16 %v54
    %v254 = vunpack.c.l.b16 %v55
    %v255 = vunpack.c.h.b16 %v55
    %v256 = vunpack.c.l.b16 %v56
    %v257 = vunpack.c.h.b16 %v56
    %v258 = vunpack.c.l.b16 %v57
    %v259 = vunpack.c.h.b16 %v57
    %v260 = vunpack.c.l.b16 %v58
    %v261 = vunpack.c.h.b16 %v58
    %v262 = vpack.c.b16 %v178, %v174
    %v263 = vpack.c.b16 %v179, %v175
    %v264 = vpack.c.b16 %v180, %v176
    %v265 = vpack.c.b16 %v181, %v177
    %v266 = vpack.c.b16 %v186, %v182
    %v267 = vpack.c.b16 %v187, %v183
    %v268 = vpack.c.b16 %v188, %v184
    %v269 = vpack.c.b16 %v189, %v185
    %v270 = vpack.c.b16 %v194, %v190
    %v271 = vpack.c.b16 %v195, %v191
    %v272 = vpack.c.b16 %v196, %v192
    %v273 = vpack.c.b16 %v197, %v193
    %v274 = vpack.c.b16 %v202, %v198
    %v275 = vpack.c.b16 %v203, %v199
    %v276 = vpack.c.b16 %v204, %v200
    %v277 = vpack.c.b16 %v205, %v201
    %v278 = vpack.c.b16 %v210, %v206
    %v279 = vpack.c.b16 %v211, %v207
    %v280 = vpack.c.b16 %v212, %v208
    %v281 = vpack.c.b16 %v213, %v209
    %v282 = vpack.c.b16 %v218, %v214
    %v283 = vpack.c.b16 %v219, %v215
    %v284 = vpack.c.b16 %v220, %v216
    %v285 = vpack.c.b16 %v221, %v217
    %v286 = vpack.c.b16 %v226, %v222
    %v287 = vpack.c.b16 %v227, %v223
    %v288 = vpack.c.b16 %v228, %v224
    %v289 = vpack.c.b16 %v229, %v225
    %v290 = vpack.c.b16 %v234, %v230
    %v291 = vpack.c.b16 %v235, %v231
    %v292 = vpack.c.b16 %v236, %v232
    %v293 = vpack.c.b16 %v237, %v233
    %v294 = vpack.c.b16 %v242, %v238
    %v295 = vpack.c.b16 %v243, %v239
    %v296 = vpack.c.b16 %v244, %v240
    %v297 = vpack.c.b16 %v245, %v241
    %v298 = vpack.c.b16 %v250, %v246
    %v299 = vpack.c.b16 %v251, %v247
    %v300 = vpack.c.b16 %v252, %v248
    %v301 = vpack.c.b16 %v253, %v249
    %v302 = vpack.c.b16 %v258, %v254
    %v303 = vpack.c.b16 %v259, %v255
    %v304 = vpack.c.b16 %v260, %v256
    %v305 = vpack.c.b16 %v261, %v257
    %v414 = vunpack.c.l.b16 %v59
    %v415 = vunpack.c.l.b16 %v60
    %v416 = vunpack.c.l.b16 %v61
    %v417 = vunpack.c.l.b16 %v62
    %v418 = vunpack.c.l.b16 %v63
    %v419 = vunpack.c.l.b16 %v64
    %v420 = vunpack.c.l.b16 %v65
    %v421 = vunpack.c.l.b16 %v66
    %v422 = vunpack.c.l.b16 %v67
    %v423 = vunpack.c.l.b16 %v68
    %v424 = vunpack.c.l.b16 %v69
    %v425 = vunpack.c.l.b16 %v70
    %v426 = vunpack.c.l.b16 %v71
    %v427 = vunpack.c.l.b16 %v72
    %v428 = vunpack.c.l.b16 %v73
    %v429 = vunpack.c.l.b16 %v74
    %v430 = vunpack.c.l.b16 %v75
    %v431 = vunpack.c.l.b16 %v76
    %v432 = vunpack.c.l.b16 %v77
    %v433 = vunpack.c.l.b16 %v78
    %v434 = vunpack.c.l.b16 %v79
    %v435 = vunpack.c.l.b16 %v80
    %v436 = vunpack.c.l.b16 %v81
    %v437 = vunpack.c.l.b16 %v82
    %v438 = vunpack.c.l.b16 %v83
    %v439 = vunpack.c.l.b16 %v84
    %v440 = vunpack.c.l.b16 %v85
    %v441 = vunpack.c.l.b16 %v86
    %v442 = vunpack.c.l.b16 %v87
    %v443 = vunpack.c.l.b16 %v88
    %v444 = vunpack.c.l.b16 %v89
    %v445 = vunpack.c.l.b16 %v90
    %v446 = vunpack.c.l.b16 %v91
    %v447 = vunpack.c.l.b16 %v92
    %v448 = vunpack.c.l.b16 %v93
    %v449 = vunpack.c.l.b16 %v94
    %v450 = vunpack.c.l.b16 %v95
    %v451 = vunpack.c.l.b16 %v96
    %v452 = vunpack.c.l.b16 %v97
    %v453 = vunpack.c.l.b16 %v98
    %v454 = vunpack.c.l.b16 %v99
    %v455 = vunpack.c.l.b16 %v100
    %v456 = vunpack.c.l.b16 %v101
    %v457 = vunpack.c.l.b16 %v102
    %v458 = vunpack.c.l.b16 %v103
    %v459 = vunpack.c.l.b16 %v104
    %v460 = vunpack.c.l.b16 %v105
    %v461 = vunpack.c.l.b16 %v106
    %v462 = vunpack.c.l.b16 %v107
    %v463 = vunpack.c.l.b16 %v108
    %v464 = vunpack.c.l.b16 %v109
    %v465 = vunpack.c.l.b16 %v110
    %v466 = vunpack.c.l.b16 %v111
    %v467 = vunpack.c.l.b16 %v112
    %v468 = vunpack.c.l.b16 %v113
    %v469 = vunpack.c.l.b16 %v114
    %v470 = vunpack.c.l.b16 %v115
    %v471 = vunpack.c.l.b16 %v116
    %v472 = vunpack.c.l.b16 %v117
    %v473 = vunpack.c.l.b16 %v118
    %v474 = vunpack.c.l.b16 %v119
    %v475 = vunpack.c.l.b16 %v120
    %v476 = vunpack.c.l.b16 %v121
    %v477 = vunpack.c.l.b16 %v122
    %v478 = vpack.c.b16 %v415, %v414
    %v479 = vpack.c.b16 %v417, %v416
    %v480 = vpack.c.b16 %v419, %v418
    %v481 = vpack.c.b16 %v421, %v420
    %v482 = vpack.c.b16 %v423, %v422
    %v483 = vpack.c.b16 %v425, %v424
    %v484 = vpack.c.b16 %v427, %v426
    %v485 = vpack.c.b16 %v429, %v428
    %v486 = vpack.c.b16 %v431, %v430
    %v487 = vpack.c.b16 %v433, %v432
    %v488 = vpack.c.b16 %v435, %v434
    %v489 = vpack.c.b16 %v437, %v436
    %v490 = vpack.c.b16 %v439, %v438
    %v491 = vpack.c.b16 %v441, %v440
    %v492 = vpack.c.b16 %v443, %v442
    %v493 = vpack.c.b16 %v445, %v444
    %v494 = vpack.c.b16 %v447, %v446
    %v495 = vpack.c.b16 %v449, %v448
    %v496 = vpack.c.b16 %v451, %v450
    %v497 = vpack.c.b16 %v453, %v452
    %v498 = vpack.c.b16 %v455, %v454
    %v499 = vpack.c.b16 %v457, %v456
    %v500 = vpack.c.b16 %v459, %v458
    %v501 = vpack.c.b16 %v461, %v460
    %v502 = vpack.c.b16 %v463, %v462
    %v503 = vpack.c.b16 %v465, %v464
    %v504 = vpack.c.b16 %v467, %v466
    %v505 = vpack.c.b16 %v469, %v468
    %v506 = vpack.c.b16 %v471, %v470
    %v507 = vpack.c.b16 %v473, %v472
    %v508 = vpack.c.b16 %v475, %v474
    %v509 = vpack.c.b16 %v477, %v476
    %542 = vmatprep.subr.bf16.mxu0 0
    %543 = vmatpush1.bf16.msra.mxu0 %v478
    %544 = vmatprep.subr.bf16.mxu0 0
    %545 = vmatpush1.bf16.msra.mxu0 %v479
    %546 = vmatprep.subr.bf16.mxu0 0
    %547 = vmatpush1.bf16.msra.mxu0 %v480
    %548 = vmatprep.subr.bf16.mxu0 0
    %549 = vmatpush1.bf16.msra.mxu0 %v481
    %550 = vmatprep.subr.bf16.mxu0 0
    %551 = vmatpush1.bf16.msra.mxu0 %v482
    %552 = vmatprep.subr.bf16.mxu0 0
    %553 = vmatpush1.bf16.msra.mxu0 %v483
    %554 = vmatprep.subr.bf16.mxu0 0
    %555 = vmatpush1.bf16.msra.mxu0 %v484
    %556 = vmatprep.subr.bf16.mxu0 0
    %557 = vmatpush1.bf16.msra.mxu0 %v485
    %558 = vmatprep.subr.bf16.mxu0 0
    %559 = vmatpush1.bf16.msra.mxu0 %v486
    %560 = vmatprep.subr.bf16.mxu0 0
    %561 = vmatpush1.bf16.msra.mxu0 %v487
    %562 = vmatprep.subr.bf16.mxu0 0
    %563 = vmatpush1.bf16.msra.mxu0 %v488
    %564 = vmatprep.subr.bf16.mxu0 0
    %565 = vmatpush1.bf16.msra.mxu0 %v489
    %566 = vmatprep.subr.bf16.mxu0 0
    %567 = vmatpush1.bf16.msra.mxu0 %v490
    %568 = vmatprep.subr.bf16.mxu0 0
    %569 = vmatpush1.bf16.msra.mxu0 %v491
    %570 = vmatprep.subr.bf16.mxu0 0
    %571 = vmatpush1.bf16.msra.mxu0 %v492
    %572 = vmatprep.subr.bf16.mxu0 0
    %573 = vmatpush1.bf16.msra.mxu0 %v493
    %574 = vmatprep.mubr.bf16.mxu0 %v263
    %575 = vmatmul.mubr.bf16.gmra.mrb[0].mxu0 %v262
    %v576 = vpop.f32.mrb[0].mxu0
    %v577 = vadd.f32 %v128, %v576
    %v578 = vpop.f32.mrb[0].mxu0
    %v579 = vpop.f32.mrb[0].mxu0
    %v580 = vadd.f32 %v128, %v579
    %v581 = vpop.f32.mrb[0].mxu0
    %582 = vmatprep.mubr.bf16.mxu0 %v267
    %583 = vmatmul.mubr.bf16.gmra.mrb[0].mxu0 %v266
    %v584 = vpop.f32.mrb[0].mxu0
    %v585 = vadd.f32 %v128, %v584
    %v586 = vpop.f32.mrb[0].mxu0
    %v587 = vpop.f32.mrb[0].mxu0
    %v588 = vadd.f32 %v128, %v587
    %v589 = vpop.f32.mrb[0].mxu0
    %590 = vmatprep.mubr.bf16.mxu0 %v271
    %591 = vmatmul.mubr.bf16.gmra.mrb[0].mxu0 %v270
    %v592 = vpop.f32.mrb[0].mxu0
    %v593 = vadd.f32 %v128, %v592
    %v594 = vpop.f32.mrb[0].mxu0
    %v595 = vpop.f32.mrb[0].mxu0
    %v596 = vadd.f32 %v128, %v595
    %v597 = vpop.f32.mrb[0].mxu0
    %598 = vmatprep.mubr.bf16.mxu0 %v275
    %599 = vmatmul.mubr.bf16.gmra.mrb[0].mxu0 %v274
    %v600 = vpop.f32.mrb[0].mxu0
    %v601 = vadd.f32 %v128, %v600
    %v602 = vpop.f32.mrb[0].mxu0
    %v603 = vpop.f32.mrb[0].mxu0
    %v604 = vadd.f32 %v128, %v603
    %v605 = vpop.f32.mrb[0].mxu0
    %606 = vmatprep.mubr.bf16.mxu0 %v279
    %607 = vmatmul.mubr.bf16.gmra.mrb[0].mxu0 %v278
    %v608 = vpop.f32.mrb[0].mxu0
    %v609 = vadd.f32 %v128, %v608
    %v610 = vpop.f32.mrb[0].mxu0
    %v611 = vpop.f32.mrb[0].mxu0
    %v612 = vadd.f32 %v128, %v611
    %v613 = vpop.f32.mrb[0].mxu0
    %614 = vmatprep.mubr.bf16.mxu0 %v283
    %615 = vmatmul.mubr.bf16.gmra.mrb[0].mxu0 %v282
    %v616 = vpop.f32.mrb[0].mxu0
    %v617 = vadd.f32 %v128, %v616
    %v618 = vpop.f32.mrb[0].mxu0
    %v619 = vpop.f32.mrb[0].mxu0
    %v620 = vadd.f32 %v128, %v619
    %v621 = vpop.f32.mrb[0].mxu0
    %622 = vmatprep.mubr.bf16.mxu0 %v287
    %623 = vmatmul.mubr.bf16.gmra.mrb[0].mxu0 %v286
    %v624 = vpop.f32.mrb[0].mxu0
    %v625 = vadd.f32 %v128, %v624
    %v626 = vpop.f32.mrb[0].mxu0
    %v627 = vpop.f32.mrb[0].mxu0
    %v628 = vadd.f32 %v128, %v627
    %v629 = vpop.f32.mrb[0].mxu0
    %630 = vmatprep.mubr.bf16.mxu0 %v291
    %631 = vmatmul.mubr.bf16.gmra.mrb[0].mxu0 %v290
    %v632 = vpop.f32.mrb[0].mxu0
    %v633 = vadd.f32 %v128, %v632
    %v634 = vpop.f32.mrb[0].mxu0
    %v635 = vpop.f32.mrb[0].mxu0
    %v636 = vadd.f32 %v128, %v635
    %v637 = vpop.f32.mrb[0].mxu0
    %638 = vmatprep.mubr.bf16.mxu0 %v295
    %639 = vmatmul.mubr.bf16.gmra.mrb[0].mxu0 %v294
    %v640 = vpop.f32.mrb[0].mxu0
    %v641 = vadd.f32 %v128, %v640
    %v642 = vpop.f32.mrb[0].mxu0
    %v643 = vpop.f32.mrb[0].mxu0
    %v644 = vadd.f32 %v128, %v643
    %v645 = vpop.f32.mrb[0].mxu0
    %646 = vmatprep.mubr.bf16.mxu0 %v299
    %647 = vmatmul.mubr.bf16.gmra.mrb[0].mxu0 %v298
    %v648 = vpop.f32.mrb[0].mxu0
    %v649 = vadd.f32 %v128, %v648
    %v650 = vpop.f32.mrb[0].mxu0
    %v651 = vpop.f32.mrb[0].mxu0
    %v652 = vadd.f32 %v128, %v651
    %v653 = vpop.f32.mrb[0].mxu0
    %654 = vmatprep.mubr.bf16.mxu0 %v303
    %655 = vmatmul.mubr.bf16.gmra.mrb[0].mxu0 %v302
    %v656 = vpop.f32.mrb[0].mxu0
    %v657 = vadd.f32 %v128, %v656
    %v658 = vpop.f32.mrb[0].mxu0
    %v659 = vpop.f32.mrb[0].mxu0
    %v660 = vadd.f32 %v128, %v659
    %v661 = vpop.f32.mrb[0].mxu0
    %662 = vdwg.mxu0
    %663 = vmatprep.subr.bf16.mxu0 0
    %664 = vmatpush1.bf16.msra.mxu0 %v494
    %665 = vmatprep.subr.bf16.mxu0 0
    %666 = vmatpush1.bf16.msra.mxu0 %v495
    %667 = vmatprep.subr.bf16.mxu0 0
    %668 = vmatpush1.bf16.msra.mxu0 %v496
    %669 = vmatprep.subr.bf16.mxu0 0
    %670 = vmatpush1.bf16.msra.mxu0 %v497
    %671 = vmatprep.subr.bf16.mxu0 0
    %672 = vmatpush1.bf16.msra.mxu0 %v498
    %673 = vmatprep.subr.bf16.mxu0 0
    %674 = vmatpush1.bf16.msra.mxu0 %v499
    %675 = vmatprep.subr.bf16.mxu0 0
    %676 = vmatpush1.bf16.msra.mxu0 %v500
    %677 = vmatprep.subr.bf16.mxu0 0
    %678 = vmatpush1.bf16.msra.mxu0 %v501
    %679 = vmatprep.subr.bf16.mxu0 0
    %680 = vmatpush1.bf16.msra.mxu0 %v502
    %681 = vmatprep.subr.bf16.mxu0 0
    %682 = vmatpush1.bf16.msra.mxu0 %v503
    %683 = vmatprep.subr.bf16.mxu0 0
    %684 = vmatpush1.bf16.msra.mxu0 %v504
    %685 = vmatprep.subr.bf16.mxu0 0
    %686 = vmatpush1.bf16.msra.mxu0 %v505
    %687 = vmatprep.subr.bf16.mxu0 0
    %688 = vmatpush1.bf16.msra.mxu0 %v506
    %689 = vmatprep.subr.bf16.mxu0 0
    %690 = vmatpush1.bf16.msra.mxu0 %v507
    %691 = vmatprep.subr.bf16.mxu0 0
    %692 = vmatpush1.bf16.msra.mxu0 %v508
    %693 = vmatprep.subr.bf16.mxu0 0
    %694 = vmatpush1.bf16.msra.mxu0 %v509
    %695 = vmatprep.mubr.bf16.mxu0 %v265
    %696 = vmatmul.mubr.bf16.gmra.mrb[0].mxu0 %v264
    %v697 = vpop.f32.mrb[0].mxu0
    %v698 = vadd.f32 %v577, %v697
    %v699 = vpop.f32.mrb[0].mxu0
    %v700 = vpop.f32.mrb[0].mxu0
    %v701 = vadd.f32 %v580, %v700
    %v702 = vpop.f32.mrb[0].mxu0
    %703 = vmatprep.mubr.bf16.mxu0 %v269
    %704 = vmatmul.mubr.bf16.gmra.mrb[0].mxu0 %v268
    %v705 = vpop.f32.mrb[0].mxu0
    %v706 = vadd.f32 %v585, %v705
    %v707 = vpop.f32.mrb[0].mxu0
    %v708 = vpop.f32.mrb[0].mxu0
    %v709 = vadd.f32 %v588, %v708
    %v710 = vpop.f32.mrb[0].mxu0
    %711 = vmatprep.mubr.bf16.mxu0 %v273
    %712 = vmatmul.mubr.bf16.gmra.mrb[0].mxu0 %v272
    %v713 = vpop.f32.mrb[0].mxu0
    %v714 = vadd.f32 %v593, %v713
    %v715 = vpop.f32.mrb[0].mxu0
    %v716 = vpop.f32.mrb[0].mxu0
    %v717 = vadd.f32 %v596, %v716
    %v718 = vpop.f32.mrb[0].mxu0
    %719 = vmatprep.mubr.bf16.mxu0 %v277
    %720 = vmatmul.mubr.bf16.gmra.mrb[0].mxu0 %v276
    %v721 = vpop.f32.mrb[0].mxu0
    %v722 = vadd.f32 %v601, %v721
    %v723 = vpop.f32.mrb[0].mxu0
    %v724 = vpop.f32.mrb[0].mxu0
    %v725 = vadd.f32 %v604, %v724
    %v726 = vpop.f32.mrb[0].mxu0
    %727 = vmatprep.mubr.bf16.mxu0 %v281
    %728 = vmatmul.mubr.bf16.gmra.mrb[0].mxu0 %v280
    %v729 = vpop.f32.mrb[0].mxu0
    %v730 = vadd.f32 %v609, %v729
    %v731 = vpop.f32.mrb[0].mxu0
    %v732 = vpop.f32.mrb[0].mxu0
    %v733 = vadd.f32 %v612, %v732
    %v734 = vpop.f32.mrb[0].mxu0
    %735 = vmatprep.mubr.bf16.mxu0 %v285
    %736 = vmatmul.mubr.bf16.gmra.mrb[0].mxu0 %v284
    %v737 = vpop.f32.mrb[0].mxu0
    %v738 = vadd.f32 %v617, %v737
    %v739 = vpop.f32.mrb[0].mxu0
    %v740 = vpop.f32.mrb[0].mxu0
    %v741 = vadd.f32 %v620, %v740
    %v742 = vpop.f32.mrb[0].mxu0
    %743 = vmatprep.mubr.bf16.mxu0 %v289
    %744 = vmatmul.mubr.bf16.gmra.mrb[0].mxu0 %v288
    %v745 = vpop.f32.mrb[0].mxu0
    %v746 = vadd.f32 %v625, %v745
    %v747 = vpop.f32.mrb[0].mxu0
    %v748 = vpop.f32.mrb[0].mxu0
    %v749 = vadd.f32 %v628, %v748
    %v750 = vpop.f32.mrb[0].mxu0
    %751 = vmatprep.mubr.bf16.mxu0 %v293
    %752 = vmatmul.mubr.bf16.gmra.mrb[0].mxu0 %v292
    %v753 = vpop.f32.mrb[0].mxu0
    %v754 = vadd.f32 %v633, %v753
    %v755 = vpop.f32.mrb[0].mxu0
    %v756 = vpop.f32.mrb[0].mxu0
    %v757 = vadd.f32 %v636, %v756
    %v758 = vpop.f32.mrb[0].mxu0
    %759 = vmatprep.mubr.bf16.mxu0 %v297
    %760 = vmatmul.mubr.bf16.gmra.mrb[0].mxu0 %v296
    %v761 = vpop.f32.mrb[0].mxu0
    %v762 = vadd.f32 %v641, %v761
    %v763 = vpop.f32.mrb[0].mxu0
    %v764 = vpop.f32.mrb[0].mxu0
    %v765 = vadd.f32 %v644, %v764
    %v766 = vpop.f32.mrb[0].mxu0
    %767 = vmatprep.mubr.bf16.mxu0 %v301
    %768 = vmatmul.mubr.bf16.gmra.mrb[0].mxu0 %v300
    %v769 = vpop.f32.mrb[0].mxu0
    %v770 = vadd.f32 %v649, %v769
    %v771 = vpop.f32.mrb[0].mxu0
    %v772 = vpop.f32.mrb[0].mxu0
    %v773 = vadd.f32 %v652, %v772
    %v774 = vpop.f32.mrb[0].mxu0
    %775 = vmatprep.mubr.bf16.mxu0 %v305
    %776 = vmatmul.mubr.bf16.gmra.mrb[0].mxu0 %v304
    %v777 = vpop.f32.mrb[0].mxu0
    %v778 = vadd.f32 %v657, %v777
    %v779 = vpop.f32.mrb[0].mxu0
    %v780 = vpop.f32.mrb[0].mxu0
    %v781 = vadd.f32 %v660, %v780
    %v782 = vpop.f32.mrb[0].mxu0
    %783 = vdwg.mxu0
    %v784 = vmax.f32 %v698, 0.0
    %v785 = vmax.f32 %v701, 0.0
    %v786 = vmax.f32 %v706, 0.0
    %v787 = vmax.f32 %v709, 0.0
    %v788 = vmax.f32 %v714, 0.0
    %v789 = vmax.f32 %v717, 0.0
    %v790 = vmax.f32 %v722, 0.0
    %v791 = vmax.f32 %v725, 0.0
    %v792 = vmax.f32 %v730, 0.0
    %v793 = vmax.f32 %v733, 0.0
    %v794 = vmax.f32 %v738, 0.0
    %v795 = vmax.f32 %v741, 0.0
    %v796 = vmax.f32 %v746, 0.0
    %v797 = vmax.f32 %v749, 0.0
    %v798 = vmax.f32 %v754, 0.0
    %v799 = vmax.f32 %v757, 0.0
    %v800 = vmax.f32 %v762, 0.0
    %v801 = vmax.f32 %v765, 0.0
    %v802 = vmax.f32 %v770, 0.0
    %v803 = vmax.f32 %v773, 0.0
    %v804 = vmax.f32 %v778, 0.0
    %v805 = vmax.f32 %v781, 0.0
    %v806 = vpack.c.bf16 %v785, %v784
    %v807 = vpack.c.bf16 %v787, %v786
    %v808 = vpack.c.bf16 %v789, %v788
    %v809 = vpack.c.bf16 %v791, %v790
    %v810 = vpack.c.bf16 %v793, %v792
    %v811 = vpack.c.bf16 %v795, %v794
    %v812 = vpack.c.bf16 %v797, %v796
    %v813 = vpack.c.bf16 %v799, %v798
    %v814 = vpack.c.bf16 %v801, %v800
    %v815 = vpack.c.bf16 %v803, %v802
    %v816 = vpack.c.bf16 %v805, %v804
    %v828 = vunpack.c.l.b16 %v806
    %v829 = vunpack.c.h.b16 %v806
    %v830 = vunpack.c.l.b16 %v807
    %v831 = vunpack.c.h.b16 %v807
    %v832 = vunpack.c.l.b16 %v808
    %v833 = vunpack.c.h.b16 %v808
    %v834 = vunpack.c.l.b16 %v809
    %v835 = vunpack.c.h.b16 %v809
    %v836 = vunpack.c.l.b16 %v810
    %v837 = vunpack.c.h.b16 %v810
    %v838 = vunpack.c.l.b16 %v811
    %v839 = vunpack.c.h.b16 %v811
    %v840 = vunpack.c.l.b16 %v812
    %v841 = vunpack.c.h.b16 %v812
    %v842 = vunpack.c.l.b16 %v813
    %v843 = vunpack.c.h.b16 %v813
    %v844 = vunpack.c.l.b16 %v814
    %v845 = vunpack.c.h.b16 %v814
    %v846 = vunpack.c.l.b16 %v815
    %v847 = vunpack.c.h.b16 %v815
    %v848 = vunpack.c.l.b16 %v816
    %v849 = vunpack.c.h.b16 %v816
    %v850 = vpack.c.b16 %v828, %v828
    %v851 = vpack.c.b16 %v829, %v829
    %v852 = vpack.c.b16 %v830, %v830
    %v853 = vpack.c.b16 %v831, %v831
    %v854 = vpack.c.b16 %v832, %v832
    %v855 = vpack.c.b16 %v833, %v833
    %v856 = vpack.c.b16 %v834, %v834
    %v857 = vpack.c.b16 %v835, %v835
    %v858 = vpack.c.b16 %v836, %v836
    %v859 = vpack.c.b16 %v837, %v837
    %v860 = vpack.c.b16 %v838, %v838
    %v861 = vpack.c.b16 %v839, %v839
    %v862 = vpack.c.b16 %v840, %v840
    %v863 = vpack.c.b16 %v841, %v841
    %v864 = vpack.c.b16 %v842, %v842
    %v865 = vpack.c.b16 %v843, %v843
    %v866 = vpack.c.b16 %v844, %v844
    %v867 = vpack.c.b16 %v845, %v845
    %v868 = vpack.c.b16 %v846, %v846
    %v869 = vpack.c.b16 %v847, %v847
    %v870 = vpack.c.b16 %v848, %v848
    %v871 = vpack.c.b16 %v849, %v849
    %vm894 = vcmask 519168
    %895 = vst.msk [vmem:[#allocation2] sm:$0xf] %vm894, %v850
    %896 = vst.msk [vmem:[#allocation2 + $0x4] sm:$0xf] %vm894, %v851
    %897 = vst.msk [vmem:[#allocation2 + $0x8] sm:$0xf] %vm894, %v852
    %898 = vst.msk [vmem:[#allocation2 + $0xc] sm:$0xf] %vm894, %v853
    %899 = vst.msk [vmem:[#allocation2 + $0x10] sm:$0xf] %vm894, %v854
    %900 = vst.msk [vmem:[#allocation2 + $0x14] sm:$0xf] %vm894, %v855
    %901 = vst.msk [vmem:[#allocation2 + $0x18] sm:$0xf] %vm894, %v856
    %902 = vst.msk [vmem:[#allocation2 + $0x1c] sm:$0xf] %vm894, %v857
    %903 = vst.msk [vmem:[#allocation2 + $0x20] sm:$0xf] %vm894, %v858
    %904 = vst.msk [vmem:[#allocation2 + $0x24] sm:$0xf] %vm894, %v859
    %905 = vst.msk [vmem:[#allocation2 + $0x28] sm:$0xf] %vm894, %v860
    %906 = vst.msk [vmem:[#allocation2 + $0x2c] sm:$0xf] %vm894, %v861
    %907 = vst.msk [vmem:[#allocation2 + $0x30] sm:$0xf] %vm894, %v862
    %908 = vst.msk [vmem:[#allocation2 + $0x34] sm:$0xf] %vm894, %v863
    %909 = vst.msk [vmem:[#allocation2 + $0x38] sm:$0xf] %vm894, %v864
    %910 = vst.msk [vmem:[#allocation2 + $0x3c] sm:$0xf] %vm894, %v865
    %911 = vst.msk [vmem:[#allocation2 + $0x40] sm:$0xf] %vm894, %v866
    %912 = vst.msk [vmem:[#allocation2 + $0x44] sm:$0xf] %vm894, %v867
    %913 = vst.msk [vmem:[#allocation2 + $0x48] sm:$0xf] %vm894, %v868
    %914 = vst.msk [vmem:[#allocation2 + $0x4c] sm:$0xf] %vm894, %v869
    %915 = vst.msk [vmem:[#allocation2 + $0x50] sm:$0xf] %vm894, %v870
    %916 = vst.msk [vmem:[#allocation2 + $0x54] sm:$0xf] %vm894, %v871
    // Predicated region
    $region14: #{nature_conv_body_forward.5} parent=1 // pred_check
      _
    $region15: #{nature_conv_body_forward.5} parent=1 // pred_check_branch
      %918 = sbr.rel (0) target = $region17
    $region16: #{nature_conv_body_forward.5} parent=1 // pred_region
      // Predicated region
      $region18: #{nature_conv_body_forward.5} parent=16 // pred_check
        _
      $region19: #{nature_conv_body_forward.5} parent=16 // pred_check_branch
        %920 = sbr.rel (0) target = $region21
      $region20: #{nature_conv_body_forward.5} parent=16 // pred_region
        // Predicated region
        $region22: #{nature_conv_body_forward.5} parent=20 // pred_check
          _
        $region23: #{nature_conv_body_forward.5} parent=20 // pred_check_branch
          %922 = sbr.rel target = $region25
        $region24: #{nature_conv_body_forward.5} parent=20 // pred_region
          // Predicated region
          $region37: #{nature_conv_body_forward.5} parent=24 // pred_check
            _
          $region38: #{nature_conv_body_forward.5} parent=24 // pred_check_branch
            %977 = sbr.rel (0) target = $region40
          $region39: #{nature_conv_body_forward.5} parent=24 // pred_region
            loop: start=0, step=1, limit=1
            $region41: #{nature_conv_body_forward.5} parent=39 // loop_pre_header
              _
            $region42: #{nature_conv_body_forward.5} parent=39 // loop_header
              %s979 = sphi 0, %s983
              %p980 = scmp.ge.s32.totalorder %s979, 1
              %s984 = sphi [#allocation2], [#allocation2]
              %s985 = sphi %s3, %s3
            $region43: #{nature_conv_body_forward.5} parent=39 // loop_header_branch
              %982 = sbr.rel (%p980) target = $region47
            $region44: #{nature_conv_body_forward.5} parent=39 // loop_body
              _
            $region45: #{nature_conv_body_forward.5} parent=39 // loop_footer
              %s983 = sadd.s32 1, %s979
            $region46: #{nature_conv_body_forward.5} parent=39 // loop_footer_branch
              %978 = sbr.rel target = $region42
            $region47: #{nature_conv_body_forward.5} parent=39 // loop_exit
              _
            loop: start=0, step=1, limit=1
            $region48: #{nature_conv_body_forward.5} parent=39 // loop_pre_header
              _
            $region49: #{nature_conv_body_forward.5} parent=39 // loop_header
              %s988 = sphi 0, %s992
              %p989 = scmp.ge.s32.totalorder %s988, 1
              %s993 = sphi [#allocation2], [#allocation2]
              %s994 = sphi %s3, %s3
            $region50: #{nature_conv_body_forward.5} parent=39 // loop_header_branch
              %991 = sbr.rel (%p989) target = $region54
            $region51: #{nature_conv_body_forward.5} parent=39 // loop_body
              %v995 = vld [vmem:[%s993] sm:$0xf]
              %996 = vst [vmem:[%s994] sm:$0xf] %v995
              %v997 = vld [vmem:[%s993 + $0x4] sm:$0xf]
              %998 = vst [vmem:[%s994 + $0x4] sm:$0xf] %v997
              %v999 = vld [vmem:[%s993 + $0x8] sm:$0xf]
              %1000 = vst [vmem:[%s994 + $0x8] sm:$0xf] %v999
              %v1001 = vld [vmem:[%s993 + $0xc] sm:$0xf]
              %1002 = vst [vmem:[%s994 + $0xc] sm:$0xf] %v1001
              %v1003 = vld [vmem:[%s993 + $0x10] sm:$0xf]
              %1004 = vst [vmem:[%s994 + $0x10] sm:$0xf] %v1003
              %v1005 = vld [vmem:[%s993 + $0x14] sm:$0xf]
              %1006 = vst [vmem:[%s994 + $0x14] sm:$0xf] %v1005
              %v1007 = vld [vmem:[%s993 + $0x18] sm:$0xf]
              %1008 = vst [vmem:[%s994 + $0x18] sm:$0xf] %v1007
              %v1009 = vld [vmem:[%s993 + $0x1c] sm:$0xf]
              %1010 = vst [vmem:[%s994 + $0x1c] sm:$0xf] %v1009
              %v1011 = vld [vmem:[%s993 + $0x20] sm:$0xf]
              %1012 = vst [vmem:[%s994 + $0x20] sm:$0xf] %v1011
              %v1013 = vld [vmem:[%s993 + $0x24] sm:$0xf]
              %1014 = vst [vmem:[%s994 + $0x24] sm:$0xf] %v1013
              %v1015 = vld [vmem:[%s993 + $0x28] sm:$0xf]
              %1016 = vst [vmem:[%s994 + $0x28] sm:$0xf] %v1015
              %v1017 = vld [vmem:[%s993 + $0x2c] sm:$0xf]
              %1018 = vst [vmem:[%s994 + $0x2c] sm:$0xf] %v1017
              %v1019 = vld [vmem:[%s993 + $0x30] sm:$0xf]
              %1020 = vst [vmem:[%s994 + $0x30] sm:$0xf] %v1019
              %v1021 = vld [vmem:[%s993 + $0x34] sm:$0xf]
              %1022 = vst [vmem:[%s994 + $0x34] sm:$0xf] %v1021
              %v1023 = vld [vmem:[%s993 + $0x38] sm:$0xf]
              %1024 = vst [vmem:[%s994 + $0x38] sm:$0xf] %v1023
              %v1025 = vld [vmem:[%s993 + $0x3c] sm:$0xf]
              %1026 = vst [vmem:[%s994 + $0x3c] sm:$0xf] %v1025
              %v1027 = vld [vmem:[%s993 + $0x40] sm:$0xf]
              %1028 = vst [vmem:[%s994 + $0x40] sm:$0xf] %v1027
              %v1029 = vld [vmem:[%s993 + $0x44] sm:$0xf]
              %1030 = vst [vmem:[%s994 + $0x44] sm:$0xf] %v1029
              %v1031 = vld [vmem:[%s993 + $0x48] sm:$0xf]
              %1032 = vst [vmem:[%s994 + $0x48] sm:$0xf] %v1031
              %v1033 = vld [vmem:[%s993 + $0x4c] sm:$0xf]
              %1034 = vst [vmem:[%s994 + $0x4c] sm:$0xf] %v1033
              %v1035 = vld [vmem:[%s993 + $0x50] sm:$0xf]
              %1036 = vst [vmem:[%s994 + $0x50] sm:$0xf] %v1035
            $region52: #{nature_conv_body_forward.5} parent=39 // loop_footer
              %s992 = sadd.s32 1, %s988
            $region53: #{nature_conv_body_forward.5} parent=39 // loop_footer_branch
              %987 = sbr.rel target = $region49
            $region54: #{nature_conv_body_forward.5} parent=39 // loop_exit
              _
          $region40: #{nature_conv_body_forward.5} parent=24 // pred_fallthru
            _
        $region25: #{nature_conv_body_forward.5} parent=20 // pred_fallthru
          _
        // Predicated region
        $region26: #{nature_conv_body_forward.5} parent=20 // pred_check
          _
        $region27: #{nature_conv_body_forward.5} parent=20 // pred_check_branch
          %924 = sbr.rel (0) target = $region29
        $region28: #{nature_conv_body_forward.5} parent=20 // pred_region
          loop: start=0, step=1, limit=1
          $region30: #{nature_conv_body_forward.5} parent=28 // loop_pre_header
            _
          $region31: #{nature_conv_body_forward.5} parent=28 // loop_header
            %s927 = sphi 0, %s931
            %p928 = scmp.ge.s32.totalorder %s927, 1
            %s932 = sphi [#allocation2], [#allocation2]
            %s933 = sphi %s3, %s3
          $region32: #{nature_conv_body_forward.5} parent=28 // loop_header_branch
            %930 = sbr.rel (%p928) target = $region36
          $region33: #{nature_conv_body_forward.5} parent=28 // loop_body
            %v934 = vld [vmem:[%s932] sm:$0xf]
            %935 = vst [vmem:[%s933] sm:$0xf] %v934
            %v936 = vld [vmem:[%s932 + $0x4] sm:$0xf]
            %937 = vst [vmem:[%s933 + $0x4] sm:$0xf] %v936
            %v938 = vld [vmem:[%s932 + $0x8] sm:$0xf]
            %939 = vst [vmem:[%s933 + $0x8] sm:$0xf] %v938
            %v940 = vld [vmem:[%s932 + $0xc] sm:$0xf]
            %941 = vst [vmem:[%s933 + $0xc] sm:$0xf] %v940
            %v942 = vld [vmem:[%s932 + $0x10] sm:$0xf]
            %943 = vst [vmem:[%s933 + $0x10] sm:$0xf] %v942
            %v944 = vld [vmem:[%s932 + $0x14] sm:$0xf]
            %945 = vst [vmem:[%s933 + $0x14] sm:$0xf] %v944
            %v946 = vld [vmem:[%s932 + $0x18] sm:$0xf]
            %947 = vst [vmem:[%s933 + $0x18] sm:$0xf] %v946
            %v948 = vld [vmem:[%s932 + $0x1c] sm:$0xf]
            %949 = vst [vmem:[%s933 + $0x1c] sm:$0xf] %v948
            %v950 = vld [vmem:[%s932 + $0x20] sm:$0xf]
            %951 = vst [vmem:[%s933 + $0x20] sm:$0xf] %v950
            %v952 = vld [vmem:[%s932 + $0x24] sm:$0xf]
            %953 = vst [vmem:[%s933 + $0x24] sm:$0xf] %v952
            %v954 = vld [vmem:[%s932 + $0x28] sm:$0xf]
            %955 = vst [vmem:[%s933 + $0x28] sm:$0xf] %v954
            %v956 = vld [vmem:[%s932 + $0x2c] sm:$0xf]
            %957 = vst [vmem:[%s933 + $0x2c] sm:$0xf] %v956
            %v958 = vld [vmem:[%s932 + $0x30] sm:$0xf]
            %959 = vst [vmem:[%s933 + $0x30] sm:$0xf] %v958
            %v960 = vld [vmem:[%s932 + $0x34] sm:$0xf]
            %961 = vst [vmem:[%s933 + $0x34] sm:$0xf] %v960
            %v962 = vld [vmem:[%s932 + $0x38] sm:$0xf]
            %963 = vst [vmem:[%s933 + $0x38] sm:$0xf] %v962
            %v964 = vld [vmem:[%s932 + $0x3c] sm:$0xf]
            %965 = vst [vmem:[%s933 + $0x3c] sm:$0xf] %v964
            %v966 = vld [vmem:[%s932 + $0x40] sm:$0xf]
            %967 = vst [vmem:[%s933 + $0x40] sm:$0xf] %v966
            %v968 = vld [vmem:[%s932 + $0x44] sm:$0xf]
            %969 = vst [vmem:[%s933 + $0x44] sm:$0xf] %v968
            %v970 = vld [vmem:[%s932 + $0x48] sm:$0xf]
            %971 = vst [vmem:[%s933 + $0x48] sm:$0xf] %v970
            %v972 = vld [vmem:[%s932 + $0x4c] sm:$0xf]
            %973 = vst [vmem:[%s933 + $0x4c] sm:$0xf] %v972
            %v974 = vld [vmem:[%s932 + $0x50] sm:$0xf]
            %975 = vst [vmem:[%s933 + $0x50] sm:$0xf] %v974
          $region34: #{nature_conv_body_forward.5} parent=28 // loop_footer
            %s931 = sadd.s32 1, %s927
          $region35: #{nature_conv_body_forward.5} parent=28 // loop_footer_branch
            %926 = sbr.rel target = $region31
          $region36: #{nature_conv_body_forward.5} parent=28 // loop_exit
            _
        $region29: #{nature_conv_body_forward.5} parent=20 // pred_fallthru
          _
      $region21: #{nature_conv_body_forward.5} parent=16 // pred_fallthru
        _
      %1037 = vnop
    $region17: #{nature_conv_body_forward.5} parent=1 // pred_fallthru
      _
    // Predicated region
    $region55: #{nature_conv_body_forward.5} parent=1 // pred_check
      _
    $region56: #{nature_conv_body_forward.5} parent=1 // pred_check_branch
      %1039 = sbr.rel (0) target = $region58
    $region57: #{nature_conv_body_forward.5} parent=1 // pred_region
      _
    $region58: #{nature_conv_body_forward.5} parent=1 // pred_fallthru
      _

// kernel: nature_conv_body_forward.6
$region0: #{nature_conv_body_forward.6}
  #allocation0 [shape = 'u32[]', space=smem, size = 0x4, offset = 0x4, fixed_abs, tag = 'smem constant byte address 0x4 - core index']
  #allocation1 [shape = 'u32[144,128]{1,0:T(1,128)}', space=vmem, size = 0x12000, scoped, tag = 'internal scratch']
  %s0 = inlined_call_operand.vmem [shape: bf16[98,576], index: 0, kind: input, shape index: {}]
  %s1 = inlined_call_operand.vmem [shape: bf16[576,64], index: 1, kind: input, shape index: {}]
  %s2 = inlined_call_operand.vmem [shape: f32[1,64], index: 2, kind: input, shape index: {}]
  %s3 = inlined_call_operand.vmem [shape: bf16[98,64], index: 3, kind: output, shape index: {}]
  %s4 = sld [smem:[#allocation0]]
  $region59: #{nature_conv_body_forward.6} parent=0
    _
  %s6 = ssub.s32 1, %s4
  %s7 = scalar_select 0, %s6, %s4
  $region1: #{nature_conv_body_forward.6} parent=0
    #allocation2 [shape = 'u8[28672]{0}', space=vmem, size = 0x7000, scoped, tag = 'output window, operand 0, single buffered']
    // Predicated region
    $region2: #{nature_conv_body_forward.6} parent=1 // pred_check
      _
    $region3: #{nature_conv_body_forward.6} parent=1 // pred_check_branch
      %9 = sbr.rel (0) target = $region5
    $region4: #{nature_conv_body_forward.6} parent=1 // pred_region
      _
    $region5: #{nature_conv_body_forward.6} parent=1 // pred_fallthru
      _
    // Predicated region
    $region6: #{nature_conv_body_forward.6} parent=1 // pred_check
      _
    $region7: #{nature_conv_body_forward.6} parent=1 // pred_check_branch
      %11 = sbr.rel (0) target = $region9
    $region8: #{nature_conv_body_forward.6} parent=1 // pred_region
      _
    $region9: #{nature_conv_body_forward.6} parent=1 // pred_fallthru
      _
    // Predicated region
    $region10: #{nature_conv_body_forward.6} parent=1 // pred_check
      _
    $region11: #{nature_conv_body_forward.6} parent=1 // pred_check_branch
      %13 = sbr.rel (0) target = $region13
    $region12: #{nature_conv_body_forward.6} parent=1 // pred_region
      _
    $region13: #{nature_conv_body_forward.6} parent=1 // pred_fallthru
      _
    %v15 = vld [vmem:[%s0] sm:$0xff]
    %v16 = vld [vmem:[%s0 + $0x8] sm:$0xff]
    %v17 = vld [vmem:[%s0 + $0x10] sm:$0xf]
    %v18 = vld [vmem:[%s0 + $0x14] sm:$0xff]
    %v19 = vld [vmem:[%s0 + $0x1c] sm:$0xff]
    %v20 = vld [vmem:[%s0 + $0x24] sm:$0xf]
    %v21 = vld [vmem:[%s0 + $0x28] sm:$0xff]
    %v22 = vld [vmem:[%s0 + $0x30] sm:$0xff]
    %v23 = vld [vmem:[%s0 + $0x38] sm:$0xf]
    %v24 = vld [vmem:[%s0 + $0x3c] sm:$0xff]
    %v25 = vld [vmem:[%s0 + $0x44] sm:$0xff]
    %v26 = vld [vmem:[%s0 + $0x4c] sm:$0xf]
    %v27 = vld [vmem:[%s0 + $0x50] sm:$0xff]
    %v28 = vld [vmem:[%s0 + $0x58] sm:$0xff]
    %v29 = vld [vmem:[%s0 + $0x60] sm:$0xf]
    %v30 = vld [vmem:[%s0 + $0x64] sm:$0xff]
    %v31 = vld [vmem:[%s0 + $0x6c] sm:$0xff]
    %v32 = vld [vmem:[%s0 + $0x74] sm:$0xf]
    %v33 = vld [vmem:[%s0 + $0x78] sm:$0xff]
    %v34 = vld [vmem:[%s0 + $0x80] sm:$0xff]
    %v35 = vld [vmem:[%s0 + $0x88] sm:$0xf]
    %v36 = vld [vmem:[%s0 + $0x8c] sm:$0xff]
    %v37 = vld [vmem:[%s0 + $0x94] sm:$0xff]
    %v38 = vld [vmem:[%s0 + $0x9c] sm:$0xf]
    %v39 = vld [vmem:[%s0 + $0xa0] sm:$0xff]
    %v40 = vld [vmem:[%s0 + $0xa8] sm:$0xff]
    %v41 = vld [vmem:[%s0 + $0xb0] sm:$0xf]
    %v42 = vld [vmem:[%s0 + $0xb4] sm:$0xff]
    %v43 = vld [vmem:[%s0 + $0xbc] sm:$0xff]
    %v44 = vld [vmem:[%s0 + $0xc4] sm:$0xf]
    %v45 = vld [vmem:[%s0 + $0xc8] sm:$0xff]
    %v46 = vld [vmem:[%s0 + $0xd0] sm:$0xff]
    %v47 = vld [vmem:[%s0 + $0xd8] sm:$0xf]
    %v48 = vld [vmem:[%s0 + $0xdc] sm:$0xff]
    %v49 = vld [vmem:[%s0 + $0xe4] sm:$0xff]
    %v50 = vld [vmem:[%s0 + $0xec] sm:$0xf]
    %v51 = vld [vmem:[%s0 + $0xf0] sm:$0xff]
    %v52 = vld [vmem:[%s0 + $0xf8] sm:$0xff]
    %v53 = vld [vmem:[%s0 + $0x100] sm:$0xf]
    %v54 = vld [vmem:[%s0 + $0x104] sm:$0xff]
    %v55 = vld [vmem:[%s0 + $0x10c] sm:$0xff]
    %v56 = vld [vmem:[%s0 + $0x114] sm:$0xf]
    %v57 = vld [vmem:[%s1] sm:$0xf]
    %v58 = vld [vmem:[%s1 + $0x4] sm:$0xf]
    %v59 = vld [vmem:[%s1 + $0x8] sm:$0xf]
    %v60 = vld [vmem:[%s1 + $0xc] sm:$0xf]
    %v61 = vld [vmem:[%s1 + $0x10] sm:$0xf]
    %v62 = vld [vmem:[%s1 + $0x14] sm:$0xf]
    %v63 = vld [vmem:[%s1 + $0x18] sm:$0xf]
    %v64 = vld [vmem:[%s1 + $0x1c] sm:$0xf]
    %v65 = vld [vmem:[%s1 + $0x20] sm:$0xf]
    %v66 = vld [vmem:[%s1 + $0x24] sm:$0xf]
    %v67 = vld [vmem:[%s1 + $0x28] sm:$0xf]
    %v68 = vld [vmem:[%s1 + $0x2c] sm:$0xf]
    %v69 = vld [vmem:[%s1 + $0x30] sm:$0xf]
    %v70 = vld [vmem:[%s1 + $0x34] sm:$0xf]
    %v71 = vld [vmem:[%s1 + $0x38] sm:$0xf]
    %v72 = vld [vmem:[%s1 + $0x3c] sm:$0xf]
    %v73 = vld [vmem:[%s1 + $0x40] sm:$0xf]
    %v74 = vld [vmem:[%s1 + $0x44] sm:$0xf]
    %v75 = vld [vmem:[%s1 + $0x48] sm:$0xf]
    %v76 = vld [vmem:[%s1 + $0x4c] sm:$0xf]
    %v77 = vld [vmem:[%s1 + $0x50] sm:$0xf]
    %v78 = vld [vmem:[%s1 + $0x54] sm:$0xf]
    %v79 = vld [vmem:[%s1 + $0x58] sm:$0xf]
    %v80 = vld [vmem:[%s1 + $0x5c] sm:$0xf]
    %v81 = vld [vmem:[%s1 + $0x60] sm:$0xf]
    %v82 = vld [vmem:[%s1 + $0x64] sm:$0xf]
    %v83 = vld [vmem:[%s1 + $0x68] sm:$0xf]
    %v84 = vld [vmem:[%s1 + $0x6c] sm:$0xf]
    %v85 = vld [vmem:[%s1 + $0x70] sm:$0xf]
    %v86 = vld [vmem:[%s1 + $0x74] sm:$0xf]
    %v87 = vld [vmem:[%s1 + $0x78] sm:$0xf]
    %v88 = vld [vmem:[%s1 + $0x7c] sm:$0xf]
    %v89 = vld [vmem:[%s1 + $0x80] sm:$0xf]
    %v90 = vld [vmem:[%s1 + $0x84] sm:$0xf]
    %v91 = vld [vmem:[%s1 + $0x88] sm:$0xf]
    %v92 = vld [vmem:[%s1 + $0x8c] sm:$0xf]
    %v93 = vld [vmem:[%s1 + $0x90] sm:$0xf]
    %v94 = vld [vmem:[%s1 + $0x94] sm:$0xf]
    %v95 = vld [vmem:[%s1 + $0x98] sm:$0xf]
    %v96 = vld [vmem:[%s1 + $0x9c] sm:$0xf]
    %v97 = vld [vmem:[%s1 + $0xa0] sm:$0xf]
    %v98 = vld [vmem:[%s1 + $0xa4] sm:$0xf]
    %v99 = vld [vmem:[%s1 + $0xa8] sm:$0xf]
    %v100 = vld [vmem:[%s1 + $0xac] sm:$0xf]
    %v101 = vld [vmem:[%s1 + $0xb0] sm:$0xf]
    %v102 = vld [vmem:[%s1 + $0xb4] sm:$0xf]
    %v103 = vld [vmem:[%s1 + $0xb8] sm:$0xf]
    %v104 = vld [vmem:[%s1 + $0xbc] sm:$0xf]
    %v105 = vld [vmem:[%s1 + $0xc0] sm:$0xf]
    %v106 = vld [vmem:[%s1 + $0xc4] sm:$0xf]
    %v107 = vld [vmem:[%s1 + $0xc8] sm:$0xf]
    %v108 = vld [vmem:[%s1 + $0xcc] sm:$0xf]
    %v109 = vld [vmem:[%s1 + $0xd0] sm:$0xf]
    %v110 = vld [vmem:[%s1 + $0xd4] sm:$0xf]
    %v111 = vld [vmem:[%s1 + $0xd8] sm:$0xf]
    %v112 = vld [vmem:[%s1 + $0xdc] sm:$0xf]
    %v113 = vld [vmem:[%s1 + $0xe0] sm:$0xf]
    %v114 = vld [vmem:[%s1 + $0xe4] sm:$0xf]
    %v115 = vld [vmem:[%s1 + $0xe8] sm:$0xf]
    %v116 = vld [vmem:[%s1 + $0xec] sm:$0xf]
    %v117 = vld [vmem:[%s1 + $0xf0] sm:$0xf]
    %v118 = vld [vmem:[%s1 + $0xf4] sm:$0xf]
    %v119 = vld [vmem:[%s1 + $0xf8] sm:$0xf]
    %v120 = vld [vmem:[%s1 + $0xfc] sm:$0xf]
    %v121 = vld [vmem:[%s1 + $0x100] sm:$0xf]
    %v122 = vld [vmem:[%s1 + $0x104] sm:$0xf]
    %v123 = vld [vmem:[%s1 + $0x108] sm:$0xf]
    %v124 = vld [vmem:[%s1 + $0x10c] sm:$0xf]
    %v125 = vld [vmem:[%s1 + $0x110] sm:$0xf]
    %v126 = vld [vmem:[%s1 + $0x114] sm:$0xf]
    %v127 = vld [vmem:[%s1 + $0x118] sm:$0xf]
    %v128 = vld [vmem:[%s1 + $0x11c] sm:$0xf]
    %v129 = vld [vmem:[%s2] sm:$0x1]
    %v131 = vlaneseq
    %v132 = vshrl.u32 %v131, 7
    %v133 = vsub.s32 0, %v132
    %v134 = vrot.slane %v129, %v133
    %v178 = vunpack.c.l.b16 %v15
    %v179 = vunpack.c.h.b16 %v15
    %v180 = vunpack.c.l.b16 %v16
    %v181 = vunpack.c.h.b16 %v16
    %v182 = vunpack.c.l.b16 %v17
    %v183 = vunpack.c.l.b16 %v18
    %v184 = vunpack.c.h.b16 %v18
    %v185 = vunpack.c.l.b16 %v19
    %v186 = vunpack.c.h.b16 %v19
    %v187 = vunpack.c.l.b16 %v20
    %v188 = vunpack.c.l.b16 %v21
    %v189 = vunpack.c.h.b16 %v21
    %v190 = vunpack.c.l.b16 %v22
    %v191 = vunpack.c.h.b16 %v22
    %v192 = vunpack.c.l.b16 %v23
    %v193 = vunpack.c.l.b16 %v24
    %v194 = vunpack.c.h.b16 %v24
    %v195 = vunpack.c.l.b16 %v25
    %v196 = vunpack.c.h.b16 %v25
    %v197 = vunpack.c.l.b16 %v26
    %v198 = vunpack.c.l.b16 %v27
    %v199 = vunpack.c.h.b16 %v27
    %v200 = vunpack.c.l.b16 %v28
    %v201 = vunpack.c.h.b16 %v28
    %v202 = vunpack.c.l.b16 %v29
    %v203 = vunpack.c.l.b16 %v30
    %v204 = vunpack.c.h.b16 %v30
    %v205 = vunpack.c.l.b16 %v31
    %v206 = vunpack.c.h.b16 %v31
    %v207 = vunpack.c.l.b16 %v32
    %v208 = vunpack.c.l.b16 %v33
    %v209 = vunpack.c.h.b16 %v33
    %v210 = vunpack.c.l.b16 %v34
    %v211 = vunpack.c.h.b16 %v34
    %v212 = vunpack.c.l.b16 %v35
    %v213 = vunpack.c.l.b16 %v36
    %v214 = vunpack.c.h.b16 %v36
    %v215 = vunpack.c.l.b16 %v37
    %v216 = vunpack.c.h.b16 %v37
    %v217 = vunpack.c.l.b16 %v38
    %v218 = vunpack.c.l.b16 %v39
    %v219 = vunpack.c.h.b16 %v39
    %v220 = vunpack.c.l.b16 %v40
    %v221 = vunpack.c.h.b16 %v40
    %v222 = vunpack.c.l.b16 %v41
    %v223 = vunpack.c.l.b16 %v42
    %v224 = vunpack.c.h.b16 %v42
    %v225 = vunpack.c.l.b16 %v43
    %v226 = vunpack.c.h.b16 %v43
    %v227 = vunpack.c.l.b16 %v44
    %v228 = vunpack.c.l.b16 %v45
    %v229 = vunpack.c.h.b16 %v45
    %v230 = vunpack.c.l.b16 %v46
    %v231 = vunpack.c.h.b16 %v46
    %v232 = vunpack.c.l.b16 %v47
    %v233 = vunpack.c.l.b16 %v48
    %v234 = vunpack.c.h.b16 %v48
    %v235 = vunpack.c.l.b16 %v49
    %v236 = vunpack.c.h.b16 %v49
    %v237 = vunpack.c.l.b16 %v50
    %v238 = vunpack.c.l.b16 %v51
    %v239 = vunpack.c.h.b16 %v51
    %v240 = vunpack.c.l.b16 %v52
    %v241 = vunpack.c.h.b16 %v52
    %v242 = vunpack.c.l.b16 %v53
    %v243 = vunpack.c.l.b16 %v54
    %v244 = vunpack.c.h.b16 %v54
    %v245 = vunpack.c.l.b16 %v55
    %v246 = vunpack.c.h.b16 %v55
    %v247 = vunpack.c.l.b16 %v56
    %v248 = vpack.c.b16 %v183, %v178
    %v249 = vpack.c.b16 %v184, %v179
    %v250 = vpack.c.b16 %v185, %v180
    %v251 = vpack.c.b16 %v186, %v181
    %v252 = vpack.c.b16 %v187, %v182
    %v253 = vpack.c.b16 %v193, %v188
    %v254 = vpack.c.b16 %v194, %v189
    %v255 = vpack.c.b16 %v195, %v190
    %v256 = vpack.c.b16 %v196, %v191
    %v257 = vpack.c.b16 %v197, %v192
    %v258 = vpack.c.b16 %v203, %v198
    %v259 = vpack.c.b16 %v204, %v199
    %v260 = vpack.c.b16 %v205, %v200
    %v261 = vpack.c.b16 %v206, %v201
    %v262 = vpack.c.b16 %v207, %v202
    %v263 = vpack.c.b16 %v213, %v208
    %v264 = vpack.c.b16 %v214, %v209
    %v265 = vpack.c.b16 %v215, %v210
    %v266 = vpack.c.b16 %v216, %v211
    %v267 = vpack.c.b16 %v217, %v212
    %v268 = vpack.c.b16 %v223, %v218
    %v269 = vpack.c.b16 %v224, %v219
    %v270 = vpack.c.b16 %v225, %v220
    %v271 = vpack.c.b16 %v226, %v221
    %v272 = vpack.c.b16 %v227, %v222
    %v273 = vpack.c.b16 %v233, %v228
    %v274 = vpack.c.b16 %v234, %v229
    %v275 = vpack.c.b16 %v235, %v230
    %v276 = vpack.c.b16 %v236, %v231
    %v277 = vpack.c.b16 %v237, %v232
    %v278 = vpack.c.b16 %v243, %v238
    %v279 = vpack.c.b16 %v244, %v239
    %v280 = vpack.c.b16 %v245, %v240
    %v281 = vpack.c.b16 %v246, %v241
    %v282 = vpack.c.b16 %v247, %v242
    %v383 = vunpack.c.l.b16 %v57
    %v384 = vunpack.c.l.b16 %v58
    %v385 = vunpack.c.l.b16 %v59
    %v386 = vunpack.c.l.b16 %v60
    %v387 = vunpack.c.l.b16 %v61
    %v388 = vunpack.c.l.b16 %v62
    %v389 = vunpack.c.l.b16 %v63
    %v390 = vunpack.c.l.b16 %v64
    %v391 = vunpack.c.l.b16 %v65
    %v392 = vunpack.c.l.b16 %v66
    %v393 = vunpack.c.l.b16 %v67
    %v394 = vunpack.c.l.b16 %v68
    %v395 = vunpack.c.l.b16 %v69
    %v396 = vunpack.c.l.b16 %v70
    %v397 = vunpack.c.l.b16 %v71
    %v398 = vunpack.c.l.b16 %v72
    %v399 = vunpack.c.l.b16 %v73
    %v400 = vunpack.c.l.b16 %v74
    %v401 = vunpack.c.l.b16 %v75
    %v402 = vunpack.c.l.b16 %v76
    %v403 = vunpack.c.l.b16 %v77
    %v404 = vunpack.c.l.b16 %v78
    %v405 = vunpack.c.l.b16 %v79
    %v406 = vunpack.c.l.b16 %v80
    %v407 = vunpack.c.l.b16 %v81
    %v408 = vunpack.c.l.b16 %v82
    %v409 = vunpack.c.l.b16 %v83
    %v410 = vunpack.c.l.b16 %v84
    %v411 = vunpack.c.l.b16 %v85
    %v412 = vunpack.c.l.b16 %v86
    %v413 = vunpack.c.l.b16 %v87
    %v414 = vunpack.c.l.b16 %v88
    %v415 = vunpack.c.l.b16 %v89
    %v416 = vunpack.c.l.b16 %v90
    %v417 = vunpack.c.l.b16 %v91
    %v418 = vunpack.c.l.b16 %v92
    %v419 = vunpack.c.l.b16 %v93
    %v420 = vunpack.c.l.b16 %v94
    %v421 = vunpack.c.l.b16 %v95
    %v422 = vunpack.c.l.b16 %v96
    %v423 = vunpack.c.l.b16 %v97
    %v424 = vunpack.c.l.b16 %v98
    %v425 = vunpack.c.l.b16 %v99
    %v426 = vunpack.c.l.b16 %v100
    %v427 = vunpack.c.l.b16 %v101
    %v428 = vunpack.c.l.b16 %v102
    %v429 = vunpack.c.l.b16 %v103
    %v430 = vunpack.c.l.b16 %v104
    %v431 = vunpack.c.l.b16 %v105
    %v432 = vunpack.c.l.b16 %v106
    %v433 = vunpack.c.l.b16 %v107
    %v434 = vunpack.c.l.b16 %v108
    %v435 = vunpack.c.l.b16 %v109
    %v436 = vunpack.c.l.b16 %v110
    %v437 = vunpack.c.l.b16 %v111
    %v438 = vunpack.c.l.b16 %v112
    %v439 = vunpack.c.l.b16 %v113
    %v440 = vunpack.c.l.b16 %v114
    %v441 = vunpack.c.l.b16 %v115
    %v442 = vunpack.c.l.b16 %v116
    %v443 = vunpack.c.l.b16 %v117
    %v444 = vunpack.c.l.b16 %v118
    %v445 = vunpack.c.l.b16 %v119
    %v446 = vunpack.c.l.b16 %v120
    %v447 = vunpack.c.l.b16 %v121
    %v448 = vunpack.c.l.b16 %v122
    %v449 = vunpack.c.l.b16 %v123
    %v450 = vunpack.c.l.b16 %v124
    %v451 = vunpack.c.l.b16 %v125
    %v452 = vunpack.c.l.b16 %v126
    %v453 = vunpack.c.l.b16 %v127
    %v454 = vunpack.c.l.b16 %v128
    %v455 = vpack.c.b16 %v384, %v383
    %v456 = vpack.c.b16 %v386, %v385
    %v457 = vpack.c.b16 %v388, %v387
    %v458 = vpack.c.b16 %v390, %v389
    %v459 = vpack.c.b16 %v392, %v391
    %v460 = vpack.c.b16 %v394, %v393
    %v461 = vpack.c.b16 %v396, %v395
    %v462 = vpack.c.b16 %v398, %v397
    %v463 = vpack.c.b16 %v400, %v399
    %v464 = vpack.c.b16 %v402, %v401
    %v465 = vpack.c.b16 %v404, %v403
    %v466 = vpack.c.b16 %v406, %v405
    %v467 = vpack.c.b16 %v408, %v407
    %v468 = vpack.c.b16 %v410, %v409
    %v469 = vpack.c.b16 %v412, %v411
    %v470 = vpack.c.b16 %v414, %v413
    %v471 = vpack.c.b16 %v416, %v415
    %v472 = vpack.c.b16 %v418, %v417
    %v473 = vpack.c.b16 %v420, %v419
    %v474 = vpack.c.b16 %v422, %v421
    %v475 = vpack.c.b16 %v424, %v423
    %v476 = vpack.c.b16 %v426, %v425
    %v477 = vpack.c.b16 %v428, %v427
    %v478 = vpack.c.b16 %v430, %v429
    %v479 = vpack.c.b16 %v432, %v431
    %v480 = vpack.c.b16 %v434, %v433
    %v481 = vpack.c.b16 %v436, %v435
    %v482 = vpack.c.b16 %v438, %v437
    %v483 = vpack.c.b16 %v440, %v439
    %v484 = vpack.c.b16 %v442, %v441
    %v485 = vpack.c.b16 %v444, %v443
    %v486 = vpack.c.b16 %v446, %v445
    %v487 = vpack.c.b16 %v448, %v447
    %v488 = vpack.c.b16 %v450, %v449
    %v489 = vpack.c.b16 %v452, %v451
    %v490 = vpack.c.b16 %v454, %v453
    %vm527 = vcmask 523264
    %v529 = vsel %vm527, %v252, 0
    %v532 = vsel %vm527, %v257, 0
    %v535 = vsel %vm527, %v262, 0
    %v538 = vsel %vm527, %v267, 0
    %v541 = vsel %vm527, %v272, 0
    %v544 = vsel %vm527, %v277, 0
    %v547 = vsel %vm527, %v282, 0
    %549 = vmatprep.subr.bf16.mxu0 0
    %550 = vmatpush1.bf16.msra.mxu0 %v455
    %551 = vmatprep.subr.bf16.mxu0 0
    %552 = vmatpush1.bf16.msra.mxu0 %v456
    %553 = vmatprep.subr.bf16.mxu0 0
    %554 = vmatpush1.bf16.msra.mxu0 %v457
    %555 = vmatprep.subr.bf16.mxu0 0
    %556 = vmatpush1.bf16.msra.mxu0 %v458
    %557 = vmatprep.subr.bf16.mxu0 0
    %558 = vmatpush1.bf16.msra.mxu0 %v459
    %559 = vmatprep.subr.bf16.mxu0 0
    %560 = vmatpush1.bf16.msra.mxu0 %v460
    %561 = vmatprep.subr.bf16.mxu0 0
    %562 = vmatpush1.bf16.msra.mxu0 %v461
    %563 = vmatprep.subr.bf16.mxu0 0
    %564 = vmatpush1.bf16.msra.mxu0 %v462
    %565 = vmatprep.subr.bf16.mxu0 0
    %566 = vmatpush1.bf16.msra.mxu0 %v463
    %567 = vmatprep.subr.bf16.mxu0 0
    %568 = vmatpush1.bf16.msra.mxu0 %v464
    %569 = vmatprep.subr.bf16.mxu0 0
    %570 = vmatpush1.bf16.msra.mxu0 %v465
    %571 = vmatprep.subr.bf16.mxu0 0
    %572 = vmatpush1.bf16.msra.mxu0 %v466
    %573 = vmatprep.subr.bf16.mxu0 0
    %574 = vmatpush1.bf16.msra.mxu0 %v467
    %575 = vmatprep.subr.bf16.mxu0 0
    %576 = vmatpush1.bf16.msra.mxu0 %v468
    %577 = vmatprep.subr.bf16.mxu0 0
    %578 = vmatpush1.bf16.msra.mxu0 %v469
    %579 = vmatprep.subr.bf16.mxu0 0
    %580 = vmatpush1.bf16.msra.mxu0 %v470
    %581 = vmatprep.mubr.bf16.mxu0 %v249
    %582 = vmatmul.mubr.bf16.gmra.mrb[0].mxu0 %v248
    %v583 = vpop.f32.mrb[0].mxu0
    %v584 = vadd.f32 %v134, %v583
    %v585 = vpop.f32.mrb[0].mxu0
    %v586 = vpop.f32.mrb[0].mxu0
    %v587 = vadd.f32 %v134, %v586
    %v588 = vpop.f32.mrb[0].mxu0
    %589 = vmatprep.mubr.bf16.mxu0 %v254
    %590 = vmatmul.mubr.bf16.gmra.mrb[0].mxu0 %v253
    %v591 = vpop.f32.mrb[0].mxu0
    %v592 = vadd.f32 %v134, %v591
    %v593 = vpop.f32.mrb[0].mxu0
    %v594 = vpop.f32.mrb[0].mxu0
    %v595 = vadd.f32 %v134, %v594
    %v596 = vpop.f32.mrb[0].mxu0
    %597 = vmatprep.mubr.bf16.mxu0 %v259
    %598 = vmatmul.mubr.bf16.gmra.mrb[0].mxu0 %v258
    %v599 = vpop.f32.mrb[0].mxu0
    %v600 = vadd.f32 %v134, %v599
    %v601 = vpop.f32.mrb[0].mxu0
    %v602 = vpop.f32.mrb[0].mxu0
    %v603 = vadd.f32 %v134, %v602
    %v604 = vpop.f32.mrb[0].mxu0
    %605 = vmatprep.mubr.bf16.mxu0 %v264
    %606 = vmatmul.mubr.bf16.gmra.mrb[0].mxu0 %v263
    %v607 = vpop.f32.mrb[0].mxu0
    %v608 = vadd.f32 %v134, %v607
    %v609 = vpop.f32.mrb[0].mxu0
    %v610 = vpop.f32.mrb[0].mxu0
    %v611 = vadd.f32 %v134, %v610
    %v612 = vpop.f32.mrb[0].mxu0
    %613 = vmatprep.mubr.bf16.mxu0 %v269
    %614 = vmatmul.mubr.bf16.gmra.mrb[0].mxu0 %v268
    %v615 = vpop.f32.mrb[0].mxu0
    %v616 = vadd.f32 %v134, %v615
    %v617 = vpop.f32.mrb[0].mxu0
    %v618 = vpop.f32.mrb[0].mxu0
    %v619 = vadd.f32 %v134, %v618
    %v620 = vpop.f32.mrb[0].mxu0
    %621 = vmatprep.mubr.bf16.mxu0 %v274
    %622 = vmatmul.mubr.bf16.gmra.mrb[0].mxu0 %v273
    %v623 = vpop.f32.mrb[0].mxu0
    %v624 = vadd.f32 %v134, %v623
    %v625 = vpop.f32.mrb[0].mxu0
    %v626 = vpop.f32.mrb[0].mxu0
    %v627 = vadd.f32 %v134, %v626
    %v628 = vpop.f32.mrb[0].mxu0
    %629 = vmatprep.mubr.bf16.mxu0 %v279
    %630 = vmatmul.mubr.bf16.gmra.mrb[0].mxu0 %v278
    %v631 = vpop.f32.mrb[0].mxu0
    %v632 = vadd.f32 %v134, %v631
    %v633 = vpop.f32.mrb[0].mxu0
    %v634 = vpop.f32.mrb[0].mxu0
    %v635 = vadd.f32 %v134, %v634
    %v636 = vpop.f32.mrb[0].mxu0
    %637 = vdwg.mxu0
    %638 = vmatprep.subr.bf16.mxu0 0
    %639 = vmatpush1.bf16.msra.mxu0 %v471
    %640 = vmatprep.subr.bf16.mxu0 0
    %641 = vmatpush1.bf16.msra.mxu0 %v472
    %642 = vmatprep.subr.bf16.mxu0 0
    %643 = vmatpush1.bf16.msra.mxu0 %v473
    %644 = vmatprep.subr.bf16.mxu0 0
    %645 = vmatpush1.bf16.msra.mxu0 %v474
    %646 = vmatprep.subr.bf16.mxu0 0
    %647 = vmatpush1.bf16.msra.mxu0 %v475
    %648 = vmatprep.subr.bf16.mxu0 0
    %649 = vmatpush1.bf16.msra.mxu0 %v476
    %650 = vmatprep.subr.bf16.mxu0 0
    %651 = vmatpush1.bf16.msra.mxu0 %v477
    %652 = vmatprep.subr.bf16.mxu0 0
    %653 = vmatpush1.bf16.msra.mxu0 %v478
    %654 = vmatprep.subr.bf16.mxu0 0
    %655 = vmatpush1.bf16.msra.mxu0 %v479
    %656 = vmatprep.subr.bf16.mxu0 0
    %657 = vmatpush1.bf16.msra.mxu0 %v480
    %658 = vmatprep.subr.bf16.mxu0 0
    %659 = vmatpush1.bf16.msra.mxu0 %v481
    %660 = vmatprep.subr.bf16.mxu0 0
    %661 = vmatpush1.bf16.msra.mxu0 %v482
    %662 = vmatprep.subr.bf16.mxu0 0
    %663 = vmatpush1.bf16.msra.mxu0 %v483
    %664 = vmatprep.subr.bf16.mxu0 0
    %665 = vmatpush1.bf16.msra.mxu0 %v484
    %666 = vmatprep.subr.bf16.mxu0 0
    %667 = vmatpush1.bf16.msra.mxu0 %v485
    %668 = vmatprep.subr.bf16.mxu0 0
    %669 = vmatpush1.bf16.msra.mxu0 %v486
    %670 = vmatprep.mubr.bf16.mxu0 %v251
    %671 = vmatmul.mubr.bf16.gmra.mrb[0].mxu0 %v250
    %v672 = vpop.f32.mrb[0].mxu0
    %v673 = vadd.f32 %v584, %v672
    %v674 = vpop.f32.mrb[0].mxu0
    %v675 = vpop.f32.mrb[0].mxu0
    %v676 = vadd.f32 %v587, %v675
    %v677 = vpop.f32.mrb[0].mxu0
    %678 = vmatprep.mubr.bf16.mxu0 %v256
    %679 = vmatmul.mubr.bf16.gmra.mrb[0].mxu0 %v255
    %v680 = vpop.f32.mrb[0].mxu0
    %v681 = vadd.f32 %v592, %v680
    %v682 = vpop.f32.mrb[0].mxu0
    %v683 = vpop.f32.mrb[0].mxu0
    %v684 = vadd.f32 %v595, %v683
    %v685 = vpop.f32.mrb[0].mxu0
    %686 = vmatprep.mubr.bf16.mxu0 %v261
    %687 = vmatmul.mubr.bf16.gmra.mrb[0].mxu0 %v260
    %v688 = vpop.f32.mrb[0].mxu0
    %v689 = vadd.f32 %v600, %v688
    %v690 = vpop.f32.mrb[0].mxu0
    %v691 = vpop.f32.mrb[0].mxu0
    %v692 = vadd.f32 %v603, %v691
    %v693 = vpop.f32.mrb[0].mxu0
    %694 = vmatprep.mubr.bf16.mxu0 %v266
    %695 = vmatmul.mubr.bf16.gmra.mrb[0].mxu0 %v265
    %v696 = vpop.f32.mrb[0].mxu0
    %v697 = vadd.f32 %v608, %v696
    %v698 = vpop.f32.mrb[0].mxu0
    %v699 = vpop.f32.mrb[0].mxu0
    %v700 = vadd.f32 %v611, %v699
    %v701 = vpop.f32.mrb[0].mxu0
    %702 = vmatprep.mubr.bf16.mxu0 %v271
    %703 = vmatmul.mubr.bf16.gmra.mrb[0].mxu0 %v270
    %v704 = vpop.f32.mrb[0].mxu0
    %v705 = vadd.f32 %v616, %v704
    %v706 = vpop.f32.mrb[0].mxu0
    %v707 = vpop.f32.mrb[0].mxu0
    %v708 = vadd.f32 %v619, %v707
    %v709 = vpop.f32.mrb[0].mxu0
    %710 = vmatprep.mubr.bf16.mxu0 %v276
    %711 = vmatmul.mubr.bf16.gmra.mrb[0].mxu0 %v275
    %v712 = vpop.f32.mrb[0].mxu0
    %v713 = vadd.f32 %v624, %v712
    %v714 = vpop.f32.mrb[0].mxu0
    %v715 = vpop.f32.mrb[0].mxu0
    %v716 = vadd.f32 %v627, %v715
    %v717 = vpop.f32.mrb[0].mxu0
    %718 = vmatprep.mubr.bf16.mxu0 %v281
    %719 = vmatmul.mubr.bf16.gmra.mrb[0].mxu0 %v280
    %v720 = vpop.f32.mrb[0].mxu0
    %v721 = vadd.f32 %v632, %v720
    %v722 = vpop.f32.mrb[0].mxu0
    %v723 = vpop.f32.mrb[0].mxu0
    %v724 = vadd.f32 %v635, %v723
    %v725 = vpop.f32.mrb[0].mxu0
    %726 = vdwg.mxu0
    %727 = vmatprep.subr.bf16.mxu0 0
    %728 = vmatpush1.bf16.msra.mxu0 %v487
    %729 = vmatprep.subr.bf16.mxu0 0
    %730 = vmatpush1.bf16.msra.mxu0 %v488
    %731 = vmatprep.subr.bf16.mxu0 0
    %732 = vmatpush1.bf16.msra.mxu0 %v489
    %733 = vmatprep.subr.bf16.mxu0 0
    %734 = vmatpush1.bf16.msra.mxu0 %v490
    %735 = vmatprep.subr.bf16.mxu0 0
    %736 = vmatpush1.bf16.msra.mxu0 0
    %737 = vmatprep.subr.bf16.mxu0 0
    %738 = vmatpush1.bf16.msra.mxu0 0
    %739 = vmatprep.subr.bf16.mxu0 0
    %740 = vmatpush1.bf16.msra.mxu0 0
    %741 = vmatprep.subr.bf16.mxu0 0
    %742 = vmatpush1.bf16.msra.mxu0 0
    %743 = vmatprep.subr.bf16.mxu0 0
    %744 = vmatpush1.bf16.msra.mxu0 0
    %745 = vmatprep.subr.bf16.mxu0 0
    %746 = vmatpush1.bf16.msra.mxu0 0
    %747 = vmatprep.subr.bf16.mxu0 0
    %748 = vmatpush1.bf16.msra.mxu0 0
    %749 = vmatprep.subr.bf16.mxu0 0
    %750 = vmatpush1.bf16.msra.mxu0 0
    %751 = vmatprep.subr.bf16.mxu0 0
    %752 = vmatpush1.bf16.msra.mxu0 0
    %753 = vmatprep.subr.bf16.mxu0 0
    %754 = vmatpush1.bf16.msra.mxu0 0
    %755 = vmatprep.subr.bf16.mxu0 0
    %756 = vmatpush1.bf16.msra.mxu0 0
    %757 = vmatprep.subr.bf16.mxu0 0
    %758 = vmatpush1.bf16.msra.mxu0 0
    %759 = vmatprep.mubr.bf16.mxu0 0
    %760 = vmatmul.mubr.bf16.gmra.mrb[0].mxu0 %v529
    %v761 = vpop.f32.mrb[0].mxu0
    %v762 = vadd.f32 %v673, %v761
    %v763 = vpop.f32.mrb[0].mxu0
    %v764 = vpop.f32.mrb[0].mxu0
    %v765 = vadd.f32 %v676, %v764
    %v766 = vpop.f32.mrb[0].mxu0
    %767 = vmatprep.mubr.bf16.mxu0 0
    %768 = vmatmul.mubr.bf16.gmra.mrb[0].mxu0 %v532
    %v769 = vpop.f32.mrb[0].mxu0
    %v770 = vadd.f32 %v681, %v769
    %v771 = vpop.f32.mrb[0].mxu0
    %v772 = vpop.f32.mrb[0].mxu0
    %v773 = vadd.f32 %v684, %v772
    %v774 = vpop.f32.mrb[0].mxu0
    %775 = vmatprep.mubr.bf16.mxu0 0
    %776 = vmatmul.mubr.bf16.gmra.mrb[0].mxu0 %v535
    %v777 = vpop.f32.mrb[0].mxu0
    %v778 = vadd.f32 %v689, %v777
    %v779 = vpop.f32.mrb[0].mxu0
    %v780 = vpop.f32.mrb[0].mxu0
    %v781 = vadd.f32 %v692, %v780
    %v782 = vpop.f32.mrb[0].mxu0
    %783 = vmatprep.mubr.bf16.mxu0 0
    %784 = vmatmul.mubr.bf16.gmra.mrb[0].mxu0 %v538
    %v785 = vpop.f32.mrb[0].mxu0
    %v786 = vadd.f32 %v697, %v785
    %v787 = vpop.f32.mrb[0].mxu0
    %v788 = vpop.f32.mrb[0].mxu0
    %v789 = vadd.f32 %v700, %v788
    %v790 = vpop.f32.mrb[0].mxu0
    %791 = vmatprep.mubr.bf16.mxu0 0
    %792 = vmatmul.mubr.bf16.gmra.mrb[0].mxu0 %v541
    %v793 = vpop.f32.mrb[0].mxu0
    %v794 = vadd.f32 %v705, %v793
    %v795 = vpop.f32.mrb[0].mxu0
    %v796 = vpop.f32.mrb[0].mxu0
    %v797 = vadd.f32 %v708, %v796
    %v798 = vpop.f32.mrb[0].mxu0
    %799 = vmatprep.mubr.bf16.mxu0 0
    %800 = vmatmul.mubr.bf16.gmra.mrb[0].mxu0 %v544
    %v801 = vpop.f32.mrb[0].mxu0
    %v802 = vadd.f32 %v713, %v801
    %v803 = vpop.f32.mrb[0].mxu0
    %v804 = vpop.f32.mrb[0].mxu0
    %v805 = vadd.f32 %v716, %v804
    %v806 = vpop.f32.mrb[0].mxu0
    %807 = vmatprep.mubr.bf16.mxu0 0
    %808 = vmatmul.mubr.bf16.gmra.mrb[0].mxu0 %v547
    %v809 = vpop.f32.mrb[0].mxu0
    %v810 = vadd.f32 %v721, %v809
    %v811 = vpop.f32.mrb[0].mxu0
    %v812 = vpop.f32.mrb[0].mxu0
    %v813 = vadd.f32 %v724, %v812
    %v814 = vpop.f32.mrb[0].mxu0
    %815 = vdwg.mxu0
    %v816 = vmax.f32 %v762, 0.0
    %v817 = vmax.f32 %v765, 0.0
    %v818 = vmax.f32 %v770, 0.0
    %v819 = vmax.f32 %v773, 0.0
    %v820 = vmax.f32 %v778, 0.0
    %v821 = vmax.f32 %v781, 0.0
    %v822 = vmax.f32 %v786, 0.0
    %v823 = vmax.f32 %v789, 0.0
    %v824 = vmax.f32 %v794, 0.0
    %v825 = vmax.f32 %v797, 0.0
    %v826 = vmax.f32 %v802, 0.0
    %v827 = vmax.f32 %v805, 0.0
    %v828 = vmax.f32 %v810, 0.0
    %v829 = vmax.f32 %v813, 0.0
    %v830 = vpack.c.bf16 %v817, %v816
    %v831 = vpack.c.bf16 %v819, %v818
    %v832 = vpack.c.bf16 %v821, %v820
    %v833 = vpack.c.bf16 %v823, %v822
    %v834 = vpack.c.bf16 %v825, %v824
    %v835 = vpack.c.bf16 %v827, %v826
    %v836 = vpack.c.bf16 %v829, %v828
    %v844 = vunpack.c.l.b16 %v830
    %v845 = vunpack.c.h.b16 %v830
    %v846 = vunpack.c.l.b16 %v831
    %v847 = vunpack.c.h.b16 %v831
    %v848 = vunpack.c.l.b16 %v832
    %v849 = vunpack.c.h.b16 %v832
    %v850 = vunpack.c.l.b16 %v833
    %v851 = vunpack.c.h.b16 %v833
    %v852 = vunpack.c.l.b16 %v834
    %v853 = vunpack.c.h.b16 %v834
    %v854 = vunpack.c.l.b16 %v835
    %v855 = vunpack.c.h.b16 %v835
    %v856 = vunpack.c.l.b16 %v836
    %v857 = vunpack.c.h.b16 %v836
    %v858 = vpack.c.b16 %v844, %v844
    %v859 = vpack.c.b16 %v845, %v845
    %v860 = vpack.c.b16 %v846, %v846
    %v861 = vpack.c.b16 %v847, %v847
    %v862 = vpack.c.b16 %v848, %v848
    %v863 = vpack.c.b16 %v849, %v849
    %v864 = vpack.c.b16 %v850, %v850
    %v865 = vpack.c.b16 %v851, %v851
    %v866 = vpack.c.b16 %v852, %v852
    %v867 = vpack.c.b16 %v853, %v853
    %v868 = vpack.c.b16 %v854, %v854
    %v869 = vpack.c.b16 %v855, %v855
    %v870 = vpack.c.b16 %v856, %v856
    %v871 = vpack.c.b16 %v857, %v857
    %vm886 = vcmask 519168
    %887 = vst.msk [vmem:[#allocation2] sm:$0xf] %vm886, %v858
    %888 = vst.msk [vmem:[#allocation2 + $0x4] sm:$0xf] %vm886, %v859
    %889 = vst.msk [vmem:[#allocation2 + $0x8] sm:$0xf] %vm886, %v860
    %890 = vst.msk [vmem:[#allocation2 + $0xc] sm:$0xf] %vm886, %v861
    %891 = vst.msk [vmem:[#allocation2 + $0x10] sm:$0xf] %vm886, %v862
    %892 = vst.msk [vmem:[#allocation2 + $0x14] sm:$0xf] %vm886, %v863
    %893 = vst.msk [vmem:[#allocation2 + $0x18] sm:$0xf] %vm886, %v864
    %894 = vst.msk [vmem:[#allocation2 + $0x1c] sm:$0xf] %vm886, %v865
    %895 = vst.msk [vmem:[#allocation2 + $0x20] sm:$0xf] %vm886, %v866
    %896 = vst.msk [vmem:[#allocation2 + $0x24] sm:$0xf] %vm886, %v867
    %897 = vst.msk [vmem:[#allocation2 + $0x28] sm:$0xf] %vm886, %v868
    %898 = vst.msk [vmem:[#allocation2 + $0x2c] sm:$0xf] %vm886, %v869
    %899 = vst.msk [vmem:[#allocation2 + $0x30] sm:$0xf] %vm886, %v870
    %900 = vst.msk [vmem:[#allocation2 + $0x34] sm:$0xf] %vm886, %v871
    // Predicated region
    $region14: #{nature_conv_body_forward.6} parent=1 // pred_check
      _
    $region15: #{nature_conv_body_forward.6} parent=1 // pred_check_branch
      %902 = sbr.rel (0) target = $region17
    $region16: #{nature_conv_body_forward.6} parent=1 // pred_region
      // Predicated region
      $region18: #{nature_conv_body_forward.6} parent=16 // pred_check
        _
      $region19: #{nature_conv_body_forward.6} parent=16 // pred_check_branch
        %904 = sbr.rel (0) target = $region21
      $region20: #{nature_conv_body_forward.6} parent=16 // pred_region
        // Predicated region
        $region22: #{nature_conv_body_forward.6} parent=20 // pred_check
          _
        $region23: #{nature_conv_body_forward.6} parent=20 // pred_check_branch
          %906 = sbr.rel target = $region25
        $region24: #{nature_conv_body_forward.6} parent=20 // pred_region
          // Predicated region
          $region37: #{nature_conv_body_forward.6} parent=24 // pred_check
            _
          $region38: #{nature_conv_body_forward.6} parent=24 // pred_check_branch
            %945 = sbr.rel (0) target = $region40
          $region39: #{nature_conv_body_forward.6} parent=24 // pred_region
            loop: start=0, step=1, limit=1
            $region41: #{nature_conv_body_forward.6} parent=39 // loop_pre_header
              _
            $region42: #{nature_conv_body_forward.6} parent=39 // loop_header
              %s947 = sphi 0, %s951
              %p948 = scmp.ge.s32.totalorder %s947, 1
              %s952 = sphi [#allocation2], [#allocation2]
              %s953 = sphi %s3, %s3
            $region43: #{nature_conv_body_forward.6} parent=39 // loop_header_branch
              %950 = sbr.rel (%p948) target = $region47
            $region44: #{nature_conv_body_forward.6} parent=39 // loop_body
              _
            $region45: #{nature_conv_body_forward.6} parent=39 // loop_footer
              %s951 = sadd.s32 1, %s947
            $region46: #{nature_conv_body_forward.6} parent=39 // loop_footer_branch
              %946 = sbr.rel target = $region42
            $region47: #{nature_conv_body_forward.6} parent=39 // loop_exit
              _
            loop: start=0, step=1, limit=1
            $region48: #{nature_conv_body_forward.6} parent=39 // loop_pre_header
              _
            $region49: #{nature_conv_body_forward.6} parent=39 // loop_header
              %s956 = sphi 0, %s960
              %p957 = scmp.ge.s32.totalorder %s956, 1
              %s961 = sphi [#allocation2], [#allocation2]
              %s962 = sphi %s3, %s3
            $region50: #{nature_conv_body_forward.6} parent=39 // loop_header_branch
              %959 = sbr.rel (%p957) target = $region54
            $region51: #{nature_conv_body_forward.6} parent=39 // loop_body
              %v963 = vld [vmem:[%s961] sm:$0xf]
              %964 = vst [vmem:[%s962] sm:$0xf] %v963
              %v965 = vld [vmem:[%s961 + $0x4] sm:$0xf]
              %966 = vst [vmem:[%s962 + $0x4] sm:$0xf] %v965
              %v967 = vld [vmem:[%s961 + $0x8] sm:$0xf]
              %968 = vst [vmem:[%s962 + $0x8] sm:$0xf] %v967
              %v969 = vld [vmem:[%s961 + $0xc] sm:$0xf]
              %970 = vst [vmem:[%s962 + $0xc] sm:$0xf] %v969
              %v971 = vld [vmem:[%s961 + $0x10] sm:$0xf]
              %972 = vst [vmem:[%s962 + $0x10] sm:$0xf] %v971
              %v973 = vld [vmem:[%s961 + $0x14] sm:$0xf]
              %974 = vst [vmem:[%s962 + $0x14] sm:$0xf] %v973
              %v975 = vld [vmem:[%s961 + $0x18] sm:$0xf]
              %976 = vst [vmem:[%s962 + $0x18] sm:$0xf] %v975
              %v977 = vld [vmem:[%s961 + $0x1c] sm:$0xf]
              %978 = vst [vmem:[%s962 + $0x1c] sm:$0xf] %v977
              %v979 = vld [vmem:[%s961 + $0x20] sm:$0xf]
              %980 = vst [vmem:[%s962 + $0x20] sm:$0xf] %v979
              %v981 = vld [vmem:[%s961 + $0x24] sm:$0xf]
              %982 = vst [vmem:[%s962 + $0x24] sm:$0xf] %v981
              %v983 = vld [vmem:[%s961 + $0x28] sm:$0xf]
              %984 = vst [vmem:[%s962 + $0x28] sm:$0xf] %v983
              %v985 = vld [vmem:[%s961 + $0x2c] sm:$0xf]
              %986 = vst [vmem:[%s962 + $0x2c] sm:$0xf] %v985
              %v987 = vld [vmem:[%s961 + $0x30] sm:$0xf]
              %988 = vst [vmem:[%s962 + $0x30] sm:$0xf] %v987
            $region52: #{nature_conv_body_forward.6} parent=39 // loop_footer
              %s960 = sadd.s32 1, %s956
            $region53: #{nature_conv_body_forward.6} parent=39 // loop_footer_branch
              %955 = sbr.rel target = $region49
            $region54: #{nature_conv_body_forward.6} parent=39 // loop_exit
              _
          $region40: #{nature_conv_body_forward.6} parent=24 // pred_fallthru
            _
        $region25: #{nature_conv_body_forward.6} parent=20 // pred_fallthru
          _
        // Predicated region
        $region26: #{nature_conv_body_forward.6} parent=20 // pred_check
          _
        $region27: #{nature_conv_body_forward.6} parent=20 // pred_check_branch
          %908 = sbr.rel (0) target = $region29
        $region28: #{nature_conv_body_forward.6} parent=20 // pred_region
          loop: start=0, step=1, limit=1
          $region30: #{nature_conv_body_forward.6} parent=28 // loop_pre_header
            _
          $region31: #{nature_conv_body_forward.6} parent=28 // loop_header
            %s911 = sphi 0, %s915
            %p912 = scmp.ge.s32.totalorder %s911, 1
            %s916 = sphi [#allocation2], [#allocation2]
            %s917 = sphi %s3, %s3
          $region32: #{nature_conv_body_forward.6} parent=28 // loop_header_branch
            %914 = sbr.rel (%p912) target = $region36
          $region33: #{nature_conv_body_forward.6} parent=28 // loop_body
            %v918 = vld [vmem:[%s916] sm:$0xf]
            %919 = vst [vmem:[%s917] sm:$0xf] %v918
            %v920 = vld [vmem:[%s916 + $0x4] sm:$0xf]
            %921 = vst [vmem:[%s917 + $0x4] sm:$0xf] %v920
            %v922 = vld [vmem:[%s916 + $0x8] sm:$0xf]
            %923 = vst [vmem:[%s917 + $0x8] sm:$0xf] %v922
            %v924 = vld [vmem:[%s916 + $0xc] sm:$0xf]
            %925 = vst [vmem:[%s917 + $0xc] sm:$0xf] %v924
            %v926 = vld [vmem:[%s916 + $0x10] sm:$0xf]
            %927 = vst [vmem:[%s917 + $0x10] sm:$0xf] %v926
            %v928 = vld [vmem:[%s916 + $0x14] sm:$0xf]
            %929 = vst [vmem:[%s917 + $0x14] sm:$0xf] %v928
            %v930 = vld [vmem:[%s916 + $0x18] sm:$0xf]
            %931 = vst [vmem:[%s917 + $0x18] sm:$0xf] %v930
            %v932 = vld [vmem:[%s916 + $0x1c] sm:$0xf]
            %933 = vst [vmem:[%s917 + $0x1c] sm:$0xf] %v932
            %v934 = vld [vmem:[%s916 + $0x20] sm:$0xf]
            %935 = vst [vmem:[%s917 + $0x20] sm:$0xf] %v934
            %v936 = vld [vmem:[%s916 + $0x24] sm:$0xf]
            %937 = vst [vmem:[%s917 + $0x24] sm:$0xf] %v936
            %v938 = vld [vmem:[%s916 + $0x28] sm:$0xf]
            %939 = vst [vmem:[%s917 + $0x28] sm:$0xf] %v938
            %v940 = vld [vmem:[%s916 + $0x2c] sm:$0xf]
            %941 = vst [vmem:[%s917 + $0x2c] sm:$0xf] %v940
            %v942 = vld [vmem:[%s916 + $0x30] sm:$0xf]
            %943 = vst [vmem:[%s917 + $0x30] sm:$0xf] %v942
          $region34: #{nature_conv_body_forward.6} parent=28 // loop_footer
            %s915 = sadd.s32 1, %s911
          $region35: #{nature_conv_body_forward.6} parent=28 // loop_footer_branch
            %910 = sbr.rel target = $region31
          $region36: #{nature_conv_body_forward.6} parent=28 // loop_exit
            _
        $region29: #{nature_conv_body_forward.6} parent=20 // pred_fallthru
          _
      $region21: #{nature_conv_body_forward.6} parent=16 // pred_fallthru
        _
      %989 = vnop
    $region17: #{nature_conv_body_forward.6} parent=1 // pred_fallthru
      _
    // Predicated region
    $region55: #{nature_conv_body_forward.6} parent=1 // pred_check
      _
    $region56: #{nature_conv_body_forward.6} parent=1 // pred_check_branch
      %991 = sbr.rel (0) target = $region58
    $region57: #{nature_conv_body_forward.6} parent=1 // pred_region
      _
    $region58: #{nature_conv_body_forward.6} parent=1 // pred_fallthru
      _

// kernel: nature_conv_body_forward.7
$region0: #{nature_conv_body_forward.7}
  #allocation0 [shape = 'u32[]', space=smem, size = 0x4, offset = 0x4, fixed_abs, tag = 'smem constant byte address 0x4 - core index']
  #allocation1 [shape = 'u32[144,128]{1,0:T(1,128)}', space=vmem, size = 0x12000, scoped, tag = 'internal scratch']
  %s0 = inlined_call_operand.vmem [shape: bf16[2,3136], index: 0, kind: input, shape index: {}]
  %s1 = inlined_call_operand.vmem [shape: bf16[3136,512], index: 1, kind: input, shape index: {}]
  %s2 = inlined_call_operand.vmem [shape: f32[1,512], index: 2, kind: input, shape index: {}]
  %s3 = inlined_call_operand.hbm [shape: f32[2,512], index: 3, kind: output, shape index: {}]
  %s4 = sld [smem:[#allocation0]]
  $region22: #{nature_conv_body_forward.7} parent=0
    _
  %s6 = ssub.s32 1, %s4
  %s7 = scalar_select 0, %s6, %s4
  $region1: #{nature_conv_body_forward.7} parent=0
    #allocation2 [shape = 'u8[32768]{0}', space=vmem, size = 0x8000, scoped, tag = 'output window, operand 0, single buffered']
    #allocation3 [shape = 's32[1]{0}', space=sflag, size = 0x4, scoped, tag = 'scoped memory for nature_conv_body_forward.7']
    %8 = vsyncpa [#allocation3], 0
    // Predicated region
    $region2: #{nature_conv_body_forward.7} parent=1 // pred_check
      _
    $region3: #{nature_conv_body_forward.7} parent=1 // pred_check_branch
      %10 = sbr.rel (0) target = $region5
    $region4: #{nature_conv_body_forward.7} parent=1 // pred_region
      _
    $region5: #{nature_conv_body_forward.7} parent=1 // pred_fallthru
      _
    // Predicated region
    $region6: #{nature_conv_body_forward.7} parent=1 // pred_check
      _
    $region7: #{nature_conv_body_forward.7} parent=1 // pred_check_branch
      %12 = sbr.rel (0) target = $region9
    $region8: #{nature_conv_body_forward.7} parent=1 // pred_region
      _
    $region9: #{nature_conv_body_forward.7} parent=1 // pred_fallthru
      _
    // Predicated region
    $region10: #{nature_conv_body_forward.7} parent=1 // pred_check
      _
    $region11: #{nature_conv_body_forward.7} parent=1 // pred_check_branch
      %14 = sbr.rel (0) target = $region13
    $region12: #{nature_conv_body_forward.7} parent=1 // pred_region
      _
    $region13: #{nature_conv_body_forward.7} parent=1 // pred_fallthru
      _
    %v16 = vld [vmem:[%s0] sm:$0xff]
    %v17 = vld [vmem:[%s0 + $0x8] sm:$0xff]
    %v18 = vld [vmem:[%s0 + $0x10] sm:$0xff]
    %v19 = vld [vmem:[%s0 + $0x18] sm:$0x1]
    %v20 = vld [vmem:[%s0 + $0x19] sm:$0xff]
    %v21 = vld [vmem:[%s0 + $0x21] sm:$0xff]
    %v22 = vld [vmem:[%s0 + $0x29] sm:$0xff]
    %v23 = vld [vmem:[%s0 + $0x31] sm:$0x1]
    %v24 = vld [vmem:[%s0 + $0x32] sm:$0xff]
    %v25 = vld [vmem:[%s0 + $0x3a] sm:$0xff]
    %v26 = vld [vmem:[%s0 + $0x42] sm:$0xff]
    %v27 = vld [vmem:[%s0 + $0x4a] sm:$0x1]
    %v28 = vld [vmem:[%s0 + $0x4b] sm:$0xff]
    %v29 = vld [vmem:[%s0 + $0x53] sm:$0xff]
    %v30 = vld [vmem:[%s0 + $0x5b] sm:$0xff]
    %v31 = vld [vmem:[%s0 + $0x63] sm:$0x1]
    %v32 = vld [vmem:[%s0 + $0x64] sm:$0xff]
    %v33 = vld [vmem:[%s0 + $0x6c] sm:$0xff]
    %v34 = vld [vmem:[%s0 + $0x74] sm:$0xff]
    %v35 = vld [vmem:[%s0 + $0x7c] sm:$0x1]
    %v36 = vld [vmem:[%s0 + $0x7d] sm:$0xff]
    %v37 = vld [vmem:[%s0 + $0x85] sm:$0xff]
    %v38 = vld [vmem:[%s0 + $0x8d] sm:$0xff]
    %v39 = vld [vmem:[%s0 + $0x95] sm:$0x1]
    %v40 = vld [vmem:[%s0 + $0x96] sm:$0xff]
    %v41 = vld [vmem:[%s0 + $0x9e] sm:$0xff]
    %v42 = vld [vmem:[%s0 + $0xa6] sm:$0xff]
    %v43 = vld [vmem:[%s0 + $0xae] sm:$0x1]
    %v44 = vld [vmem:[%s0 + $0xaf] sm:$0xff]
    %v45 = vld [vmem:[%s0 + $0xb7] sm:$0xff]
    %v46 = vld [vmem:[%s0 + $0xbf] sm:$0xff]
    %v47 = vld [vmem:[%s0 + $0xc7] sm:$0x1]
    %v48 = vld [vmem:[%s1] sm:$0xff]
    %v49 = vld [vmem:[%s1 + $0x8] sm:$0xff]
    %v50 = vld [vmem:[%s1 + $0x10] sm:$0xff]
    %v51 = vld [vmem:[%s1 + $0x18] sm:$0xff]
    %v52 = vld [vmem:[%s1 + $0x20] sm:$0xff]
    %v53 = vld [vmem:[%s1 + $0x28] sm:$0xff]
    %v54 = vld [vmem:[%s1 + $0x30] sm:$0xff]
    %v55 = vld [vmem:[%s1 + $0x38] sm:$0xff]
    %v56 = vld [vmem:[%s1 + $0x40] sm:$0xff]
    %v57 = vld [vmem:[%s1 + $0x48] sm:$0xff]
    %v58 = vld [vmem:[%s1 + $0x50] sm:$0xff]
    %v59 = vld [vmem:[%s1 + $0x58] sm:$0xff]
    %v60 = vld [vmem:[%s1 + $0x60] sm:$0xff]
    %v61 = vld [vmem:[%s1 + $0x68] sm:$0xff]
    %v62 = vld [vmem:[%s1 + $0x70] sm:$0xff]
    %v63 = vld [vmem:[%s1 + $0x78] sm:$0xff]
    %v64 = vld [vmem:[%s1 + $0x80] sm:$0xff]
    %v65 = vld [vmem:[%s1 + $0x88] sm:$0xff]
    %v66 = vld [vmem:[%s1 + $0x90] sm:$0xff]
    %v67 = vld [vmem:[%s1 + $0x98] sm:$0xff]
    %v68 = vld [vmem:[%s1 + $0xa0] sm:$0xff]
    %v69 = vld [vmem:[%s1 + $0xa8] sm:$0xff]
    %v70 = vld [vmem:[%s1 + $0xb0] sm:$0xff]
    %v71 = vld [vmem:[%s1 + $0xb8] sm:$0xff]
    %v72 = vld [vmem:[%s1 + $0xc0] sm:$0xff]
    %v73 = vld [vmem:[%s1 + $0xc8] sm:$0xff]
    %v74 = vld [vmem:[%s1 + $0xd0] sm:$0xff]
    %v75 = vld [vmem:[%s1 + $0xd8] sm:$0xff]
    %v76 = vld [vmem:[%s1 + $0xe0] sm:$0xff]
    %v77 = vld [vmem:[%s1 + $0xe8] sm:$0xff]
    %v78 = vld [vmem:[%s1 + $0xf0] sm:$0xff]
    %v79 = vld [vmem:[%s1 + $0xf8] sm:$0xff]
    %v80 = vld [vmem:[%s1 + $0x100] sm:$0xff]
    %v81 = vld [vmem:[%s1 + $0x108] sm:$0xff]
    %v82 = vld [vmem:[%s1 + $0x110] sm:$0xff]
    %v83 = vld [vmem:[%s1 + $0x118] sm:$0xff]
    %v84 = vld [vmem:[%s1 + $0x120] sm:$0xff]
    %v85 = vld [vmem:[%s1 + $0x128] sm:$0xff]
    %v86 = vld [vmem:[%s1 + $0x130] sm:$0xff]
    %v87 = vld [vmem:[%s1 + $0x138] sm:$0xff]
    %v88 = vld [vmem:[%s1 + $0x140] sm:$0xff]
    %v89 = vld [vmem:[%s1 + $0x148] sm:$0xff]
    %v90 = vld [vmem:[%s1 + $0x150] sm:$0xff]
    %v91 = vld [vmem:[%s1 + $0x158] sm:$0xff]
    %v92 = vld [vmem:[%s1 + $0x160] sm:$0xff]
    %v93 = vld [vmem:[%s1 + $0x168] sm:$0xff]
    %v94 = vld [vmem:[%s1 + $0x170] sm:$0xff]
    %v95 = vld [vmem:[%s1 + $0x178] sm:$0xff]
    %v96 = vld [vmem:[%s1 + $0x180] sm:$0xff]
    %v97 = vld [vmem:[%s1 + $0x188] sm:$0xff]
    %v98 = vld [vmem:[%s1 + $0x190] sm:$0xff]
    %v99 = vld [vmem:[%s1 + $0x198] sm:$0xff]
    %v100 = vld [vmem:[%s1 + $0x1a0] sm:$0xff]
    %v101 = vld [vmem:[%s1 + $0x1a8] sm:$0xff]
    %v102 = vld [vmem:[%s1 + $0x1b0] sm:$0xff]
    %v103 = vld [vmem:[%s1 + $0x1b8] sm:$0xff]
    %v104 = vld [vmem:[%s1 + $0x1c0] sm:$0xff]
    %v105 = vld [vmem:[%s1 + $0x1c8] sm:$0xff]
    %v106 = vld [vmem:[%s1 + $0x1d0] sm:$0xff]
    %v107 = vld [vmem:[%s1 + $0x1d8] sm:$0xff]
    %v108 = vld [vmem:[%s1 + $0x1e0] sm:$0xff]
    %v109 = vld [vmem:[%s1 + $0x1e8] sm:$0xff]
    %v110 = vld [vmem:[%s1 + $0x1f0] sm:$0xff]
    %v111 = vld [vmem:[%s1 + $0x1f8] sm:$0xff]
    %v112 = vld [vmem:[%s1 + $0x200] sm:$0xff]
    %v113 = vld [vmem:[%s1 + $0x208] sm:$0xff]
    %v114 = vld [vmem:[%s1 + $0x210] sm:$0xff]
    %v115 = vld [vmem:[%s1 + $0x218] sm:$0xff]
    %v116 = vld [vmem:[%s1 + $0x220] sm:$0xff]
    %v117 = vld [vmem:[%s1 + $0x228] sm:$0xff]
    %v118 = vld [vmem:[%s1 + $0x230] sm:$0xff]
    %v119 = vld [vmem:[%s1 + $0x238] sm:$0xff]
    %v120 = vld [vmem:[%s1 + $0x240] sm:$0xff]
    %v121 = vld [vmem:[%s1 + $0x248] sm:$0xff]
    %v122 = vld [vmem:[%s1 + $0x250] sm:$0xff]
    %v123 = vld [vmem:[%s1 + $0x258] sm:$0xff]
    %v124 = vld [vmem:[%s1 + $0x260] sm:$0xff]
    %v125 = vld [vmem:[%s1 + $0x268] sm:$0xff]
    %v126 = vld [vmem:[%s1 + $0x270] sm:$0xff]
    %v127 = vld [vmem:[%s1 + $0x278] sm:$0xff]
    %v128 = vld [vmem:[%s1 + $0x280] sm:$0xff]
    %v129 = vld [vmem:[%s1 + $0x288] sm:$0xff]
    %v130 = vld [vmem:[%s1 + $0x290] sm:$0xff]
    %v131 = vld [vmem:[%s1 + $0x298] sm:$0xff]
    %v132 = vld [vmem:[%s1 + $0x2a0] sm:$0xff]
    %v133 = vld [vmem:[%s1 + $0x2a8] sm:$0xff]
    %v134 = vld [vmem:[%s1 + $0x2b0] sm:$0xff]
    %v135 = vld [vmem:[%s1 + $0x2b8] sm:$0xff]
    %v136 = vld [vmem:[%s1 + $0x2c0] sm:$0xff]
    %v137 = vld [vmem:[%s1 + $0x2c8] sm:$0xff]
    %v138 = vld [vmem:[%s1 + $0x2d0] sm:$0xff]
    %v139 = vld [vmem:[%s1 + $0x2d8] sm:$0xff]
    %v140 = vld [vmem:[%s1 + $0x2e0] sm:$0xff]
    %v141 = vld [vmem:[%s1 + $0x2e8] sm:$0xff]
    %v142 = vld [vmem:[%s1 + $0x2f0] sm:$0xff]
    %v143 = vld [vmem:[%s1 + $0x2f8] sm:$0xff]
    %v144 = vld [vmem:[%s1 + $0x300] sm:$0xff]
    %v145 = vld [vmem:[%s1 + $0x308] sm:$0xff]
    %v146 = vld [vmem:[%s1 + $0x310] sm:$0xff]
    %v147 = vld [vmem:[%s1 + $0x318] sm:$0xff]
    %v148 = vld [vmem:[%s1 + $0x320] sm:$0xff]
    %v149 = vld [vmem:[%s1 + $0x328] sm:$0xff]
    %v150 = vld [vmem:[%s1 + $0x330] sm:$0xff]
    %v151 = vld [vmem:[%s1 + $0x338] sm:$0xff]
    %v152 = vld [vmem:[%s1 + $0x340] sm:$0xff]
    %v153 = vld [vmem:[%s1 + $0x348] sm:$0xff]
    %v154 = vld [vmem:[%s1 + $0x350] sm:$0xff]
    %v155 = vld [vmem:[%s1 + $0x358] sm:$0xff]
    %v156 = vld [vmem:[%s1 + $0x360] sm:$0xff]
    %v157 = vld [vmem:[%s1 + $0x368] sm:$0xff]
    %v158 = vld [vmem:[%s1 + $0x370] sm:$0xff]
    %v159 = vld [vmem:[%s1 + $0x378] sm:$0xff]
    %v160 = vld [vmem:[%s1 + $0x380] sm:$0xff]
    %v161 = vld [vmem:[%s1 + $0x388] sm:$0xff]
    %v162 = vld [vmem:[%s1 + $0x390] sm:$0xff]
    %v163 = vld [vmem:[%s1 + $0x398] sm:$0xff]
    %v164 = vld [vmem:[%s1 + $0x3a0] sm:$0xff]
    %v165 = vld [vmem:[%s1 + $0x3a8] sm:$0xff]
    %v166 = vld [vmem:[%s1 + $0x3b0] sm:$0xff]
    %v167 = vld [vmem:[%s1 + $0x3b8] sm:$0xff]
    %v168 = vld [vmem:[%s1 + $0x3c0] sm:$0xff]
    %v169 = vld [vmem:[%s1 + $0x3c8] sm:$0xff]
    %v170 = vld [vmem:[%s1 + $0x3d0] sm:$0xff]
    %v171 = vld [vmem:[%s1 + $0x3d8] sm:$0xff]
    %v172 = vld [vmem:[%s1 + $0x3e0] sm:$0xff]
    %v173 = vld [vmem:[%s1 + $0x3e8] sm:$0xff]
    %v174 = vld [vmem:[%s1 + $0x3f0] sm:$0xff]
    %v175 = vld [vmem:[%s1 + $0x3f8] sm:$0xff]
    %v176 = vld [vmem:[%s1 + $0x400] sm:$0xff]
    %v177 = vld [vmem:[%s1 + $0x408] sm:$0xff]
    %v178 = vld [vmem:[%s1 + $0x410] sm:$0xff]
    %v179 = vld [vmem:[%s1 + $0x418] sm:$0xff]
    %v180 = vld [vmem:[%s1 + $0x420] sm:$0xff]
    %v181 = vld [vmem:[%s1 + $0x428] sm:$0xff]
    %v182 = vld [vmem:[%s1 + $0x430] sm:$0xff]
    %v183 = vld [vmem:[%s1 + $0x438] sm:$0xff]
    %v184 = vld [vmem:[%s1 + $0x440] sm:$0xff]
    %v185 = vld [vmem:[%s1 + $0x448] sm:$0xff]
    %v186 = vld [vmem:[%s1 + $0x450] sm:$0xff]
    %v187 = vld [vmem:[%s1 + $0x458] sm:$0xff]
    %v188 = vld [vmem:[%s1 + $0x460] sm:$0xff]
    %v189 = vld [vmem:[%s1 + $0x468] sm:$0xff]
    %v190 = vld [vmem:[%s1 + $0x470] sm:$0xff]
    %v191 = vld [vmem:[%s1 + $0x478] sm:$0xff]
    %v192 = vld [vmem:[%s1 + $0x480] sm:$0xff]
    %v193 = vld [vmem:[%s1 + $0x488] sm:$0xff]
    %v194 = vld [vmem:[%s1 + $0x490] sm:$0xff]
    %v195 = vld [vmem:[%s1 + $0x498] sm:$0xff]
    %v196 = vld [vmem:[%s1 + $0x4a0] sm:$0xff]
    %v197 = vld [vmem:[%s1 + $0x4a8] sm:$0xff]
    %v198 = vld [vmem:[%s1 + $0x4b0] sm:$0xff]
    %v199 = vld [vmem:[%s1 + $0x4b8] sm:$0xff]
    %v200 = vld [vmem:[%s1 + $0x4c0] sm:$0xff]
    %v201 = vld [vmem:[%s1 + $0x4c8] sm:$0xff]
    %v202 = vld [vmem:[%s1 + $0x4d0] sm:$0xff]
    %v203 = vld [vmem:[%s1 + $0x4d8] sm:$0xff]
    %v204 = vld [vmem:[%s1 + $0x4e0] sm:$0xff]
    %v205 = vld [vmem:[%s1 + $0x4e8] sm:$0xff]
    %v206 = vld [vmem:[%s1 + $0x4f0] sm:$0xff]
    %v207 = vld [vmem:[%s1 + $0x4f8] sm:$0xff]
    %v208 = vld [vmem:[%s1 + $0x500] sm:$0xff]
    %v209 = vld [vmem:[%s1 + $0x508] sm:$0xff]
    %v210 = vld [vmem:[%s1 + $0x510] sm:$0xff]
    %v211 = vld [vmem:[%s1 + $0x518] sm:$0xff]
    %v212 = vld [vmem:[%s1 + $0x520] sm:$0xff]
    %v213 = vld [vmem:[%s1 + $0x528] sm:$0xff]
    %v214 = vld [vmem:[%s1 + $0x530] sm:$0xff]
    %v215 = vld [vmem:[%s1 + $0x538] sm:$0xff]
    %v216 = vld [vmem:[%s1 + $0x540] sm:$0xff]
    %v217 = vld [vmem:[%s1 + $0x548] sm:$0xff]
    %v218 = vld [vmem:[%s1 + $0x550] sm:$0xff]
    %v219 = vld [vmem:[%s1 + $0x558] sm:$0xff]
    %v220 = vld [vmem:[%s1 + $0x560] sm:$0xff]
    %v221 = vld [vmem:[%s1 + $0x568] sm:$0xff]
    %v222 = vld [vmem:[%s1 + $0x570] sm:$0xff]
    %v223 = vld [vmem:[%s1 + $0x578] sm:$0xff]
    %v224 = vld [vmem:[%s1 + $0x580] sm:$0xff]
    %v225 = vld [vmem:[%s1 + $0x588] sm:$0xff]
    %v226 = vld [vmem:[%s1 + $0x590] sm:$0xff]
    %v227 = vld [vmem:[%s1 + $0x598] sm:$0xff]
    %v228 = vld [vmem:[%s1 + $0x5a0] sm:$0xff]
    %v229 = vld [vmem:[%s1 + $0x5a8] sm:$0xff]
    %v230 = vld [vmem:[%s1 + $0x5b0] sm:$0xff]
    %v231 = vld [vmem:[%s1 + $0x5b8] sm:$0xff]
    %v232 = vld [vmem:[%s1 + $0x5c0] sm:$0xff]
    %v233 = vld [vmem:[%s1 + $0x5c8] sm:$0xff]
    %v234 = vld [vmem:[%s1 + $0x5d0] sm:$0xff]
    %v235 = vld [vmem:[%s1 + $0x5d8] sm:$0xff]
    %v236 = vld [vmem:[%s1 + $0x5e0] sm:$0xff]
    %v237 = vld [vmem:[%s1 + $0x5e8] sm:$0xff]
    %v238 = vld [vmem:[%s1 + $0x5f0] sm:$0xff]
    %v239 = vld [vmem:[%s1 + $0x5f8] sm:$0xff]
    %v240 = vld [vmem:[%s1 + $0x600] sm:$0xff]
    %v241 = vld [vmem:[%s1 + $0x608] sm:$0xff]
    %v242 = vld [vmem:[%s1 + $0x610] sm:$0xff]
    %v243 = vld [vmem:[%s1 + $0x618] sm:$0xff]
    %v244 = vld [vmem:[%s1 + $0x620] sm:$0xff]
    %v245 = vld [vmem:[%s1 + $0x628] sm:$0xff]
    %v246 = vld [vmem:[%s1 + $0x630] sm:$0xff]
    %v247 = vld [vmem:[%s1 + $0x638] sm:$0xff]
    %v248 = vld [vmem:[%s1 + $0x640] sm:$0xff]
    %v249 = vld [vmem:[%s1 + $0x648] sm:$0xff]
    %v250 = vld [vmem:[%s1 + $0x650] sm:$0xff]
    %v251 = vld [vmem:[%s1 + $0x658] sm:$0xff]
    %v252 = vld [vmem:[%s1 + $0x660] sm:$0xff]
    %v253 = vld [vmem:[%s1 + $0x668] sm:$0xff]
    %v254 = vld [vmem:[%s1 + $0x670] sm:$0xff]
    %v255 = vld [vmem:[%s1 + $0x678] sm:$0xff]
    %v256 = vld [vmem:[%s1 + $0x680] sm:$0xff]
    %v257 = vld [vmem:[%s1 + $0x688] sm:$0xff]
    %v258 = vld [vmem:[%s1 + $0x690] sm:$0xff]
    %v259 = vld [vmem:[%s1 + $0x698] sm:$0xff]
    %v260 = vld [vmem:[%s1 + $0x6a0] sm:$0xff]
    %v261 = vld [vmem:[%s1 + $0x6a8] sm:$0xff]
    %v262 = vld [vmem:[%s1 + $0x6b0] sm:$0xff]
    %v263 = vld [vmem:[%s1 + $0x6b8] sm:$0xff]
    %v264 = vld [vmem:[%s1 + $0x6c0] sm:$0xff]
    %v265 = vld [vmem:[%s1 + $0x6c8] sm:$0xff]
    %v266 = vld [vmem:[%s1 + $0x6d0] sm:$0xff]
    %v267 = vld [vmem:[%s1 + $0x6d8] sm:$0xff]
    %v268 = vld [vmem:[%s1 + $0x6e0] sm:$0xff]
    %v269 = vld [vmem:[%s1 + $0x6e8] sm:$0xff]
    %v270 = vld [vmem:[%s1 + $0x6f0] sm:$0xff]
    %v271 = vld [vmem:[%s1 + $0x6f8] sm:$0xff]
    %v272 = vld [vmem:[%s1 + $0x700] sm:$0xff]
    %v273 = vld [vmem:[%s1 + $0x708] sm:$0xff]
    %v274 = vld [vmem:[%s1 + $0x710] sm:$0xff]
    %v275 = vld [vmem:[%s1 + $0x718] sm:$0xff]
    %v276 = vld [vmem:[%s1 + $0x720] sm:$0xff]
    %v277 = vld [vmem:[%s1 + $0x728] sm:$0xff]
    %v278 = vld [vmem:[%s1 + $0x730] sm:$0xff]
    %v279 = vld [vmem:[%s1 + $0x738] sm:$0xff]
    %v280 = vld [vmem:[%s1 + $0x740] sm:$0xff]
    %v281 = vld [vmem:[%s1 + $0x748] sm:$0xff]
    %v282 = vld [vmem:[%s1 + $0x750] sm:$0xff]
    %v283 = vld [vmem:[%s1 + $0x758] sm:$0xff]
    %v284 = vld [vmem:[%s1 + $0x760] sm:$0xff]
    %v285 = vld [vmem:[%s1 + $0x768] sm:$0xff]
    %v286 = vld [vmem:[%s1 + $0x770] sm:$0xff]
    %v287 = vld [vmem:[%s1 + $0x778] sm:$0xff]
    %v288 = vld [vmem:[%s1 + $0x780] sm:$0xff]
    %v289 = vld [vmem:[%s1 + $0x788] sm:$0xff]
    %v290 = vld [vmem:[%s1 + $0x790] sm:$0xff]
    %v291 = vld [vmem:[%s1 + $0x798] sm:$0xff]
    %v292 = vld [vmem:[%s1 + $0x7a0] sm:$0xff]
    %v293 = vld [vmem:[%s1 + $0x7a8] sm:$0xff]
    %v294 = vld [vmem:[%s1 + $0x7b0] sm:$0xff]
    %v295 = vld [vmem:[%s1 + $0x7b8] sm:$0xff]
    %v296 = vld [vmem:[%s1 + $0x7c0] sm:$0xff]
    %v297 = vld [vmem:[%s1 + $0x7c8] sm:$0xff]
    %v298 = vld [vmem:[%s1 + $0x7d0] sm:$0xff]
    %v299 = vld [vmem:[%s1 + $0x7d8] sm:$0xff]
    %v300 = vld [vmem:[%s1 + $0x7e0] sm:$0xff]
    %v301 = vld [vmem:[%s1 + $0x7e8] sm:$0xff]
    %v302 = vld [vmem:[%s1 + $0x7f0] sm:$0xff]
    %v303 = vld [vmem:[%s1 + $0x7f8] sm:$0xff]
    %v304 = vld [vmem:[%s1 + $0x800] sm:$0xff]
    %v305 = vld [vmem:[%s1 + $0x808] sm:$0xff]
    %v306 = vld [vmem:[%s1 + $0x810] sm:$0xff]
    %v307 = vld [vmem:[%s1 + $0x818] sm:$0xff]
    %v308 = vld [vmem:[%s1 + $0x820] sm:$0xff]
    %v309 = vld [vmem:[%s1 + $0x828] sm:$0xff]
    %v310 = vld [vmem:[%s1 + $0x830] sm:$0xff]
    %v311 = vld [vmem:[%s1 + $0x838] sm:$0xff]
    %v312 = vld [vmem:[%s1 + $0x840] sm:$0xff]
    %v313 = vld [vmem:[%s1 + $0x848] sm:$0xff]
    %v314 = vld [vmem:[%s1 + $0x850] sm:$0xff]
    %v315 = vld [vmem:[%s1 + $0x858] sm:$0xff]
    %v316 = vld [vmem:[%s1 + $0x860] sm:$0xff]
    %v317 = vld [vmem:[%s1 + $0x868] sm:$0xff]
    %v318 = vld [vmem:[%s1 + $0x870] sm:$0xff]
    %v319 = vld [vmem:[%s1 + $0x878] sm:$0xff]
    %v320 = vld [vmem:[%s1 + $0x880] sm:$0xff]
    %v321 = vld [vmem:[%s1 + $0x888] sm:$0xff]
    %v322 = vld [vmem:[%s1 + $0x890] sm:$0xff]
    %v323 = vld [vmem:[%s1 + $0x898] sm:$0xff]
    %v324 = vld [vmem:[%s1 + $0x8a0] sm:$0xff]
    %v325 = vld [vmem:[%s1 + $0x8a8] sm:$0xff]
    %v326 = vld [vmem:[%s1 + $0x8b0] sm:$0xff]
    %v327 = vld [vmem:[%s1 + $0x8b8] sm:$0xff]
    %v328 = vld [vmem:[%s1 + $0x8c0] sm:$0xff]
    %v329 = vld [vmem:[%s1 + $0x8c8] sm:$0xff]
    %v330 = vld [vmem:[%s1 + $0x8d0] sm:$0xff]
    %v331 = vld [vmem:[%s1 + $0x8d8] sm:$0xff]
    %v332 = vld [vmem:[%s1 + $0x8e0] sm:$0xff]
    %v333 = vld [vmem:[%s1 + $0x8e8] sm:$0xff]
    %v334 = vld [vmem:[%s1 + $0x8f0] sm:$0xff]
    %v335 = vld [vmem:[%s1 + $0x8f8] sm:$0xff]
    %v336 = vld [vmem:[%s1 + $0x900] sm:$0xff]
    %v337 = vld [vmem:[%s1 + $0x908] sm:$0xff]
    %v338 = vld [vmem:[%s1 + $0x910] sm:$0xff]
    %v339 = vld [vmem:[%s1 + $0x918] sm:$0xff]
    %v340 = vld [vmem:[%s1 + $0x920] sm:$0xff]
    %v341 = vld [vmem:[%s1 + $0x928] sm:$0xff]
    %v342 = vld [vmem:[%s1 + $0x930] sm:$0xff]
    %v343 = vld [vmem:[%s1 + $0x938] sm:$0xff]
    %v344 = vld [vmem:[%s1 + $0x940] sm:$0xff]
    %v345 = vld [vmem:[%s1 + $0x948] sm:$0xff]
    %v346 = vld [vmem:[%s1 + $0x950] sm:$0xff]
    %v347 = vld [vmem:[%s1 + $0x958] sm:$0xff]
    %v348 = vld [vmem:[%s1 + $0x960] sm:$0xff]
    %v349 = vld [vmem:[%s1 + $0x968] sm:$0xff]
    %v350 = vld [vmem:[%s1 + $0x970] sm:$0xff]
    %v351 = vld [vmem:[%s1 + $0x978] sm:$0xff]
    %v352 = vld [vmem:[%s1 + $0x980] sm:$0xff]
    %v353 = vld [vmem:[%s1 + $0x988] sm:$0xff]
    %v354 = vld [vmem:[%s1 + $0x990] sm:$0xff]
    %v355 = vld [vmem:[%s1 + $0x998] sm:$0xff]
    %v356 = vld [vmem:[%s1 + $0x9a0] sm:$0xff]
    %v357 = vld [vmem:[%s1 + $0x9a8] sm:$0xff]
    %v358 = vld [vmem:[%s1 + $0x9b0] sm:$0xff]
    %v359 = vld [vmem:[%s1 + $0x9b8] sm:$0xff]
    %v360 = vld [vmem:[%s1 + $0x9c0] sm:$0xff]
    %v361 = vld [vmem:[%s1 + $0x9c8] sm:$0xff]
    %v362 = vld [vmem:[%s1 + $0x9d0] sm:$0xff]
    %v363 = vld [vmem:[%s1 + $0x9d8] sm:$0xff]
    %v364 = vld [vmem:[%s1 + $0x9e0] sm:$0xff]
    %v365 = vld [vmem:[%s1 + $0x9e8] sm:$0xff]
    %v366 = vld [vmem:[%s1 + $0x9f0] sm:$0xff]
    %v367 = vld [vmem:[%s1 + $0x9f8] sm:$0xff]
    %v368 = vld [vmem:[%s1 + $0xa00] sm:$0xff]
    %v369 = vld [vmem:[%s1 + $0xa08] sm:$0xff]
    %v370 = vld [vmem:[%s1 + $0xa10] sm:$0xff]
    %v371 = vld [vmem:[%s1 + $0xa18] sm:$0xff]
    %v372 = vld [vmem:[%s1 + $0xa20] sm:$0xff]
    %v373 = vld [vmem:[%s1 + $0xa28] sm:$0xff]
    %v374 = vld [vmem:[%s1 + $0xa30] sm:$0xff]
    %v375 = vld [vmem:[%s1 + $0xa38] sm:$0xff]
    %v376 = vld [vmem:[%s1 + $0xa40] sm:$0xff]
    %v377 = vld [vmem:[%s1 + $0xa48] sm:$0xff]
    %v378 = vld [vmem:[%s1 + $0xa50] sm:$0xff]
    %v379 = vld [vmem:[%s1 + $0xa58] sm:$0xff]
    %v380 = vld [vmem:[%s1 + $0xa60] sm:$0xff]
    %v381 = vld [vmem:[%s1 + $0xa68] sm:$0xff]
    %v382 = vld [vmem:[%s1 + $0xa70] sm:$0xff]
    %v383 = vld [vmem:[%s1 + $0xa78] sm:$0xff]
    %v384 = vld [vmem:[%s1 + $0xa80] sm:$0xff]
    %v385 = vld [vmem:[%s1 + $0xa88] sm:$0xff]
    %v386 = vld [vmem:[%s1 + $0xa90] sm:$0xff]
    %v387 = vld [vmem:[%s1 + $0xa98] sm:$0xff]
    %v388 = vld [vmem:[%s1 + $0xaa0] sm:$0xff]
    %v389 = vld [vmem:[%s1 + $0xaa8] sm:$0xff]
    %v390 = vld [vmem:[%s1 + $0xab0] sm:$0xff]
    %v391 = vld [vmem:[%s1 + $0xab8] sm:$0xff]
    %v392 = vld [vmem:[%s1 + $0xac0] sm:$0xff]
    %v393 = vld [vmem:[%s1 + $0xac8] sm:$0xff]
    %v394 = vld [vmem:[%s1 + $0xad0] sm:$0xff]
    %v395 = vld [vmem:[%s1 + $0xad8] sm:$0xff]
    %v396 = vld [vmem:[%s1 + $0xae0] sm:$0xff]
    %v397 = vld [vmem:[%s1 + $0xae8] sm:$0xff]
    %v398 = vld [vmem:[%s1 + $0xaf0] sm:$0xff]
    %v399 = vld [vmem:[%s1 + $0xaf8] sm:$0xff]
    %v400 = vld [vmem:[%s1 + $0xb00] sm:$0xff]
    %v401 = vld [vmem:[%s1 + $0xb08] sm:$0xff]
    %v402 = vld [vmem:[%s1 + $0xb10] sm:$0xff]
    %v403 = vld [vmem:[%s1 + $0xb18] sm:$0xff]
    %v404 = vld [vmem:[%s1 + $0xb20] sm:$0xff]
    %v405 = vld [vmem:[%s1 + $0xb28] sm:$0xff]
    %v406 = vld [vmem:[%s1 + $0xb30] sm:$0xff]
    %v407 = vld [vmem:[%s1 + $0xb38] sm:$0xff]
    %v408 = vld [vmem:[%s1 + $0xb40] sm:$0xff]
    %v409 = vld [vmem:[%s1 + $0xb48] sm:$0xff]
    %v410 = vld [vmem:[%s1 + $0xb50] sm:$0xff]
    %v411 = vld [vmem:[%s1 + $0xb58] sm:$0xff]
    %v412 = vld [vmem:[%s1 + $0xb60] sm:$0xff]
    %v413 = vld [vmem:[%s1 + $0xb68] sm:$0xff]
    %v414 = vld [vmem:[%s1 + $0xb70] sm:$0xff]
    %v415 = vld [vmem:[%s1 + $0xb78] sm:$0xff]
    %v416 = vld [vmem:[%s1 + $0xb80] sm:$0xff]
    %v417 = vld [vmem:[%s1 + $0xb88] sm:$0xff]
    %v418 = vld [vmem:[%s1 + $0xb90] sm:$0xff]
    %v419 = vld [vmem:[%s1 + $0xb98] sm:$0xff]
    %v420 = vld [vmem:[%s1 + $0xba0] sm:$0xff]
    %v421 = vld [vmem:[%s1 + $0xba8] sm:$0xff]
    %v422 = vld [vmem:[%s1 + $0xbb0] sm:$0xff]
    %v423 = vld [vmem:[%s1 + $0xbb8] sm:$0xff]
    %v424 = vld [vmem:[%s1 + $0xbc0] sm:$0xff]
    %v425 = vld [vmem:[%s1 + $0xbc8] sm:$0xff]
    %v426 = vld [vmem:[%s1 + $0xbd0] sm:$0xff]
    %v427 = vld [vmem:[%s1 + $0xbd8] sm:$0xff]
    %v428 = vld [vmem:[%s1 + $0xbe0] sm:$0xff]
    %v429 = vld [vmem:[%s1 + $0xbe8] sm:$0xff]
    %v430 = vld [vmem:[%s1 + $0xbf0] sm:$0xff]
    %v431 = vld [vmem:[%s1 + $0xbf8] sm:$0xff]
    %v432 = vld [vmem:[%s1 + $0xc00] sm:$0xff]
    %v433 = vld [vmem:[%s1 + $0xc08] sm:$0xff]
    %v434 = vld [vmem:[%s1 + $0xc10] sm:$0xff]
    %v435 = vld [vmem:[%s1 + $0xc18] sm:$0xff]
    %v436 = vld [vmem:[%s1 + $0xc20] sm:$0xff]
    %v437 = vld [vmem:[%s1 + $0xc28] sm:$0xff]
    %v438 = vld [vmem:[%s1 + $0xc30] sm:$0xff]
    %v439 = vld [vmem:[%s1 + $0xc38] sm:$0xff]
    %v440 = vld [vmem:[%s1 + $0xc40] sm:$0xff]
    %v441 = vld [vmem:[%s1 + $0xc48] sm:$0xff]
    %v442 = vld [vmem:[%s1 + $0xc50] sm:$0xff]
    %v443 = vld [vmem:[%s1 + $0xc58] sm:$0xff]
    %v444 = vld [vmem:[%s1 + $0xc60] sm:$0xff]
    %v445 = vld [vmem:[%s1 + $0xc68] sm:$0xff]
    %v446 = vld [vmem:[%s1 + $0xc70] sm:$0xff]
    %v447 = vld [vmem:[%s1 + $0xc78] sm:$0xff]
    %v448 = vld [vmem:[%s1 + $0xc80] sm:$0xff]
    %v449 = vld [vmem:[%s1 + $0xc88] sm:$0xff]
    %v450 = vld [vmem:[%s1 + $0xc90] sm:$0xff]
    %v451 = vld [vmem:[%s1 + $0xc98] sm:$0xff]
    %v452 = vld [vmem:[%s1 + $0xca0] sm:$0xff]
    %v453 = vld [vmem:[%s1 + $0xca8] sm:$0xff]
    %v454 = vld [vmem:[%s1 + $0xcb0] sm:$0xff]
    %v455 = vld [vmem:[%s1 + $0xcb8] sm:$0xff]
    %v456 = vld [vmem:[%s1 + $0xcc0] sm:$0xff]
    %v457 = vld [vmem:[%s1 + $0xcc8] sm:$0xff]
    %v458 = vld [vmem:[%s1 + $0xcd0] sm:$0xff]
    %v459 = vld [vmem:[%s1 + $0xcd8] sm:$0xff]
    %v460 = vld [vmem:[%s1 + $0xce0] sm:$0xff]
    %v461 = vld [vmem:[%s1 + $0xce8] sm:$0xff]
    %v462 = vld [vmem:[%s1 + $0xcf0] sm:$0xff]
    %v463 = vld [vmem:[%s1 + $0xcf8] sm:$0xff]
    %v464 = vld [vmem:[%s1 + $0xd00] sm:$0xff]
    %v465 = vld [vmem:[%s1 + $0xd08] sm:$0xff]
    %v466 = vld [vmem:[%s1 + $0xd10] sm:$0xff]
    %v467 = vld [vmem:[%s1 + $0xd18] sm:$0xff]
    %v468 = vld [vmem:[%s1 + $0xd20] sm:$0xff]
    %v469 = vld [vmem:[%s1 + $0xd28] sm:$0xff]
    %v470 = vld [vmem:[%s1 + $0xd30] sm:$0xff]
    %v471 = vld [vmem:[%s1 + $0xd38] sm:$0xff]
    %v472 = vld [vmem:[%s1 + $0xd40] sm:$0xff]
    %v473 = vld [vmem:[%s1 + $0xd48] sm:$0xff]
    %v474 = vld [vmem:[%s1 + $0xd50] sm:$0xff]
    %v475 = vld [vmem:[%s1 + $0xd58] sm:$0xff]
    %v476 = vld [vmem:[%s1 + $0xd60] sm:$0xff]
    %v477 = vld [vmem:[%s1 + $0xd68] sm:$0xff]
    %v478 = vld [vmem:[%s1 + $0xd70] sm:$0xff]
    %v479 = vld [vmem:[%s1 + $0xd78] sm:$0xff]
    %v480 = vld [vmem:[%s1 + $0xd80] sm:$0xff]
    %v481 = vld [vmem:[%s1 + $0xd88] sm:$0xff]
    %v482 = vld [vmem:[%s1 + $0xd90] sm:$0xff]
    %v483 = vld [vmem:[%s1 + $0xd98] sm:$0xff]
    %v484 = vld [vmem:[%s1 + $0xda0] sm:$0xff]
    %v485 = vld [vmem:[%s1 + $0xda8] sm:$0xff]
    %v486 = vld [vmem:[%s1 + $0xdb0] sm:$0xff]
    %v487 = vld [vmem:[%s1 + $0xdb8] sm:$0xff]
    %v488 = vld [vmem:[%s1 + $0xdc0] sm:$0xff]
    %v489 = vld [vmem:[%s1 + $0xdc8] sm:$0xff]
    %v490 = vld [vmem:[%s1 + $0xdd0] sm:$0xff]
    %v491 = vld [vmem:[%s1 + $0xdd8] sm:$0xff]
    %v492 = vld [vmem:[%s1 + $0xde0] sm:$0xff]
    %v493 = vld [vmem:[%s1 + $0xde8] sm:$0xff]
    %v494 = vld [vmem:[%s1 + $0xdf0] sm:$0xff]
    %v495 = vld [vmem:[%s1 + $0xdf8] sm:$0xff]
    %v496 = vld [vmem:[%s1 + $0xe00] sm:$0xff]
    %v497 = vld [vmem:[%s1 + $0xe08] sm:$0xff]
    %v498 = vld [vmem:[%s1 + $0xe10] sm:$0xff]
    %v499 = vld [vmem:[%s1 + $0xe18] sm:$0xff]
    %v500 = vld [vmem:[%s1 + $0xe20] sm:$0xff]
    %v501 = vld [vmem:[%s1 + $0xe28] sm:$0xff]
    %v502 = vld [vmem:[%s1 + $0xe30] sm:$0xff]
    %v503 = vld [vmem:[%s1 + $0xe38] sm:$0xff]
    %v504 = vld [vmem:[%s1 + $0xe40] sm:$0xff]
    %v505 = vld [vmem:[%s1 + $0xe48] sm:$0xff]
    %v506 = vld [vmem:[%s1 + $0xe50] sm:$0xff]
    %v507 = vld [vmem:[%s1 + $0xe58] sm:$0xff]
    %v508 = vld [vmem:[%s1 + $0xe60] sm:$0xff]
    %v509 = vld [vmem:[%s1 + $0xe68] sm:$0xff]
    %v510 = vld [vmem:[%s1 + $0xe70] sm:$0xff]
    %v511 = vld [vmem:[%s1 + $0xe78] sm:$0xff]
    %v512 = vld [vmem:[%s1 + $0xe80] sm:$0xff]
    %v513 = vld [vmem:[%s1 + $0xe88] sm:$0xff]
    %v514 = vld [vmem:[%s1 + $0xe90] sm:$0xff]
    %v515 = vld [vmem:[%s1 + $0xe98] sm:$0xff]
    %v516 = vld [vmem:[%s1 + $0xea0] sm:$0xff]
    %v517 = vld [vmem:[%s1 + $0xea8] sm:$0xff]
    %v518 = vld [vmem:[%s1 + $0xeb0] sm:$0xff]
    %v519 = vld [vmem:[%s1 + $0xeb8] sm:$0xff]
    %v520 = vld [vmem:[%s1 + $0xec0] sm:$0xff]
    %v521 = vld [vmem:[%s1 + $0xec8] sm:$0xff]
    %v522 = vld [vmem:[%s1 + $0xed0] sm:$0xff]
    %v523 = vld [vmem:[%s1 + $0xed8] sm:$0xff]
    %v524 = vld [vmem:[%s1 + $0xee0] sm:$0xff]
    %v525 = vld [vmem:[%s1 + $0xee8] sm:$0xff]
    %v526 = vld [vmem:[%s1 + $0xef0] sm:$0xff]
    %v527 = vld [vmem:[%s1 + $0xef8] sm:$0xff]
    %v528 = vld [vmem:[%s1 + $0xf00] sm:$0xff]
    %v529 = vld [vmem:[%s1 + $0xf08] sm:$0xff]
    %v530 = vld [vmem:[%s1 + $0xf10] sm:$0xff]
    %v531 = vld [vmem:[%s1 + $0xf18] sm:$0xff]
    %v532 = vld [vmem:[%s1 + $0xf20] sm:$0xff]
    %v533 = vld [vmem:[%s1 + $0xf28] sm:$0xff]
    %v534 = vld [vmem:[%s1 + $0xf30] sm:$0xff]
    %v535 = vld [vmem:[%s1 + $0xf38] sm:$0xff]
    %v536 = vld [vmem:[%s1 + $0xf40] sm:$0xff]
    %v537 = vld [vmem:[%s1 + $0xf48] sm:$0xff]
    %v538 = vld [vmem:[%s1 + $0xf50] sm:$0xff]
    %v539 = vld [vmem:[%s1 + $0xf58] sm:$0xff]
    %v540 = vld [vmem:[%s1 + $0xf60] sm:$0xff]
    %v541 = vld [vmem:[%s1 + $0xf68] sm:$0xff]
    %v542 = vld [vmem:[%s1 + $0xf70] sm:$0xff]
    %v543 = vld [vmem:[%s1 + $0xf78] sm:$0xff]
    %v544 = vld [vmem:[%s1 + $0xf80] sm:$0xff]
    %v545 = vld [vmem:[%s1 + $0xf88] sm:$0xff]
    %v546 = vld [vmem:[%s1 + $0xf90] sm:$0xff]
    %v547 = vld [vmem:[%s1 + $0xf98] sm:$0xff]
    %v548 = vld [vmem:[%s1 + $0xfa0] sm:$0xff]
    %v549 = vld [vmem:[%s1 + $0xfa8] sm:$0xff]
    %v550 = vld [vmem:[%s1 + $0xfb0] sm:$0xff]
    %v551 = vld [vmem:[%s1 + $0xfb8] sm:$0xff]
    %v552 = vld [vmem:[%s1 + $0xfc0] sm:$0xff]
    %v553 = vld [vmem:[%s1 + $0xfc8] sm:$0xff]
    %v554 = vld [vmem:[%s1 + $0xfd0] sm:$0xff]
    %v555 = vld [vmem:[%s1 + $0xfd8] sm:$0xff]
    %v556 = vld [vmem:[%s1 + $0xfe0] sm:$0xff]
    %v557 = vld [vmem:[%s1 + $0xfe8] sm:$0xff]
    %v558 = vld [vmem:[%s1 + $0xff0] sm:$0xff]
    %v559 = vld [vmem:[%s1 + $0xff8] sm:$0xff]
    %v560 = vld [vmem:[%s1 + $0x1000] sm:$0xff]
    %v561 = vld [vmem:[%s1 + $0x1008] sm:$0xff]
    %v562 = vld [vmem:[%s1 + $0x1010] sm:$0xff]
    %v563 = vld [vmem:[%s1 + $0x1018] sm:$0xff]
    %v564 = vld [vmem:[%s1 + $0x1020] sm:$0xff]
    %v565 = vld [vmem:[%s1 + $0x1028] sm:$0xff]
    %v566 = vld [vmem:[%s1 + $0x1030] sm:$0xff]
    %v567 = vld [vmem:[%s1 + $0x1038] sm:$0xff]
    %v568 = vld [vmem:[%s1 + $0x1040] sm:$0xff]
    %v569 = vld [vmem:[%s1 + $0x1048] sm:$0xff]
    %v570 = vld [vmem:[%s1 + $0x1050] sm:$0xff]
    %v571 = vld [vmem:[%s1 + $0x1058] sm:$0xff]
    %v572 = vld [vmem:[%s1 + $0x1060] sm:$0xff]
    %v573 = vld [vmem:[%s1 + $0x1068] sm:$0xff]
    %v574 = vld [vmem:[%s1 + $0x1070] sm:$0xff]
    %v575 = vld [vmem:[%s1 + $0x1078] sm:$0xff]
    %v576 = vld [vmem:[%s1 + $0x1080] sm:$0xff]
    %v577 = vld [vmem:[%s1 + $0x1088] sm:$0xff]
    %v578 = vld [vmem:[%s1 + $0x1090] sm:$0xff]
    %v579 = vld [vmem:[%s1 + $0x1098] sm:$0xff]
    %v580 = vld [vmem:[%s1 + $0x10a0] sm:$0xff]
    %v581 = vld [vmem:[%s1 + $0x10a8] sm:$0xff]
    %v582 = vld [vmem:[%s1 + $0x10b0] sm:$0xff]
    %v583 = vld [vmem:[%s1 + $0x10b8] sm:$0xff]
    %v584 = vld [vmem:[%s1 + $0x10c0] sm:$0xff]
    %v585 = vld [vmem:[%s1 + $0x10c8] sm:$0xff]
    %v586 = vld [vmem:[%s1 + $0x10d0] sm:$0xff]
    %v587 = vld [vmem:[%s1 + $0x10d8] sm:$0xff]
    %v588 = vld [vmem:[%s1 + $0x10e0] sm:$0xff]
    %v589 = vld [vmem:[%s1 + $0x10e8] sm:$0xff]
    %v590 = vld [vmem:[%s1 + $0x10f0] sm:$0xff]
    %v591 = vld [vmem:[%s1 + $0x10f8] sm:$0xff]
    %v592 = vld [vmem:[%s1 + $0x1100] sm:$0xff]
    %v593 = vld [vmem:[%s1 + $0x1108] sm:$0xff]
    %v594 = vld [vmem:[%s1 + $0x1110] sm:$0xff]
    %v595 = vld [vmem:[%s1 + $0x1118] sm:$0xff]
    %v596 = vld [vmem:[%s1 + $0x1120] sm:$0xff]
    %v597 = vld [vmem:[%s1 + $0x1128] sm:$0xff]
    %v598 = vld [vmem:[%s1 + $0x1130] sm:$0xff]
    %v599 = vld [vmem:[%s1 + $0x1138] sm:$0xff]
    %v600 = vld [vmem:[%s1 + $0x1140] sm:$0xff]
    %v601 = vld [vmem:[%s1 + $0x1148] sm:$0xff]
    %v602 = vld [vmem:[%s1 + $0x1150] sm:$0xff]
    %v603 = vld [vmem:[%s1 + $0x1158] sm:$0xff]
    %v604 = vld [vmem:[%s1 + $0x1160] sm:$0xff]
    %v605 = vld [vmem:[%s1 + $0x1168] sm:$0xff]
    %v606 = vld [vmem:[%s1 + $0x1170] sm:$0xff]
    %v607 = vld [vmem:[%s1 + $0x1178] sm:$0xff]
    %v608 = vld [vmem:[%s1 + $0x1180] sm:$0xff]
    %v609 = vld [vmem:[%s1 + $0x1188] sm:$0xff]
    %v610 = vld [vmem:[%s1 + $0x1190] sm:$0xff]
    %v611 = vld [vmem:[%s1 + $0x1198] sm:$0xff]
    %v612 = vld [vmem:[%s1 + $0x11a0] sm:$0xff]
    %v613 = vld [vmem:[%s1 + $0x11a8] sm:$0xff]
    %v614 = vld [vmem:[%s1 + $0x11b0] sm:$0xff]
    %v615 = vld [vmem:[%s1 + $0x11b8] sm:$0xff]
    %v616 = vld [vmem:[%s1 + $0x11c0] sm:$0xff]
    %v617 = vld [vmem:[%s1 + $0x11c8] sm:$0xff]
    %v618 = vld [vmem:[%s1 + $0x11d0] sm:$0xff]
    %v619 = vld [vmem:[%s1 + $0x11d8] sm:$0xff]
    %v620 = vld [vmem:[%s1 + $0x11e0] sm:$0xff]
    %v621 = vld [vmem:[%s1 + $0x11e8] sm:$0xff]
    %v622 = vld [vmem:[%s1 + $0x11f0] sm:$0xff]
    %v623 = vld [vmem:[%s1 + $0x11f8] sm:$0xff]
    %v624 = vld [vmem:[%s1 + $0x1200] sm:$0xff]
    %v625 = vld [vmem:[%s1 + $0x1208] sm:$0xff]
    %v626 = vld [vmem:[%s1 + $0x1210] sm:$0xff]
    %v627 = vld [vmem:[%s1 + $0x1218] sm:$0xff]
    %v628 = vld [vmem:[%s1 + $0x1220] sm:$0xff]
    %v629 = vld [vmem:[%s1 + $0x1228] sm:$0xff]
    %v630 = vld [vmem:[%s1 + $0x1230] sm:$0xff]
    %v631 = vld [vmem:[%s1 + $0x1238] sm:$0xff]
    %v632 = vld [vmem:[%s1 + $0x1240] sm:$0xff]
    %v633 = vld [vmem:[%s1 + $0x1248] sm:$0xff]
    %v634 = vld [vmem:[%s1 + $0x1250] sm:$0xff]
    %v635 = vld [vmem:[%s1 + $0x1258] sm:$0xff]
    %v636 = vld [vmem:[%s1 + $0x1260] sm:$0xff]
    %v637 = vld [vmem:[%s1 + $0x1268] sm:$0xff]
    %v638 = vld [vmem:[%s1 + $0x1270] sm:$0xff]
    %v639 = vld [vmem:[%s1 + $0x1278] sm:$0xff]
    %v640 = vld [vmem:[%s1 + $0x1280] sm:$0xff]
    %v641 = vld [vmem:[%s1 + $0x1288] sm:$0xff]
    %v642 = vld [vmem:[%s1 + $0x1290] sm:$0xff]
    %v643 = vld [vmem:[%s1 + $0x1298] sm:$0xff]
    %v644 = vld [vmem:[%s1 + $0x12a0] sm:$0xff]
    %v645 = vld [vmem:[%s1 + $0x12a8] sm:$0xff]
    %v646 = vld [vmem:[%s1 + $0x12b0] sm:$0xff]
    %v647 = vld [vmem:[%s1 + $0x12b8] sm:$0xff]
    %v648 = vld [vmem:[%s1 + $0x12c0] sm:$0xff]
    %v649 = vld [vmem:[%s1 + $0x12c8] sm:$0xff]
    %v650 = vld [vmem:[%s1 + $0x12d0] sm:$0xff]
    %v651 = vld [vmem:[%s1 + $0x12d8] sm:$0xff]
    %v652 = vld [vmem:[%s1 + $0x12e0] sm:$0xff]
    %v653 = vld [vmem:[%s1 + $0x12e8] sm:$0xff]
    %v654 = vld [vmem:[%s1 + $0x12f0] sm:$0xff]
    %v655 = vld [vmem:[%s1 + $0x12f8] sm:$0xff]
    %v656 = vld [vmem:[%s1 + $0x1300] sm:$0xff]
    %v657 = vld [vmem:[%s1 + $0x1308] sm:$0xff]
    %v658 = vld [vmem:[%s1 + $0x1310] sm:$0xff]
    %v659 = vld [vmem:[%s1 + $0x1318] sm:$0xff]
    %v660 = vld [vmem:[%s1 + $0x1320] sm:$0xff]
    %v661 = vld [vmem:[%s1 + $0x1328] sm:$0xff]
    %v662 = vld [vmem:[%s1 + $0x1330] sm:$0xff]
    %v663 = vld [vmem:[%s1 + $0x1338] sm:$0xff]
    %v664 = vld [vmem:[%s1 + $0x1340] sm:$0xff]
    %v665 = vld [vmem:[%s1 + $0x1348] sm:$0xff]
    %v666 = vld [vmem:[%s1 + $0x1350] sm:$0xff]
    %v667 = vld [vmem:[%s1 + $0x1358] sm:$0xff]
    %v668 = vld [vmem:[%s1 + $0x1360] sm:$0xff]
    %v669 = vld [vmem:[%s1 + $0x1368] sm:$0xff]
    %v670 = vld [vmem:[%s1 + $0x1370] sm:$0xff]
    %v671 = vld [vmem:[%s1 + $0x1378] sm:$0xff]
    %v672 = vld [vmem:[%s1 + $0x1380] sm:$0xff]
    %v673 = vld [vmem:[%s1 + $0x1388] sm:$0xff]
    %v674 = vld [vmem:[%s1 + $0x1390] sm:$0xff]
    %v675 = vld [vmem:[%s1 + $0x1398] sm:$0xff]
    %v676 = vld [vmem:[%s1 + $0x13a0] sm:$0xff]
    %v677 = vld [vmem:[%s1 + $0x13a8] sm:$0xff]
    %v678 = vld [vmem:[%s1 + $0x13b0] sm:$0xff]
    %v679 = vld [vmem:[%s1 + $0x13b8] sm:$0xff]
    %v680 = vld [vmem:[%s1 + $0x13c0] sm:$0xff]
    %v681 = vld [vmem:[%s1 + $0x13c8] sm:$0xff]
    %v682 = vld [vmem:[%s1 + $0x13d0] sm:$0xff]
    %v683 = vld [vmem:[%s1 + $0x13d8] sm:$0xff]
    %v684 = vld [vmem:[%s1 + $0x13e0] sm:$0xff]
    %v685 = vld [vmem:[%s1 + $0x13e8] sm:$0xff]
    %v686 = vld [vmem:[%s1 + $0x13f0] sm:$0xff]
    %v687 = vld [vmem:[%s1 + $0x13f8] sm:$0xff]
    %v688 = vld [vmem:[%s1 + $0x1400] sm:$0xff]
    %v689 = vld [vmem:[%s1 + $0x1408] sm:$0xff]
    %v690 = vld [vmem:[%s1 + $0x1410] sm:$0xff]
    %v691 = vld [vmem:[%s1 + $0x1418] sm:$0xff]
    %v692 = vld [vmem:[%s1 + $0x1420] sm:$0xff]
    %v693 = vld [vmem:[%s1 + $0x1428] sm:$0xff]
    %v694 = vld [vmem:[%s1 + $0x1430] sm:$0xff]
    %v695 = vld [vmem:[%s1 + $0x1438] sm:$0xff]
    %v696 = vld [vmem:[%s1 + $0x1440] sm:$0xff]
    %v697 = vld [vmem:[%s1 + $0x1448] sm:$0xff]
    %v698 = vld [vmem:[%s1 + $0x1450] sm:$0xff]
    %v699 = vld [vmem:[%s1 + $0x1458] sm:$0xff]
    %v700 = vld [vmem:[%s1 + $0x1460] sm:$0xff]
    %v701 = vld [vmem:[%s1 + $0x1468] sm:$0xff]
    %v702 = vld [vmem:[%s1 + $0x1470] sm:$0xff]
    %v703 = vld [vmem:[%s1 + $0x1478] sm:$0xff]
    %v704 = vld [vmem:[%s1 + $0x1480] sm:$0xff]
    %v705 = vld [vmem:[%s1 + $0x1488] sm:$0xff]
    %v706 = vld [vmem:[%s1 + $0x1490] sm:$0xff]
    %v707 = vld [vmem:[%s1 + $0x1498] sm:$0xff]
    %v708 = vld [vmem:[%s1 + $0x14a0] sm:$0xff]
    %v709 = vld [vmem:[%s1 + $0x14a8] sm:$0xff]
    %v710 = vld [vmem:[%s1 + $0x14b0] sm:$0xff]
    %v711 = vld [vmem:[%s1 + $0x14b8] sm:$0xff]
    %v712 = vld [vmem:[%s1 + $0x14c0] sm:$0xff]
    %v713 = vld [vmem:[%s1 + $0x14c8] sm:$0xff]
    %v714 = vld [vmem:[%s1 + $0x14d0] sm:$0xff]
    %v715 = vld [vmem:[%s1 + $0x14d8] sm:$0xff]
    %v716 = vld [vmem:[%s1 + $0x14e0] sm:$0xff]
    %v717 = vld [vmem:[%s1 + $0x14e8] sm:$0xff]
    %v718 = vld [vmem:[%s1 + $0x14f0] sm:$0xff]
    %v719 = vld [vmem:[%s1 + $0x14f8] sm:$0xff]
    %v720 = vld [vmem:[%s1 + $0x1500] sm:$0xff]
    %v721 = vld [vmem:[%s1 + $0x1508] sm:$0xff]
    %v722 = vld [vmem:[%s1 + $0x1510] sm:$0xff]
    %v723 = vld [vmem:[%s1 + $0x1518] sm:$0xff]
    %v724 = vld [vmem:[%s1 + $0x1520] sm:$0xff]
    %v725 = vld [vmem:[%s1 + $0x1528] sm:$0xff]
    %v726 = vld [vmem:[%s1 + $0x1530] sm:$0xff]
    %v727 = vld [vmem:[%s1 + $0x1538] sm:$0xff]
    %v728 = vld [vmem:[%s1 + $0x1540] sm:$0xff]
    %v729 = vld [vmem:[%s1 + $0x1548] sm:$0xff]
    %v730 = vld [vmem:[%s1 + $0x1550] sm:$0xff]
    %v731 = vld [vmem:[%s1 + $0x1558] sm:$0xff]
    %v732 = vld [vmem:[%s1 + $0x1560] sm:$0xff]
    %v733 = vld [vmem:[%s1 + $0x1568] sm:$0xff]
    %v734 = vld [vmem:[%s1 + $0x1570] sm:$0xff]
    %v735 = vld [vmem:[%s1 + $0x1578] sm:$0xff]
    %v736 = vld [vmem:[%s1 + $0x1580] sm:$0xff]
    %v737 = vld [vmem:[%s1 + $0x1588] sm:$0xff]
    %v738 = vld [vmem:[%s1 + $0x1590] sm:$0xff]
    %v739 = vld [vmem:[%s1 + $0x1598] sm:$0xff]
    %v740 = vld [vmem:[%s1 + $0x15a0] sm:$0xff]
    %v741 = vld [vmem:[%s1 + $0x15a8] sm:$0xff]
    %v742 = vld [vmem:[%s1 + $0x15b0] sm:$0xff]
    %v743 = vld [vmem:[%s1 + $0x15b8] sm:$0xff]
    %v744 = vld [vmem:[%s1 + $0x15c0] sm:$0xff]
    %v745 = vld [vmem:[%s1 + $0x15c8] sm:$0xff]
    %v746 = vld [vmem:[%s1 + $0x15d0] sm:$0xff]
    %v747 = vld [vmem:[%s1 + $0x15d8] sm:$0xff]
    %v748 = vld [vmem:[%s1 + $0x15e0] sm:$0xff]
    %v749 = vld [vmem:[%s1 + $0x15e8] sm:$0xff]
    %v750 = vld [vmem:[%s1 + $0x15f0] sm:$0xff]
    %v751 = vld [vmem:[%s1 + $0x15f8] sm:$0xff]
    %v752 = vld [vmem:[%s1 + $0x1600] sm:$0xff]
    %v753 = vld [vmem:[%s1 + $0x1608] sm:$0xff]
    %v754 = vld [vmem:[%s1 + $0x1610] sm:$0xff]
    %v755 = vld [vmem:[%s1 + $0x1618] sm:$0xff]
    %v756 = vld [vmem:[%s1 + $0x1620] sm:$0xff]
    %v757 = vld [vmem:[%s1 + $0x1628] sm:$0xff]
    %v758 = vld [vmem:[%s1 + $0x1630] sm:$0xff]
    %v759 = vld [vmem:[%s1 + $0x1638] sm:$0xff]
    %v760 = vld [vmem:[%s1 + $0x1640] sm:$0xff]
    %v761 = vld [vmem:[%s1 + $0x1648] sm:$0xff]
    %v762 = vld [vmem:[%s1 + $0x1650] sm:$0xff]
    %v763 = vld [vmem:[%s1 + $0x1658] sm:$0xff]
    %v764 = vld [vmem:[%s1 + $0x1660] sm:$0xff]
    %v765 = vld [vmem:[%s1 + $0x1668] sm:$0xff]
    %v766 = vld [vmem:[%s1 + $0x1670] sm:$0xff]
    %v767 = vld [vmem:[%s1 + $0x1678] sm:$0xff]
    %v768 = vld [vmem:[%s1 + $0x1680] sm:$0xff]
    %v769 = vld [vmem:[%s1 + $0x1688] sm:$0xff]
    %v770 = vld [vmem:[%s1 + $0x1690] sm:$0xff]
    %v771 = vld [vmem:[%s1 + $0x1698] sm:$0xff]
    %v772 = vld [vmem:[%s1 + $0x16a0] sm:$0xff]
    %v773 = vld [vmem:[%s1 + $0x16a8] sm:$0xff]
    %v774 = vld [vmem:[%s1 + $0x16b0] sm:$0xff]
    %v775 = vld [vmem:[%s1 + $0x16b8] sm:$0xff]
    %v776 = vld [vmem:[%s1 + $0x16c0] sm:$0xff]
    %v777 = vld [vmem:[%s1 + $0x16c8] sm:$0xff]
    %v778 = vld [vmem:[%s1 + $0x16d0] sm:$0xff]
    %v779 = vld [vmem:[%s1 + $0x16d8] sm:$0xff]
    %v780 = vld [vmem:[%s1 + $0x16e0] sm:$0xff]
    %v781 = vld [vmem:[%s1 + $0x16e8] sm:$0xff]
    %v782 = vld [vmem:[%s1 + $0x16f0] sm:$0xff]
    %v783 = vld [vmem:[%s1 + $0x16f8] sm:$0xff]
    %v784 = vld [vmem:[%s1 + $0x1700] sm:$0xff]
    %v785 = vld [vmem:[%s1 + $0x1708] sm:$0xff]
    %v786 = vld [vmem:[%s1 + $0x1710] sm:$0xff]
    %v787 = vld [vmem:[%s1 + $0x1718] sm:$0xff]
    %v788 = vld [vmem:[%s1 + $0x1720] sm:$0xff]
    %v789 = vld [vmem:[%s1 + $0x1728] sm:$0xff]
    %v790 = vld [vmem:[%s1 + $0x1730] sm:$0xff]
    %v791 = vld [vmem:[%s1 + $0x1738] sm:$0xff]
    %v792 = vld [vmem:[%s1 + $0x1740] sm:$0xff]
    %v793 = vld [vmem:[%s1 + $0x1748] sm:$0xff]
    %v794 = vld [vmem:[%s1 + $0x1750] sm:$0xff]
    %v795 = vld [vmem:[%s1 + $0x1758] sm:$0xff]
    %v796 = vld [vmem:[%s1 + $0x1760] sm:$0xff]
    %v797 = vld [vmem:[%s1 + $0x1768] sm:$0xff]
    %v798 = vld [vmem:[%s1 + $0x1770] sm:$0xff]
    %v799 = vld [vmem:[%s1 + $0x1778] sm:$0xff]
    %v800 = vld [vmem:[%s1 + $0x1780] sm:$0xff]
    %v801 = vld [vmem:[%s1 + $0x1788] sm:$0xff]
    %v802 = vld [vmem:[%s1 + $0x1790] sm:$0xff]
    %v803 = vld [vmem:[%s1 + $0x1798] sm:$0xff]
    %v804 = vld [vmem:[%s1 + $0x17a0] sm:$0xff]
    %v805 = vld [vmem:[%s1 + $0x17a8] sm:$0xff]
    %v806 = vld [vmem:[%s1 + $0x17b0] sm:$0xff]
    %v807 = vld [vmem:[%s1 + $0x17b8] sm:$0xff]
    %v808 = vld [vmem:[%s1 + $0x17c0] sm:$0xff]
    %v809 = vld [vmem:[%s1 + $0x17c8] sm:$0xff]
    %v810 = vld [vmem:[%s1 + $0x17d0] sm:$0xff]
    %v811 = vld [vmem:[%s1 + $0x17d8] sm:$0xff]
    %v812 = vld [vmem:[%s1 + $0x17e0] sm:$0xff]
    %v813 = vld [vmem:[%s1 + $0x17e8] sm:$0xff]
    %v814 = vld [vmem:[%s1 + $0x17f0] sm:$0xff]
    %v815 = vld [vmem:[%s1 + $0x17f8] sm:$0xff]
    %v816 = vld [vmem:[%s1 + $0x1800] sm:$0xff]
    %v817 = vld [vmem:[%s1 + $0x1808] sm:$0xff]
    %v818 = vld [vmem:[%s1 + $0x1810] sm:$0xff]
    %v819 = vld [vmem:[%s1 + $0x1818] sm:$0xff]
    %v820 = vld [vmem:[%s1 + $0x1820] sm:$0xff]
    %v821 = vld [vmem:[%s1 + $0x1828] sm:$0xff]
    %v822 = vld [vmem:[%s1 + $0x1830] sm:$0xff]
    %v823 = vld [vmem:[%s1 + $0x1838] sm:$0xff]
    %v824 = vld [vmem:[%s1 + $0x1840] sm:$0xff]
    %v825 = vld [vmem:[%s1 + $0x1848] sm:$0xff]
    %v826 = vld [vmem:[%s1 + $0x1850] sm:$0xff]
    %v827 = vld [vmem:[%s1 + $0x1858] sm:$0xff]
    %v828 = vld [vmem:[%s1 + $0x1860] sm:$0xff]
    %v829 = vld [vmem:[%s1 + $0x1868] sm:$0xff]
    %v830 = vld [vmem:[%s1 + $0x1870] sm:$0xff]
    %v831 = vld [vmem:[%s1 + $0x1878] sm:$0xff]
    %v832 = vld [vmem:[%s2] sm:$0xf]
    %v834 = vlaneseq
    %v835 = vshrl.u32 %v834, 7
    %v836 = vsub.s32 0, %v835
    %v837 = vrot.slane %v832, %v836
    %v838 = vlaneseq
    %v839 = vshrl.u32 %v838, 7
    %v840 = vsub.s32 1, %v839
    %v841 = vrot.slane %v832, %v840
    %v842 = vlaneseq
    %v843 = vshrl.u32 %v842, 7
    %v844 = vsub.s32 2, %v843
    %v845 = vrot.slane %v832, %v844
    %v846 = vlaneseq
    %v847 = vshrl.u32 %v846, 7
    %v848 = vsub.s32 3, %v847
    %v849 = vrot.slane %v832, %v848
    %v886 = vcombine.low %v16, %v20
    %v887 = vcombine.high %v16, %v20
    %v888 = vcombine.low %v24, %v28
    %v889 = vcombine.high %v24, %v28
    %v890 = vcombine.low %v32, %v36
    %v891 = vcombine.high %v32, %v36
    %v892 = vcombine.low %v40, %v44
    %v893 = vcombine.high %v40, %v44
    %v895 = vunpack.c.l.s4 1966171168
    %v896 = vunpack.c.0.s8 %v895
    %v897 = vlaneseq
    %v898 = vshrl.u32 %v897, 7
    %v899 = vsub.s32 %v896, %v898
    %v900 = vrot.slane %v886, %v899
    %v902 = vunpack.c.l.s4 1966171168
    %v903 = vunpack.c.0.s8 %v902
    %v904 = vlaneseq
    %v905 = vshrl.u32 %v904, 7
    %v906 = vsub.s32 %v903, %v905
    %v907 = vrot.slane %v887, %v906
    %v909 = vunpack.c.l.s4 1966171168
    %v910 = vunpack.c.0.s8 %v909
    %v911 = vlaneseq
    %v912 = vshrl.u32 %v911, 7
    %v913 = vsub.s32 %v910, %v912
    %v914 = vrot.slane %v888, %v913
    %v916 = vunpack.c.l.s4 1966171168
    %v917 = vunpack.c.0.s8 %v916
    %v918 = vlaneseq
    %v919 = vshrl.u32 %v918, 7
    %v920 = vsub.s32 %v917, %v919
    %v921 = vrot.slane %v889, %v920
    %v923 = vunpack.c.l.s4 1966171168
    %v924 = vunpack.c.0.s8 %v923
    %v925 = vlaneseq
    %v926 = vshrl.u32 %v925, 7
    %v927 = vsub.s32 %v924, %v926
    %v928 = vrot.slane %v890, %v927
    %v930 = vunpack.c.l.s4 1966171168
    %v931 = vunpack.c.0.s8 %v930
    %v932 = vlaneseq
    %v933 = vshrl.u32 %v932, 7
    %v934 = vsub.s32 %v931, %v933
    %v935 = vrot.slane %v891, %v934
    %v937 = vunpack.c.l.s4 1966171168
    %v938 = vunpack.c.0.s8 %v937
    %v939 = vlaneseq
    %v940 = vshrl.u32 %v939, 7
    %v941 = vsub.s32 %v938, %v940
    %v942 = vrot.slane %v892, %v941
    %v944 = vunpack.c.l.s4 1966171168
    %v945 = vunpack.c.0.s8 %v944
    %v946 = vlaneseq
    %v947 = vshrl.u32 %v946, 7
    %v948 = vsub.s32 %v945, %v947
    %v949 = vrot.slane %v893, %v948
    %v950 = vcombine.low %v900, %v914
    %v951 = vcombine.high %v900, %v914
    %v952 = vcombine.low %v907, %v921
    %v953 = vcombine.high %v907, %v921
    %v954 = vcombine.low %v928, %v942
    %v955 = vcombine.high %v928, %v942
    %v956 = vcombine.low %v935, %v949
    %v957 = vcombine.high %v935, %v949
    %v959 = vunpack.c.l.s4 1966171168
    %v960 = vunpack.c.0.s8 %v959
    %v961 = vlaneseq
    %v962 = vshrl.u32 %v961, 7
    %v963 = vsub.s32 %v960, %v962
    %v964 = vrot.slane %v950, %v963
    %v966 = vunpack.c.l.s4 1966171168
    %v967 = vunpack.c.0.s8 %v966
    %v968 = vlaneseq
    %v969 = vshrl.u32 %v968, 7
    %v970 = vsub.s32 %v967, %v969
    %v971 = vrot.slane %v952, %v970
    %v973 = vunpack.c.l.s4 1966171168
    %v974 = vunpack.c.0.s8 %v973
    %v975 = vlaneseq
    %v976 = vshrl.u32 %v975, 7
    %v977 = vsub.s32 %v974, %v976
    %v978 = vrot.slane %v951, %v977
    %v980 = vunpack.c.l.s4 1966171168
    %v981 = vunpack.c.0.s8 %v980
    %v982 = vlaneseq
    %v983 = vshrl.u32 %v982, 7
    %v984 = vsub.s32 %v981, %v983
    %v985 = vrot.slane %v953, %v984
    %v987 = vunpack.c.l.s4 1966171168
    %v988 = vunpack.c.0.s8 %v987
    %v989 = vlaneseq
    %v990 = vshrl.u32 %v989, 7
    %v991 = vsub.s32 %v988, %v990
    %v992 = vrot.slane %v954, %v991
    %v994 = vunpack.c.l.s4 1966171168
    %v995 = vunpack.c.0.s8 %v994
    %v996 = vlaneseq
    %v997 = vshrl.u32 %v996, 7
    %v998 = vsub.s32 %v995, %v997
    %v999 = vrot.slane %v956, %v998
    %v1001 = vunpack.c.l.s4 1966171168
    %v1002 = vunpack.c.0.s8 %v1001
    %v1003 = vlaneseq
    %v1004 = vshrl.u32 %v1003, 7
    %v1005 = vsub.s32 %v1002, %v1004
    %v1006 = vrot.slane %v955, %v1005
    %v1008 = vunpack.c.l.s4 1966171168
    %v1009 = vunpack.c.0.s8 %v1008
    %v1010 = vlaneseq
    %v1011 = vshrl.u32 %v1010, 7
    %v1012 = vsub.s32 %v1009, %v1011
    %v1013 = vrot.slane %v957, %v1012
    %v1014 = vcombine.low %v964, %v992
    %v1015 = vcombine.high %v964, %v992
    %v1016 = vcombine.low %v971, %v999
    %v1017 = vcombine.high %v971, %v999
    %v1018 = vcombine.low %v978, %v1006
    %v1019 = vcombine.high %v978, %v1006
    %v1020 = vcombine.low %v985, %v1013
    %v1021 = vcombine.high %v985, %v1013
    %v1022 = vcombine.low %v17, %v21
    %v1023 = vcombine.high %v17, %v21
    %v1024 = vcombine.low %v25, %v29
    %v1025 = vcombine.high %v25, %v29
    %v1026 = vcombine.low %v33, %v37
    %v1027 = vcombine.high %v33, %v37
    %v1028 = vcombine.low %v41, %v45
    %v1029 = vcombine.high %v41, %v45
    %v1031 = vunpack.c.l.s4 1966171168
    %v1032 = vunpack.c.0.s8 %v1031
    %v1033 = vlaneseq
    %v1034 = vshrl.u32 %v1033, 7
    %v1035 = vsub.s32 %v1032, %v1034
    %v1036 = vrot.slane %v1022, %v1035
    %v1038 = vunpack.c.l.s4 1966171168
    %v1039 = vunpack.c.0.s8 %v1038
    %v1040 = vlaneseq
    %v1041 = vshrl.u32 %v1040, 7
    %v1042 = vsub.s32 %v1039, %v1041
    %v1043 = vrot.slane %v1023, %v1042
    %v1045 = vunpack.c.l.s4 1966171168
    %v1046 = vunpack.c.0.s8 %v1045
    %v1047 = vlaneseq
    %v1048 = vshrl.u32 %v1047, 7
    %v1049 = vsub.s32 %v1046, %v1048
    %v1050 = vrot.slane %v1024, %v1049
    %v1052 = vunpack.c.l.s4 1966171168
    %v1053 = vunpack.c.0.s8 %v1052
    %v1054 = vlaneseq
    %v1055 = vshrl.u32 %v1054, 7
    %v1056 = vsub.s32 %v1053, %v1055
    %v1057 = vrot.slane %v1025, %v1056
    %v1059 = vunpack.c.l.s4 1966171168
    %v1060 = vunpack.c.0.s8 %v1059
    %v1061 = vlaneseq
    %v1062 = vshrl.u32 %v1061, 7
    %v1063 = vsub.s32 %v1060, %v1062
    %v1064 = vrot.slane %v1026, %v1063
    %v1066 = vunpack.c.l.s4 1966171168
    %v1067 = vunpack.c.0.s8 %v1066
    %v1068 = vlaneseq
    %v1069 = vshrl.u32 %v1068, 7
    %v1070 = vsub.s32 %v1067, %v1069
    %v1071 = vrot.slane %v1027, %v1070
    %v1073 = vunpack.c.l.s4 1966171168
    %v1074 = vunpack.c.0.s8 %v1073
    %v1075 = vlaneseq
    %v1076 = vshrl.u32 %v1075, 7
    %v1077 = vsub.s32 %v1074, %v1076
    %v1078 = vrot.slane %v1028, %v1077
    %v1080 = vunpack.c.l.s4 1966171168
    %v1081 = vunpack.c.0.s8 %v1080
    %v1082 = vlaneseq
    %v1083 = vshrl.u32 %v1082, 7
    %v1084 = vsub.s32 %v1081, %v1083
    %v1085 = vrot.slane %v1029, %v1084
    %v1086 = vcombine.low %v1036, %v1050
    %v1087 = vcombine.high %v1036, %v1050
    %v1088 = vcombine.low %v1043, %v1057
    %v1089 = vcombine.high %v1043, %v1057
    %v1090 = vcombine.low %v1064, %v1078
    %v1091 = vcombine.high %v1064, %v1078
    %v1092 = vcombine.low %v1071, %v1085
    %v1093 = vcombine.high %v1071, %v1085
    %v1095 = vunpack.c.l.s4 1966171168
    %v1096 = vunpack.c.0.s8 %v1095
    %v1097 = vlaneseq
    %v1098 = vshrl.u32 %v1097, 7
    %v1099 = vsub.s32 %v1096, %v1098
    %v1100 = vrot.slane %v1086, %v1099
    %v1102 = vunpack.c.l.s4 1966171168
    %v1103 = vunpack.c.0.s8 %v1102
    %v1104 = vlaneseq
    %v1105 = vshrl.u32 %v1104, 7
    %v1106 = vsub.s32 %v1103, %v1105
    %v1107 = vrot.slane %v1088, %v1106
    %v1109 = vunpack.c.l.s4 1966171168
    %v1110 = vunpack.c.0.s8 %v1109
    %v1111 = vlaneseq
    %v1112 = vshrl.u32 %v1111, 7
    %v1113 = vsub.s32 %v1110, %v1112
    %v1114 = vrot.slane %v1087, %v1113
    %v1116 = vunpack.c.l.s4 1966171168
    %v1117 = vunpack.c.0.s8 %v1116
    %v1118 = vlaneseq
    %v1119 = vshrl.u32 %v1118, 7
    %v1120 = vsub.s32 %v1117, %v1119
    %v1121 = vrot.slane %v1089, %v1120
    %v1123 = vunpack.c.l.s4 1966171168
    %v1124 = vunpack.c.0.s8 %v1123
    %v1125 = vlaneseq
    %v1126 = vshrl.u32 %v1125, 7
    %v1127 = vsub.s32 %v1124, %v1126
    %v1128 = vrot.slane %v1090, %v1127
    %v1130 = vunpack.c.l.s4 1966171168
    %v1131 = vunpack.c.0.s8 %v1130
    %v1132 = vlaneseq
    %v1133 = vshrl.u32 %v1132, 7
    %v1134 = vsub.s32 %v1131, %v1133
    %v1135 = vrot.slane %v1092, %v1134
    %v1137 = vunpack.c.l.s4 1966171168
    %v1138 = vunpack.c.0.s8 %v1137
    %v1139 = vlaneseq
    %v1140 = vshrl.u32 %v1139, 7
    %v1141 = vsub.s32 %v1138, %v1140
    %v1142 = vrot.slane %v1091, %v1141
    %v1144 = vunpack.c.l.s4 1966171168
    %v1145 = vunpack.c.0.s8 %v1144
    %v1146 = vlaneseq
    %v1147 = vshrl.u32 %v1146, 7
    %v1148 = vsub.s32 %v1145, %v1147
    %v1149 = vrot.slane %v1093, %v1148
    %v1150 = vcombine.low %v1100, %v1128
    %v1151 = vcombine.high %v1100, %v1128
    %v1152 = vcombine.low %v1107, %v1135
    %v1153 = vcombine.high %v1107, %v1135
    %v1154 = vcombine.low %v1114, %v1142
    %v1155 = vcombine.high %v1114, %v1142
    %v1156 = vcombine.low %v1121, %v1149
    %v1157 = vcombine.high %v1121, %v1149
    %v1158 = vcombine.low %v18, %v22
    %v1159 = vcombine.high %v18, %v22
    %v1160 = vcombine.low %v26, %v30
    %v1161 = vcombine.high %v26, %v30
    %v1162 = vcombine.low %v34, %v38
    %v1163 = vcombine.high %v34, %v38
    %v1164 = vcombine.low %v42, %v46
    %v1165 = vcombine.high %v42, %v46
    %v1167 = vunpack.c.l.s4 1966171168
    %v1168 = vunpack.c.0.s8 %v1167
    %v1169 = vlaneseq
    %v1170 = vshrl.u32 %v1169, 7
    %v1171 = vsub.s32 %v1168, %v1170
    %v1172 = vrot.slane %v1158, %v1171
    %v1174 = vunpack.c.l.s4 1966171168
    %v1175 = vunpack.c.0.s8 %v1174
    %v1176 = vlaneseq
    %v1177 = vshrl.u32 %v1176, 7
    %v1178 = vsub.s32 %v1175, %v1177
    %v1179 = vrot.slane %v1159, %v1178
    %v1181 = vunpack.c.l.s4 1966171168
    %v1182 = vunpack.c.0.s8 %v1181
    %v1183 = vlaneseq
    %v1184 = vshrl.u32 %v1183, 7
    %v1185 = vsub.s32 %v1182, %v1184
    %v1186 = vrot.slane %v1160, %v1185
    %v1188 = vunpack.c.l.s4 1966171168
    %v1189 = vunpack.c.0.s8 %v1188
    %v1190 = vlaneseq
    %v1191 = vshrl.u32 %v1190, 7
    %v1192 = vsub.s32 %v1189, %v1191
    %v1193 = vrot.slane %v1161, %v1192
    %v1195 = vunpack.c.l.s4 1966171168
    %v1196 = vunpack.c.0.s8 %v1195
    %v1197 = vlaneseq
    %v1198 = vshrl.u32 %v1197, 7
    %v1199 = vsub.s32 %v1196, %v1198
    %v1200 = vrot.slane %v1162, %v1199
    %v1202 = vunpack.c.l.s4 1966171168
    %v1203 = vunpack.c.0.s8 %v1202
    %v1204 = vlaneseq
    %v1205 = vshrl.u32 %v1204, 7
    %v1206 = vsub.s32 %v1203, %v1205
    %v1207 = vrot.slane %v1163, %v1206
    %v1209 = vunpack.c.l.s4 1966171168
    %v1210 = vunpack.c.0.s8 %v1209
    %v1211 = vlaneseq
    %v1212 = vshrl.u32 %v1211, 7
    %v1213 = vsub.s32 %v1210, %v1212
    %v1214 = vrot.slane %v1164, %v1213
    %v1216 = vunpack.c.l.s4 1966171168
    %v1217 = vunpack.c.0.s8 %v1216
    %v1218 = vlaneseq
    %v1219 = vshrl.u32 %v1218, 7
    %v1220 = vsub.s32 %v1217, %v1219
    %v1221 = vrot.slane %v1165, %v1220
    %v1222 = vcombine.low %v1172, %v1186
    %v1223 = vcombine.high %v1172, %v1186
    %v1224 = vcombine.low %v1179, %v1193
    %v1225 = vcombine.high %v1179, %v1193
    %v1226 = vcombine.low %v1200, %v1214
    %v1227 = vcombine.high %v1200, %v1214
    %v1228 = vcombine.low %v1207, %v1221
    %v1229 = vcombine.high %v1207, %v1221
    %v1231 = vunpack.c.l.s4 1966171168
    %v1232 = vunpack.c.0.s8 %v1231
    %v1233 = vlaneseq
    %v1234 = vshrl.u32 %v1233, 7
    %v1235 = vsub.s32 %v1232, %v1234
    %v1236 = vrot.slane %v1222, %v1235
    %v1238 = vunpack.c.l.s4 1966171168
    %v1239 = vunpack.c.0.s8 %v1238
    %v1240 = vlaneseq
    %v1241 = vshrl.u32 %v1240, 7
    %v1242 = vsub.s32 %v1239, %v1241
    %v1243 = vrot.slane %v1224, %v1242
    %v1245 = vunpack.c.l.s4 1966171168
    %v1246 = vunpack.c.0.s8 %v1245
    %v1247 = vlaneseq
    %v1248 = vshrl.u32 %v1247, 7
    %v1249 = vsub.s32 %v1246, %v1248
    %v1250 = vrot.slane %v1223, %v1249
    %v1252 = vunpack.c.l.s4 1966171168
    %v1253 = vunpack.c.0.s8 %v1252
    %v1254 = vlaneseq
    %v1255 = vshrl.u32 %v1254, 7
    %v1256 = vsub.s32 %v1253, %v1255
    %v1257 = vrot.slane %v1225, %v1256
    %v1259 = vunpack.c.l.s4 1966171168
    %v1260 = vunpack.c.0.s8 %v1259
    %v1261 = vlaneseq
    %v1262 = vshrl.u32 %v1261, 7
    %v1263 = vsub.s32 %v1260, %v1262
    %v1264 = vrot.slane %v1226, %v1263
    %v1266 = vunpack.c.l.s4 1966171168
    %v1267 = vunpack.c.0.s8 %v1266
    %v1268 = vlaneseq
    %v1269 = vshrl.u32 %v1268, 7
    %v1270 = vsub.s32 %v1267, %v1269
    %v1271 = vrot.slane %v1228, %v1270
    %v1273 = vunpack.c.l.s4 1966171168
    %v1274 = vunpack.c.0.s8 %v1273
    %v1275 = vlaneseq
    %v1276 = vshrl.u32 %v1275, 7
    %v1277 = vsub.s32 %v1274, %v1276
    %v1278 = vrot.slane %v1227, %v1277
    %v1280 = vunpack.c.l.s4 1966171168
    %v1281 = vunpack.c.0.s8 %v1280
    %v1282 = vlaneseq
    %v1283 = vshrl.u32 %v1282, 7
    %v1284 = vsub.s32 %v1281, %v1283
    %v1285 = vrot.slane %v1229, %v1284
    %v1286 = vcombine.low %v1236, %v1264
    %v1287 = vcombine.high %v1236, %v1264
    %v1288 = vcombine.low %v1243, %v1271
    %v1289 = vcombine.high %v1243, %v1271
    %v1290 = vcombine.low %v1250, %v1278
    %v1291 = vcombine.high %v1250, %v1278
    %v1292 = vcombine.low %v1257, %v1285
    %v1293 = vcombine.high %v1257, %v1285
    %v1294 = vcombine.low %v19, %v23
    %v1295 = vcombine.low %v27, %v31
    %v1296 = vcombine.low %v35, %v39
    %v1297 = vcombine.low %v43, %v47
    %v1299 = vunpack.c.l.s4 1966171168
    %v1300 = vunpack.c.0.s8 %v1299
    %v1301 = vlaneseq
    %v1302 = vshrl.u32 %v1301, 7
    %v1303 = vsub.s32 %v1300, %v1302
    %v1304 = vrot.slane %v1294, %v1303
    %v1306 = vunpack.c.l.s4 1966171168
    %v1307 = vunpack.c.0.s8 %v1306
    %v1308 = vlaneseq
    %v1309 = vshrl.u32 %v1308, 7
    %v1310 = vsub.s32 %v1307, %v1309
    %v1311 = vrot.slane %v1295, %v1310
    %v1313 = vunpack.c.l.s4 1966171168
    %v1314 = vunpack.c.0.s8 %v1313
    %v1315 = vlaneseq
    %v1316 = vshrl.u32 %v1315, 7
    %v1317 = vsub.s32 %v1314, %v1316
    %v1318 = vrot.slane %v1296, %v1317
    %v1320 = vunpack.c.l.s4 1966171168
    %v1321 = vunpack.c.0.s8 %v1320
    %v1322 = vlaneseq
    %v1323 = vshrl.u32 %v1322, 7
    %v1324 = vsub.s32 %v1321, %v1323
    %v1325 = vrot.slane %v1297, %v1324
    %v1326 = vcombine.low %v1304, %v1311
    %v1327 = vcombine.low %v1318, %v1325
    %v1329 = vunpack.c.l.s4 1966171168
    %v1330 = vunpack.c.0.s8 %v1329
    %v1331 = vlaneseq
    %v1332 = vshrl.u32 %v1331, 7
    %v1333 = vsub.s32 %v1330, %v1332
    %v1334 = vrot.slane %v1326, %v1333
    %v1336 = vunpack.c.l.s4 1966171168
    %v1337 = vunpack.c.0.s8 %v1336
    %v1338 = vlaneseq
    %v1339 = vshrl.u32 %v1338, 7
    %v1340 = vsub.s32 %v1337, %v1339
    %v1341 = vrot.slane %v1327, %v1340
    %v1342 = vcombine.low %v1334, %v1341
    %v2151 = vunpack.c.l.b16 %v48
    %v2152 = vunpack.c.h.b16 %v48
    %v2153 = vunpack.c.l.b16 %v49
    %v2154 = vunpack.c.h.b16 %v49
    %v2155 = vunpack.c.l.b16 %v50
    %v2156 = vunpack.c.h.b16 %v50
    %v2157 = vunpack.c.l.b16 %v51
    %v2158 = vunpack.c.h.b16 %v51
    %v2159 = vunpack.c.l.b16 %v52
    %v2160 = vunpack.c.h.b16 %v52
    %v2161 = vunpack.c.l.b16 %v53
    %v2162 = vunpack.c.h.b16 %v53
    %v2163 = vunpack.c.l.b16 %v54
    %v2164 = vunpack.c.h.b16 %v54
    %v2165 = vunpack.c.l.b16 %v55
    %v2166 = vunpack.c.h.b16 %v55
    %v2167 = vunpack.c.l.b16 %v56
    %v2168 = vunpack.c.h.b16 %v56
    %v2169 = vunpack.c.l.b16 %v57
    %v2170 = vunpack.c.h.b16 %v57
    %v2171 = vunpack.c.l.b16 %v58
    %v2172 = vunpack.c.h.b16 %v58
    %v2173 = vunpack.c.l.b16 %v59
    %v2174 = vunpack.c.h.b16 %v59
    %v2175 = vunpack.c.l.b16 %v60
    %v2176 = vunpack.c.h.b16 %v60
    %v2177 = vunpack.c.l.b16 %v61
    %v2178 = vunpack.c.h.b16 %v61
    %v2179 = vunpack.c.l.b16 %v62
    %v2180 = vunpack.c.h.b16 %v62
    %v2181 = vunpack.c.l.b16 %v63
    %v2182 = vunpack.c.h.b16 %v63
    %v2183 = vunpack.c.l.b16 %v64
    %v2184 = vunpack.c.h.b16 %v64
    %v2185 = vunpack.c.l.b16 %v65
    %v2186 = vunpack.c.h.b16 %v65
    %v2187 = vunpack.c.l.b16 %v66
    %v2188 = vunpack.c.h.b16 %v66
    %v2189 = vunpack.c.l.b16 %v67
    %v2190 = vunpack.c.h.b16 %v67
    %v2191 = vunpack.c.l.b16 %v68
    %v2192 = vunpack.c.h.b16 %v68
    %v2193 = vunpack.c.l.b16 %v69
    %v2194 = vunpack.c.h.b16 %v69
    %v2195 = vunpack.c.l.b16 %v70
    %v2196 = vunpack.c.h.b16 %v70
    %v2197 = vunpack.c.l.b16 %v71
    %v2198 = vunpack.c.h.b16 %v71
    %v2199 = vunpack.c.l.b16 %v72
    %v2200 = vunpack.c.h.b16 %v72
    %v2201 = vunpack.c.l.b16 %v73
    %v2202 = vunpack.c.h.b16 %v73
    %v2203 = vunpack.c.l.b16 %v74
    %v2204 = vunpack.c.h.b16 %v74
    %v2205 = vunpack.c.l.b16 %v75
    %v2206 = vunpack.c.h.b16 %v75
    %v2207 = vunpack.c.l.b16 %v76
    %v2208 = vunpack.c.h.b16 %v76
    %v2209 = vunpack.c.l.b16 %v77
    %v2210 = vunpack.c.h.b16 %v77
    %v2211 = vunpack.c.l.b16 %v78
    %v2212 = vunpack.c.h.b16 %v78
    %v2213 = vunpack.c.l.b16 %v79
    %v2214 = vunpack.c.h.b16 %v79
    %v2215 = vunpack.c.l.b16 %v80
    %v2216 = vunpack.c.h.b16 %v80
    %v2217 = vunpack.c.l.b16 %v81
    %v2218 = vunpack.c.h.b16 %v81
    %v2219 = vunpack.c.l.b16 %v82
    %v2220 = vunpack.c.h.b16 %v82
    %v2221 = vunpack.c.l.b16 %v83
    %v2222 = vunpack.c.h.b16 %v83
    %v2223 = vunpack.c.l.b16 %v84
    %v2224 = vunpack.c.h.b16 %v84
    %v2225 = vunpack.c.l.b16 %v85
    %v2226 = vunpack.c.h.b16 %v85
    %v2227 = vunpack.c.l.b16 %v86
    %v2228 = vunpack.c.h.b16 %v86
    %v2229 = vunpack.c.l.b16 %v87
    %v2230 = vunpack.c.h.b16 %v87
    %v2231 = vunpack.c.l.b16 %v88
    %v2232 = vunpack.c.h.b16 %v88
    %v2233 = vunpack.c.l.b16 %v89
    %v2234 = vunpack.c.h.b16 %v89
    %v2235 = vunpack.c.l.b16 %v90
    %v2236 = vunpack.c.h.b16 %v90
    %v2237 = vunpack.c.l.b16 %v91
    %v2238 = vunpack.c.h.b16 %v91
    %v2239 = vunpack.c.l.b16 %v92
    %v2240 = vunpack.c.h.b16 %v92
    %v2241 = vunpack.c.l.b16 %v93
    %v2242 = vunpack.c.h.b16 %v93
    %v2243 = vunpack.c.l.b16 %v94
    %v2244 = vunpack.c.h.b16 %v94
    %v2245 = vunpack.c.l.b16 %v95
    %v2246 = vunpack.c.h.b16 %v95
    %v2247 = vunpack.c.l.b16 %v96
    %v2248 = vunpack.c.h.b16 %v96
    %v2249 = vunpack.c.l.b16 %v97
    %v2250 = vunpack.c.h.b16 %v97
    %v2251 = vunpack.c.l.b16 %v98
    %v2252 = vunpack.c.h.b16 %v98
    %v2253 = vunpack.c.l.b16 %v99
    %v2254 = vunpack.c.h.b16 %v99
    %v2255 = vunpack.c.l.b16 %v100
    %v2256 = vunpack.c.h.b16 %v100
    %v2257 = vunpack.c.l.b16 %v101
    %v2258 = vunpack.c.h.b16 %v101
    %v2259 = vunpack.c.l.b16 %v102
    %v2260 = vunpack.c.h.b16 %v102
    %v2261 = vunpack.c.l.b16 %v103
    %v2262 = vunpack.c.h.b16 %v103
    %v2263 = vunpack.c.l.b16 %v104
    %v2264 = vunpack.c.h.b16 %v104
    %v2265 = vunpack.c.l.b16 %v105
    %v2266 = vunpack.c.h.b16 %v105
    %v2267 = vunpack.c.l.b16 %v106
    %v2268 = vunpack.c.h.b16 %v106
    %v2269 = vunpack.c.l.b16 %v107
    %v2270 = vunpack.c.h.b16 %v107
    %v2271 = vunpack.c.l.b16 %v108
    %v2272 = vunpack.c.h.b16 %v108
    %v2273 = vunpack.c.l.b16 %v109
    %v2274 = vunpack.c.h.b16 %v109
    %v2275 = vunpack.c.l.b16 %v110
    %v2276 = vunpack.c.h.b16 %v110
    %v2277 = vunpack.c.l.b16 %v111
    %v2278 = vunpack.c.h.b16 %v111
    %v2279 = vunpack.c.l.b16 %v112
    %v2280 = vunpack.c.h.b16 %v112
    %v2281 = vunpack.c.l.b16 %v113
    %v2282 = vunpack.c.h.b16 %v113
    %v2283 = vunpack.c.l.b16 %v114
    %v2284 = vunpack.c.h.b16 %v114
    %v2285 = vunpack.c.l.b16 %v115
    %v2286 = vunpack.c.h.b16 %v115
    %v2287 = vunpack.c.l.b16 %v116
    %v2288 = vunpack.c.h.b16 %v116
    %v2289 = vunpack.c.l.b16 %v117
    %v2290 = vunpack.c.h.b16 %v117
    %v2291 = vunpack.c.l.b16 %v118
    %v2292 = vunpack.c.h.b16 %v118
    %v2293 = vunpack.c.l.b16 %v119
    %v2294 = vunpack.c.h.b16 %v119
    %v2295 = vunpack.c.l.b16 %v120
    %v2296 = vunpack.c.h.b16 %v120
    %v2297 = vunpack.c.l.b16 %v121
    %v2298 = vunpack.c.h.b16 %v121
    %v2299 = vunpack.c.l.b16 %v122
    %v2300 = vunpack.c.h.b16 %v122
    %v2301 = vunpack.c.l.b16 %v123
    %v2302 = vunpack.c.h.b16 %v123
    %v2303 = vunpack.c.l.b16 %v124
    %v2304 = vunpack.c.h.b16 %v124
    %v2305 = vunpack.c.l.b16 %v125
    %v2306 = vunpack.c.h.b16 %v125
    %v2307 = vunpack.c.l.b16 %v126
    %v2308 = vunpack.c.h.b16 %v126
    %v2309 = vunpack.c.l.b16 %v127
    %v2310 = vunpack.c.h.b16 %v127
    %v2311 = vunpack.c.l.b16 %v128
    %v2312 = vunpack.c.h.b16 %v128
    %v2313 = vunpack.c.l.b16 %v129
    %v2314 = vunpack.c.h.b16 %v129
    %v2315 = vunpack.c.l.b16 %v130
    %v2316 = vunpack.c.h.b16 %v130
    %v2317 = vunpack.c.l.b16 %v131
    %v2318 = vunpack.c.h.b16 %v131
    %v2319 = vunpack.c.l.b16 %v132
    %v2320 = vunpack.c.h.b16 %v132
    %v2321 = vunpack.c.l.b16 %v133
    %v2322 = vunpack.c.h.b16 %v133
    %v2323 = vunpack.c.l.b16 %v134
    %v2324 = vunpack.c.h.b16 %v134
    %v2325 = vunpack.c.l.b16 %v135
    %v2326 = vunpack.c.h.b16 %v135
    %v2327 = vunpack.c.l.b16 %v136
    %v2328 = vunpack.c.h.b16 %v136
    %v2329 = vunpack.c.l.b16 %v137
    %v2330 = vunpack.c.h.b16 %v137
    %v2331 = vunpack.c.l.b16 %v138
    %v2332 = vunpack.c.h.b16 %v138
    %v2333 = vunpack.c.l.b16 %v139
    %v2334 = vunpack.c.h.b16 %v139
    %v2335 = vunpack.c.l.b16 %v140
    %v2336 = vunpack.c.h.b16 %v140
    %v2337 = vunpack.c.l.b16 %v141
    %v2338 = vunpack.c.h.b16 %v141
    %v2339 = vunpack.c.l.b16 %v142
    %v2340 = vunpack.c.h.b16 %v142
    %v2341 = vunpack.c.l.b16 %v143
    %v2342 = vunpack.c.h.b16 %v143
    %v2343 = vunpack.c.l.b16 %v144
    %v2344 = vunpack.c.h.b16 %v144
    %v2345 = vunpack.c.l.b16 %v145
    %v2346 = vunpack.c.h.b16 %v145
    %v2347 = vunpack.c.l.b16 %v146
    %v2348 = vunpack.c.h.b16 %v146
    %v2349 = vunpack.c.l.b16 %v147
    %v2350 = vunpack.c.h.b16 %v147
    %v2351 = vunpack.c.l.b16 %v148
    %v2352 = vunpack.c.h.b16 %v148
    %v2353 = vunpack.c.l.b16 %v149
    %v2354 = vunpack.c.h.b16 %v149
    %v2355 = vunpack.c.l.b16 %v150
    %v2356 = vunpack.c.h.b16 %v150
    %v2357 = vunpack.c.l.b16 %v151
    %v2358 = vunpack.c.h.b16 %v151
    %v2359 = vunpack.c.l.b16 %v152
    %v2360 = vunpack.c.h.b16 %v152
    %v2361 = vunpack.c.l.b16 %v153
    %v2362 = vunpack.c.h.b16 %v153
    %v2363 = vunpack.c.l.b16 %v154
    %v2364 = vunpack.c.h.b16 %v154
    %v2365 = vunpack.c.l.b16 %v155
    %v2366 = vunpack.c.h.b16 %v155
    %v2367 = vunpack.c.l.b16 %v156
    %v2368 = vunpack.c.h.b16 %v156
    %v2369 = vunpack.c.l.b16 %v157
    %v2370 = vunpack.c.h.b16 %v157
    %v2371 = vunpack.c.l.b16 %v158
    %v2372 = vunpack.c.h.b16 %v158
    %v2373 = vunpack.c.l.b16 %v159
    %v2374 = vunpack.c.h.b16 %v159
    %v2375 = vunpack.c.l.b16 %v160
    %v2376 = vunpack.c.h.b16 %v160
    %v2377 = vunpack.c.l.b16 %v161
    %v2378 = vunpack.c.h.b16 %v161
    %v2379 = vunpack.c.l.b16 %v162
    %v2380 = vunpack.c.h.b16 %v162
    %v2381 = vunpack.c.l.b16 %v163
    %v2382 = vunpack.c.h.b16 %v163
    %v2383 = vunpack.c.l.b16 %v164
    %v2384 = vunpack.c.h.b16 %v164
    %v2385 = vunpack.c.l.b16 %v165
    %v2386 = vunpack.c.h.b16 %v165
    %v2387 = vunpack.c.l.b16 %v166
    %v2388 = vunpack.c.h.b16 %v166
    %v2389 = vunpack.c.l.b16 %v167
    %v2390 = vunpack.c.h.b16 %v167
    %v2391 = vunpack.c.l.b16 %v168
    %v2392 = vunpack.c.h.b16 %v168
    %v2393 = vunpack.c.l.b16 %v169
    %v2394 = vunpack.c.h.b16 %v169
    %v2395 = vunpack.c.l.b16 %v170
    %v2396 = vunpack.c.h.b16 %v170
    %v2397 = vunpack.c.l.b16 %v171
    %v2398 = vunpack.c.h.b16 %v171
    %v2399 = vunpack.c.l.b16 %v172
    %v2400 = vunpack.c.h.b16 %v172
    %v2401 = vunpack.c.l.b16 %v173
    %v2402 = vunpack.c.h.b16 %v173
    %v2403 = vunpack.c.l.b16 %v174
    %v2404 = vunpack.c.h.b16 %v174
    %v2405 = vunpack.c.l.b16 %v175
    %v2406 = vunpack.c.h.b16 %v175
    %v2407 = vunpack.c.l.b16 %v176
    %v2408 = vunpack.c.h.b16 %v176
    %v2409 = vunpack.c.l.b16 %v177
    %v2410 = vunpack.c.h.b16 %v177
    %v2411 = vunpack.c.l.b16 %v178
    %v2412 = vunpack.c.h.b16 %v178
    %v2413 = vunpack.c.l.b16 %v179
    %v2414 = vunpack.c.h.b16 %v179
    %v2415 = vunpack.c.l.b16 %v180
    %v2416 = vunpack.c.h.b16 %v180
    %v2417 = vunpack.c.l.b16 %v181
    %v2418 = vunpack.c.h.b16 %v181
    %v2419 = vunpack.c.l.b16 %v182
    %v2420 = vunpack.c.h.b16 %v182
    %v2421 = vunpack.c.l.b16 %v183
    %v2422 = vunpack.c.h.b16 %v183
    %v2423 = vunpack.c.l.b16 %v184
    %v2424 = vunpack.c.h.b16 %v184
    %v2425 = vunpack.c.l.b16 %v185
    %v2426 = vunpack.c.h.b16 %v185
    %v2427 = vunpack.c.l.b16 %v186
    %v2428 = vunpack.c.h.b16 %v186
    %v2429 = vunpack.c.l.b16 %v187
    %v2430 = vunpack.c.h.b16 %v187
    %v2431 = vunpack.c.l.b16 %v188
    %v2432 = vunpack.c.h.b16 %v188
    %v2433 = vunpack.c.l.b16 %v189
    %v2434 = vunpack.c.h.b16 %v189
    %v2435 = vunpack.c.l.b16 %v190
    %v2436 = vunpack.c.h.b16 %v190
    %v2437 = vunpack.c.l.b16 %v191
    %v2438 = vunpack.c.h.b16 %v191
    %v2439 = vunpack.c.l.b16 %v192
    %v2440 = vunpack.c.h.b16 %v192
    %v2441 = vunpack.c.l.b16 %v193
    %v2442 = vunpack.c.h.b16 %v193
    %v2443 = vunpack.c.l.b16 %v194
    %v2444 = vunpack.c.h.b16 %v194
    %v2445 = vunpack.c.l.b16 %v195
    %v2446 = vunpack.c.h.b16 %v195
    %v2447 = vunpack.c.l.b16 %v196
    %v2448 = vunpack.c.h.b16 %v196
    %v2449 = vunpack.c.l.b16 %v197
    %v2450 = vunpack.c.h.b16 %v197
    %v2451 = vunpack.c.l.b16 %v198
    %v2452 = vunpack.c.h.b16 %v198
    %v2453 = vunpack.c.l.b16 %v199
    %v2454 = vunpack.c.h.b16 %v199
    %v2455 = vunpack.c.l.b16 %v200
    %v2456 = vunpack.c.h.b16 %v200
    %v2457 = vunpack.c.l.b16 %v201
    %v2458 = vunpack.c.h.b16 %v201
    %v2459 = vunpack.c.l.b16 %v202
    %v2460 = vunpack.c.h.b16 %v202
    %v2461 = vunpack.c.l.b16 %v203
    %v2462 = vunpack.c.h.b16 %v203
    %v2463 = vunpack.c.l.b16 %v204
    %v2464 = vunpack.c.h.b16 %v204
    %v2465 = vunpack.c.l.b16 %v205
    %v2466 = vunpack.c.h.b16 %v205
    %v2467 = vunpack.c.l.b16 %v206
    %v2468 = vunpack.c.h.b16 %v206
    %v2469 = vunpack.c.l.b16 %v207
    %v2470 = vunpack.c.h.b16 %v207
    %v2471 = vunpack.c.l.b16 %v208
    %v2472 = vunpack.c.h.b16 %v208
    %v2473 = vunpack.c.l.b16 %v209
    %v2474 = vunpack.c.h.b16 %v209
    %v2475 = vunpack.c.l.b16 %v210
    %v2476 = vunpack.c.h.b16 %v210
    %v2477 = vunpack.c.l.b16 %v211
    %v2478 = vunpack.c.h.b16 %v211
    %v2479 = vunpack.c.l.b16 %v212
    %v2480 = vunpack.c.h.b16 %v212
    %v2481 = vunpack.c.l.b16 %v213
    %v2482 = vunpack.c.h.b16 %v213
    %v2483 = vunpack.c.l.b16 %v214
    %v2484 = vunpack.c.h.b16 %v214
    %v2485 = vunpack.c.l.b16 %v215
    %v2486 = vunpack.c.h.b16 %v215
    %v2487 = vunpack.c.l.b16 %v216
    %v2488 = vunpack.c.h.b16 %v216
    %v2489 = vunpack.c.l.b16 %v217
    %v2490 = vunpack.c.h.b16 %v217
    %v2491 = vunpack.c.l.b16 %v218
    %v2492 = vunpack.c.h.b16 %v218
    %v2493 = vunpack.c.l.b16 %v219
    %v2494 = vunpack.c.h.b16 %v219
    %v2495 = vunpack.c.l.b16 %v220
    %v2496 = vunpack.c.h.b16 %v220
    %v2497 = vunpack.c.l.b16 %v221
    %v2498 = vunpack.c.h.b16 %v221
    %v2499 = vunpack.c.l.b16 %v222
    %v2500 = vunpack.c.h.b16 %v222
    %v2501 = vunpack.c.l.b16 %v223
    %v2502 = vunpack.c.h.b16 %v223
    %v2503 = vunpack.c.l.b16 %v224
    %v2504 = vunpack.c.h.b16 %v224
    %v2505 = vunpack.c.l.b16 %v225
    %v2506 = vunpack.c.h.b16 %v225
    %v2507 = vunpack.c.l.b16 %v226
    %v2508 = vunpack.c.h.b16 %v226
    %v2509 = vunpack.c.l.b16 %v227
    %v2510 = vunpack.c.h.b16 %v227
    %v2511 = vunpack.c.l.b16 %v228
    %v2512 = vunpack.c.h.b16 %v228
    %v2513 = vunpack.c.l.b16 %v229
    %v2514 = vunpack.c.h.b16 %v229
    %v2515 = vunpack.c.l.b16 %v230
    %v2516 = vunpack.c.h.b16 %v230
    %v2517 = vunpack.c.l.b16 %v231
    %v2518 = vunpack.c.h.b16 %v231
    %v2519 = vunpack.c.l.b16 %v232
    %v2520 = vunpack.c.h.b16 %v232
    %v2521 = vunpack.c.l.b16 %v233
    %v2522 = vunpack.c.h.b16 %v233
    %v2523 = vunpack.c.l.b16 %v234
    %v2524 = vunpack.c.h.b16 %v234
    %v2525 = vunpack.c.l.b16 %v235
    %v2526 = vunpack.c.h.b16 %v235
    %v2527 = vunpack.c.l.b16 %v236
    %v2528 = vunpack.c.h.b16 %v236
    %v2529 = vunpack.c.l.b16 %v237
    %v2530 = vunpack.c.h.b16 %v237
    %v2531 = vunpack.c.l.b16 %v238
    %v2532 = vunpack.c.h.b16 %v238
    %v2533 = vunpack.c.l.b16 %v239
    %v2534 = vunpack.c.h.b16 %v239
    %v2535 = vunpack.c.l.b16 %v240
    %v2536 = vunpack.c.h.b16 %v240
    %v2537 = vunpack.c.l.b16 %v241
    %v2538 = vunpack.c.h.b16 %v241
    %v2539 = vunpack.c.l.b16 %v242
    %v2540 = vunpack.c.h.b16 %v242
    %v2541 = vunpack.c.l.b16 %v243
    %v2542 = vunpack.c.h.b16 %v243
    %v2543 = vunpack.c.l.b16 %v244
    %v2544 = vunpack.c.h.b16 %v244
    %v2545 = vunpack.c.l.b16 %v245
    %v2546 = vunpack.c.h.b16 %v245
    %v2547 = vunpack.c.l.b16 %v246
    %v2548 = vunpack.c.h.b16 %v246
    %v2549 = vunpack.c.l.b16 %v247
    %v2550 = vunpack.c.h.b16 %v247
    %v2551 = vunpack.c.l.b16 %v248
    %v2552 = vunpack.c.h.b16 %v248
    %v2553 = vunpack.c.l.b16 %v249
    %v2554 = vunpack.c.h.b16 %v249
    %v2555 = vunpack.c.l.b16 %v250
    %v2556 = vunpack.c.h.b16 %v250
    %v2557 = vunpack.c.l.b16 %v251
    %v2558 = vunpack.c.h.b16 %v251
    %v2559 = vunpack.c.l.b16 %v252
    %v2560 = vunpack.c.h.b16 %v252
    %v2561 = vunpack.c.l.b16 %v253
    %v2562 = vunpack.c.h.b16 %v253
    %v2563 = vunpack.c.l.b16 %v254
    %v2564 = vunpack.c.h.b16 %v254
    %v2565 = vunpack.c.l.b16 %v255
    %v2566 = vunpack.c.h.b16 %v255
    %v2567 = vunpack.c.l.b16 %v256
    %v2568 = vunpack.c.h.b16 %v256
    %v2569 = vunpack.c.l.b16 %v257
    %v2570 = vunpack.c.h.b16 %v257
    %v2571 = vunpack.c.l.b16 %v258
    %v2572 = vunpack.c.h.b16 %v258
    %v2573 = vunpack.c.l.b16 %v259
    %v2574 = vunpack.c.h.b16 %v259
    %v2575 = vunpack.c.l.b16 %v260
    %v2576 = vunpack.c.h.b16 %v260
    %v2577 = vunpack.c.l.b16 %v261
    %v2578 = vunpack.c.h.b16 %v261
    %v2579 = vunpack.c.l.b16 %v262
    %v2580 = vunpack.c.h.b16 %v262
    %v2581 = vunpack.c.l.b16 %v263
    %v2582 = vunpack.c.h.b16 %v263
    %v2583 = vunpack.c.l.b16 %v264
    %v2584 = vunpack.c.h.b16 %v264
    %v2585 = vunpack.c.l.b16 %v265
    %v2586 = vunpack.c.h.b16 %v265
    %v2587 = vunpack.c.l.b16 %v266
    %v2588 = vunpack.c.h.b16 %v266
    %v2589 = vunpack.c.l.b16 %v267
    %v2590 = vunpack.c.h.b16 %v267
    %v2591 = vunpack.c.l.b16 %v268
    %v2592 = vunpack.c.h.b16 %v268
    %v2593 = vunpack.c.l.b16 %v269
    %v2594 = vunpack.c.h.b16 %v269
    %v2595 = vunpack.c.l.b16 %v270
    %v2596 = vunpack.c.h.b16 %v270
    %v2597 = vunpack.c.l.b16 %v271
    %v2598 = vunpack.c.h.b16 %v271
    %v2599 = vunpack.c.l.b16 %v272
    %v2600 = vunpack.c.h.b16 %v272
    %v2601 = vunpack.c.l.b16 %v273
    %v2602 = vunpack.c.h.b16 %v273
    %v2603 = vunpack.c.l.b16 %v274
    %v2604 = vunpack.c.h.b16 %v274
    %v2605 = vunpack.c.l.b16 %v275
    %v2606 = vunpack.c.h.b16 %v275
    %v2607 = vunpack.c.l.b16 %v276
    %v2608 = vunpack.c.h.b16 %v276
    %v2609 = vunpack.c.l.b16 %v277
    %v2610 = vunpack.c.h.b16 %v277
    %v2611 = vunpack.c.l.b16 %v278
    %v2612 = vunpack.c.h.b16 %v278
    %v2613 = vunpack.c.l.b16 %v279
    %v2614 = vunpack.c.h.b16 %v279
    %v2615 = vunpack.c.l.b16 %v280
    %v2616 = vunpack.c.h.b16 %v280
    %v2617 = vunpack.c.l.b16 %v281
    %v2618 = vunpack.c.h.b16 %v281
    %v2619 = vunpack.c.l.b16 %v282
    %v2620 = vunpack.c.h.b16 %v282
    %v2621 = vunpack.c.l.b16 %v283
    %v2622 = vunpack.c.h.b16 %v283
    %v2623 = vunpack.c.l.b16 %v284
    %v2624 = vunpack.c.h.b16 %v284
    %v2625 = vunpack.c.l.b16 %v285
    %v2626 = vunpack.c.h.b16 %v285
    %v2627 = vunpack.c.l.b16 %v286
    %v2628 = vunpack.c.h.b16 %v286
    %v2629 = vunpack.c.l.b16 %v287
    %v2630 = vunpack.c.h.b16 %v287
    %v2631 = vunpack.c.l.b16 %v288
    %v2632 = vunpack.c.h.b16 %v288
    %v2633 = vunpack.c.l.b16 %v289
    %v2634 = vunpack.c.h.b16 %v289
    %v2635 = vunpack.c.l.b16 %v290
    %v2636 = vunpack.c.h.b16 %v290
    %v2637 = vunpack.c.l.b16 %v291
    %v2638 = vunpack.c.h.b16 %v291
    %v2639 = vunpack.c.l.b16 %v292
    %v2640 = vunpack.c.h.b16 %v292
    %v2641 = vunpack.c.l.b16 %v293
    %v2642 = vunpack.c.h.b16 %v293
    %v2643 = vunpack.c.l.b16 %v294
    %v2644 = vunpack.c.h.b16 %v294
    %v2645 = vunpack.c.l.b16 %v295
    %v2646 = vunpack.c.h.b16 %v295
    %v2647 = vunpack.c.l.b16 %v296
    %v2648 = vunpack.c.h.b16 %v296
    %v2649 = vunpack.c.l.b16 %v297
    %v2650 = vunpack.c.h.b16 %v297
    %v2651 = vunpack.c.l.b16 %v298
    %v2652 = vunpack.c.h.b16 %v298
    %v2653 = vunpack.c.l.b16 %v299
    %v2654 = vunpack.c.h.b16 %v299
    %v2655 = vunpack.c.l.b16 %v300
    %v2656 = vunpack.c.h.b16 %v300
    %v2657 = vunpack.c.l.b16 %v301
    %v2658 = vunpack.c.h.b16 %v301
    %v2659 = vunpack.c.l.b16 %v302
    %v2660 = vunpack.c.h.b16 %v302
    %v2661 = vunpack.c.l.b16 %v303
    %v2662 = vunpack.c.h.b16 %v303
    %v2663 = vunpack.c.l.b16 %v304
    %v2664 = vunpack.c.h.b16 %v304
    %v2665 = vunpack.c.l.b16 %v305
    %v2666 = vunpack.c.h.b16 %v305
    %v2667 = vunpack.c.l.b16 %v306
    %v2668 = vunpack.c.h.b16 %v306
    %v2669 = vunpack.c.l.b16 %v307
    %v2670 = vunpack.c.h.b16 %v307
    %v2671 = vunpack.c.l.b16 %v308
    %v2672 = vunpack.c.h.b16 %v308
    %v2673 = vunpack.c.l.b16 %v309
    %v2674 = vunpack.c.h.b16 %v309
    %v2675 = vunpack.c.l.b16 %v310
    %v2676 = vunpack.c.h.b16 %v310
    %v2677 = vunpack.c.l.b16 %v311
    %v2678 = vunpack.c.h.b16 %v311
    %v2679 = vunpack.c.l.b16 %v312
    %v2680 = vunpack.c.h.b16 %v312
    %v2681 = vunpack.c.l.b16 %v313
    %v2682 = vunpack.c.h.b16 %v313
    %v2683 = vunpack.c.l.b16 %v314
    %v2684 = vunpack.c.h.b16 %v314
    %v2685 = vunpack.c.l.b16 %v315
    %v2686 = vunpack.c.h.b16 %v315
    %v2687 = vunpack.c.l.b16 %v316
    %v2688 = vunpack.c.h.b16 %v316
    %v2689 = vunpack.c.l.b16 %v317
    %v2690 = vunpack.c.h.b16 %v317
    %v2691 = vunpack.c.l.b16 %v318
    %v2692 = vunpack.c.h.b16 %v318
    %v2693 = vunpack.c.l.b16 %v319
    %v2694 = vunpack.c.h.b16 %v319
    %v2695 = vunpack.c.l.b16 %v320
    %v2696 = vunpack.c.h.b16 %v320
    %v2697 = vunpack.c.l.b16 %v321
    %v2698 = vunpack.c.h.b16 %v321
    %v2699 = vunpack.c.l.b16 %v322
    %v2700 = vunpack.c.h.b16 %v322
    %v2701 = vunpack.c.l.b16 %v323
    %v2702 = vunpack.c.h.b16 %v323
    %v2703 = vunpack.c.l.b16 %v324
    %v2704 = vunpack.c.h.b16 %v324
    %v2705 = vunpack.c.l.b16 %v325
    %v2706 = vunpack.c.h.b16 %v325
    %v2707 = vunpack.c.l.b16 %v326
    %v2708 = vunpack.c.h.b16 %v326
    %v2709 = vunpack.c.l.b16 %v327
    %v2710 = vunpack.c.h.b16 %v327
    %v2711 = vunpack.c.l.b16 %v328
    %v2712 = vunpack.c.h.b16 %v328
    %v2713 = vunpack.c.l.b16 %v329
    %v2714 = vunpack.c.h.b16 %v329
    %v2715 = vunpack.c.l.b16 %v330
    %v2716 = vunpack.c.h.b16 %v330
    %v2717 = vunpack.c.l.b16 %v331
    %v2718 = vunpack.c.h.b16 %v331
    %v2719 = vunpack.c.l.b16 %v332
    %v2720 = vunpack.c.h.b16 %v332
    %v2721 = vunpack.c.l.b16 %v333
    %v2722 = vunpack.c.h.b16 %v333
    %v2723 = vunpack.c.l.b16 %v334
    %v2724 = vunpack.c.h.b16 %v334
    %v2725 = vunpack.c.l.b16 %v335
    %v2726 = vunpack.c.h.b16 %v335
    %v2727 = vunpack.c.l.b16 %v336
    %v2728 = vunpack.c.h.b16 %v336
    %v2729 = vunpack.c.l.b16 %v337
    %v2730 = vunpack.c.h.b16 %v337
    %v2731 = vunpack.c.l.b16 %v338
    %v2732 = vunpack.c.h.b16 %v338
    %v2733 = vunpack.c.l.b16 %v339
    %v2734 = vunpack.c.h.b16 %v339
    %v2735 = vunpack.c.l.b16 %v340
    %v2736 = vunpack.c.h.b16 %v340
    %v2737 = vunpack.c.l.b16 %v341
    %v2738 = vunpack.c.h.b16 %v341
    %v2739 = vunpack.c.l.b16 %v342
    %v2740 = vunpack.c.h.b16 %v342
    %v2741 = vunpack.c.l.b16 %v343
    %v2742 = vunpack.c.h.b16 %v343
    %v2743 = vunpack.c.l.b16 %v344
    %v2744 = vunpack.c.h.b16 %v344
    %v2745 = vunpack.c.l.b16 %v345
    %v2746 = vunpack.c.h.b16 %v345
    %v2747 = vunpack.c.l.b16 %v346
    %v2748 = vunpack.c.h.b16 %v346
    %v2749 = vunpack.c.l.b16 %v347
    %v2750 = vunpack.c.h.b16 %v347
    %v2751 = vunpack.c.l.b16 %v348
    %v2752 = vunpack.c.h.b16 %v348
    %v2753 = vunpack.c.l.b16 %v349
    %v2754 = vunpack.c.h.b16 %v349
    %v2755 = vunpack.c.l.b16 %v350
    %v2756 = vunpack.c.h.b16 %v350
    %v2757 = vunpack.c.l.b16 %v351
    %v2758 = vunpack.c.h.b16 %v351
    %v2759 = vunpack.c.l.b16 %v352
    %v2760 = vunpack.c.h.b16 %v352
    %v2761 = vunpack.c.l.b16 %v353
    %v2762 = vunpack.c.h.b16 %v353
    %v2763 = vunpack.c.l.b16 %v354
    %v2764 = vunpack.c.h.b16 %v354
    %v2765 = vunpack.c.l.b16 %v355
    %v2766 = vunpack.c.h.b16 %v355
    %v2767 = vunpack.c.l.b16 %v356
    %v2768 = vunpack.c.h.b16 %v356
    %v2769 = vunpack.c.l.b16 %v357
    %v2770 = vunpack.c.h.b16 %v357
    %v2771 = vunpack.c.l.b16 %v358
    %v2772 = vunpack.c.h.b16 %v358
    %v2773 = vunpack.c.l.b16 %v359
    %v2774 = vunpack.c.h.b16 %v359
    %v2775 = vunpack.c.l.b16 %v360
    %v2776 = vunpack.c.h.b16 %v360
    %v2777 = vunpack.c.l.b16 %v361
    %v2778 = vunpack.c.h.b16 %v361
    %v2779 = vunpack.c.l.b16 %v362
    %v2780 = vunpack.c.h.b16 %v362
    %v2781 = vunpack.c.l.b16 %v363
    %v2782 = vunpack.c.h.b16 %v363
    %v2783 = vunpack.c.l.b16 %v364
    %v2784 = vunpack.c.h.b16 %v364
    %v2785 = vunpack.c.l.b16 %v365
    %v2786 = vunpack.c.h.b16 %v365
    %v2787 = vunpack.c.l.b16 %v366
    %v2788 = vunpack.c.h.b16 %v366
    %v2789 = vunpack.c.l.b16 %v367
    %v2790 = vunpack.c.h.b16 %v367
    %v2791 = vunpack.c.l.b16 %v368
    %v2792 = vunpack.c.h.b16 %v368
    %v2793 = vunpack.c.l.b16 %v369
    %v2794 = vunpack.c.h.b16 %v369
    %v2795 = vunpack.c.l.b16 %v370
    %v2796 = vunpack.c.h.b16 %v370
    %v2797 = vunpack.c.l.b16 %v371
    %v2798 = vunpack.c.h.b16 %v371
    %v2799 = vunpack.c.l.b16 %v372
    %v2800 = vunpack.c.h.b16 %v372
    %v2801 = vunpack.c.l.b16 %v373
    %v2802 = vunpack.c.h.b16 %v373
    %v2803 = vunpack.c.l.b16 %v374
    %v2804 = vunpack.c.h.b16 %v374
    %v2805 = vunpack.c.l.b16 %v375
    %v2806 = vunpack.c.h.b16 %v375
    %v2807 = vunpack.c.l.b16 %v376
    %v2808 = vunpack.c.h.b16 %v376
    %v2809 = vunpack.c.l.b16 %v377
    %v2810 = vunpack.c.h.b16 %v377
    %v2811 = vunpack.c.l.b16 %v378
    %v2812 = vunpack.c.h.b16 %v378
    %v2813 = vunpack.c.l.b16 %v379
    %v2814 = vunpack.c.h.b16 %v379
    %v2815 = vunpack.c.l.b16 %v380
    %v2816 = vunpack.c.h.b16 %v380
    %v2817 = vunpack.c.l.b16 %v381
    %v2818 = vunpack.c.h.b16 %v381
    %v2819 = vunpack.c.l.b16 %v382
    %v2820 = vunpack.c.h.b16 %v382
    %v2821 = vunpack.c.l.b16 %v383
    %v2822 = vunpack.c.h.b16 %v383
    %v2823 = vunpack.c.l.b16 %v384
    %v2824 = vunpack.c.h.b16 %v384
    %v2825 = vunpack.c.l.b16 %v385
    %v2826 = vunpack.c.h.b16 %v385
    %v2827 = vunpack.c.l.b16 %v386
    %v2828 = vunpack.c.h.b16 %v386
    %v2829 = vunpack.c.l.b16 %v387
    %v2830 = vunpack.c.h.b16 %v387
    %v2831 = vunpack.c.l.b16 %v388
    %v2832 = vunpack.c.h.b16 %v388
    %v2833 = vunpack.c.l.b16 %v389
    %v2834 = vunpack.c.h.b16 %v389
    %v2835 = vunpack.c.l.b16 %v390
    %v2836 = vunpack.c.h.b16 %v390
    %v2837 = vunpack.c.l.b16 %v391
    %v2838 = vunpack.c.h.b16 %v391
    %v2839 = vunpack.c.l.b16 %v392
    %v2840 = vunpack.c.h.b16 %v392
    %v2841 = vunpack.c.l.b16 %v393
    %v2842 = vunpack.c.h.b16 %v393
    %v2843 = vunpack.c.l.b16 %v394
    %v2844 = vunpack.c.h.b16 %v394
    %v2845 = vunpack.c.l.b16 %v395
    %v2846 = vunpack.c.h.b16 %v395
    %v2847 = vunpack.c.l.b16 %v396
    %v2848 = vunpack.c.h.b16 %v396
    %v2849 = vunpack.c.l.b16 %v397
    %v2850 = vunpack.c.h.b16 %v397
    %v2851 = vunpack.c.l.b16 %v398
    %v2852 = vunpack.c.h.b16 %v398
    %v2853 = vunpack.c.l.b16 %v399
    %v2854 = vunpack.c.h.b16 %v399
    %v2855 = vunpack.c.l.b16 %v400
    %v2856 = vunpack.c.h.b16 %v400
    %v2857 = vunpack.c.l.b16 %v401
    %v2858 = vunpack.c.h.b16 %v401
    %v2859 = vunpack.c.l.b16 %v402
    %v2860 = vunpack.c.h.b16 %v402
    %v2861 = vunpack.c.l.b16 %v403
    %v2862 = vunpack.c.h.b16 %v403
    %v2863 = vunpack.c.l.b16 %v404
    %v2864 = vunpack.c.h.b16 %v404
    %v2865 = vunpack.c.l.b16 %v405
    %v2866 = vunpack.c.h.b16 %v405
    %v2867 = vunpack.c.l.b16 %v406
    %v2868 = vunpack.c.h.b16 %v406
    %v2869 = vunpack.c.l.b16 %v407
    %v2870 = vunpack.c.h.b16 %v407
    %v2871 = vunpack.c.l.b16 %v408
    %v2872 = vunpack.c.h.b16 %v408
    %v2873 = vunpack.c.l.b16 %v409
    %v2874 = vunpack.c.h.b16 %v409
    %v2875 = vunpack.c.l.b16 %v410
    %v2876 = vunpack.c.h.b16 %v410
    %v2877 = vunpack.c.l.b16 %v411
    %v2878 = vunpack.c.h.b16 %v411
    %v2879 = vunpack.c.l.b16 %v412
    %v2880 = vunpack.c.h.b16 %v412
    %v2881 = vunpack.c.l.b16 %v413
    %v2882 = vunpack.c.h.b16 %v413
    %v2883 = vunpack.c.l.b16 %v414
    %v2884 = vunpack.c.h.b16 %v414
    %v2885 = vunpack.c.l.b16 %v415
    %v2886 = vunpack.c.h.b16 %v415
    %v2887 = vunpack.c.l.b16 %v416
    %v2888 = vunpack.c.h.b16 %v416
    %v2889 = vunpack.c.l.b16 %v417
    %v2890 = vunpack.c.h.b16 %v417
    %v2891 = vunpack.c.l.b16 %v418
    %v2892 = vunpack.c.h.b16 %v418
    %v2893 = vunpack.c.l.b16 %v419
    %v2894 = vunpack.c.h.b16 %v419
    %v2895 = vunpack.c.l.b16 %v420
    %v2896 = vunpack.c.h.b16 %v420
    %v2897 = vunpack.c.l.b16 %v421
    %v2898 = vunpack.c.h.b16 %v421
    %v2899 = vunpack.c.l.b16 %v422
    %v2900 = vunpack.c.h.b16 %v422
    %v2901 = vunpack.c.l.b16 %v423
    %v2902 = vunpack.c.h.b16 %v423
    %v2903 = vunpack.c.l.b16 %v424
    %v2904 = vunpack.c.h.b16 %v424
    %v2905 = vunpack.c.l.b16 %v425
    %v2906 = vunpack.c.h.b16 %v425
    %v2907 = vunpack.c.l.b16 %v426
    %v2908 = vunpack.c.h.b16 %v426
    %v2909 = vunpack.c.l.b16 %v427
    %v2910 = vunpack.c.h.b16 %v427
    %v2911 = vunpack.c.l.b16 %v428
    %v2912 = vunpack.c.h.b16 %v428
    %v2913 = vunpack.c.l.b16 %v429
    %v2914 = vunpack.c.h.b16 %v429
    %v2915 = vunpack.c.l.b16 %v430
    %v2916 = vunpack.c.h.b16 %v430
    %v2917 = vunpack.c.l.b16 %v431
    %v2918 = vunpack.c.h.b16 %v431
    %v2919 = vunpack.c.l.b16 %v432
    %v2920 = vunpack.c.h.b16 %v432
    %v2921 = vunpack.c.l.b16 %v433
    %v2922 = vunpack.c.h.b16 %v433
    %v2923 = vunpack.c.l.b16 %v434
    %v2924 = vunpack.c.h.b16 %v434
    %v2925 = vunpack.c.l.b16 %v435
    %v2926 = vunpack.c.h.b16 %v435
    %v2927 = vunpack.c.l.b16 %v436
    %v2928 = vunpack.c.h.b16 %v436
    %v2929 = vunpack.c.l.b16 %v437
    %v2930 = vunpack.c.h.b16 %v437
    %v2931 = vunpack.c.l.b16 %v438
    %v2932 = vunpack.c.h.b16 %v438
    %v2933 = vunpack.c.l.b16 %v439
    %v2934 = vunpack.c.h.b16 %v439
    %v2935 = vunpack.c.l.b16 %v440
    %v2936 = vunpack.c.h.b16 %v440
    %v2937 = vunpack.c.l.b16 %v441
    %v2938 = vunpack.c.h.b16 %v441
    %v2939 = vunpack.c.l.b16 %v442
    %v2940 = vunpack.c.h.b16 %v442
    %v2941 = vunpack.c.l.b16 %v443
    %v2942 = vunpack.c.h.b16 %v443
    %v2943 = vunpack.c.l.b16 %v444
    %v2944 = vunpack.c.h.b16 %v444
    %v2945 = vunpack.c.l.b16 %v445
    %v2946 = vunpack.c.h.b16 %v445
    %v2947 = vunpack.c.l.b16 %v446
    %v2948 = vunpack.c.h.b16 %v446
    %v2949 = vunpack.c.l.b16 %v447
    %v2950 = vunpack.c.h.b16 %v447
    %v2951 = vunpack.c.l.b16 %v448
    %v2952 = vunpack.c.h.b16 %v448
    %v2953 = vunpack.c.l.b16 %v449
    %v2954 = vunpack.c.h.b16 %v449
    %v2955 = vunpack.c.l.b16 %v450
    %v2956 = vunpack.c.h.b16 %v450
    %v2957 = vunpack.c.l.b16 %v451
    %v2958 = vunpack.c.h.b16 %v451
    %v2959 = vunpack.c.l.b16 %v452
    %v2960 = vunpack.c.h.b16 %v452
    %v2961 = vunpack.c.l.b16 %v453
    %v2962 = vunpack.c.h.b16 %v453
    %v2963 = vunpack.c.l.b16 %v454
    %v2964 = vunpack.c.h.b16 %v454
    %v2965 = vunpack.c.l.b16 %v455
    %v2966 = vunpack.c.h.b16 %v455
    %v2967 = vunpack.c.l.b16 %v456
    %v2968 = vunpack.c.h.b16 %v456
    %v2969 = vunpack.c.l.b16 %v457
    %v2970 = vunpack.c.h.b16 %v457
    %v2971 = vunpack.c.l.b16 %v458
    %v2972 = vunpack.c.h.b16 %v458
    %v2973 = vunpack.c.l.b16 %v459
    %v2974 = vunpack.c.h.b16 %v459
    %v2975 = vunpack.c.l.b16 %v460
    %v2976 = vunpack.c.h.b16 %v460
    %v2977 = vunpack.c.l.b16 %v461
    %v2978 = vunpack.c.h.b16 %v461
    %v2979 = vunpack.c.l.b16 %v462
    %v2980 = vunpack.c.h.b16 %v462
    %v2981 = vunpack.c.l.b16 %v463
    %v2982 = vunpack.c.h.b16 %v463
    %v2983 = vunpack.c.l.b16 %v464
    %v2984 = vunpack.c.h.b16 %v464
    %v2985 = vunpack.c.l.b16 %v465
    %v2986 = vunpack.c.h.b16 %v465
    %v2987 = vunpack.c.l.b16 %v466
    %v2988 = vunpack.c.h.b16 %v466
    %v2989 = vunpack.c.l.b16 %v467
    %v2990 = vunpack.c.h.b16 %v467
    %v2991 = vunpack.c.l.b16 %v468
    %v2992 = vunpack.c.h.b16 %v468
    %v2993 = vunpack.c.l.b16 %v469
    %v2994 = vunpack.c.h.b16 %v469
    %v2995 = vunpack.c.l.b16 %v470
    %v2996 = vunpack.c.h.b16 %v470
    %v2997 = vunpack.c.l.b16 %v471
    %v2998 = vunpack.c.h.b16 %v471
    %v2999 = vunpack.c.l.b16 %v472
    %v3000 = vunpack.c.h.b16 %v472
    %v3001 = vunpack.c.l.b16 %v473
    %v3002 = vunpack.c.h.b16 %v473
    %v3003 = vunpack.c.l.b16 %v474
    %v3004 = vunpack.c.h.b16 %v474
    %v3005 = vunpack.c.l.b16 %v475
    %v3006 = vunpack.c.h.b16 %v475
    %v3007 = vunpack.c.l.b16 %v476
    %v3008 = vunpack.c.h.b16 %v476
    %v3009 = vunpack.c.l.b16 %v477
    %v3010 = vunpack.c.h.b16 %v477
    %v3011 = vunpack.c.l.b16 %v478
    %v3012 = vunpack.c.h.b16 %v478
    %v3013 = vunpack.c.l.b16 %v479
    %v3014 = vunpack.c.h.b16 %v479
    %v3015 = vunpack.c.l.b16 %v480
    %v3016 = vunpack.c.h.b16 %v480
    %v3017 = vunpack.c.l.b16 %v481
    %v3018 = vunpack.c.h.b16 %v481
    %v3019 = vunpack.c.l.b16 %v482
    %v3020 = vunpack.c.h.b16 %v482
    %v3021 = vunpack.c.l.b16 %v483
    %v3022 = vunpack.c.h.b16 %v483
    %v3023 = vunpack.c.l.b16 %v484
    %v3024 = vunpack.c.h.b16 %v484
    %v3025 = vunpack.c.l.b16 %v485
    %v3026 = vunpack.c.h.b16 %v485
    %v3027 = vunpack.c.l.b16 %v486
    %v3028 = vunpack.c.h.b16 %v486
    %v3029 = vunpack.c.l.b16 %v487
    %v3030 = vunpack.c.h.b16 %v487
    %v3031 = vunpack.c.l.b16 %v488
    %v3032 = vunpack.c.h.b16 %v488
    %v3033 = vunpack.c.l.b16 %v489
    %v3034 = vunpack.c.h.b16 %v489
    %v3035 = vunpack.c.l.b16 %v490
    %v3036 = vunpack.c.h.b16 %v490
    %v3037 = vunpack.c.l.b16 %v491
    %v3038 = vunpack.c.h.b16 %v491
    %v3039 = vunpack.c.l.b16 %v492
    %v3040 = vunpack.c.h.b16 %v492
    %v3041 = vunpack.c.l.b16 %v493
    %v3042 = vunpack.c.h.b16 %v493
    %v3043 = vunpack.c.l.b16 %v494
    %v3044 = vunpack.c.h.b16 %v494
    %v3045 = vunpack.c.l.b16 %v495
    %v3046 = vunpack.c.h.b16 %v495
    %v3047 = vunpack.c.l.b16 %v496
    %v3048 = vunpack.c.h.b16 %v496
    %v3049 = vunpack.c.l.b16 %v497
    %v3050 = vunpack.c.h.b16 %v497
    %v3051 = vunpack.c.l.b16 %v498
    %v3052 = vunpack.c.h.b16 %v498
    %v3053 = vunpack.c.l.b16 %v499
    %v3054 = vunpack.c.h.b16 %v499
    %v3055 = vunpack.c.l.b16 %v500
    %v3056 = vunpack.c.h.b16 %v500
    %v3057 = vunpack.c.l.b16 %v501
    %v3058 = vunpack.c.h.b16 %v501
    %v3059 = vunpack.c.l.b16 %v502
    %v3060 = vunpack.c.h.b16 %v502
    %v3061 = vunpack.c.l.b16 %v503
    %v3062 = vunpack.c.h.b16 %v503
    %v3063 = vunpack.c.l.b16 %v504
    %v3064 = vunpack.c.h.b16 %v504
    %v3065 = vunpack.c.l.b16 %v505
    %v3066 = vunpack.c.h.b16 %v505
    %v3067 = vunpack.c.l.b16 %v506
    %v3068 = vunpack.c.h.b16 %v506
    %v3069 = vunpack.c.l.b16 %v507
    %v3070 = vunpack.c.h.b16 %v507
    %v3071 = vunpack.c.l.b16 %v508
    %v3072 = vunpack.c.h.b16 %v508
    %v3073 = vunpack.c.l.b16 %v509
    %v3074 = vunpack.c.h.b16 %v509
    %v3075 = vunpack.c.l.b16 %v510
    %v3076 = vunpack.c.h.b16 %v510
    %v3077 = vunpack.c.l.b16 %v511
    %v3078 = vunpack.c.h.b16 %v511
    %v3079 = vunpack.c.l.b16 %v512
    %v3080 = vunpack.c.h.b16 %v512
    %v3081 = vunpack.c.l.b16 %v513
    %v3082 = vunpack.c.h.b16 %v513
    %v3083 = vunpack.c.l.b16 %v514
    %v3084 = vunpack.c.h.b16 %v514
    %v3085 = vunpack.c.l.b16 %v515
    %v3086 = vunpack.c.h.b16 %v515
    %v3087 = vunpack.c.l.b16 %v516
    %v3088 = vunpack.c.h.b16 %v516
    %v3089 = vunpack.c.l.b16 %v517
    %v3090 = vunpack.c.h.b16 %v517
    %v3091 = vunpack.c.l.b16 %v518
    %v3092 = vunpack.c.h.b16 %v518
    %v3093 = vunpack.c.l.b16 %v519
    %v3094 = vunpack.c.h.b16 %v519
    %v3095 = vunpack.c.l.b16 %v520
    %v3096 = vunpack.c.h.b16 %v520
    %v3097 = vunpack.c.l.b16 %v521
    %v3098 = vunpack.c.h.b16 %v521
    %v3099 = vunpack.c.l.b16 %v522
    %v3100 = vunpack.c.h.b16 %v522
    %v3101 = vunpack.c.l.b16 %v523
    %v3102 = vunpack.c.h.b16 %v523
    %v3103 = vunpack.c.l.b16 %v524
    %v3104 = vunpack.c.h.b16 %v524
    %v3105 = vunpack.c.l.b16 %v525
    %v3106 = vunpack.c.h.b16 %v525
    %v3107 = vunpack.c.l.b16 %v526
    %v3108 = vunpack.c.h.b16 %v526
    %v3109 = vunpack.c.l.b16 %v527
    %v3110 = vunpack.c.h.b16 %v527
    %v3111 = vunpack.c.l.b16 %v528
    %v3112 = vunpack.c.h.b16 %v528
    %v3113 = vunpack.c.l.b16 %v529
    %v3114 = vunpack.c.h.b16 %v529
    %v3115 = vunpack.c.l.b16 %v530
    %v3116 = vunpack.c.h.b16 %v530
    %v3117 = vunpack.c.l.b16 %v531
    %v3118 = vunpack.c.h.b16 %v531
    %v3119 = vunpack.c.l.b16 %v532
    %v3120 = vunpack.c.h.b16 %v532
    %v3121 = vunpack.c.l.b16 %v533
    %v3122 = vunpack.c.h.b16 %v533
    %v3123 = vunpack.c.l.b16 %v534
    %v3124 = vunpack.c.h.b16 %v534
    %v3125 = vunpack.c.l.b16 %v535
    %v3126 = vunpack.c.h.b16 %v535
    %v3127 = vunpack.c.l.b16 %v536
    %v3128 = vunpack.c.h.b16 %v536
    %v3129 = vunpack.c.l.b16 %v537
    %v3130 = vunpack.c.h.b16 %v537
    %v3131 = vunpack.c.l.b16 %v538
    %v3132 = vunpack.c.h.b16 %v538
    %v3133 = vunpack.c.l.b16 %v539
    %v3134 = vunpack.c.h.b16 %v539
    %v3135 = vunpack.c.l.b16 %v540
    %v3136 = vunpack.c.h.b16 %v540
    %v3137 = vunpack.c.l.b16 %v541
    %v3138 = vunpack.c.h.b16 %v541
    %v3139 = vunpack.c.l.b16 %v542
    %v3140 = vunpack.c.h.b16 %v542
    %v3141 = vunpack.c.l.b16 %v543
    %v3142 = vunpack.c.h.b16 %v543
    %v3143 = vunpack.c.l.b16 %v544
    %v3144 = vunpack.c.h.b16 %v544
    %v3145 = vunpack.c.l.b16 %v545
    %v3146 = vunpack.c.h.b16 %v545
    %v3147 = vunpack.c.l.b16 %v546
    %v3148 = vunpack.c.h.b16 %v546
    %v3149 = vunpack.c.l.b16 %v547
    %v3150 = vunpack.c.h.b16 %v547
    %v3151 = vunpack.c.l.b16 %v548
    %v3152 = vunpack.c.h.b16 %v548
    %v3153 = vunpack.c.l.b16 %v549
    %v3154 = vunpack.c.h.b16 %v549
    %v3155 = vunpack.c.l.b16 %v550
    %v3156 = vunpack.c.h.b16 %v550
    %v3157 = vunpack.c.l.b16 %v551
    %v3158 = vunpack.c.h.b16 %v551
    %v3159 = vunpack.c.l.b16 %v552
    %v3160 = vunpack.c.h.b16 %v552
    %v3161 = vunpack.c.l.b16 %v553
    %v3162 = vunpack.c.h.b16 %v553
    %v3163 = vunpack.c.l.b16 %v554
    %v3164 = vunpack.c.h.b16 %v554
    %v3165 = vunpack.c.l.b16 %v555
    %v3166 = vunpack.c.h.b16 %v555
    %v3167 = vunpack.c.l.b16 %v556
    %v3168 = vunpack.c.h.b16 %v556
    %v3169 = vunpack.c.l.b16 %v557
    %v3170 = vunpack.c.h.b16 %v557
    %v3171 = vunpack.c.l.b16 %v558
    %v3172 = vunpack.c.h.b16 %v558
    %v3173 = vunpack.c.l.b16 %v559
    %v3174 = vunpack.c.h.b16 %v559
    %v3175 = vunpack.c.l.b16 %v560
    %v3176 = vunpack.c.h.b16 %v560
    %v3177 = vunpack.c.l.b16 %v561
    %v3178 = vunpack.c.h.b16 %v561
    %v3179 = vunpack.c.l.b16 %v562
    %v3180 = vunpack.c.h.b16 %v562
    %v3181 = vunpack.c.l.b16 %v563
    %v3182 = vunpack.c.h.b16 %v563
    %v3183 = vunpack.c.l.b16 %v564
    %v3184 = vunpack.c.h.b16 %v564
    %v3185 = vunpack.c.l.b16 %v565
    %v3186 = vunpack.c.h.b16 %v565
    %v3187 = vunpack.c.l.b16 %v566
    %v3188 = vunpack.c.h.b16 %v566
    %v3189 = vunpack.c.l.b16 %v567
    %v3190 = vunpack.c.h.b16 %v567
    %v3191 = vunpack.c.l.b16 %v568
    %v3192 = vunpack.c.h.b16 %v568
    %v3193 = vunpack.c.l.b16 %v569
    %v3194 = vunpack.c.h.b16 %v569
    %v3195 = vunpack.c.l.b16 %v570
    %v3196 = vunpack.c.h.b16 %v570
    %v3197 = vunpack.c.l.b16 %v571
    %v3198 = vunpack.c.h.b16 %v571
    %v3199 = vunpack.c.l.b16 %v572
    %v3200 = vunpack.c.h.b16 %v572
    %v3201 = vunpack.c.l.b16 %v573
    %v3202 = vunpack.c.h.b16 %v573
    %v3203 = vunpack.c.l.b16 %v574
    %v3204 = vunpack.c.h.b16 %v574
    %v3205 = vunpack.c.l.b16 %v575
    %v3206 = vunpack.c.h.b16 %v575
    %v3207 = vunpack.c.l.b16 %v576
    %v3208 = vunpack.c.h.b16 %v576
    %v3209 = vunpack.c.l.b16 %v577
    %v3210 = vunpack.c.h.b16 %v577
    %v3211 = vunpack.c.l.b16 %v578
    %v3212 = vunpack.c.h.b16 %v578
    %v3213 = vunpack.c.l.b16 %v579
    %v3214 = vunpack.c.h.b16 %v579
    %v3215 = vunpack.c.l.b16 %v580
    %v3216 = vunpack.c.h.b16 %v580
    %v3217 = vunpack.c.l.b16 %v581
    %v3218 = vunpack.c.h.b16 %v581
    %v3219 = vunpack.c.l.b16 %v582
    %v3220 = vunpack.c.h.b16 %v582
    %v3221 = vunpack.c.l.b16 %v583
    %v3222 = vunpack.c.h.b16 %v583
    %v3223 = vunpack.c.l.b16 %v584
    %v3224 = vunpack.c.h.b16 %v584
    %v3225 = vunpack.c.l.b16 %v585
    %v3226 = vunpack.c.h.b16 %v585
    %v3227 = vunpack.c.l.b16 %v586
    %v3228 = vunpack.c.h.b16 %v586
    %v3229 = vunpack.c.l.b16 %v587
    %v3230 = vunpack.c.h.b16 %v587
    %v3231 = vunpack.c.l.b16 %v588
    %v3232 = vunpack.c.h.b16 %v588
    %v3233 = vunpack.c.l.b16 %v589
    %v3234 = vunpack.c.h.b16 %v589
    %v3235 = vunpack.c.l.b16 %v590
    %v3236 = vunpack.c.h.b16 %v590
    %v3237 = vunpack.c.l.b16 %v591
    %v3238 = vunpack.c.h.b16 %v591
    %v3239 = vunpack.c.l.b16 %v592
    %v3240 = vunpack.c.h.b16 %v592
    %v3241 = vunpack.c.l.b16 %v593
    %v3242 = vunpack.c.h.b16 %v593
    %v3243 = vunpack.c.l.b16 %v594
    %v3244 = vunpack.c.h.b16 %v594
    %v3245 = vunpack.c.l.b16 %v595
    %v3246 = vunpack.c.h.b16 %v595
    %v3247 = vunpack.c.l.b16 %v596
    %v3248 = vunpack.c.h.b16 %v596
    %v3249 = vunpack.c.l.b16 %v597
    %v3250 = vunpack.c.h.b16 %v597
    %v3251 = vunpack.c.l.b16 %v598
    %v3252 = vunpack.c.h.b16 %v598
    %v3253 = vunpack.c.l.b16 %v599
    %v3254 = vunpack.c.h.b16 %v599
    %v3255 = vunpack.c.l.b16 %v600
    %v3256 = vunpack.c.h.b16 %v600
    %v3257 = vunpack.c.l.b16 %v601
    %v3258 = vunpack.c.h.b16 %v601
    %v3259 = vunpack.c.l.b16 %v602
    %v3260 = vunpack.c.h.b16 %v602
    %v3261 = vunpack.c.l.b16 %v603
    %v3262 = vunpack.c.h.b16 %v603
    %v3263 = vunpack.c.l.b16 %v604
    %v3264 = vunpack.c.h.b16 %v604
    %v3265 = vunpack.c.l.b16 %v605
    %v3266 = vunpack.c.h.b16 %v605
    %v3267 = vunpack.c.l.b16 %v606
    %v3268 = vunpack.c.h.b16 %v606
    %v3269 = vunpack.c.l.b16 %v607
    %v3270 = vunpack.c.h.b16 %v607
    %v3271 = vunpack.c.l.b16 %v608
    %v3272 = vunpack.c.h.b16 %v608
    %v3273 = vunpack.c.l.b16 %v609
    %v3274 = vunpack.c.h.b16 %v609
    %v3275 = vunpack.c.l.b16 %v610
    %v3276 = vunpack.c.h.b16 %v610
    %v3277 = vunpack.c.l.b16 %v611
    %v3278 = vunpack.c.h.b16 %v611
    %v3279 = vunpack.c.l.b16 %v612
    %v3280 = vunpack.c.h.b16 %v612
    %v3281 = vunpack.c.l.b16 %v613
    %v3282 = vunpack.c.h.b16 %v613
    %v3283 = vunpack.c.l.b16 %v614
    %v3284 = vunpack.c.h.b16 %v614
    %v3285 = vunpack.c.l.b16 %v615
    %v3286 = vunpack.c.h.b16 %v615
    %v3287 = vunpack.c.l.b16 %v616
    %v3288 = vunpack.c.h.b16 %v616
    %v3289 = vunpack.c.l.b16 %v617
    %v3290 = vunpack.c.h.b16 %v617
    %v3291 = vunpack.c.l.b16 %v618
    %v3292 = vunpack.c.h.b16 %v618
    %v3293 = vunpack.c.l.b16 %v619
    %v3294 = vunpack.c.h.b16 %v619
    %v3295 = vunpack.c.l.b16 %v620
    %v3296 = vunpack.c.h.b16 %v620
    %v3297 = vunpack.c.l.b16 %v621
    %v3298 = vunpack.c.h.b16 %v621
    %v3299 = vunpack.c.l.b16 %v622
    %v3300 = vunpack.c.h.b16 %v622
    %v3301 = vunpack.c.l.b16 %v623
    %v3302 = vunpack.c.h.b16 %v623
    %v3303 = vunpack.c.l.b16 %v624
    %v3304 = vunpack.c.h.b16 %v624
    %v3305 = vunpack.c.l.b16 %v625
    %v3306 = vunpack.c.h.b16 %v625
    %v3307 = vunpack.c.l.b16 %v626
    %v3308 = vunpack.c.h.b16 %v626
    %v3309 = vunpack.c.l.b16 %v627
    %v3310 = vunpack.c.h.b16 %v627
    %v3311 = vunpack.c.l.b16 %v628
    %v3312 = vunpack.c.h.b16 %v628
    %v3313 = vunpack.c.l.b16 %v629
    %v3314 = vunpack.c.h.b16 %v629
    %v3315 = vunpack.c.l.b16 %v630
    %v3316 = vunpack.c.h.b16 %v630
    %v3317 = vunpack.c.l.b16 %v631
    %v3318 = vunpack.c.h.b16 %v631
    %v3319 = vunpack.c.l.b16 %v632
    %v3320 = vunpack.c.h.b16 %v632
    %v3321 = vunpack.c.l.b16 %v633
    %v3322 = vunpack.c.h.b16 %v633
    %v3323 = vunpack.c.l.b16 %v634
    %v3324 = vunpack.c.h.b16 %v634
    %v3325 = vunpack.c.l.b16 %v635
    %v3326 = vunpack.c.h.b16 %v635
    %v3327 = vunpack.c.l.b16 %v636
    %v3328 = vunpack.c.h.b16 %v636
    %v3329 = vunpack.c.l.b16 %v637
    %v3330 = vunpack.c.h.b16 %v637
    %v3331 = vunpack.c.l.b16 %v638
    %v3332 = vunpack.c.h.b16 %v638
    %v3333 = vunpack.c.l.b16 %v639
    %v3334 = vunpack.c.h.b16 %v639
    %v3335 = vunpack.c.l.b16 %v640
    %v3336 = vunpack.c.h.b16 %v640
    %v3337 = vunpack.c.l.b16 %v641
    %v3338 = vunpack.c.h.b16 %v641
    %v3339 = vunpack.c.l.b16 %v642
    %v3340 = vunpack.c.h.b16 %v642
    %v3341 = vunpack.c.l.b16 %v643
    %v3342 = vunpack.c.h.b16 %v643
    %v3343 = vunpack.c.l.b16 %v644
    %v3344 = vunpack.c.h.b16 %v644
    %v3345 = vunpack.c.l.b16 %v645
    %v3346 = vunpack.c.h.b16 %v645
    %v3347 = vunpack.c.l.b16 %v646
    %v3348 = vunpack.c.h.b16 %v646
    %v3349 = vunpack.c.l.b16 %v647
    %v3350 = vunpack.c.h.b16 %v647
    %v3351 = vunpack.c.l.b16 %v648
    %v3352 = vunpack.c.h.b16 %v648
    %v3353 = vunpack.c.l.b16 %v649
    %v3354 = vunpack.c.h.b16 %v649
    %v3355 = vunpack.c.l.b16 %v650
    %v3356 = vunpack.c.h.b16 %v650
    %v3357 = vunpack.c.l.b16 %v651
    %v3358 = vunpack.c.h.b16 %v651
    %v3359 = vunpack.c.l.b16 %v652
    %v3360 = vunpack.c.h.b16 %v652
    %v3361 = vunpack.c.l.b16 %v653
    %v3362 = vunpack.c.h.b16 %v653
    %v3363 = vunpack.c.l.b16 %v654
    %v3364 = vunpack.c.h.b16 %v654
    %v3365 = vunpack.c.l.b16 %v655
    %v3366 = vunpack.c.h.b16 %v655
    %v3367 = vunpack.c.l.b16 %v656
    %v3368 = vunpack.c.h.b16 %v656
    %v3369 = vunpack.c.l.b16 %v657
    %v3370 = vunpack.c.h.b16 %v657
    %v3371 = vunpack.c.l.b16 %v658
    %v3372 = vunpack.c.h.b16 %v658
    %v3373 = vunpack.c.l.b16 %v659
    %v3374 = vunpack.c.h.b16 %v659
    %v3375 = vunpack.c.l.b16 %v660
    %v3376 = vunpack.c.h.b16 %v660
    %v3377 = vunpack.c.l.b16 %v661
    %v3378 = vunpack.c.h.b16 %v661
    %v3379 = vunpack.c.l.b16 %v662
    %v3380 = vunpack.c.h.b16 %v662
    %v3381 = vunpack.c.l.b16 %v663
    %v3382 = vunpack.c.h.b16 %v663
    %v3383 = vunpack.c.l.b16 %v664
    %v3384 = vunpack.c.h.b16 %v664
    %v3385 = vunpack.c.l.b16 %v665
    %v3386 = vunpack.c.h.b16 %v665
    %v3387 = vunpack.c.l.b16 %v666
    %v3388 = vunpack.c.h.b16 %v666
    %v3389 = vunpack.c.l.b16 %v667
    %v3390 = vunpack.c.h.b16 %v667
    %v3391 = vunpack.c.l.b16 %v668
    %v3392 = vunpack.c.h.b16 %v668
    %v3393 = vunpack.c.l.b16 %v669
    %v3394 = vunpack.c.h.b16 %v669
    %v3395 = vunpack.c.l.b16 %v670
    %v3396 = vunpack.c.h.b16 %v670
    %v3397 = vunpack.c.l.b16 %v671
    %v3398 = vunpack.c.h.b16 %v671
    %v3399 = vunpack.c.l.b16 %v672
    %v3400 = vunpack.c.h.b16 %v672
    %v3401 = vunpack.c.l.b16 %v673
    %v3402 = vunpack.c.h.b16 %v673
    %v3403 = vunpack.c.l.b16 %v674
    %v3404 = vunpack.c.h.b16 %v674
    %v3405 = vunpack.c.l.b16 %v675
    %v3406 = vunpack.c.h.b16 %v675
    %v3407 = vunpack.c.l.b16 %v676
    %v3408 = vunpack.c.h.b16 %v676
    %v3409 = vunpack.c.l.b16 %v677
    %v3410 = vunpack.c.h.b16 %v677
    %v3411 = vunpack.c.l.b16 %v678
    %v3412 = vunpack.c.h.b16 %v678
    %v3413 = vunpack.c.l.b16 %v679
    %v3414 = vunpack.c.h.b16 %v679
    %v3415 = vunpack.c.l.b16 %v680
    %v3416 = vunpack.c.h.b16 %v680
    %v3417 = vunpack.c.l.b16 %v681
    %v3418 = vunpack.c.h.b16 %v681
    %v3419 = vunpack.c.l.b16 %v682
    %v3420 = vunpack.c.h.b16 %v682
    %v3421 = vunpack.c.l.b16 %v683
    %v3422 = vunpack.c.h.b16 %v683
    %v3423 = vunpack.c.l.b16 %v684
    %v3424 = vunpack.c.h.b16 %v684
    %v3425 = vunpack.c.l.b16 %v685
    %v3426 = vunpack.c.h.b16 %v685
    %v3427 = vunpack.c.l.b16 %v686
    %v3428 = vunpack.c.h.b16 %v686
    %v3429 = vunpack.c.l.b16 %v687
    %v3430 = vunpack.c.h.b16 %v687
    %v3431 = vunpack.c.l.b16 %v688
    %v3432 = vunpack.c.h.b16 %v688
    %v3433 = vunpack.c.l.b16 %v689
    %v3434 = vunpack.c.h.b16 %v689
    %v3435 = vunpack.c.l.b16 %v690
    %v3436 = vunpack.c.h.b16 %v690
    %v3437 = vunpack.c.l.b16 %v691
    %v3438 = vunpack.c.h.b16 %v691
    %v3439 = vunpack.c.l.b16 %v692
    %v3440 = vunpack.c.h.b16 %v692
    %v3441 = vunpack.c.l.b16 %v693
    %v3442 = vunpack.c.h.b16 %v693
    %v3443 = vunpack.c.l.b16 %v694
    %v3444 = vunpack.c.h.b16 %v694
    %v3445 = vunpack.c.l.b16 %v695
    %v3446 = vunpack.c.h.b16 %v695
    %v3447 = vunpack.c.l.b16 %v696
    %v3448 = vunpack.c.h.b16 %v696
    %v3449 = vunpack.c.l.b16 %v697
    %v3450 = vunpack.c.h.b16 %v697
    %v3451 = vunpack.c.l.b16 %v698
    %v3452 = vunpack.c.h.b16 %v698
    %v3453 = vunpack.c.l.b16 %v699
    %v3454 = vunpack.c.h.b16 %v699
    %v3455 = vunpack.c.l.b16 %v700
    %v3456 = vunpack.c.h.b16 %v700
    %v3457 = vunpack.c.l.b16 %v701
    %v3458 = vunpack.c.h.b16 %v701
    %v3459 = vunpack.c.l.b16 %v702
    %v3460 = vunpack.c.h.b16 %v702
    %v3461 = vunpack.c.l.b16 %v703
    %v3462 = vunpack.c.h.b16 %v703
    %v3463 = vunpack.c.l.b16 %v704
    %v3464 = vunpack.c.h.b16 %v704
    %v3465 = vunpack.c.l.b16 %v705
    %v3466 = vunpack.c.h.b16 %v705
    %v3467 = vunpack.c.l.b16 %v706
    %v3468 = vunpack.c.h.b16 %v706
    %v3469 = vunpack.c.l.b16 %v707
    %v3470 = vunpack.c.h.b16 %v707
    %v3471 = vunpack.c.l.b16 %v708
    %v3472 = vunpack.c.h.b16 %v708
    %v3473 = vunpack.c.l.b16 %v709
    %v3474 = vunpack.c.h.b16 %v709
    %v3475 = vunpack.c.l.b16 %v710
    %v3476 = vunpack.c.h.b16 %v710
    %v3477 = vunpack.c.l.b16 %v711
    %v3478 = vunpack.c.h.b16 %v711
    %v3479 = vunpack.c.l.b16 %v712
    %v3480 = vunpack.c.h.b16 %v712
    %v3481 = vunpack.c.l.b16 %v713
    %v3482 = vunpack.c.h.b16 %v713
    %v3483 = vunpack.c.l.b16 %v714
    %v3484 = vunpack.c.h.b16 %v714
    %v3485 = vunpack.c.l.b16 %v715
    %v3486 = vunpack.c.h.b16 %v715
    %v3487 = vunpack.c.l.b16 %v716
    %v3488 = vunpack.c.h.b16 %v716
    %v3489 = vunpack.c.l.b16 %v717
    %v3490 = vunpack.c.h.b16 %v717
    %v3491 = vunpack.c.l.b16 %v718
    %v3492 = vunpack.c.h.b16 %v718
    %v3493 = vunpack.c.l.b16 %v719
    %v3494 = vunpack.c.h.b16 %v719
    %v3495 = vunpack.c.l.b16 %v720
    %v3496 = vunpack.c.h.b16 %v720
    %v3497 = vunpack.c.l.b16 %v721
    %v3498 = vunpack.c.h.b16 %v721
    %v3499 = vunpack.c.l.b16 %v722
    %v3500 = vunpack.c.h.b16 %v722
    %v3501 = vunpack.c.l.b16 %v723
    %v3502 = vunpack.c.h.b16 %v723
    %v3503 = vunpack.c.l.b16 %v724
    %v3504 = vunpack.c.h.b16 %v724
    %v3505 = vunpack.c.l.b16 %v725
    %v3506 = vunpack.c.h.b16 %v725
    %v3507 = vunpack.c.l.b16 %v726
    %v3508 = vunpack.c.h.b16 %v726
    %v3509 = vunpack.c.l.b16 %v727
    %v3510 = vunpack.c.h.b16 %v727
    %v3511 = vunpack.c.l.b16 %v728
    %v3512 = vunpack.c.h.b16 %v728
    %v3513 = vunpack.c.l.b16 %v729
    %v3514 = vunpack.c.h.b16 %v729
    %v3515 = vunpack.c.l.b16 %v730
    %v3516 = vunpack.c.h.b16 %v730
    %v3517 = vunpack.c.l.b16 %v731
    %v3518 = vunpack.c.h.b16 %v731
    %v3519 = vunpack.c.l.b16 %v732
    %v3520 = vunpack.c.h.b16 %v732
    %v3521 = vunpack.c.l.b16 %v733
    %v3522 = vunpack.c.h.b16 %v733
    %v3523 = vunpack.c.l.b16 %v734
    %v3524 = vunpack.c.h.b16 %v734
    %v3525 = vunpack.c.l.b16 %v735
    %v3526 = vunpack.c.h.b16 %v735
    %v3527 = vunpack.c.l.b16 %v736
    %v3528 = vunpack.c.h.b16 %v736
    %v3529 = vunpack.c.l.b16 %v737
    %v3530 = vunpack.c.h.b16 %v737
    %v3531 = vunpack.c.l.b16 %v738
    %v3532 = vunpack.c.h.b16 %v738
    %v3533 = vunpack.c.l.b16 %v739
    %v3534 = vunpack.c.h.b16 %v739
    %v3535 = vunpack.c.l.b16 %v740
    %v3536 = vunpack.c.h.b16 %v740
    %v3537 = vunpack.c.l.b16 %v741
    %v3538 = vunpack.c.h.b16 %v741
    %v3539 = vunpack.c.l.b16 %v742
    %v3540 = vunpack.c.h.b16 %v742
    %v3541 = vunpack.c.l.b16 %v743
    %v3542 = vunpack.c.h.b16 %v743
    %v3543 = vunpack.c.l.b16 %v744
    %v3544 = vunpack.c.h.b16 %v744
    %v3545 = vunpack.c.l.b16 %v745
    %v3546 = vunpack.c.h.b16 %v745
    %v3547 = vunpack.c.l.b16 %v746
    %v3548 = vunpack.c.h.b16 %v746
    %v3549 = vunpack.c.l.b16 %v747
    %v3550 = vunpack.c.h.b16 %v747
    %v3551 = vunpack.c.l.b16 %v748
    %v3552 = vunpack.c.h.b16 %v748
    %v3553 = vunpack.c.l.b16 %v749
    %v3554 = vunpack.c.h.b16 %v749
    %v3555 = vunpack.c.l.b16 %v750
    %v3556 = vunpack.c.h.b16 %v750
    %v3557 = vunpack.c.l.b16 %v751
    %v3558 = vunpack.c.h.b16 %v751
    %v3559 = vunpack.c.l.b16 %v752
    %v3560 = vunpack.c.h.b16 %v752
    %v3561 = vunpack.c.l.b16 %v753
    %v3562 = vunpack.c.h.b16 %v753
    %v3563 = vunpack.c.l.b16 %v754
    %v3564 = vunpack.c.h.b16 %v754
    %v3565 = vunpack.c.l.b16 %v755
    %v3566 = vunpack.c.h.b16 %v755
    %v3567 = vunpack.c.l.b16 %v756
    %v3568 = vunpack.c.h.b16 %v756
    %v3569 = vunpack.c.l.b16 %v757
    %v3570 = vunpack.c.h.b16 %v757
    %v3571 = vunpack.c.l.b16 %v758
    %v3572 = vunpack.c.h.b16 %v758
    %v3573 = vunpack.c.l.b16 %v759
    %v3574 = vunpack.c.h.b16 %v759
    %v3575 = vunpack.c.l.b16 %v760
    %v3576 = vunpack.c.h.b16 %v760
    %v3577 = vunpack.c.l.b16 %v761
    %v3578 = vunpack.c.h.b16 %v761
    %v3579 = vunpack.c.l.b16 %v762
    %v3580 = vunpack.c.h.b16 %v762
    %v3581 = vunpack.c.l.b16 %v763
    %v3582 = vunpack.c.h.b16 %v763
    %v3583 = vunpack.c.l.b16 %v764
    %v3584 = vunpack.c.h.b16 %v764
    %v3585 = vunpack.c.l.b16 %v765
    %v3586 = vunpack.c.h.b16 %v765
    %v3587 = vunpack.c.l.b16 %v766
    %v3588 = vunpack.c.h.b16 %v766
    %v3589 = vunpack.c.l.b16 %v767
    %v3590 = vunpack.c.h.b16 %v767
    %v3591 = vunpack.c.l.b16 %v768
    %v3592 = vunpack.c.h.b16 %v768
    %v3593 = vunpack.c.l.b16 %v769
    %v3594 = vunpack.c.h.b16 %v769
    %v3595 = vunpack.c.l.b16 %v770
    %v3596 = vunpack.c.h.b16 %v770
    %v3597 = vunpack.c.l.b16 %v771
    %v3598 = vunpack.c.h.b16 %v771
    %v3599 = vunpack.c.l.b16 %v772
    %v3600 = vunpack.c.h.b16 %v772
    %v3601 = vunpack.c.l.b16 %v773
    %v3602 = vunpack.c.h.b16 %v773
    %v3603 = vunpack.c.l.b16 %v774
    %v3604 = vunpack.c.h.b16 %v774
    %v3605 = vunpack.c.l.b16 %v775
    %v3606 = vunpack.c.h.b16 %v775
    %v3607 = vunpack.c.l.b16 %v776
    %v3608 = vunpack.c.h.b16 %v776
    %v3609 = vunpack.c.l.b16 %v777
    %v3610 = vunpack.c.h.b16 %v777
    %v3611 = vunpack.c.l.b16 %v778
    %v3612 = vunpack.c.h.b16 %v778
    %v3613 = vunpack.c.l.b16 %v779
    %v3614 = vunpack.c.h.b16 %v779
    %v3615 = vunpack.c.l.b16 %v780
    %v3616 = vunpack.c.h.b16 %v780
    %v3617 = vunpack.c.l.b16 %v781
    %v3618 = vunpack.c.h.b16 %v781
    %v3619 = vunpack.c.l.b16 %v782
    %v3620 = vunpack.c.h.b16 %v782
    %v3621 = vunpack.c.l.b16 %v783
    %v3622 = vunpack.c.h.b16 %v783
    %v3623 = vunpack.c.l.b16 %v784
    %v3624 = vunpack.c.h.b16 %v784
    %v3625 = vunpack.c.l.b16 %v785
    %v3626 = vunpack.c.h.b16 %v785
    %v3627 = vunpack.c.l.b16 %v786
    %v3628 = vunpack.c.h.b16 %v786
    %v3629 = vunpack.c.l.b16 %v787
    %v3630 = vunpack.c.h.b16 %v787
    %v3631 = vunpack.c.l.b16 %v788
    %v3632 = vunpack.c.h.b16 %v788
    %v3633 = vunpack.c.l.b16 %v789
    %v3634 = vunpack.c.h.b16 %v789
    %v3635 = vunpack.c.l.b16 %v790
    %v3636 = vunpack.c.h.b16 %v790
    %v3637 = vunpack.c.l.b16 %v791
    %v3638 = vunpack.c.h.b16 %v791
    %v3639 = vunpack.c.l.b16 %v792
    %v3640 = vunpack.c.h.b16 %v792
    %v3641 = vunpack.c.l.b16 %v793
    %v3642 = vunpack.c.h.b16 %v793
    %v3643 = vunpack.c.l.b16 %v794
    %v3644 = vunpack.c.h.b16 %v794
    %v3645 = vunpack.c.l.b16 %v795
    %v3646 = vunpack.c.h.b16 %v795
    %v3647 = vunpack.c.l.b16 %v796
    %v3648 = vunpack.c.h.b16 %v796
    %v3649 = vunpack.c.l.b16 %v797
    %v3650 = vunpack.c.h.b16 %v797
    %v3651 = vunpack.c.l.b16 %v798
    %v3652 = vunpack.c.h.b16 %v798
    %v3653 = vunpack.c.l.b16 %v799
    %v3654 = vunpack.c.h.b16 %v799
    %v3655 = vunpack.c.l.b16 %v800
    %v3656 = vunpack.c.h.b16 %v800
    %v3657 = vunpack.c.l.b16 %v801
    %v3658 = vunpack.c.h.b16 %v801
    %v3659 = vunpack.c.l.b16 %v802
    %v3660 = vunpack.c.h.b16 %v802
    %v3661 = vunpack.c.l.b16 %v803
    %v3662 = vunpack.c.h.b16 %v803
    %v3663 = vunpack.c.l.b16 %v804
    %v3664 = vunpack.c.h.b16 %v804
    %v3665 = vunpack.c.l.b16 %v805
    %v3666 = vunpack.c.h.b16 %v805
    %v3667 = vunpack.c.l.b16 %v806
    %v3668 = vunpack.c.h.b16 %v806
    %v3669 = vunpack.c.l.b16 %v807
    %v3670 = vunpack.c.h.b16 %v807
    %v3671 = vunpack.c.l.b16 %v808
    %v3672 = vunpack.c.h.b16 %v808
    %v3673 = vunpack.c.l.b16 %v809
    %v3674 = vunpack.c.h.b16 %v809
    %v3675 = vunpack.c.l.b16 %v810
    %v3676 = vunpack.c.h.b16 %v810
    %v3677 = vunpack.c.l.b16 %v811
    %v3678 = vunpack.c.h.b16 %v811
    %v3679 = vunpack.c.l.b16 %v812
    %v3680 = vunpack.c.h.b16 %v812
    %v3681 = vunpack.c.l.b16 %v813
    %v3682 = vunpack.c.h.b16 %v813
    %v3683 = vunpack.c.l.b16 %v814
    %v3684 = vunpack.c.h.b16 %v814
    %v3685 = vunpack.c.l.b16 %v815
    %v3686 = vunpack.c.h.b16 %v815
    %v3687 = vunpack.c.l.b16 %v816
    %v3688 = vunpack.c.h.b16 %v816
    %v3689 = vunpack.c.l.b16 %v817
    %v3690 = vunpack.c.h.b16 %v817
    %v3691 = vunpack.c.l.b16 %v818
    %v3692 = vunpack.c.h.b16 %v818
    %v3693 = vunpack.c.l.b16 %v819
    %v3694 = vunpack.c.h.b16 %v819
    %v3695 = vunpack.c.l.b16 %v820
    %v3696 = vunpack.c.h.b16 %v820
    %v3697 = vunpack.c.l.b16 %v821
    %v3698 = vunpack.c.h.b16 %v821
    %v3699 = vunpack.c.l.b16 %v822
    %v3700 = vunpack.c.h.b16 %v822
    %v3701 = vunpack.c.l.b16 %v823
    %v3702 = vunpack.c.h.b16 %v823
    %v3703 = vunpack.c.l.b16 %v824
    %v3704 = vunpack.c.h.b16 %v824
    %v3705 = vunpack.c.l.b16 %v825
    %v3706 = vunpack.c.h.b16 %v825
    %v3707 = vunpack.c.l.b16 %v826
    %v3708 = vunpack.c.h.b16 %v826
    %v3709 = vunpack.c.l.b16 %v827
    %v3710 = vunpack.c.h.b16 %v827
    %v3711 = vunpack.c.l.b16 %v828
    %v3712 = vunpack.c.h.b16 %v828
    %v3713 = vunpack.c.l.b16 %v829
    %v3714 = vunpack.c.h.b16 %v829
    %v3715 = vunpack.c.l.b16 %v830
    %v3716 = vunpack.c.h.b16 %v830
    %v3717 = vunpack.c.l.b16 %v831
    %v3718 = vunpack.c.h.b16 %v831
    %v3719 = vpack.c.b16 %v2155, %v2151
    %v3720 = vpack.c.b16 %v2156, %v2152
    %v3721 = vpack.c.b16 %v2157, %v2153
    %v3722 = vpack.c.b16 %v2158, %v2154
    %v3723 = vpack.c.b16 %v2163, %v2159
    %v3724 = vpack.c.b16 %v2164, %v2160
    %v3725 = vpack.c.b16 %v2165, %v2161
    %v3726 = vpack.c.b16 %v2166, %v2162
    %v3727 = vpack.c.b16 %v2171, %v2167
    %v3728 = vpack.c.b16 %v2172, %v2168
    %v3729 = vpack.c.b16 %v2173, %v2169
    %v3730 = vpack.c.b16 %v2174, %v2170
    %v3731 = vpack.c.b16 %v2179, %v2175
    %v3732 = vpack.c.b16 %v2180, %v2176
    %v3733 = vpack.c.b16 %v2181, %v2177
    %v3734 = vpack.c.b16 %v2182, %v2178
    %v3735 = vpack.c.b16 %v2187, %v2183
    %v3736 = vpack.c.b16 %v2188, %v2184
    %v3737 = vpack.c.b16 %v2189, %v2185
    %v3738 = vpack.c.b16 %v2190, %v2186
    %v3739 = vpack.c.b16 %v2195, %v2191
    %v3740 = vpack.c.b16 %v2196, %v2192
    %v3741 = vpack.c.b16 %v2197, %v2193
    %v3742 = vpack.c.b16 %v2198, %v2194
    %v3743 = vpack.c.b16 %v2203, %v2199
    %v3744 = vpack.c.b16 %v2204, %v2200
    %v3745 = vpack.c.b16 %v2205, %v2201
    %v3746 = vpack.c.b16 %v2206, %v2202
    %v3747 = vpack.c.b16 %v2211, %v2207
    %v3748 = vpack.c.b16 %v2212, %v2208
    %v3749 = vpack.c.b16 %v2213, %v2209
    %v3750 = vpack.c.b16 %v2214, %v2210
    %v3751 = vpack.c.b16 %v2219, %v2215
    %v3752 = vpack.c.b16 %v2220, %v2216
    %v3753 = vpack.c.b16 %v2221, %v2217
    %v3754 = vpack.c.b16 %v2222, %v2218
    %v3755 = vpack.c.b16 %v2227, %v2223
    %v3756 = vpack.c.b16 %v2228, %v2224
    %v3757 = vpack.c.b16 %v2229, %v2225
    %v3758 = vpack.c.b16 %v2230, %v2226
    %v3759 = vpack.c.b16 %v2235, %v2231
    %v3760 = vpack.c.b16 %v2236, %v2232
    %v3761 = vpack.c.b16 %v2237, %v2233
    %v3762 = vpack.c.b16 %v2238, %v2234
    %v3763 = vpack.c.b16 %v2243, %v2239
    %v3764 = vpack.c.b16 %v2244, %v2240
    %v3765 = vpack.c.b16 %v2245, %v2241
    %v3766 = vpack.c.b16 %v2246, %v2242
    %v3767 = vpack.c.b16 %v2251, %v2247
    %v3768 = vpack.c.b16 %v2252, %v2248
    %v3769 = vpack.c.b16 %v2253, %v2249
    %v3770 = vpack.c.b16 %v2254, %v2250
    %v3771 = vpack.c.b16 %v2259, %v2255
    %v3772 = vpack.c.b16 %v2260, %v2256
    %v3773 = vpack.c.b16 %v2261, %v2257
    %v3774 = vpack.c.b16 %v2262, %v2258
    %v3775 = vpack.c.b16 %v2267, %v2263
    %v3776 = vpack.c.b16 %v2268, %v2264
    %v3777 = vpack.c.b16 %v2269, %v2265
    %v3778 = vpack.c.b16 %v2270, %v2266
    %v3779 = vpack.c.b16 %v2275, %v2271
    %v3780 = vpack.c.b16 %v2276, %v2272
    %v3781 = vpack.c.b16 %v2277, %v2273
    %v3782 = vpack.c.b16 %v2278, %v2274
    %v3783 = vpack.c.b16 %v2283, %v2279
    %v3784 = vpack.c.b16 %v2284, %v2280
    %v3785 = vpack.c.b16 %v2285, %v2281
    %v3786 = vpack.c.b16 %v2286, %v2282
    %v3787 = vpack.c.b16 %v2291, %v2287
    %v3788 = vpack.c.b16 %v2292, %v2288
    %v3789 = vpack.c.b16 %v2293, %v2289
    %v3790 = vpack.c.b16 %v2294, %v2290
    %v3791 = vpack.c.b16 %v2299, %v2295
    %v3792 = vpack.c.b16 %v2300, %v2296
    %v3793 = vpack.c.b16 %v2301, %v2297
    %v3794 = vpack.c.b16 %v2302, %v2298
    %v3795 = vpack.c.b16 %v2307, %v2303
    %v3796 = vpack.c.b16 %v2308, %v2304
    %v3797 = vpack.c.b16 %v2309, %v2305
    %v3798 = vpack.c.b16 %v2310, %v2306
    %v3799 = vpack.c.b16 %v2315, %v2311
    %v3800 = vpack.c.b16 %v2316, %v2312
    %v3801 = vpack.c.b16 %v2317, %v2313
    %v3802 = vpack.c.b16 %v2318, %v2314
    %v3803 = vpack.c.b16 %v2323, %v2319
    %v3804 = vpack.c.b16 %v2324, %v2320
    %v3805 = vpack.c.b16 %v2325, %v2321
    %v3806 = vpack.c.b16 %v2326, %v2322
    %v3807 = vpack.c.b16 %v2331, %v2327
    %v3808 = vpack.c.b16 %v2332, %v2328
    %v3809 = vpack.c.b16 %v2333, %v2329
    %v3810 = vpack.c.b16 %v2334, %v2330
    %v3811 = vpack.c.b16 %v2339, %v2335
    %v3812 = vpack.c.b16 %v2340, %v2336
    %v3813 = vpack.c.b16 %v2341, %v2337
    %v3814 = vpack.c.b16 %v2342, %v2338
    %v3815 = vpack.c.b16 %v2347, %v2343
    %v3816 = vpack.c.b16 %v2348, %v2344
    %v3817 = vpack.c.b16 %v2349, %v2345
    %v3818 = vpack.c.b16 %v2350, %v2346
    %v3819 = vpack.c.b16 %v2355, %v2351
    %v3820 = vpack.c.b16 %v2356, %v2352
    %v3821 = vpack.c.b16 %v2357, %v2353
    %v3822 = vpack.c.b16 %v2358, %v2354
    %v3823 = vpack.c.b16 %v2363, %v2359
    %v3824 = vpack.c.b16 %v2364, %v2360
    %v3825 = vpack.c.b16 %v2365, %v2361
    %v3826 = vpack.c.b16 %v2366, %v2362
    %v3827 = vpack.c.b16 %v2371, %v2367
    %v3828 = vpack.c.b16 %v2372, %v2368
    %v3829 = vpack.c.b16 %v2373, %v2369
    %v3830 = vpack.c.b16 %v2374, %v2370
    %v3831 = vpack.c.b16 %v2379, %v2375
    %v3832 = vpack.c.b16 %v2380, %v2376
    %v3833 = vpack.c.b16 %v2381, %v2377
    %v3834 = vpack.c.b16 %v2382, %v2378
    %v3835 = vpack.c.b16 %v2387, %v2383
    %v3836 = vpack.c.b16 %v2388, %v2384
    %v3837 = vpack.c.b16 %v2389, %v2385
    %v3838 = vpack.c.b16 %v2390, %v2386
    %v3839 = vpack.c.b16 %v2395, %v2391
    %v3840 = vpack.c.b16 %v2396, %v2392
    %v3841 = vpack.c.b16 %v2397, %v2393
    %v3842 = vpack.c.b16 %v2398, %v2394
    %v3843 = vpack.c.b16 %v2403, %v2399
    %v3844 = vpack.c.b16 %v2404, %v2400
    %v3845 = vpack.c.b16 %v2405, %v2401
    %v3846 = vpack.c.b16 %v2406, %v2402
    %v3847 = vpack.c.b16 %v2411, %v2407
    %v3848 = vpack.c.b16 %v2412, %v2408
    %v3849 = vpack.c.b16 %v2413, %v2409
    %v3850 = vpack.c.b16 %v2414, %v2410
    %v3851 = vpack.c.b16 %v2419, %v2415
    %v3852 = vpack.c.b16 %v2420, %v2416
    %v3853 = vpack.c.b16 %v2421, %v2417
    %v3854 = vpack.c.b16 %v2422, %v2418
    %v3855 = vpack.c.b16 %v2427, %v2423
    %v3856 = vpack.c.b16 %v2428, %v2424
    %v3857 = vpack.c.b16 %v2429, %v2425
    %v3858 = vpack.c.b16 %v2430, %v2426
    %v3859 = vpack.c.b16 %v2435, %v2431
    %v3860 = vpack.c.b16 %v2436, %v2432
    %v3861 = vpack.c.b16 %v2437, %v2433
    %v3862 = vpack.c.b16 %v2438, %v2434
    %v3863 = vpack.c.b16 %v2443, %v2439
    %v3864 = vpack.c.b16 %v2444, %v2440
    %v3865 = vpack.c.b16 %v2445, %v2441
    %v3866 = vpack.c.b16 %v2446, %v2442
    %v3867 = vpack.c.b16 %v2451, %v2447
    %v3868 = vpack.c.b16 %v2452, %v2448
    %v3869 = vpack.c.b16 %v2453, %v2449
    %v3870 = vpack.c.b16 %v2454, %v2450
    %v3871 = vpack.c.b16 %v2459, %v2455
    %v3872 = vpack.c.b16 %v2460, %v2456
    %v3873 = vpack.c.b16 %v2461, %v2457
    %v3874 = vpack.c.b16 %v2462, %v2458
    %v3875 = vpack.c.b16 %v2467, %v2463
    %v3876 = vpack.c.b16 %v2468, %v2464
    %v3877 = vpack.c.b16 %v2469, %v2465
    %v3878 = vpack.c.b16 %v2470, %v2466
    %v3879 = vpack.c.b16 %v2475, %v2471
    %v3880 = vpack.c.b16 %v2476, %v2472
    %v3881 = vpack.c.b16 %v2477, %v2473
    %v3882 = vpack.c.b16 %v2478, %v2474
    %v3883 = vpack.c.b16 %v2483, %v2479
    %v3884 = vpack.c.b16 %v2484, %v2480
    %v3885 = vpack.c.b16 %v2485, %v2481
    %v3886 = vpack.c.b16 %v2486, %v2482
    %v3887 = vpack.c.b16 %v2491, %v2487
    %v3888 = vpack.c.b16 %v2492, %v2488
    %v3889 = vpack.c.b16 %v2493, %v2489
    %v3890 = vpack.c.b16 %v2494, %v2490
    %v3891 = vpack.c.b16 %v2499, %v2495
    %v3892 = vpack.c.b16 %v2500, %v2496
    %v3893 = vpack.c.b16 %v2501, %v2497
    %v3894 = vpack.c.b16 %v2502, %v2498
    %v3895 = vpack.c.b16 %v2507, %v2503
    %v3896 = vpack.c.b16 %v2508, %v2504
    %v3897 = vpack.c.b16 %v2509, %v2505
    %v3898 = vpack.c.b16 %v2510, %v2506
    %v3899 = vpack.c.b16 %v2515, %v2511
    %v3900 = vpack.c.b16 %v2516, %v2512
    %v3901 = vpack.c.b16 %v2517, %v2513
    %v3902 = vpack.c.b16 %v2518, %v2514
    %v3903 = vpack.c.b16 %v2523, %v2519
    %v3904 = vpack.c.b16 %v2524, %v2520
    %v3905 = vpack.c.b16 %v2525, %v2521
    %v3906 = vpack.c.b16 %v2526, %v2522
    %v3907 = vpack.c.b16 %v2531, %v2527
    %v3908 = vpack.c.b16 %v2532, %v2528
    %v3909 = vpack.c.b16 %v2533, %v2529
    %v3910 = vpack.c.b16 %v2534, %v2530
    %v3911 = vpack.c.b16 %v2539, %v2535
    %v3912 = vpack.c.b16 %v2540, %v2536
    %v3913 = vpack.c.b16 %v2541, %v2537
    %v3914 = vpack.c.b16 %v2542, %v2538
    %v3915 = vpack.c.b16 %v2547, %v2543
    %v3916 = vpack.c.b16 %v2548, %v2544
    %v3917 = vpack.c.b16 %v2549, %v2545
    %v3918 = vpack.c.b16 %v2550, %v2546
    %v3919 = vpack.c.b16 %v2555, %v2551
    %v3920 = vpack.c.b16 %v2556, %v2552
    %v3921 = vpack.c.b16 %v2557, %v2553
    %v3922 = vpack.c.b16 %v2558, %v2554
    %v3923 = vpack.c.b16 %v2563, %v2559
    %v3924 = vpack.c.b16 %v2564, %v2560
    %v3925 = vpack.c.b16 %v2565, %v2561
    %v3926 = vpack.c.b16 %v2566, %v2562
    %v3927 = vpack.c.b16 %v2571, %v2567
    %v3928 = vpack.c.b16 %v2572, %v2568
    %v3929 = vpack.c.b16 %v2573, %v2569
    %v3930 = vpack.c.b16 %v2574, %v2570
    %v3931 = vpack.c.b16 %v2579, %v2575
    %v3932 = vpack.c.b16 %v2580, %v2576
    %v3933 = vpack.c.b16 %v2581, %v2577
    %v3934 = vpack.c.b16 %v2582, %v2578
    %v3935 = vpack.c.b16 %v2587, %v2583
    %v3936 = vpack.c.b16 %v2588, %v2584
    %v3937 = vpack.c.b16 %v2589, %v2585
    %v3938 = vpack.c.b16 %v2590, %v2586
    %v3939 = vpack.c.b16 %v2595, %v2591
    %v3940 = vpack.c.b16 %v2596, %v2592
    %v3941 = vpack.c.b16 %v2597, %v2593
    %v3942 = vpack.c.b16 %v2598, %v2594
    %v3943 = vpack.c.b16 %v2603, %v2599
    %v3944 = vpack.c.b16 %v2604, %v2600
    %v3945 = vpack.c.b16 %v2605, %v2601
    %v3946 = vpack.c.b16 %v2606, %v2602
    %v3947 = vpack.c.b16 %v2611, %v2607
    %v3948 = vpack.c.b16 %v2612, %v2608
    %v3949 = vpack.c.b16 %v2613, %v2609
    %v3950 = vpack.c.b16 %v2614, %v2610
    %v3951 = vpack.c.b16 %v2619, %v2615
    %v3952 = vpack.c.b16 %v2620, %v2616
    %v3953 = vpack.c.b16 %v2621, %v2617
    %v3954 = vpack.c.b16 %v2622, %v2618
    %v3955 = vpack.c.b16 %v2627, %v2623
    %v3956 = vpack.c.b16 %v2628, %v2624
    %v3957 = vpack.c.b16 %v2629, %v2625
    %v3958 = vpack.c.b16 %v2630, %v2626
    %v3959 = vpack.c.b16 %v2635, %v2631
    %v3960 = vpack.c.b16 %v2636, %v2632
    %v3961 = vpack.c.b16 %v2637, %v2633
    %v3962 = vpack.c.b16 %v2638, %v2634
    %v3963 = vpack.c.b16 %v2643, %v2639
    %v3964 = vpack.c.b16 %v2644, %v2640
    %v3965 = vpack.c.b16 %v2645, %v2641
    %v3966 = vpack.c.b16 %v2646, %v2642
    %v3967 = vpack.c.b16 %v2651, %v2647
    %v3968 = vpack.c.b16 %v2652, %v2648
    %v3969 = vpack.c.b16 %v2653, %v2649
    %v3970 = vpack.c.b16 %v2654, %v2650
    %v3971 = vpack.c.b16 %v2659, %v2655
    %v3972 = vpack.c.b16 %v2660, %v2656
    %v3973 = vpack.c.b16 %v2661, %v2657
    %v3974 = vpack.c.b16 %v2662, %v2658
    %v3975 = vpack.c.b16 %v2667, %v2663
    %v3976 = vpack.c.b16 %v2668, %v2664
    %v3977 = vpack.c.b16 %v2669, %v2665
    %v3978 = vpack.c.b16 %v2670, %v2666
    %v3979 = vpack.c.b16 %v2675, %v2671
    %v3980 = vpack.c.b16 %v2676, %v2672
    %v3981 = vpack.c.b16 %v2677, %v2673
    %v3982 = vpack.c.b16 %v2678, %v2674
    %v3983 = vpack.c.b16 %v2683, %v2679
    %v3984 = vpack.c.b16 %v2684, %v2680
    %v3985 = vpack.c.b16 %v2685, %v2681
    %v3986 = vpack.c.b16 %v2686, %v2682
    %v3987 = vpack.c.b16 %v2691, %v2687
    %v3988 = vpack.c.b16 %v2692, %v2688
    %v3989 = vpack.c.b16 %v2693, %v2689
    %v3990 = vpack.c.b16 %v2694, %v2690
    %v3991 = vpack.c.b16 %v2699, %v2695
    %v3992 = vpack.c.b16 %v2700, %v2696
    %v3993 = vpack.c.b16 %v2701, %v2697
    %v3994 = vpack.c.b16 %v2702, %v2698
    %v3995 = vpack.c.b16 %v2707, %v2703
    %v3996 = vpack.c.b16 %v2708, %v2704
    %v3997 = vpack.c.b16 %v2709, %v2705
    %v3998 = vpack.c.b16 %v2710, %v2706
    %v3999 = vpack.c.b16 %v2715, %v2711
    %v4000 = vpack.c.b16 %v2716, %v2712
    %v4001 = vpack.c.b16 %v2717, %v2713
    %v4002 = vpack.c.b16 %v2718, %v2714
    %v4003 = vpack.c.b16 %v2723, %v2719
    %v4004 = vpack.c.b16 %v2724, %v2720
    %v4005 = vpack.c.b16 %v2725, %v2721
    %v4006 = vpack.c.b16 %v2726, %v2722
    %v4007 = vpack.c.b16 %v2731, %v2727
    %v4008 = vpack.c.b16 %v2732, %v2728
    %v4009 = vpack.c.b16 %v2733, %v2729
    %v4010 = vpack.c.b16 %v2734, %v2730
    %v4011 = vpack.c.b16 %v2739, %v2735
    %v4012 = vpack.c.b16 %v2740, %v2736
    %v4013 = vpack.c.b16 %v2741, %v2737
    %v4014 = vpack.c.b16 %v2742, %v2738
    %v4015 = vpack.c.b16 %v2747, %v2743
    %v4016 = vpack.c.b16 %v2748, %v2744
    %v4017 = vpack.c.b16 %v2749, %v2745
    %v4018 = vpack.c.b16 %v2750, %v2746
    %v4019 = vpack.c.b16 %v2755, %v2751
    %v4020 = vpack.c.b16 %v2756, %v2752
    %v4021 = vpack.c.b16 %v2757, %v2753
    %v4022 = vpack.c.b16 %v2758, %v2754
    %v4023 = vpack.c.b16 %v2763, %v2759
    %v4024 = vpack.c.b16 %v2764, %v2760
    %v4025 = vpack.c.b16 %v2765, %v2761
    %v4026 = vpack.c.b16 %v2766, %v2762
    %v4027 = vpack.c.b16 %v2771, %v2767
    %v4028 = vpack.c.b16 %v2772, %v2768
    %v4029 = vpack.c.b16 %v2773, %v2769
    %v4030 = vpack.c.b16 %v2774, %v2770
    %v4031 = vpack.c.b16 %v2779, %v2775
    %v4032 = vpack.c.b16 %v2780, %v2776
    %v4033 = vpack.c.b16 %v2781, %v2777
    %v4034 = vpack.c.b16 %v2782, %v2778
    %v4035 = vpack.c.b16 %v2787, %v2783
    %v4036 = vpack.c.b16 %v2788, %v2784
    %v4037 = vpack.c.b16 %v2789, %v2785
    %v4038 = vpack.c.b16 %v2790, %v2786
    %v4039 = vpack.c.b16 %v2795, %v2791
    %v4040 = vpack.c.b16 %v2796, %v2792
    %v4041 = vpack.c.b16 %v2797, %v2793
    %v4042 = vpack.c.b16 %v2798, %v2794
    %v4043 = vpack.c.b16 %v2803, %v2799
    %v4044 = vpack.c.b16 %v2804, %v2800
    %v4045 = vpack.c.b16 %v2805, %v2801
    %v4046 = vpack.c.b16 %v2806, %v2802
    %v4047 = vpack.c.b16 %v2811, %v2807
    %v4048 = vpack.c.b16 %v2812, %v2808
    %v4049 = vpack.c.b16 %v2813, %v2809
    %v4050 = vpack.c.b16 %v2814, %v2810
    %v4051 = vpack.c.b16 %v2819, %v2815
    %v4052 = vpack.c.b16 %v2820, %v2816
    %v4053 = vpack.c.b16 %v2821, %v2817
    %v4054 = vpack.c.b16 %v2822, %v2818
    %v4055 = vpack.c.b16 %v2827, %v2823
    %v4056 = vpack.c.b16 %v2828, %v2824
    %v4057 = vpack.c.b16 %v2829, %v2825
    %v4058 = vpack.c.b16 %v2830, %v2826
    %v4059 = vpack.c.b16 %v2835, %v2831
    %v4060 = vpack.c.b16 %v2836, %v2832
    %v4061 = vpack.c.b16 %v2837, %v2833
    %v4062 = vpack.c.b16 %v2838, %v2834
    %v4063 = vpack.c.b16 %v2843, %v2839
    %v4064 = vpack.c.b16 %v2844, %v2840
    %v4065 = vpack.c.b16 %v2845, %v2841
    %v4066 = vpack.c.b16 %v2846, %v2842
    %v4067 = vpack.c.b16 %v2851, %v2847
    %v4068 = vpack.c.b16 %v2852, %v2848
    %v4069 = vpack.c.b16 %v2853, %v2849
    %v4070 = vpack.c.b16 %v2854, %v2850
    %v4071 = vpack.c.b16 %v2859, %v2855
    %v4072 = vpack.c.b16 %v2860, %v2856
    %v4073 = vpack.c.b16 %v2861, %v2857
    %v4074 = vpack.c.b16 %v2862, %v2858
    %v4075 = vpack.c.b16 %v2867, %v2863
    %v4076 = vpack.c.b16 %v2868, %v2864
    %v4077 = vpack.c.b16 %v2869, %v2865
    %v4078 = vpack.c.b16 %v2870, %v2866
    %v4079 = vpack.c.b16 %v2875, %v2871
    %v4080 = vpack.c.b16 %v2876, %v2872
    %v4081 = vpack.c.b16 %v2877, %v2873
    %v4082 = vpack.c.b16 %v2878, %v2874
    %v4083 = vpack.c.b16 %v2883, %v2879
    %v4084 = vpack.c.b16 %v2884, %v2880
    %v4085 = vpack.c.b16 %v2885, %v2881
    %v4086 = vpack.c.b16 %v2886, %v2882
    %v4087 = vpack.c.b16 %v2891, %v2887
    %v4088 = vpack.c.b16 %v2892, %v2888
    %v4089 = vpack.c.b16 %v2893, %v2889
    %v4090 = vpack.c.b16 %v2894, %v2890
    %v4091 = vpack.c.b16 %v2899, %v2895
    %v4092 = vpack.c.b16 %v2900, %v2896
    %v4093 = vpack.c.b16 %v2901, %v2897
    %v4094 = vpack.c.b16 %v2902, %v2898
    %v4095 = vpack.c.b16 %v2907, %v2903
    %v4096 = vpack.c.b16 %v2908, %v2904
    %v4097 = vpack.c.b16 %v2909, %v2905
    %v4098 = vpack.c.b16 %v2910, %v2906
    %v4099 = vpack.c.b16 %v2915, %v2911
    %v4100 = vpack.c.b16 %v2916, %v2912
    %v4101 = vpack.c.b16 %v2917, %v2913
    %v4102 = vpack.c.b16 %v2918, %v2914
    %v4103 = vpack.c.b16 %v2923, %v2919
    %v4104 = vpack.c.b16 %v2924, %v2920
    %v4105 = vpack.c.b16 %v2925, %v2921
    %v4106 = vpack.c.b16 %v2926, %v2922
    %v4107 = vpack.c.b16 %v2931, %v2927
    %v4108 = vpack.c.b16 %v2932, %v2928
    %v4109 = vpack.c.b16 %v2933, %v2929
    %v4110 = vpack.c.b16 %v2934, %v2930
    %v4111 = vpack.c.b16 %v2939, %v2935
    %v4112 = vpack.c.b16 %v2940, %v2936
    %v4113 = vpack.c.b16 %v2941, %v2937
    %v4114 = vpack.c.b16 %v2942, %v2938
    %v4115 = vpack.c.b16 %v2947, %v2943
    %v4116 = vpack.c.b16 %v2948, %v2944
    %v4117 = vpack.c.b16 %v2949, %v2945
    %v4118 = vpack.c.b16 %v2950, %v2946
    %v4119 = vpack.c.b16 %v2955, %v2951
    %v4120 = vpack.c.b16 %v2956, %v2952
    %v4121 = vpack.c.b16 %v2957, %v2953
    %v4122 = vpack.c.b16 %v2958, %v2954
    %v4123 = vpack.c.b16 %v2963, %v2959
    %v4124 = vpack.c.b16 %v2964, %v2960
    %v4125 = vpack.c.b16 %v2965, %v2961
    %v4126 = vpack.c.b16 %v2966, %v2962
    %v4127 = vpack.c.b16 %v2971, %v2967
    %v4128 = vpack.c.b16 %v2972, %v2968
    %v4129 = vpack.c.b16 %v2973, %v2969
    %v4130 = vpack.c.b16 %v2974, %v2970
    %v4131 = vpack.c.b16 %v2979, %v2975
    %v4132 = vpack.c.b16 %v2980, %v2976
    %v4133 = vpack.c.b16 %v2981, %v2977
    %v4134 = vpack.c.b16 %v2982, %v2978
    %v4135 = vpack.c.b16 %v2987, %v2983
    %v4136 = vpack.c.b16 %v2988, %v2984
    %v4137 = vpack.c.b16 %v2989, %v2985
    %v4138 = vpack.c.b16 %v2990, %v2986
    %v4139 = vpack.c.b16 %v2995, %v2991
    %v4140 = vpack.c.b16 %v2996, %v2992
    %v4141 = vpack.c.b16 %v2997, %v2993
    %v4142 = vpack.c.b16 %v2998, %v2994
    %v4143 = vpack.c.b16 %v3003, %v2999
    %v4144 = vpack.c.b16 %v3004, %v3000
    %v4145 = vpack.c.b16 %v3005, %v3001
    %v4146 = vpack.c.b16 %v3006, %v3002
    %v4147 = vpack.c.b16 %v3011, %v3007
    %v4148 = vpack.c.b16 %v3012, %v3008
    %v4149 = vpack.c.b16 %v3013, %v3009
    %v4150 = vpack.c.b16 %v3014, %v3010
    %v4151 = vpack.c.b16 %v3019, %v3015
    %v4152 = vpack.c.b16 %v3020, %v3016
    %v4153 = vpack.c.b16 %v3021, %v3017
    %v4154 = vpack.c.b16 %v3022, %v3018
    %v4155 = vpack.c.b16 %v3027, %v3023
    %v4156 = vpack.c.b16 %v3028, %v3024
    %v4157 = vpack.c.b16 %v3029, %v3025
    %v4158 = vpack.c.b16 %v3030, %v3026
    %v4159 = vpack.c.b16 %v3035, %v3031
    %v4160 = vpack.c.b16 %v3036, %v3032
    %v4161 = vpack.c.b16 %v3037, %v3033
    %v4162 = vpack.c.b16 %v3038, %v3034
    %v4163 = vpack.c.b16 %v3043, %v3039
    %v4164 = vpack.c.b16 %v3044, %v3040
    %v4165 = vpack.c.b16 %v3045, %v3041
    %v4166 = vpack.c.b16 %v3046, %v3042
    %v4167 = vpack.c.b16 %v3051, %v3047
    %v4168 = vpack.c.b16 %v3052, %v3048
    %v4169 = vpack.c.b16 %v3053, %v3049
    %v4170 = vpack.c.b16 %v3054, %v3050
    %v4171 = vpack.c.b16 %v3059, %v3055
    %v4172 = vpack.c.b16 %v3060, %v3056
    %v4173 = vpack.c.b16 %v3061, %v3057
    %v4174 = vpack.c.b16 %v3062, %v3058
    %v4175 = vpack.c.b16 %v3067, %v3063
    %v4176 = vpack.c.b16 %v3068, %v3064
    %v4177 = vpack.c.b16 %v3069, %v3065
    %v4178 = vpack.c.b16 %v3070, %v3066
    %v4179 = vpack.c.b16 %v3075, %v3071
    %v4180 = vpack.c.b16 %v3076, %v3072
    %v4181 = vpack.c.b16 %v3077, %v3073
    %v4182 = vpack.c.b16 %v3078, %v3074
    %v4183 = vpack.c.b16 %v3083, %v3079
    %v4184 = vpack.c.b16 %v3084, %v3080
    %v4185 = vpack.c.b16 %v3085, %v3081
    %v4186 = vpack.c.b16 %v3086, %v3082
    %v4187 = vpack.c.b16 %v3091, %v3087
    %v4188 = vpack.c.b16 %v3092, %v3088
    %v4189 = vpack.c.b16 %v3093, %v3089
    %v4190 = vpack.c.b16 %v3094, %v3090
    %v4191 = vpack.c.b16 %v3099, %v3095
    %v4192 = vpack.c.b16 %v3100, %v3096
    %v4193 = vpack.c.b16 %v3101, %v3097
    %v4194 = vpack.c.b16 %v3102, %v3098
    %v4195 = vpack.c.b16 %v3107, %v3103
    %v4196 = vpack.c.b16 %v3108, %v3104
    %v4197 = vpack.c.b16 %v3109, %v3105
    %v4198 = vpack.c.b16 %v3110, %v3106
    %v4199 = vpack.c.b16 %v3115, %v3111
    %v4200 = vpack.c.b16 %v3116, %v3112
    %v4201 = vpack.c.b16 %v3117, %v3113
    %v4202 = vpack.c.b16 %v3118, %v3114
    %v4203 = vpack.c.b16 %v3123, %v3119
    %v4204 = vpack.c.b16 %v3124, %v3120
    %v4205 = vpack.c.b16 %v3125, %v3121
    %v4206 = vpack.c.b16 %v3126, %v3122
    %v4207 = vpack.c.b16 %v3131, %v3127
    %v4208 = vpack.c.b16 %v3132, %v3128
    %v4209 = vpack.c.b16 %v3133, %v3129
    %v4210 = vpack.c.b16 %v3134, %v3130
    %v4211 = vpack.c.b16 %v3139, %v3135
    %v4212 = vpack.c.b16 %v3140, %v3136
    %v4213 = vpack.c.b16 %v3141, %v3137
    %v4214 = vpack.c.b16 %v3142, %v3138
    %v4215 = vpack.c.b16 %v3147, %v3143
    %v4216 = vpack.c.b16 %v3148, %v3144
    %v4217 = vpack.c.b16 %v3149, %v3145
    %v4218 = vpack.c.b16 %v3150, %v3146
    %v4219 = vpack.c.b16 %v3155, %v3151
    %v4220 = vpack.c.b16 %v3156, %v3152
    %v4221 = vpack.c.b16 %v3157, %v3153
    %v4222 = vpack.c.b16 %v3158, %v3154
    %v4223 = vpack.c.b16 %v3163, %v3159
    %v4224 = vpack.c.b16 %v3164, %v3160
    %v4225 = vpack.c.b16 %v3165, %v3161
    %v4226 = vpack.c.b16 %v3166, %v3162
    %v4227 = vpack.c.b16 %v3171, %v3167
    %v4228 = vpack.c.b16 %v3172, %v3168
    %v4229 = vpack.c.b16 %v3173, %v3169
    %v4230 = vpack.c.b16 %v3174, %v3170
    %v4231 = vpack.c.b16 %v3179, %v3175
    %v4232 = vpack.c.b16 %v3180, %v3176
    %v4233 = vpack.c.b16 %v3181, %v3177
    %v4234 = vpack.c.b16 %v3182, %v3178
    %v4235 = vpack.c.b16 %v3187, %v3183
    %v4236 = vpack.c.b16 %v3188, %v3184
    %v4237 = vpack.c.b16 %v3189, %v3185
    %v4238 = vpack.c.b16 %v3190, %v3186
    %v4239 = vpack.c.b16 %v3195, %v3191
    %v4240 = vpack.c.b16 %v3196, %v3192
    %v4241 = vpack.c.b16 %v3197, %v3193
    %v4242 = vpack.c.b16 %v3198, %v3194
    %v4243 = vpack.c.b16 %v3203, %v3199
    %v4244 = vpack.c.b16 %v3204, %v3200
    %v4245 = vpack.c.b16 %v3205, %v3201
    %v4246 = vpack.c.b16 %v3206, %v3202
    %v4247 = vpack.c.b16 %v3211, %v3207
    %v4248 = vpack.c.b16 %v3212, %v3208
    %v4249 = vpack.c.b16 %v3213, %v3209
    %v4250 = vpack.c.b16 %v3214, %v3210
    %v4251 = vpack.c.b16 %v3219, %v3215
    %v4252 = vpack.c.b16 %v3220, %v3216
    %v4253 = vpack.c.b16 %v3221, %v3217
    %v4254 = vpack.c.b16 %v3222, %v3218
    %v4255 = vpack.c.b16 %v3227, %v3223
    %v4256 = vpack.c.b16 %v3228, %v3224
    %v4257 = vpack.c.b16 %v3229, %v3225
    %v4258 = vpack.c.b16 %v3230, %v3226
    %v4259 = vpack.c.b16 %v3235, %v3231
    %v4260 = vpack.c.b16 %v3236, %v3232
    %v4261 = vpack.c.b16 %v3237, %v3233
    %v4262 = vpack.c.b16 %v3238, %v3234
    %v4263 = vpack.c.b16 %v3243, %v3239
    %v4264 = vpack.c.b16 %v3244, %v3240
    %v4265 = vpack.c.b16 %v3245, %v3241
    %v4266 = vpack.c.b16 %v3246, %v3242
    %v4267 = vpack.c.b16 %v3251, %v3247
    %v4268 = vpack.c.b16 %v3252, %v3248
    %v4269 = vpack.c.b16 %v3253, %v3249
    %v4270 = vpack.c.b16 %v3254, %v3250
    %v4271 = vpack.c.b16 %v3259, %v3255
    %v4272 = vpack.c.b16 %v3260, %v3256
    %v4273 = vpack.c.b16 %v3261, %v3257
    %v4274 = vpack.c.b16 %v3262, %v3258
    %v4275 = vpack.c.b16 %v3267, %v3263
    %v4276 = vpack.c.b16 %v3268, %v3264
    %v4277 = vpack.c.b16 %v3269, %v3265
    %v4278 = vpack.c.b16 %v3270, %v3266
    %v4279 = vpack.c.b16 %v3275, %v3271
    %v4280 = vpack.c.b16 %v3276, %v3272
    %v4281 = vpack.c.b16 %v3277, %v3273
    %v4282 = vpack.c.b16 %v3278, %v3274
    %v4283 = vpack.c.b16 %v3283, %v3279
    %v4284 = vpack.c.b16 %v3284, %v3280
    %v4285 = vpack.c.b16 %v3285, %v3281
    %v4286 = vpack.c.b16 %v3286, %v3282
    %v4287 = vpack.c.b16 %v3291, %v3287
    %v4288 = vpack.c.b16 %v3292, %v3288
    %v4289 = vpack.c.b16 %v3293, %v3289
    %v4290 = vpack.c.b16 %v3294, %v3290
    %v4291 = vpack.c.b16 %v3299, %v3295
    %v4292 = vpack.c.b16 %v3300, %v3296
    %v4293 = vpack.c.b16 %v3301, %v3297
    %v4294 = vpack.c.b16 %v3302, %v3298
    %v4295 = vpack.c.b16 %v3307, %v3303
    %v4296 = vpack.c.b16 %v3308, %v3304
    %v4297 = vpack.c.b16 %v3309, %v3305
    %v4298 = vpack.c.b16 %v3310, %v3306
    %v4299 = vpack.c.b16 %v3315, %v3311
    %v4300 = vpack.c.b16 %v3316, %v3312
    %v4301 = vpack.c.b16 %v3317, %v3313
    %v4302 = vpack.c.b16 %v3318, %v3314
    %v4303 = vpack.c.b16 %v3323, %v3319
    %v4304 = vpack.c.b16 %v3324, %v3320
    %v4305 = vpack.c.b16 %v3325, %v3321
    %v4306 = vpack.c.b16 %v3326, %v3322
    %v4307 = vpack.c.b16 %v3331, %v3327
    %v4308 = vpack.c.b16 %v3332, %v3328
    %v4309 = vpack.c.b16 %v3333, %v3329
    %v4310 = vpack.c.b16 %v3334, %v3330
    %v4311 = vpack.c.b16 %v3339, %v3335
    %v4312 = vpack.c.b16 %v3340, %v3336
    %v4313 = vpack.c.b16 %v3341, %v3337
    %v4314 = vpack.c.b16 %v3342, %v3338
    %v4315 = vpack.c.b16 %v3347, %v3343
    %v4316 = vpack.c.b16 %v3348, %v3344
    %v4317 = vpack.c.b16 %v3349, %v3345
    %v4318 = vpack.c.b16 %v3350, %v3346
    %v4319 = vpack.c.b16 %v3355, %v3351
    %v4320 = vpack.c.b16 %v3356, %v3352
    %v4321 = vpack.c.b16 %v3357, %v3353
    %v4322 = vpack.c.b16 %v3358, %v3354
    %v4323 = vpack.c.b16 %v3363, %v3359
    %v4324 = vpack.c.b16 %v3364, %v3360
    %v4325 = vpack.c.b16 %v3365, %v3361
    %v4326 = vpack.c.b16 %v3366, %v3362
    %v4327 = vpack.c.b16 %v3371, %v3367
    %v4328 = vpack.c.b16 %v3372, %v3368
    %v4329 = vpack.c.b16 %v3373, %v3369
    %v4330 = vpack.c.b16 %v3374, %v3370
    %v4331 = vpack.c.b16 %v3379, %v3375
    %v4332 = vpack.c.b16 %v3380, %v3376
    %v4333 = vpack.c.b16 %v3381, %v3377
    %v4334 = vpack.c.b16 %v3382, %v3378
    %v4335 = vpack.c.b16 %v3387, %v3383
    %v4336 = vpack.c.b16 %v3388, %v3384
    %v4337 = vpack.c.b16 %v3389, %v3385
    %v4338 = vpack.c.b16 %v3390, %v3386
    %v4339 = vpack.c.b16 %v3395, %v3391
    %v4340 = vpack.c.b16 %v3396, %v3392
    %v4341 = vpack.c.b16 %v3397, %v3393
    %v4342 = vpack.c.b16 %v3398, %v3394
    %v4343 = vpack.c.b16 %v3403, %v3399
    %v4344 = vpack.c.b16 %v3404, %v3400
    %v4345 = vpack.c.b16 %v3405, %v3401
    %v4346 = vpack.c.b16 %v3406, %v3402
    %v4347 = vpack.c.b16 %v3411, %v3407
    %v4348 = vpack.c.b16 %v3412, %v3408
    %v4349 = vpack.c.b16 %v3413, %v3409
    %v4350 = vpack.c.b16 %v3414, %v3410
    %v4351 = vpack.c.b16 %v3419, %v3415
    %v4352 = vpack.c.b16 %v3420, %v3416
    %v4353 = vpack.c.b16 %v3421, %v3417
    %v4354 = vpack.c.b16 %v3422, %v3418
    %v4355 = vpack.c.b16 %v3427, %v3423
    %v4356 = vpack.c.b16 %v3428, %v3424
    %v4357 = vpack.c.b16 %v3429, %v3425
    %v4358 = vpack.c.b16 %v3430, %v3426
    %v4359 = vpack.c.b16 %v3435, %v3431
    %v4360 = vpack.c.b16 %v3436, %v3432
    %v4361 = vpack.c.b16 %v3437, %v3433
    %v4362 = vpack.c.b16 %v3438, %v3434
    %v4363 = vpack.c.b16 %v3443, %v3439
    %v4364 = vpack.c.b16 %v3444, %v3440
    %v4365 = vpack.c.b16 %v3445, %v3441
    %v4366 = vpack.c.b16 %v3446, %v3442
    %v4367 = vpack.c.b16 %v3451, %v3447
    %v4368 = vpack.c.b16 %v3452, %v3448
    %v4369 = vpack.c.b16 %v3453, %v3449
    %v4370 = vpack.c.b16 %v3454, %v3450
    %v4371 = vpack.c.b16 %v3459, %v3455
    %v4372 = vpack.c.b16 %v3460, %v3456
    %v4373 = vpack.c.b16 %v3461, %v3457
    %v4374 = vpack.c.b16 %v3462, %v3458
    %v4375 = vpack.c.b16 %v3467, %v3463
    %v4376 = vpack.c.b16 %v3468, %v3464
    %v4377 = vpack.c.b16 %v3469, %v3465
    %v4378 = vpack.c.b16 %v3470, %v3466
    %v4379 = vpack.c.b16 %v3475, %v3471
    %v4380 = vpack.c.b16 %v3476, %v3472
    %v4381 = vpack.c.b16 %v3477, %v3473
    %v4382 = vpack.c.b16 %v3478, %v3474
    %v4383 = vpack.c.b16 %v3483, %v3479
    %v4384 = vpack.c.b16 %v3484, %v3480
    %v4385 = vpack.c.b16 %v3485, %v3481
    %v4386 = vpack.c.b16 %v3486, %v3482
    %v4387 = vpack.c.b16 %v3491, %v3487
    %v4388 = vpack.c.b16 %v3492, %v3488
    %v4389 = vpack.c.b16 %v3493, %v3489
    %v4390 = vpack.c.b16 %v3494, %v3490
    %v4391 = vpack.c.b16 %v3499, %v3495
    %v4392 = vpack.c.b16 %v3500, %v3496
    %v4393 = vpack.c.b16 %v3501, %v3497
    %v4394 = vpack.c.b16 %v3502, %v3498
    %v4395 = vpack.c.b16 %v3507, %v3503
    %v4396 = vpack.c.b16 %v3508, %v3504
    %v4397 = vpack.c.b16 %v3509, %v3505
    %v4398 = vpack.c.b16 %v3510, %v3506
    %v4399 = vpack.c.b16 %v3515, %v3511
    %v4400 = vpack.c.b16 %v3516, %v3512
    %v4401 = vpack.c.b16 %v3517, %v3513
    %v4402 = vpack.c.b16 %v3518, %v3514
    %v4403 = vpack.c.b16 %v3523, %v3519
    %v4404 = vpack.c.b16 %v3524, %v3520
    %v4405 = vpack.c.b16 %v3525, %v3521
    %v4406 = vpack.c.b16 %v3526, %v3522
    %v4407 = vpack.c.b16 %v3531, %v3527
    %v4408 = vpack.c.b16 %v3532, %v3528
    %v4409 = vpack.c.b16 %v3533, %v3529
    %v4410 = vpack.c.b16 %v3534, %v3530
    %v4411 = vpack.c.b16 %v3539, %v3535
    %v4412 = vpack.c.b16 %v3540, %v3536
    %v4413 = vpack.c.b16 %v3541, %v3537
    %v4414 = vpack.c.b16 %v3542, %v3538
    %v4415 = vpack.c.b16 %v3547, %v3543
    %v4416 = vpack.c.b16 %v3548, %v3544
    %v4417 = vpack.c.b16 %v3549, %v3545
    %v4418 = vpack.c.b16 %v3550, %v3546
    %v4419 = vpack.c.b16 %v3555, %v3551
    %v4420 = vpack.c.b16 %v3556, %v3552
    %v4421 = vpack.c.b16 %v3557, %v3553
    %v4422 = vpack.c.b16 %v3558, %v3554
    %v4423 = vpack.c.b16 %v3563, %v3559
    %v4424 = vpack.c.b16 %v3564, %v3560
    %v4425 = vpack.c.b16 %v3565, %v3561
    %v4426 = vpack.c.b16 %v3566, %v3562
    %v4427 = vpack.c.b16 %v3571, %v3567
    %v4428 = vpack.c.b16 %v3572, %v3568
    %v4429 = vpack.c.b16 %v3573, %v3569
    %v4430 = vpack.c.b16 %v3574, %v3570
    %v4431 = vpack.c.b16 %v3579, %v3575
    %v4432 = vpack.c.b16 %v3580, %v3576
    %v4433 = vpack.c.b16 %v3581, %v3577
    %v4434 = vpack.c.b16 %v3582, %v3578
    %v4435 = vpack.c.b16 %v3587, %v3583
    %v4436 = vpack.c.b16 %v3588, %v3584
    %v4437 = vpack.c.b16 %v3589, %v3585
    %v4438 = vpack.c.b16 %v3590, %v3586
    %v4439 = vpack.c.b16 %v3595, %v3591
    %v4440 = vpack.c.b16 %v3596, %v3592
    %v4441 = vpack.c.b16 %v3597, %v3593
    %v4442 = vpack.c.b16 %v3598, %v3594
    %v4443 = vpack.c.b16 %v3603, %v3599
    %v4444 = vpack.c.b16 %v3604, %v3600
    %v4445 = vpack.c.b16 %v3605, %v3601
    %v4446 = vpack.c.b16 %v3606, %v3602
    %v4447 = vpack.c.b16 %v3611, %v3607
    %v4448 = vpack.c.b16 %v3612, %v3608
    %v4449 = vpack.c.b16 %v3613, %v3609
    %v4450 = vpack.c.b16 %v3614, %v3610
    %v4451 = vpack.c.b16 %v3619, %v3615
    %v4452 = vpack.c.b16 %v3620, %v3616
    %v4453 = vpack.c.b16 %v3621, %v3617
    %v4454 = vpack.c.b16 %v3622, %v3618
    %v4455 = vpack.c.b16 %v3627, %v3623
    %v4456 = vpack.c.b16 %v3628, %v3624
    %v4457 = vpack.c.b16 %v3629, %v3625
    %v4458 = vpack.c.b16 %v3630, %v3626
    %v4459 = vpack.c.b16 %v3635, %v3631
    %v4460 = vpack.c.b16 %v3636, %v3632
    %v4461 = vpack.c.b16 %v3637, %v3633
    %v4462 = vpack.c.b16 %v3638, %v3634
    %v4463 = vpack.c.b16 %v3643, %v3639
    %v4464 = vpack.c.b16 %v3644, %v3640
    %v4465 = vpack.c.b16 %v3645, %v3641
    %v4466 = vpack.c.b16 %v3646, %v3642
    %v4467 = vpack.c.b16 %v3651, %v3647
    %v4468 = vpack.c.b16 %v3652, %v3648
    %v4469 = vpack.c.b16 %v3653, %v3649
    %v4470 = vpack.c.b16 %v3654, %v3650
    %v4471 = vpack.c.b16 %v3659, %v3655
    %v4472 = vpack.c.b16 %v3660, %v3656
    %v4473 = vpack.c.b16 %v3661, %v3657
    %v4474 = vpack.c.b16 %v3662, %v3658
    %v4475 = vpack.c.b16 %v3667, %v3663
    %v4476 = vpack.c.b16 %v3668, %v3664
    %v4477 = vpack.c.b16 %v3669, %v3665
    %v4478 = vpack.c.b16 %v3670, %v3666
    %v4479 = vpack.c.b16 %v3675, %v3671
    %v4480 = vpack.c.b16 %v3676, %v3672
    %v4481 = vpack.c.b16 %v3677, %v3673
    %v4482 = vpack.c.b16 %v3678, %v3674
    %v4483 = vpack.c.b16 %v3683, %v3679
    %v4484 = vpack.c.b16 %v3684, %v3680
    %v4485 = vpack.c.b16 %v3685, %v3681
    %v4486 = vpack.c.b16 %v3686, %v3682
    %v4487 = vpack.c.b16 %v3691, %v3687
    %v4488 = vpack.c.b16 %v3692, %v3688
    %v4489 = vpack.c.b16 %v3693, %v3689
    %v4490 = vpack.c.b16 %v3694, %v3690
    %v4491 = vpack.c.b16 %v3699, %v3695
    %v4492 = vpack.c.b16 %v3700, %v3696
    %v4493 = vpack.c.b16 %v3701, %v3697
    %v4494 = vpack.c.b16 %v3702, %v3698
    %v4495 = vpack.c.b16 %v3707, %v3703
    %v4496 = vpack.c.b16 %v3708, %v3704
    %v4497 = vpack.c.b16 %v3709, %v3705
    %v4498 = vpack.c.b16 %v3710, %v3706
    %v4499 = vpack.c.b16 %v3715, %v3711
    %v4500 = vpack.c.b16 %v3716, %v3712
    %v4501 = vpack.c.b16 %v3717, %v3713
    %v4502 = vpack.c.b16 %v3718, %v3714
    %vm5287 = vcmask 523264
    %v5289 = vsel %vm5287, %v1342, 0
    %5291 = vmatprep.subr.bf16.mxu0 %v3720
    %5292 = vmatpush1.bf16.msra.mxu0 %v3719
    %5293 = vmatprep.subr.bf16.mxu0 %v3724
    %5294 = vmatpush1.bf16.msra.mxu0 %v3723
    %5295 = vmatprep.subr.bf16.mxu0 %v3728
    %5296 = vmatpush1.bf16.msra.mxu0 %v3727
    %5297 = vmatprep.subr.bf16.mxu0 %v3732
    %5298 = vmatpush1.bf16.msra.mxu0 %v3731
    %5299 = vmatprep.subr.bf16.mxu0 %v3736
    %5300 = vmatpush1.bf16.msra.mxu0 %v3735
    %5301 = vmatprep.subr.bf16.mxu0 %v3740
    %5302 = vmatpush1.bf16.msra.mxu0 %v3739
    %5303 = vmatprep.subr.bf16.mxu0 %v3744
    %5304 = vmatpush1.bf16.msra.mxu0 %v3743
    %5305 = vmatprep.subr.bf16.mxu0 %v3748
    %5306 = vmatpush1.bf16.msra.mxu0 %v3747
    %5307 = vmatprep.subr.bf16.mxu0 %v3752
    %5308 = vmatpush1.bf16.msra.mxu0 %v3751
    %5309 = vmatprep.subr.bf16.mxu0 %v3756
    %5310 = vmatpush1.bf16.msra.mxu0 %v3755
    %5311 = vmatprep.subr.bf16.mxu0 %v3760
    %5312 = vmatpush1.bf16.msra.mxu0 %v3759
    %5313 = vmatprep.subr.bf16.mxu0 %v3764
    %5314 = vmatpush1.bf16.msra.mxu0 %v3763
    %5315 = vmatprep.subr.bf16.mxu0 %v3768
    %5316 = vmatpush1.bf16.msra.mxu0 %v3767
    %5317 = vmatprep.subr.bf16.mxu0 %v3772
    %5318 = vmatpush1.bf16.msra.mxu0 %v3771
    %5319 = vmatprep.subr.bf16.mxu0 %v3776
    %5320 = vmatpush1.bf16.msra.mxu0 %v3775
    %5321 = vmatprep.subr.bf16.mxu0 %v3780
    %5322 = vmatpush1.bf16.msra.mxu0 %v3779
    %5323 = vmatprep.mubr.bf16.mxu0 %v1018
    %5324 = vmatmul.mubr.bf16.gmra.mrb[0].mxu0 %v1014
    %v5325 = vpop.f32.mrb[0].mxu0
    %v5326 = vadd.f32 %v837, %v5325
    %v5327 = vpop.f32.mrb[0].mxu0
    %v5328 = vadd.f32 %v841, %v5327
    %v5329 = vpop.f32.mrb[0].mxu0
    %v5330 = vadd.f32 %v837, %v5329
    %v5331 = vpop.f32.mrb[0].mxu0
    %v5332 = vadd.f32 %v841, %v5331
    %5333 = vdwg.mxu0
    %5334 = vmatprep.subr.bf16.mxu0 %v3784
    %5335 = vmatpush1.bf16.msra.mxu0 %v3783
    %5336 = vmatprep.subr.bf16.mxu0 %v3788
    %5337 = vmatpush1.bf16.msra.mxu0 %v3787
    %5338 = vmatprep.subr.bf16.mxu0 %v3792
    %5339 = vmatpush1.bf16.msra.mxu0 %v3791
    %5340 = vmatprep.subr.bf16.mxu0 %v3796
    %5341 = vmatpush1.bf16.msra.mxu0 %v3795
    %5342 = vmatprep.subr.bf16.mxu0 %v3800
    %5343 = vmatpush1.bf16.msra.mxu0 %v3799
    %5344 = vmatprep.subr.bf16.mxu0 %v3804
    %5345 = vmatpush1.bf16.msra.mxu0 %v3803
    %5346 = vmatprep.subr.bf16.mxu0 %v3808
    %5347 = vmatpush1.bf16.msra.mxu0 %v3807
    %5348 = vmatprep.subr.bf16.mxu0 %v3812
    %5349 = vmatpush1.bf16.msra.mxu0 %v3811
    %5350 = vmatprep.subr.bf16.mxu0 %v3816
    %5351 = vmatpush1.bf16.msra.mxu0 %v3815
    %5352 = vmatprep.subr.bf16.mxu0 %v3820
    %5353 = vmatpush1.bf16.msra.mxu0 %v3819
    %5354 = vmatprep.subr.bf16.mxu0 %v3824
    %5355 = vmatpush1.bf16.msra.mxu0 %v3823
    %5356 = vmatprep.subr.bf16.mxu0 %v3828
    %5357 = vmatpush1.bf16.msra.mxu0 %v3827
    %5358 = vmatprep.subr.bf16.mxu0 %v3832
    %5359 = vmatpush1.bf16.msra.mxu0 %v3831
    %5360 = vmatprep.subr.bf16.mxu0 %v3836
    %5361 = vmatpush1.bf16.msra.mxu0 %v3835
    %5362 = vmatprep.subr.bf16.mxu0 %v3840
    %5363 = vmatpush1.bf16.msra.mxu0 %v3839
    %5364 = vmatprep.subr.bf16.mxu0 %v3844
    %5365 = vmatpush1.bf16.msra.mxu0 %v3843
    %5366 = vmatprep.mubr.bf16.mxu0 %v1019
    %5367 = vmatmul.mubr.bf16.gmra.mrb[0].mxu0 %v1015
    %v5368 = vpop.f32.mrb[0].mxu0
    %v5369 = vadd.f32 %v5326, %v5368
    %v5370 = vpop.f32.mrb[0].mxu0
    %v5371 = vadd.f32 %v5328, %v5370
    %v5372 = vpop.f32.mrb[0].mxu0
    %v5373 = vadd.f32 %v5330, %v5372
    %v5374 = vpop.f32.mrb[0].mxu0
    %v5375 = vadd.f32 %v5332, %v5374
    %5376 = vdwg.mxu0
    %5377 = vmatprep.subr.bf16.mxu0 %v3848
    %5378 = vmatpush1.bf16.msra.mxu0 %v3847
    %5379 = vmatprep.subr.bf16.mxu0 %v3852
    %5380 = vmatpush1.bf16.msra.mxu0 %v3851
    %5381 = vmatprep.subr.bf16.mxu0 %v3856
    %5382 = vmatpush1.bf16.msra.mxu0 %v3855
    %5383 = vmatprep.subr.bf16.mxu0 %v3860
    %5384 = vmatpush1.bf16.msra.mxu0 %v3859
    %5385 = vmatprep.subr.bf16.mxu0 %v3864
    %5386 = vmatpush1.bf16.msra.mxu0 %v3863
    %5387 = vmatprep.subr.bf16.mxu0 %v3868
    %5388 = vmatpush1.bf16.msra.mxu0 %v3867
    %5389 = vmatprep.subr.bf16.mxu0 %v3872
    %5390 = vmatpush1.bf16.msra.mxu0 %v3871
    %5391 = vmatprep.subr.bf16.mxu0 %v3876
    %5392 = vmatpush1.bf16.msra.mxu0 %v3875
    %5393 = vmatprep.subr.bf16.mxu0 %v3880
    %5394 = vmatpush1.bf16.msra.mxu0 %v3879
    %5395 = vmatprep.subr.bf16.mxu0 %v3884
    %5396 = vmatpush1.bf16.msra.mxu0 %v3883
    %5397 = vmatprep.subr.bf16.mxu0 %v3888
    %5398 = vmatpush1.bf16.msra.mxu0 %v3887
    %5399 = vmatprep.subr.bf16.mxu0 %v3892
    %5400 = vmatpush1.bf16.msra.mxu0 %v3891
    %5401 = vmatprep.subr.bf16.mxu0 %v3896
    %5402 = vmatpush1.bf16.msra.mxu0 %v3895
    %5403 = vmatprep.subr.bf16.mxu0 %v3900
    %5404 = vmatpush1.bf16.msra.mxu0 %v3899
    %5405 = vmatprep.subr.bf16.mxu0 %v3904
    %5406 = vmatpush1.bf16.msra.mxu0 %v3903
    %5407 = vmatprep.subr.bf16.mxu0 %v3908
    %5408 = vmatpush1.bf16.msra.mxu0 %v3907
    %5409 = vmatprep.mubr.bf16.mxu0 %v1020
    %5410 = vmatmul.mubr.bf16.gmra.mrb[0].mxu0 %v1016
    %v5411 = vpop.f32.mrb[0].mxu0
    %v5412 = vadd.f32 %v5369, %v5411
    %v5413 = vpop.f32.mrb[0].mxu0
    %v5414 = vadd.f32 %v5371, %v5413
    %v5415 = vpop.f32.mrb[0].mxu0
    %v5416 = vadd.f32 %v5373, %v5415
    %v5417 = vpop.f32.mrb[0].mxu0
    %v5418 = vadd.f32 %v5375, %v5417
    %5419 = vdwg.mxu0
    %5420 = vmatprep.subr.bf16.mxu0 %v3912
    %5421 = vmatpush1.bf16.msra.mxu0 %v3911
    %5422 = vmatprep.subr.bf16.mxu0 %v3916
    %5423 = vmatpush1.bf16.msra.mxu0 %v3915
    %5424 = vmatprep.subr.bf16.mxu0 %v3920
    %5425 = vmatpush1.bf16.msra.mxu0 %v3919
    %5426 = vmatprep.subr.bf16.mxu0 %v3924
    %5427 = vmatpush1.bf16.msra.mxu0 %v3923
    %5428 = vmatprep.subr.bf16.mxu0 %v3928
    %5429 = vmatpush1.bf16.msra.mxu0 %v3927
    %5430 = vmatprep.subr.bf16.mxu0 %v3932
    %5431 = vmatpush1.bf16.msra.mxu0 %v3931
    %5432 = vmatprep.subr.bf16.mxu0 %v3936
    %5433 = vmatpush1.bf16.msra.mxu0 %v3935
    %5434 = vmatprep.subr.bf16.mxu0 %v3940
    %5435 = vmatpush1.bf16.msra.mxu0 %v3939
    %5436 = vmatprep.subr.bf16.mxu0 %v3944
    %5437 = vmatpush1.bf16.msra.mxu0 %v3943
    %5438 = vmatprep.subr.bf16.mxu0 %v3948
    %5439 = vmatpush1.bf16.msra.mxu0 %v3947
    %5440 = vmatprep.subr.bf16.mxu0 %v3952
    %5441 = vmatpush1.bf16.msra.mxu0 %v3951
    %5442 = vmatprep.subr.bf16.mxu0 %v3956
    %5443 = vmatpush1.bf16.msra.mxu0 %v3955
    %5444 = vmatprep.subr.bf16.mxu0 %v3960
    %5445 = vmatpush1.bf16.msra.mxu0 %v3959
    %5446 = vmatprep.subr.bf16.mxu0 %v3964
    %5447 = vmatpush1.bf16.msra.mxu0 %v3963
    %5448 = vmatprep.subr.bf16.mxu0 %v3968
    %5449 = vmatpush1.bf16.msra.mxu0 %v3967
    %5450 = vmatprep.subr.bf16.mxu0 %v3972
    %5451 = vmatpush1.bf16.msra.mxu0 %v3971
    %5452 = vmatprep.mubr.bf16.mxu0 %v1021
    %5453 = vmatmul.mubr.bf16.gmra.mrb[0].mxu0 %v1017
    %v5454 = vpop.f32.mrb[0].mxu0
    %v5455 = vadd.f32 %v5412, %v5454
    %v5456 = vpop.f32.mrb[0].mxu0
    %v5457 = vadd.f32 %v5414, %v5456
    %v5458 = vpop.f32.mrb[0].mxu0
    %v5459 = vadd.f32 %v5416, %v5458
    %v5460 = vpop.f32.mrb[0].mxu0
    %v5461 = vadd.f32 %v5418, %v5460
    %5462 = vdwg.mxu0
    %5463 = vmatprep.subr.bf16.mxu0 %v3976
    %5464 = vmatpush1.bf16.msra.mxu0 %v3975
    %5465 = vmatprep.subr.bf16.mxu0 %v3980
    %5466 = vmatpush1.bf16.msra.mxu0 %v3979
    %5467 = vmatprep.subr.bf16.mxu0 %v3984
    %5468 = vmatpush1.bf16.msra.mxu0 %v3983
    %5469 = vmatprep.subr.bf16.mxu0 %v3988
    %5470 = vmatpush1.bf16.msra.mxu0 %v3987
    %5471 = vmatprep.subr.bf16.mxu0 %v3992
    %5472 = vmatpush1.bf16.msra.mxu0 %v3991
    %5473 = vmatprep.subr.bf16.mxu0 %v3996
    %5474 = vmatpush1.bf16.msra.mxu0 %v3995
    %5475 = vmatprep.subr.bf16.mxu0 %v4000
    %5476 = vmatpush1.bf16.msra.mxu0 %v3999
    %5477 = vmatprep.subr.bf16.mxu0 %v4004
    %5478 = vmatpush1.bf16.msra.mxu0 %v4003
    %5479 = vmatprep.subr.bf16.mxu0 %v4008
    %5480 = vmatpush1.bf16.msra.mxu0 %v4007
    %5481 = vmatprep.subr.bf16.mxu0 %v4012
    %5482 = vmatpush1.bf16.msra.mxu0 %v4011
    %5483 = vmatprep.subr.bf16.mxu0 %v4016
    %5484 = vmatpush1.bf16.msra.mxu0 %v4015
    %5485 = vmatprep.subr.bf16.mxu0 %v4020
    %5486 = vmatpush1.bf16.msra.mxu0 %v4019
    %5487 = vmatprep.subr.bf16.mxu0 %v4024
    %5488 = vmatpush1.bf16.msra.mxu0 %v4023
    %5489 = vmatprep.subr.bf16.mxu0 %v4028
    %5490 = vmatpush1.bf16.msra.mxu0 %v4027
    %5491 = vmatprep.subr.bf16.mxu0 %v4032
    %5492 = vmatpush1.bf16.msra.mxu0 %v4031
    %5493 = vmatprep.subr.bf16.mxu0 %v4036
    %5494 = vmatpush1.bf16.msra.mxu0 %v4035
    %5495 = vmatprep.mubr.bf16.mxu0 %v1154
    %5496 = vmatmul.mubr.bf16.gmra.mrb[0].mxu0 %v1150
    %v5497 = vpop.f32.mrb[0].mxu0
    %v5498 = vadd.f32 %v5455, %v5497
    %v5499 = vpop.f32.mrb[0].mxu0
    %v5500 = vadd.f32 %v5457, %v5499
    %v5501 = vpop.f32.mrb[0].mxu0
    %v5502 = vadd.f32 %v5459, %v5501
    %v5503 = vpop.f32.mrb[0].mxu0
    %v5504 = vadd.f32 %v5461, %v5503
    %5505 = vdwg.mxu0
    %5506 = vmatprep.subr.bf16.mxu0 %v4040
    %5507 = vmatpush1.bf16.msra.mxu0 %v4039
    %5508 = vmatprep.subr.bf16.mxu0 %v4044
    %5509 = vmatpush1.bf16.msra.mxu0 %v4043
    %5510 = vmatprep.subr.bf16.mxu0 %v4048
    %5511 = vmatpush1.bf16.msra.mxu0 %v4047
    %5512 = vmatprep.subr.bf16.mxu0 %v4052
    %5513 = vmatpush1.bf16.msra.mxu0 %v4051
    %5514 = vmatprep.subr.bf16.mxu0 %v4056
    %5515 = vmatpush1.bf16.msra.mxu0 %v4055
    %5516 = vmatprep.subr.bf16.mxu0 %v4060
    %5517 = vmatpush1.bf16.msra.mxu0 %v4059
    %5518 = vmatprep.subr.bf16.mxu0 %v4064
    %5519 = vmatpush1.bf16.msra.mxu0 %v4063
    %5520 = vmatprep.subr.bf16.mxu0 %v4068
    %5521 = vmatpush1.bf16.msra.mxu0 %v4067
    %5522 = vmatprep.subr.bf16.mxu0 %v4072
    %5523 = vmatpush1.bf16.msra.mxu0 %v4071
    %5524 = vmatprep.subr.bf16.mxu0 %v4076
    %5525 = vmatpush1.bf16.msra.mxu0 %v4075
    %5526 = vmatprep.subr.bf16.mxu0 %v4080
    %5527 = vmatpush1.bf16.msra.mxu0 %v4079
    %5528 = vmatprep.subr.bf16.mxu0 %v4084
    %5529 = vmatpush1.bf16.msra.mxu0 %v4083
    %5530 = vmatprep.subr.bf16.mxu0 %v4088
    %5531 = vmatpush1.bf16.msra.mxu0 %v4087
    %5532 = vmatprep.subr.bf16.mxu0 %v4092
    %5533 = vmatpush1.bf16.msra.mxu0 %v4091
    %5534 = vmatprep.subr.bf16.mxu0 %v4096
    %5535 = vmatpush1.bf16.msra.mxu0 %v4095
    %5536 = vmatprep.subr.bf16.mxu0 %v4100
    %5537 = vmatpush1.bf16.msra.mxu0 %v4099
    %5538 = vmatprep.mubr.bf16.mxu0 %v1155
    %5539 = vmatmul.mubr.bf16.gmra.mrb[0].mxu0 %v1151
    %v5540 = vpop.f32.mrb[0].mxu0
    %v5541 = vadd.f32 %v5498, %v5540
    %v5542 = vpop.f32.mrb[0].mxu0
    %v5543 = vadd.f32 %v5500, %v5542
    %v5544 = vpop.f32.mrb[0].mxu0
    %v5545 = vadd.f32 %v5502, %v5544
    %v5546 = vpop.f32.mrb[0].mxu0
    %v5547 = vadd.f32 %v5504, %v5546
    %5548 = vdwg.mxu0
    %5549 = vmatprep.subr.bf16.mxu0 %v4104
    %5550 = vmatpush1.bf16.msra.mxu0 %v4103
    %5551 = vmatprep.subr.bf16.mxu0 %v4108
    %5552 = vmatpush1.bf16.msra.mxu0 %v4107
    %5553 = vmatprep.subr.bf16.mxu0 %v4112
    %5554 = vmatpush1.bf16.msra.mxu0 %v4111
    %5555 = vmatprep.subr.bf16.mxu0 %v4116
    %5556 = vmatpush1.bf16.msra.mxu0 %v4115
    %5557 = vmatprep.subr.bf16.mxu0 %v4120
    %5558 = vmatpush1.bf16.msra.mxu0 %v4119
    %5559 = vmatprep.subr.bf16.mxu0 %v4124
    %5560 = vmatpush1.bf16.msra.mxu0 %v4123
    %5561 = vmatprep.subr.bf16.mxu0 %v4128
    %5562 = vmatpush1.bf16.msra.mxu0 %v4127
    %5563 = vmatprep.subr.bf16.mxu0 %v4132
    %5564 = vmatpush1.bf16.msra.mxu0 %v4131
    %5565 = vmatprep.subr.bf16.mxu0 %v4136
    %5566 = vmatpush1.bf16.msra.mxu0 %v4135
    %5567 = vmatprep.subr.bf16.mxu0 %v4140
    %5568 = vmatpush1.bf16.msra.mxu0 %v4139
    %5569 = vmatprep.subr.bf16.mxu0 %v4144
    %5570 = vmatpush1.bf16.msra.mxu0 %v4143
    %5571 = vmatprep.subr.bf16.mxu0 %v4148
    %5572 = vmatpush1.bf16.msra.mxu0 %v4147
    %5573 = vmatprep.subr.bf16.mxu0 %v4152
    %5574 = vmatpush1.bf16.msra.mxu0 %v4151
    %5575 = vmatprep.subr.bf16.mxu0 %v4156
    %5576 = vmatpush1.bf16.msra.mxu0 %v4155
    %5577 = vmatprep.subr.bf16.mxu0 %v4160
    %5578 = vmatpush1.bf16.msra.mxu0 %v4159
    %5579 = vmatprep.subr.bf16.mxu0 %v4164
    %5580 = vmatpush1.bf16.msra.mxu0 %v4163
    %5581 = vmatprep.mubr.bf16.mxu0 %v1156
    %5582 = vmatmul.mubr.bf16.gmra.mrb[0].mxu0 %v1152
    %v5583 = vpop.f32.mrb[0].mxu0
    %v5584 = vadd.f32 %v5541, %v5583
    %v5585 = vpop.f32.mrb[0].mxu0
    %v5586 = vadd.f32 %v5543, %v5585
    %v5587 = vpop.f32.mrb[0].mxu0
    %v5588 = vadd.f32 %v5545, %v5587
    %v5589 = vpop.f32.mrb[0].mxu0
    %v5590 = vadd.f32 %v5547, %v5589
    %5591 = vdwg.mxu0
    %5592 = vmatprep.subr.bf16.mxu0 %v4168
    %5593 = vmatpush1.bf16.msra.mxu0 %v4167
    %5594 = vmatprep.subr.bf16.mxu0 %v4172
    %5595 = vmatpush1.bf16.msra.mxu0 %v4171
    %5596 = vmatprep.subr.bf16.mxu0 %v4176
    %5597 = vmatpush1.bf16.msra.mxu0 %v4175
    %5598 = vmatprep.subr.bf16.mxu0 %v4180
    %5599 = vmatpush1.bf16.msra.mxu0 %v4179
    %5600 = vmatprep.subr.bf16.mxu0 %v4184
    %5601 = vmatpush1.bf16.msra.mxu0 %v4183
    %5602 = vmatprep.subr.bf16.mxu0 %v4188
    %5603 = vmatpush1.bf16.msra.mxu0 %v4187
    %5604 = vmatprep.subr.bf16.mxu0 %v4192
    %5605 = vmatpush1.bf16.msra.mxu0 %v4191
    %5606 = vmatprep.subr.bf16.mxu0 %v4196
    %5607 = vmatpush1.bf16.msra.mxu0 %v4195
    %5608 = vmatprep.subr.bf16.mxu0 %v4200
    %5609 = vmatpush1.bf16.msra.mxu0 %v4199
    %5610 = vmatprep.subr.bf16.mxu0 %v4204
    %5611 = vmatpush1.bf16.msra.mxu0 %v4203
    %5612 = vmatprep.subr.bf16.mxu0 %v4208
    %5613 = vmatpush1.bf16.msra.mxu0 %v4207
    %5614 = vmatprep.subr.bf16.mxu0 %v4212
    %5615 = vmatpush1.bf16.msra.mxu0 %v4211
    %5616 = vmatprep.subr.bf16.mxu0 %v4216
    %5617 = vmatpush1.bf16.msra.mxu0 %v4215
    %5618 = vmatprep.subr.bf16.mxu0 %v4220
    %5619 = vmatpush1.bf16.msra.mxu0 %v4219
    %5620 = vmatprep.subr.bf16.mxu0 %v4224
    %5621 = vmatpush1.bf16.msra.mxu0 %v4223
    %5622 = vmatprep.subr.bf16.mxu0 %v4228
    %5623 = vmatpush1.bf16.msra.mxu0 %v4227
    %5624 = vmatprep.mubr.bf16.mxu0 %v1157
    %5625 = vmatmul.mubr.bf16.gmra.mrb[0].mxu0 %v1153
    %v5626 = vpop.f32.mrb[0].mxu0
    %v5627 = vadd.f32 %v5584, %v5626
    %v5628 = vpop.f32.mrb[0].mxu0
    %v5629 = vadd.f32 %v5586, %v5628
    %v5630 = vpop.f32.mrb[0].mxu0
    %v5631 = vadd.f32 %v5588, %v5630
    %v5632 = vpop.f32.mrb[0].mxu0
    %v5633 = vadd.f32 %v5590, %v5632
    %5634 = vdwg.mxu0
    %5635 = vmatprep.subr.bf16.mxu0 %v4232
    %5636 = vmatpush1.bf16.msra.mxu0 %v4231
    %5637 = vmatprep.subr.bf16.mxu0 %v4236
    %5638 = vmatpush1.bf16.msra.mxu0 %v4235
    %5639 = vmatprep.subr.bf16.mxu0 %v4240
    %5640 = vmatpush1.bf16.msra.mxu0 %v4239
    %5641 = vmatprep.subr.bf16.mxu0 %v4244
    %5642 = vmatpush1.bf16.msra.mxu0 %v4243
    %5643 = vmatprep.subr.bf16.mxu0 %v4248
    %5644 = vmatpush1.bf16.msra.mxu0 %v4247
    %5645 = vmatprep.subr.bf16.mxu0 %v4252
    %5646 = vmatpush1.bf16.msra.mxu0 %v4251
    %5647 = vmatprep.subr.bf16.mxu0 %v4256
    %5648 = vmatpush1.bf16.msra.mxu0 %v4255
    %5649 = vmatprep.subr.bf16.mxu0 %v4260
    %5650 = vmatpush1.bf16.msra.mxu0 %v4259
    %5651 = vmatprep.subr.bf16.mxu0 %v4264
    %5652 = vmatpush1.bf16.msra.mxu0 %v4263
    %5653 = vmatprep.subr.bf16.mxu0 %v4268
    %5654 = vmatpush1.bf16.msra.mxu0 %v4267
    %5655 = vmatprep.subr.bf16.mxu0 %v4272
    %5656 = vmatpush1.bf16.msra.mxu0 %v4271
    %5657 = vmatprep.subr.bf16.mxu0 %v4276
    %5658 = vmatpush1.bf16.msra.mxu0 %v4275
    %5659 = vmatprep.subr.bf16.mxu0 %v4280
    %5660 = vmatpush1.bf16.msra.mxu0 %v4279
    %5661 = vmatprep.subr.bf16.mxu0 %v4284
    %5662 = vmatpush1.bf16.msra.mxu0 %v4283
    %5663 = vmatprep.subr.bf16.mxu0 %v4288
    %5664 = vmatpush1.bf16.msra.mxu0 %v4287
    %5665 = vmatprep.subr.bf16.mxu0 %v4292
    %5666 = vmatpush1.bf16.msra.mxu0 %v4291
    %5667 = vmatprep.mubr.bf16.mxu0 %v1290
    %5668 = vmatmul.mubr.bf16.gmra.mrb[0].mxu0 %v1286
    %v5669 = vpop.f32.mrb[0].mxu0
    %v5670 = vadd.f32 %v5627, %v5669
    %v5671 = vpop.f32.mrb[0].mxu0
    %v5672 = vadd.f32 %v5629, %v5671
    %v5673 = vpop.f32.mrb[0].mxu0
    %v5674 = vadd.f32 %v5631, %v5673
    %v5675 = vpop.f32.mrb[0].mxu0
    %v5676 = vadd.f32 %v5633, %v5675
    %5677 = vdwg.mxu0
    %5678 = vmatprep.subr.bf16.mxu0 %v4296
    %5679 = vmatpush1.bf16.msra.mxu0 %v4295
    %5680 = vmatprep.subr.bf16.mxu0 %v4300
    %5681 = vmatpush1.bf16.msra.mxu0 %v4299
    %5682 = vmatprep.subr.bf16.mxu0 %v4304
    %5683 = vmatpush1.bf16.msra.mxu0 %v4303
    %5684 = vmatprep.subr.bf16.mxu0 %v4308
    %5685 = vmatpush1.bf16.msra.mxu0 %v4307
    %5686 = vmatprep.subr.bf16.mxu0 %v4312
    %5687 = vmatpush1.bf16.msra.mxu0 %v4311
    %5688 = vmatprep.subr.bf16.mxu0 %v4316
    %5689 = vmatpush1.bf16.msra.mxu0 %v4315
    %5690 = vmatprep.subr.bf16.mxu0 %v4320
    %5691 = vmatpush1.bf16.msra.mxu0 %v4319
    %5692 = vmatprep.subr.bf16.mxu0 %v4324
    %5693 = vmatpush1.bf16.msra.mxu0 %v4323
    %5694 = vmatprep.subr.bf16.mxu0 %v4328
    %5695 = vmatpush1.bf16.msra.mxu0 %v4327
    %5696 = vmatprep.subr.bf16.mxu0 %v4332
    %5697 = vmatpush1.bf16.msra.mxu0 %v4331
    %5698 = vmatprep.subr.bf16.mxu0 %v4336
    %5699 = vmatpush1.bf16.msra.mxu0 %v4335
    %5700 = vmatprep.subr.bf16.mxu0 %v4340
    %5701 = vmatpush1.bf16.msra.mxu0 %v4339
    %5702 = vmatprep.subr.bf16.mxu0 %v4344
    %5703 = vmatpush1.bf16.msra.mxu0 %v4343
    %5704 = vmatprep.subr.bf16.mxu0 %v4348
    %5705 = vmatpush1.bf16.msra.mxu0 %v4347
    %5706 = vmatprep.subr.bf16.mxu0 %v4352
    %5707 = vmatpush1.bf16.msra.mxu0 %v4351
    %5708 = vmatprep.subr.bf16.mxu0 %v4356
    %5709 = vmatpush1.bf16.msra.mxu0 %v4355
    %5710 = vmatprep.mubr.bf16.mxu0 %v1291
    %5711 = vmatmul.mubr.bf16.gmra.mrb[0].mxu0 %v1287
    %v5712 = vpop.f32.mrb[0].mxu0
    %v5713 = vadd.f32 %v5670, %v5712
    %v5714 = vpop.f32.mrb[0].mxu0
    %v5715 = vadd.f32 %v5672, %v5714
    %v5716 = vpop.f32.mrb[0].mxu0
    %v5717 = vadd.f32 %v5674, %v5716
    %v5718 = vpop.f32.mrb[0].mxu0
    %v5719 = vadd.f32 %v5676, %v5718
    %5720 = vdwg.mxu0
    %5721 = vmatprep.subr.bf16.mxu0 %v4360
    %5722 = vmatpush1.bf16.msra.mxu0 %v4359
    %5723 = vmatprep.subr.bf16.mxu0 %v4364
    %5724 = vmatpush1.bf16.msra.mxu0 %v4363
    %5725 = vmatprep.subr.bf16.mxu0 %v4368
    %5726 = vmatpush1.bf16.msra.mxu0 %v4367
    %5727 = vmatprep.subr.bf16.mxu0 %v4372
    %5728 = vmatpush1.bf16.msra.mxu0 %v4371
    %5729 = vmatprep.subr.bf16.mxu0 %v4376
    %5730 = vmatpush1.bf16.msra.mxu0 %v4375
    %5731 = vmatprep.subr.bf16.mxu0 %v4380
    %5732 = vmatpush1.bf16.msra.mxu0 %v4379
    %5733 = vmatprep.subr.bf16.mxu0 %v4384
    %5734 = vmatpush1.bf16.msra.mxu0 %v4383
    %5735 = vmatprep.subr.bf16.mxu0 %v4388
    %5736 = vmatpush1.bf16.msra.mxu0 %v4387
    %5737 = vmatprep.subr.bf16.mxu0 %v4392
    %5738 = vmatpush1.bf16.msra.mxu0 %v4391
    %5739 = vmatprep.subr.bf16.mxu0 %v4396
    %5740 = vmatpush1.bf16.msra.mxu0 %v4395
    %5741 = vmatprep.subr.bf16.mxu0 %v4400
    %5742 = vmatpush1.bf16.msra.mxu0 %v4399
    %5743 = vmatprep.subr.bf16.mxu0 %v4404
    %5744 = vmatpush1.bf16.msra.mxu0 %v4403
    %5745 = vmatprep.subr.bf16.mxu0 %v4408
    %5746 = vmatpush1.bf16.msra.mxu0 %v4407
    %5747 = vmatprep.subr.bf16.mxu0 %v4412
    %5748 = vmatpush1.bf16.msra.mxu0 %v4411
    %5749 = vmatprep.subr.bf16.mxu0 %v4416
    %5750 = vmatpush1.bf16.msra.mxu0 %v4415
    %5751 = vmatprep.subr.bf16.mxu0 %v4420
    %5752 = vmatpush1.bf16.msra.mxu0 %v4419
    %5753 = vmatprep.mubr.bf16.mxu0 %v1292
    %5754 = vmatmul.mubr.bf16.gmra.mrb[0].mxu0 %v1288
    %v5755 = vpop.f32.mrb[0].mxu0
    %v5756 = vadd.f32 %v5713, %v5755
    %v5757 = vpop.f32.mrb[0].mxu0
    %v5758 = vadd.f32 %v5715, %v5757
    %v5759 = vpop.f32.mrb[0].mxu0
    %v5760 = vadd.f32 %v5717, %v5759
    %v5761 = vpop.f32.mrb[0].mxu0
    %v5762 = vadd.f32 %v5719, %v5761
    %5763 = vdwg.mxu0
    %5764 = vmatprep.subr.bf16.mxu0 %v4424
    %5765 = vmatpush1.bf16.msra.mxu0 %v4423
    %5766 = vmatprep.subr.bf16.mxu0 %v4428
    %5767 = vmatpush1.bf16.msra.mxu0 %v4427
    %5768 = vmatprep.subr.bf16.mxu0 %v4432
    %5769 = vmatpush1.bf16.msra.mxu0 %v4431
    %5770 = vmatprep.subr.bf16.mxu0 %v4436
    %5771 = vmatpush1.bf16.msra.mxu0 %v4435
    %5772 = vmatprep.subr.bf16.mxu0 %v4440
    %5773 = vmatpush1.bf16.msra.mxu0 %v4439
    %5774 = vmatprep.subr.bf16.mxu0 %v4444
    %5775 = vmatpush1.bf16.msra.mxu0 %v4443
    %5776 = vmatprep.subr.bf16.mxu0 %v4448
    %5777 = vmatpush1.bf16.msra.mxu0 %v4447
    %5778 = vmatprep.subr.bf16.mxu0 %v4452
    %5779 = vmatpush1.bf16.msra.mxu0 %v4451
    %5780 = vmatprep.subr.bf16.mxu0 %v4456
    %5781 = vmatpush1.bf16.msra.mxu0 %v4455
    %5782 = vmatprep.subr.bf16.mxu0 %v4460
    %5783 = vmatpush1.bf16.msra.mxu0 %v4459
    %5784 = vmatprep.subr.bf16.mxu0 %v4464
    %5785 = vmatpush1.bf16.msra.mxu0 %v4463
    %5786 = vmatprep.subr.bf16.mxu0 %v4468
    %5787 = vmatpush1.bf16.msra.mxu0 %v4467
    %5788 = vmatprep.subr.bf16.mxu0 %v4472
    %5789 = vmatpush1.bf16.msra.mxu0 %v4471
    %5790 = vmatprep.subr.bf16.mxu0 %v4476
    %5791 = vmatpush1.bf16.msra.mxu0 %v4475
    %5792 = vmatprep.subr.bf16.mxu0 %v4480
    %5793 = vmatpush1.bf16.msra.mxu0 %v4479
    %5794 = vmatprep.subr.bf16.mxu0 %v4484
    %5795 = vmatpush1.bf16.msra.mxu0 %v4483
    %5796 = vmatprep.mubr.bf16.mxu0 %v1293
    %5797 = vmatmul.mubr.bf16.gmra.mrb[0].mxu0 %v1289
    %v5798 = vpop.f32.mrb[0].mxu0
    %v5799 = vadd.f32 %v5756, %v5798
    %v5800 = vpop.f32.mrb[0].mxu0
    %v5801 = vadd.f32 %v5758, %v5800
    %v5802 = vpop.f32.mrb[0].mxu0
    %v5803 = vadd.f32 %v5760, %v5802
    %v5804 = vpop.f32.mrb[0].mxu0
    %v5805 = vadd.f32 %v5762, %v5804
    %5806 = vdwg.mxu0
    %5807 = vmatprep.subr.bf16.mxu0 %v4488
    %5808 = vmatpush1.bf16.msra.mxu0 %v4487
    %5809 = vmatprep.subr.bf16.mxu0 %v4492
    %5810 = vmatpush1.bf16.msra.mxu0 %v4491
    %5811 = vmatprep.subr.bf16.mxu0 %v4496
    %5812 = vmatpush1.bf16.msra.mxu0 %v4495
    %5813 = vmatprep.subr.bf16.mxu0 %v4500
    %5814 = vmatpush1.bf16.msra.mxu0 %v4499
    %5815 = vmatprep.subr.bf16.mxu0 0
    %5816 = vmatpush1.bf16.msra.mxu0 0
    %5817 = vmatprep.subr.bf16.mxu0 0
    %5818 = vmatpush1.bf16.msra.mxu0 0
    %5819 = vmatprep.subr.bf16.mxu0 0
    %5820 = vmatpush1.bf16.msra.mxu0 0
    %5821 = vmatprep.subr.bf16.mxu0 0
    %5822 = vmatpush1.bf16.msra.mxu0 0
    %5823 = vmatprep.subr.bf16.mxu0 0
    %5824 = vmatpush1.bf16.msra.mxu0 0
    %5825 = vmatprep.subr.bf16.mxu0 0
    %5826 = vmatpush1.bf16.msra.mxu0 0
    %5827 = vmatprep.subr.bf16.mxu0 0
    %5828 = vmatpush1.bf16.msra.mxu0 0
    %5829 = vmatprep.subr.bf16.mxu0 0
    %5830 = vmatpush1.bf16.msra.mxu0 0
    %5831 = vmatprep.subr.bf16.mxu0 0
    %5832 = vmatpush1.bf16.msra.mxu0 0
    %5833 = vmatprep.subr.bf16.mxu0 0
    %5834 = vmatpush1.bf16.msra.mxu0 0
    %5835 = vmatprep.subr.bf16.mxu0 0
    %5836 = vmatpush1.bf16.msra.mxu0 0
    %5837 = vmatprep.subr.bf16.mxu0 0
    %5838 = vmatpush1.bf16.msra.mxu0 0
    %5839 = vmatprep.mubr.bf16.mxu0 0
    %5840 = vmatmul.mubr.bf16.gmra.mrb[0].mxu0 %v5289
    %v5841 = vpop.f32.mrb[0].mxu0
    %v5842 = vadd.f32 %v5799, %v5841
    %v5843 = vpop.f32.mrb[0].mxu0
    %v5844 = vadd.f32 %v5801, %v5843
    %v5845 = vpop.f32.mrb[0].mxu0
    %v5846 = vadd.f32 %v5803, %v5845
    %v5847 = vpop.f32.mrb[0].mxu0
    %v5848 = vadd.f32 %v5805, %v5847
    %5849 = vdwg.mxu0
    %5850 = vmatprep.subr.bf16.mxu0 %v3722
    %5851 = vmatpush1.bf16.msra.mxu0 %v3721
    %5852 = vmatprep.subr.bf16.mxu0 %v3726
    %5853 = vmatpush1.bf16.msra.mxu0 %v3725
    %5854 = vmatprep.subr.bf16.mxu0 %v3730
    %5855 = vmatpush1.bf16.msra.mxu0 %v3729
    %5856 = vmatprep.subr.bf16.mxu0 %v3734
    %5857 = vmatpush1.bf16.msra.mxu0 %v3733
    %5858 = vmatprep.subr.bf16.mxu0 %v3738
    %5859 = vmatpush1.bf16.msra.mxu0 %v3737
    %5860 = vmatprep.subr.bf16.mxu0 %v3742
    %5861 = vmatpush1.bf16.msra.mxu0 %v3741
    %5862 = vmatprep.subr.bf16.mxu0 %v3746
    %5863 = vmatpush1.bf16.msra.mxu0 %v3745
    %5864 = vmatprep.subr.bf16.mxu0 %v3750
    %5865 = vmatpush1.bf16.msra.mxu0 %v3749
    %5866 = vmatprep.subr.bf16.mxu0 %v3754
    %5867 = vmatpush1.bf16.msra.mxu0 %v3753
    %5868 = vmatprep.subr.bf16.mxu0 %v3758
    %5869 = vmatpush1.bf16.msra.mxu0 %v3757
    %5870 = vmatprep.subr.bf16.mxu0 %v3762
    %5871 = vmatpush1.bf16.msra.mxu0 %v3761
    %5872 = vmatprep.subr.bf16.mxu0 %v3766
    %5873 = vmatpush1.bf16.msra.mxu0 %v3765
    %5874 = vmatprep.subr.bf16.mxu0 %v3770
    %5875 = vmatpush1.bf16.msra.mxu0 %v3769
    %5876 = vmatprep.subr.bf16.mxu0 %v3774
    %5877 = vmatpush1.bf16.msra.mxu0 %v3773
    %5878 = vmatprep.subr.bf16.mxu0 %v3778
    %5879 = vmatpush1.bf16.msra.mxu0 %v3777
    %5880 = vmatprep.subr.bf16.mxu0 %v3782
    %5881 = vmatpush1.bf16.msra.mxu0 %v3781
    %5882 = vmatprep.mubr.bf16.mxu0 %v1018
    %5883 = vmatmul.mubr.bf16.gmra.mrb[0].mxu0 %v1014
    %v5884 = vpop.f32.mrb[0].mxu0
    %v5885 = vadd.f32 %v845, %v5884
    %v5886 = vpop.f32.mrb[0].mxu0
    %v5887 = vadd.f32 %v849, %v5886
    %v5888 = vpop.f32.mrb[0].mxu0
    %v5889 = vadd.f32 %v845, %v5888
    %v5890 = vpop.f32.mrb[0].mxu0
    %v5891 = vadd.f32 %v849, %v5890
    %5892 = vdwg.mxu0
    %5893 = vmatprep.subr.bf16.mxu0 %v3786
    %5894 = vmatpush1.bf16.msra.mxu0 %v3785
    %5895 = vmatprep.subr.bf16.mxu0 %v3790
    %5896 = vmatpush1.bf16.msra.mxu0 %v3789
    %5897 = vmatprep.subr.bf16.mxu0 %v3794
    %5898 = vmatpush1.bf16.msra.mxu0 %v3793
    %5899 = vmatprep.subr.bf16.mxu0 %v3798
    %5900 = vmatpush1.bf16.msra.mxu0 %v3797
    %5901 = vmatprep.subr.bf16.mxu0 %v3802
    %5902 = vmatpush1.bf16.msra.mxu0 %v3801
    %5903 = vmatprep.subr.bf16.mxu0 %v3806
    %5904 = vmatpush1.bf16.msra.mxu0 %v3805
    %5905 = vmatprep.subr.bf16.mxu0 %v3810
    %5906 = vmatpush1.bf16.msra.mxu0 %v3809
    %5907 = vmatprep.subr.bf16.mxu0 %v3814
    %5908 = vmatpush1.bf16.msra.mxu0 %v3813
    %5909 = vmatprep.subr.bf16.mxu0 %v3818
    %5910 = vmatpush1.bf16.msra.mxu0 %v3817
    %5911 = vmatprep.subr.bf16.mxu0 %v3822
    %5912 = vmatpush1.bf16.msra.mxu0 %v3821
    %5913 = vmatprep.subr.bf16.mxu0 %v3826
    %5914 = vmatpush1.bf16.msra.mxu0 %v3825
    %5915 = vmatprep.subr.bf16.mxu0 %v3830
    %5916 = vmatpush1.bf16.msra.mxu0 %v3829
    %5917 = vmatprep.subr.bf16.mxu0 %v3834
    %5918 = vmatpush1.bf16.msra.mxu0 %v3833
    %5919 = vmatprep.subr.bf16.mxu0 %v3838
    %5920 = vmatpush1.bf16.msra.mxu0 %v3837
    %5921 = vmatprep.subr.bf16.mxu0 %v3842
    %5922 = vmatpush1.bf16.msra.mxu0 %v3841
    %5923 = vmatprep.subr.bf16.mxu0 %v3846
    %5924 = vmatpush1.bf16.msra.mxu0 %v3845
    %5925 = vmatprep.mubr.bf16.mxu0 %v1019
    %5926 = vmatmul.mubr.bf16.gmra.mrb[0].mxu0 %v1015
    %v5927 = vpop.f32.mrb[0].mxu0
    %v5928 = vadd.f32 %v5885, %v5927
    %v5929 = vpop.f32.mrb[0].mxu0
    %v5930 = vadd.f32 %v5887, %v5929
    %v5931 = vpop.f32.mrb[0].mxu0
    %v5932 = vadd.f32 %v5889, %v5931
    %v5933 = vpop.f32.mrb[0].mxu0
    %v5934 = vadd.f32 %v5891, %v5933
    %5935 = vdwg.mxu0
    %5936 = vmatprep.subr.bf16.mxu0 %v3850
    %5937 = vmatpush1.bf16.msra.mxu0 %v3849
    %5938 = vmatprep.subr.bf16.mxu0 %v3854
    %5939 = vmatpush1.bf16.msra.mxu0 %v3853
    %5940 = vmatprep.subr.bf16.mxu0 %v3858
    %5941 = vmatpush1.bf16.msra.mxu0 %v3857
    %5942 = vmatprep.subr.bf16.mxu0 %v3862
    %5943 = vmatpush1.bf16.msra.mxu0 %v3861
    %5944 = vmatprep.subr.bf16.mxu0 %v3866
    %5945 = vmatpush1.bf16.msra.mxu0 %v3865
    %5946 = vmatprep.subr.bf16.mxu0 %v3870
    %5947 = vmatpush1.bf16.msra.mxu0 %v3869
    %5948 = vmatprep.subr.bf16.mxu0 %v3874
    %5949 = vmatpush1.bf16.msra.mxu0 %v3873
    %5950 = vmatprep.subr.bf16.mxu0 %v3878
    %5951 = vmatpush1.bf16.msra.mxu0 %v3877
    %5952 = vmatprep.subr.bf16.mxu0 %v3882
    %5953 = vmatpush1.bf16.msra.mxu0 %v3881
    %5954 = vmatprep.subr.bf16.mxu0 %v3886
    %5955 = vmatpush1.bf16.msra.mxu0 %v3885
    %5956 = vmatprep.subr.bf16.mxu0 %v3890
    %5957 = vmatpush1.bf16.msra.mxu0 %v3889
    %5958 = vmatprep.subr.bf16.mxu0 %v3894
    %5959 = vmatpush1.bf16.msra.mxu0 %v3893
    %5960 = vmatprep.subr.bf16.mxu0 %v3898
    %5961 = vmatpush1.bf16.msra.mxu0 %v3897
    %5962 = vmatprep.subr.bf16.mxu0 %v3902
    %5963 = vmatpush1.bf16.msra.mxu0 %v3901
    %5964 = vmatprep.subr.bf16.mxu0 %v3906
    %5965 = vmatpush1.bf16.msra.mxu0 %v3905
    %5966 = vmatprep.subr.bf16.mxu0 %v3910
    %5967 = vmatpush1.bf16.msra.mxu0 %v3909
    %5968 = vmatprep.mubr.bf16.mxu0 %v1020
    %5969 = vmatmul.mubr.bf16.gmra.mrb[0].mxu0 %v1016
    %v5970 = vpop.f32.mrb[0].mxu0
    %v5971 = vadd.f32 %v5928, %v5970
    %v5972 = vpop.f32.mrb[0].mxu0
    %v5973 = vadd.f32 %v5930, %v5972
    %v5974 = vpop.f32.mrb[0].mxu0
    %v5975 = vadd.f32 %v5932, %v5974
    %v5976 = vpop.f32.mrb[0].mxu0
    %v5977 = vadd.f32 %v5934, %v5976
    %5978 = vdwg.mxu0
    %5979 = vmatprep.subr.bf16.mxu0 %v3914
    %5980 = vmatpush1.bf16.msra.mxu0 %v3913
    %5981 = vmatprep.subr.bf16.mxu0 %v3918
    %5982 = vmatpush1.bf16.msra.mxu0 %v3917
    %5983 = vmatprep.subr.bf16.mxu0 %v3922
    %5984 = vmatpush1.bf16.msra.mxu0 %v3921
    %5985 = vmatprep.subr.bf16.mxu0 %v3926
    %5986 = vmatpush1.bf16.msra.mxu0 %v3925
    %5987 = vmatprep.subr.bf16.mxu0 %v3930
    %5988 = vmatpush1.bf16.msra.mxu0 %v3929
    %5989 = vmatprep.subr.bf16.mxu0 %v3934
    %5990 = vmatpush1.bf16.msra.mxu0 %v3933
    %5991 = vmatprep.subr.bf16.mxu0 %v3938
    %5992 = vmatpush1.bf16.msra.mxu0 %v3937
    %5993 = vmatprep.subr.bf16.mxu0 %v3942
    %5994 = vmatpush1.bf16.msra.mxu0 %v3941
    %5995 = vmatprep.subr.bf16.mxu0 %v3946
    %5996 = vmatpush1.bf16.msra.mxu0 %v3945
    %5997 = vmatprep.subr.bf16.mxu0 %v3950
    %5998 = vmatpush1.bf16.msra.mxu0 %v3949
    %5999 = vmatprep.subr.bf16.mxu0 %v3954
    %6000 = vmatpush1.bf16.msra.mxu0 %v3953
    %6001 = vmatprep.subr.bf16.mxu0 %v3958
    %6002 = vmatpush1.bf16.msra.mxu0 %v3957
    %6003 = vmatprep.subr.bf16.mxu0 %v3962
    %6004 = vmatpush1.bf16.msra.mxu0 %v3961
    %6005 = vmatprep.subr.bf16.mxu0 %v3966
    %6006 = vmatpush1.bf16.msra.mxu0 %v3965
    %6007 = vmatprep.subr.bf16.mxu0 %v3970
    %6008 = vmatpush1.bf16.msra.mxu0 %v3969
    %6009 = vmatprep.subr.bf16.mxu0 %v3974
    %6010 = vmatpush1.bf16.msra.mxu0 %v3973
    %6011 = vmatprep.mubr.bf16.mxu0 %v1021
    %6012 = vmatmul.mubr.bf16.gmra.mrb[0].mxu0 %v1017
    %v6013 = vpop.f32.mrb[0].mxu0
    %v6014 = vadd.f32 %v5971, %v6013
    %v6015 = vpop.f32.mrb[0].mxu0
    %v6016 = vadd.f32 %v5973, %v6015
    %v6017 = vpop.f32.mrb[0].mxu0
    %v6018 = vadd.f32 %v5975, %v6017
    %v6019 = vpop.f32.mrb[0].mxu0
    %v6020 = vadd.f32 %v5977, %v6019
    %6021 = vdwg.mxu0
    %6022 = vmatprep.subr.bf16.mxu0 %v3978
    %6023 = vmatpush1.bf16.msra.mxu0 %v3977
    %6024 = vmatprep.subr.bf16.mxu0 %v3982
    %6025 = vmatpush1.bf16.msra.mxu0 %v3981
    %6026 = vmatprep.subr.bf16.mxu0 %v3986
    %6027 = vmatpush1.bf16.msra.mxu0 %v3985
    %6028 = vmatprep.subr.bf16.mxu0 %v3990
    %6029 = vmatpush1.bf16.msra.mxu0 %v3989
    %6030 = vmatprep.subr.bf16.mxu0 %v3994
    %6031 = vmatpush1.bf16.msra.mxu0 %v3993
    %6032 = vmatprep.subr.bf16.mxu0 %v3998
    %6033 = vmatpush1.bf16.msra.mxu0 %v3997
    %6034 = vmatprep.subr.bf16.mxu0 %v4002
    %6035 = vmatpush1.bf16.msra.mxu0 %v4001
    %6036 = vmatprep.subr.bf16.mxu0 %v4006
    %6037 = vmatpush1.bf16.msra.mxu0 %v4005
    %6038 = vmatprep.subr.bf16.mxu0 %v4010
    %6039 = vmatpush1.bf16.msra.mxu0 %v4009
    %6040 = vmatprep.subr.bf16.mxu0 %v4014
    %6041 = vmatpush1.bf16.msra.mxu0 %v4013
    %6042 = vmatprep.subr.bf16.mxu0 %v4018
    %6043 = vmatpush1.bf16.msra.mxu0 %v4017
    %6044 = vmatprep.subr.bf16.mxu0 %v4022
    %6045 = vmatpush1.bf16.msra.mxu0 %v4021
    %6046 = vmatprep.subr.bf16.mxu0 %v4026
    %6047 = vmatpush1.bf16.msra.mxu0 %v4025
    %6048 = vmatprep.subr.bf16.mxu0 %v4030
    %6049 = vmatpush1.bf16.msra.mxu0 %v4029
    %6050 = vmatprep.subr.bf16.mxu0 %v4034
    %6051 = vmatpush1.bf16.msra.mxu0 %v4033
    %6052 = vmatprep.subr.bf16.mxu0 %v4038
    %6053 = vmatpush1.bf16.msra.mxu0 %v4037
    %6054 = vmatprep.mubr.bf16.mxu0 %v1154
    %6055 = vmatmul.mubr.bf16.gmra.mrb[0].mxu0 %v1150
    %v6056 = vpop.f32.mrb[0].mxu0
    %v6057 = vadd.f32 %v6014, %v6056
    %v6058 = vpop.f32.mrb[0].mxu0
    %v6059 = vadd.f32 %v6016, %v6058
    %v6060 = vpop.f32.mrb[0].mxu0
    %v6061 = vadd.f32 %v6018, %v6060
    %v6062 = vpop.f32.mrb[0].mxu0
    %v6063 = vadd.f32 %v6020, %v6062
    %6064 = vdwg.mxu0
    %6065 = vmatprep.subr.bf16.mxu0 %v4042
    %6066 = vmatpush1.bf16.msra.mxu0 %v4041
    %6067 = vmatprep.subr.bf16.mxu0 %v4046
    %6068 = vmatpush1.bf16.msra.mxu0 %v4045
    %6069 = vmatprep.subr.bf16.mxu0 %v4050
    %6070 = vmatpush1.bf16.msra.mxu0 %v4049
    %6071 = vmatprep.subr.bf16.mxu0 %v4054
    %6072 = vmatpush1.bf16.msra.mxu0 %v4053
    %6073 = vmatprep.subr.bf16.mxu0 %v4058
    %6074 = vmatpush1.bf16.msra.mxu0 %v4057
    %6075 = vmatprep.subr.bf16.mxu0 %v4062
    %6076 = vmatpush1.bf16.msra.mxu0 %v4061
    %6077 = vmatprep.subr.bf16.mxu0 %v4066
    %6078 = vmatpush1.bf16.msra.mxu0 %v4065
    %6079 = vmatprep.subr.bf16.mxu0 %v4070
    %6080 = vmatpush1.bf16.msra.mxu0 %v4069
    %6081 = vmatprep.subr.bf16.mxu0 %v4074
    %6082 = vmatpush1.bf16.msra.mxu0 %v4073
    %6083 = vmatprep.subr.bf16.mxu0 %v4078
    %6084 = vmatpush1.bf16.msra.mxu0 %v4077
    %6085 = vmatprep.subr.bf16.mxu0 %v4082
    %6086 = vmatpush1.bf16.msra.mxu0 %v4081
    %6087 = vmatprep.subr.bf16.mxu0 %v4086
    %6088 = vmatpush1.bf16.msra.mxu0 %v4085
    %6089 = vmatprep.subr.bf16.mxu0 %v4090
    %6090 = vmatpush1.bf16.msra.mxu0 %v4089
    %6091 = vmatprep.subr.bf16.mxu0 %v4094
    %6092 = vmatpush1.bf16.msra.mxu0 %v4093
    %6093 = vmatprep.subr.bf16.mxu0 %v4098
    %6094 = vmatpush1.bf16.msra.mxu0 %v4097
    %6095 = vmatprep.subr.bf16.mxu0 %v4102
    %6096 = vmatpush1.bf16.msra.mxu0 %v4101
    %6097 = vmatprep.mubr.bf16.mxu0 %v1155
    %6098 = vmatmul.mubr.bf16.gmra.mrb[0].mxu0 %v1151
    %v6099 = vpop.f32.mrb[0].mxu0
    %v6100 = vadd.f32 %v6057, %v6099
    %v6101 = vpop.f32.mrb[0].mxu0
    %v6102 = vadd.f32 %v6059, %v6101
    %v6103 = vpop.f32.mrb[0].mxu0
    %v6104 = vadd.f32 %v6061, %v6103
    %v6105 = vpop.f32.mrb[0].mxu0
    %v6106 = vadd.f32 %v6063, %v6105
    %6107 = vdwg.mxu0
    %6108 = vmatprep.subr.bf16.mxu0 %v4106
    %6109 = vmatpush1.bf16.msra.mxu0 %v4105
    %6110 = vmatprep.subr.bf16.mxu0 %v4110
    %6111 = vmatpush1.bf16.msra.mxu0 %v4109
    %6112 = vmatprep.subr.bf16.mxu0 %v4114
    %6113 = vmatpush1.bf16.msra.mxu0 %v4113
    %6114 = vmatprep.subr.bf16.mxu0 %v4118
    %6115 = vmatpush1.bf16.msra.mxu0 %v4117
    %6116 = vmatprep.subr.bf16.mxu0 %v4122
    %6117 = vmatpush1.bf16.msra.mxu0 %v4121
    %6118 = vmatprep.subr.bf16.mxu0 %v4126
    %6119 = vmatpush1.bf16.msra.mxu0 %v4125
    %6120 = vmatprep.subr.bf16.mxu0 %v4130
    %6121 = vmatpush1.bf16.msra.mxu0 %v4129
    %6122 = vmatprep.subr.bf16.mxu0 %v4134
    %6123 = vmatpush1.bf16.msra.mxu0 %v4133
    %6124 = vmatprep.subr.bf16.mxu0 %v4138
    %6125 = vmatpush1.bf16.msra.mxu0 %v4137
    %6126 = vmatprep.subr.bf16.mxu0 %v4142
    %6127 = vmatpush1.bf16.msra.mxu0 %v4141
    %6128 = vmatprep.subr.bf16.mxu0 %v4146
    %6129 = vmatpush1.bf16.msra.mxu0 %v4145
    %6130 = vmatprep.subr.bf16.mxu0 %v4150
    %6131 = vmatpush1.bf16.msra.mxu0 %v4149
    %6132 = vmatprep.subr.bf16.mxu0 %v4154
    %6133 = vmatpush1.bf16.msra.mxu0 %v4153
    %6134 = vmatprep.subr.bf16.mxu0 %v4158
    %6135 = vmatpush1.bf16.msra.mxu0 %v4157
    %6136 = vmatprep.subr.bf16.mxu0 %v4162
    %6137 = vmatpush1.bf16.msra.mxu0 %v4161
    %6138 = vmatprep.subr.bf16.mxu0 %v4166
    %6139 = vmatpush1.bf16.msra.mxu0 %v4165
    %6140 = vmatprep.mubr.bf16.mxu0 %v1156
    %6141 = vmatmul.mubr.bf16.gmra.mrb[0].mxu0 %v1152
    %v6142 = vpop.f32.mrb[0].mxu0
    %v6143 = vadd.f32 %v6100, %v6142
    %v6144 = vpop.f32.mrb[0].mxu0
    %v6145 = vadd.f32 %v6102, %v6144
    %v6146 = vpop.f32.mrb[0].mxu0
    %v6147 = vadd.f32 %v6104, %v6146
    %v6148 = vpop.f32.mrb[0].mxu0
    %v6149 = vadd.f32 %v6106, %v6148
    %6150 = vdwg.mxu0
    %6151 = vmatprep.subr.bf16.mxu0 %v4170
    %6152 = vmatpush1.bf16.msra.mxu0 %v4169
    %6153 = vmatprep.subr.bf16.mxu0 %v4174
    %6154 = vmatpush1.bf16.msra.mxu0 %v4173
    %6155 = vmatprep.subr.bf16.mxu0 %v4178
    %6156 = vmatpush1.bf16.msra.mxu0 %v4177
    %6157 = vmatprep.subr.bf16.mxu0 %v4182
    %6158 = vmatpush1.bf16.msra.mxu0 %v4181
    %6159 = vmatprep.subr.bf16.mxu0 %v4186
    %6160 = vmatpush1.bf16.msra.mxu0 %v4185
    %6161 = vmatprep.subr.bf16.mxu0 %v4190
    %6162 = vmatpush1.bf16.msra.mxu0 %v4189
    %6163 = vmatprep.subr.bf16.mxu0 %v4194
    %6164 = vmatpush1.bf16.msra.mxu0 %v4193
    %6165 = vmatprep.subr.bf16.mxu0 %v4198
    %6166 = vmatpush1.bf16.msra.mxu0 %v4197
    %6167 = vmatprep.subr.bf16.mxu0 %v4202
    %6168 = vmatpush1.bf16.msra.mxu0 %v4201
    %6169 = vmatprep.subr.bf16.mxu0 %v4206
    %6170 = vmatpush1.bf16.msra.mxu0 %v4205
    %6171 = vmatprep.subr.bf16.mxu0 %v4210
    %6172 = vmatpush1.bf16.msra.mxu0 %v4209
    %6173 = vmatprep.subr.bf16.mxu0 %v4214
    %6174 = vmatpush1.bf16.msra.mxu0 %v4213
    %6175 = vmatprep.subr.bf16.mxu0 %v4218
    %6176 = vmatpush1.bf16.msra.mxu0 %v4217
    %6177 = vmatprep.subr.bf16.mxu0 %v4222
    %6178 = vmatpush1.bf16.msra.mxu0 %v4221
    %6179 = vmatprep.subr.bf16.mxu0 %v4226
    %6180 = vmatpush1.bf16.msra.mxu0 %v4225
    %6181 = vmatprep.subr.bf16.mxu0 %v4230
    %6182 = vmatpush1.bf16.msra.mxu0 %v4229
    %6183 = vmatprep.mubr.bf16.mxu0 %v1157
    %6184 = vmatmul.mubr.bf16.gmra.mrb[0].mxu0 %v1153
    %v6185 = vpop.f32.mrb[0].mxu0
    %v6186 = vadd.f32 %v6143, %v6185
    %v6187 = vpop.f32.mrb[0].mxu0
    %v6188 = vadd.f32 %v6145, %v6187
    %v6189 = vpop.f32.mrb[0].mxu0
    %v6190 = vadd.f32 %v6147, %v6189
    %v6191 = vpop.f32.mrb[0].mxu0
    %v6192 = vadd.f32 %v6149, %v6191
    %6193 = vdwg.mxu0
    %6194 = vmatprep.subr.bf16.mxu0 %v4234
    %6195 = vmatpush1.bf16.msra.mxu0 %v4233
    %6196 = vmatprep.subr.bf16.mxu0 %v4238
    %6197 = vmatpush1.bf16.msra.mxu0 %v4237
    %6198 = vmatprep.subr.bf16.mxu0 %v4242
    %6199 = vmatpush1.bf16.msra.mxu0 %v4241
    %6200 = vmatprep.subr.bf16.mxu0 %v4246
    %6201 = vmatpush1.bf16.msra.mxu0 %v4245
    %6202 = vmatprep.subr.bf16.mxu0 %v4250
    %6203 = vmatpush1.bf16.msra.mxu0 %v4249
    %6204 = vmatprep.subr.bf16.mxu0 %v4254
    %6205 = vmatpush1.bf16.msra.mxu0 %v4253
    %6206 = vmatprep.subr.bf16.mxu0 %v4258
    %6207 = vmatpush1.bf16.msra.mxu0 %v4257
    %6208 = vmatprep.subr.bf16.mxu0 %v4262
    %6209 = vmatpush1.bf16.msra.mxu0 %v4261
    %6210 = vmatprep.subr.bf16.mxu0 %v4266
    %6211 = vmatpush1.bf16.msra.mxu0 %v4265
    %6212 = vmatprep.subr.bf16.mxu0 %v4270
    %6213 = vmatpush1.bf16.msra.mxu0 %v4269
    %6214 = vmatprep.subr.bf16.mxu0 %v4274
    %6215 = vmatpush1.bf16.msra.mxu0 %v4273
    %6216 = vmatprep.subr.bf16.mxu0 %v4278
    %6217 = vmatpush1.bf16.msra.mxu0 %v4277
    %6218 = vmatprep.subr.bf16.mxu0 %v4282
    %6219 = vmatpush1.bf16.msra.mxu0 %v4281
    %6220 = vmatprep.subr.bf16.mxu0 %v4286
    %6221 = vmatpush1.bf16.msra.mxu0 %v4285
    %6222 = vmatprep.subr.bf16.mxu0 %v4290
    %6223 = vmatpush1.bf16.msra.mxu0 %v4289
    %6224 = vmatprep.subr.bf16.mxu0 %v4294
    %6225 = vmatpush1.bf16.msra.mxu0 %v4293
    %6226 = vmatprep.mubr.bf16.mxu0 %v1290
    %6227 = vmatmul.mubr.bf16.gmra.mrb[0].mxu0 %v1286
    %v6228 = vpop.f32.mrb[0].mxu0
    %v6229 = vadd.f32 %v6186, %v6228
    %v6230 = vpop.f32.mrb[0].mxu0
    %v6231 = vadd.f32 %v6188, %v6230
    %v6232 = vpop.f32.mrb[0].mxu0
    %v6233 = vadd.f32 %v6190, %v6232
    %v6234 = vpop.f32.mrb[0].mxu0
    %v6235 = vadd.f32 %v6192, %v6234
    %6236 = vdwg.mxu0
    %6237 = vmatprep.subr.bf16.mxu0 %v4298
    %6238 = vmatpush1.bf16.msra.mxu0 %v4297
    %6239 = vmatprep.subr.bf16.mxu0 %v4302
    %6240 = vmatpush1.bf16.msra.mxu0 %v4301
    %6241 = vmatprep.subr.bf16.mxu0 %v4306
    %6242 = vmatpush1.bf16.msra.mxu0 %v4305
    %6243 = vmatprep.subr.bf16.mxu0 %v4310
    %6244 = vmatpush1.bf16.msra.mxu0 %v4309
    %6245 = vmatprep.subr.bf16.mxu0 %v4314
    %6246 = vmatpush1.bf16.msra.mxu0 %v4313
    %6247 = vmatprep.subr.bf16.mxu0 %v4318
    %6248 = vmatpush1.bf16.msra.mxu0 %v4317
    %6249 = vmatprep.subr.bf16.mxu0 %v4322
    %6250 = vmatpush1.bf16.msra.mxu0 %v4321
    %6251 = vmatprep.subr.bf16.mxu0 %v4326
    %6252 = vmatpush1.bf16.msra.mxu0 %v4325
    %6253 = vmatprep.subr.bf16.mxu0 %v4330
    %6254 = vmatpush1.bf16.msra.mxu0 %v4329
    %6255 = vmatprep.subr.bf16.mxu0 %v4334
    %6256 = vmatpush1.bf16.msra.mxu0 %v4333
    %6257 = vmatprep.subr.bf16.mxu0 %v4338
    %6258 = vmatpush1.bf16.msra.mxu0 %v4337
    %6259 = vmatprep.subr.bf16.mxu0 %v4342
    %6260 = vmatpush1.bf16.msra.mxu0 %v4341
    %6261 = vmatprep.subr.bf16.mxu0 %v4346
    %6262 = vmatpush1.bf16.msra.mxu0 %v4345
    %6263 = vmatprep.subr.bf16.mxu0 %v4350
    %6264 = vmatpush1.bf16.msra.mxu0 %v4349
    %6265 = vmatprep.subr.bf16.mxu0 %v4354
    %6266 = vmatpush1.bf16.msra.mxu0 %v4353
    %6267 = vmatprep.subr.bf16.mxu0 %v4358
    %6268 = vmatpush1.bf16.msra.mxu0 %v4357
    %6269 = vmatprep.mubr.bf16.mxu0 %v1291
    %6270 = vmatmul.mubr.bf16.gmra.mrb[0].mxu0 %v1287
    %v6271 = vpop.f32.mrb[0].mxu0
    %v6272 = vadd.f32 %v6229, %v6271
    %v6273 = vpop.f32.mrb[0].mxu0
    %v6274 = vadd.f32 %v6231, %v6273
    %v6275 = vpop.f32.mrb[0].mxu0
    %v6276 = vadd.f32 %v6233, %v6275
    %v6277 = vpop.f32.mrb[0].mxu0
    %v6278 = vadd.f32 %v6235, %v6277
    %6279 = vdwg.mxu0
    %6280 = vmatprep.subr.bf16.mxu0 %v4362
    %6281 = vmatpush1.bf16.msra.mxu0 %v4361
    %6282 = vmatprep.subr.bf16.mxu0 %v4366
    %6283 = vmatpush1.bf16.msra.mxu0 %v4365
    %6284 = vmatprep.subr.bf16.mxu0 %v4370
    %6285 = vmatpush1.bf16.msra.mxu0 %v4369
    %6286 = vmatprep.subr.bf16.mxu0 %v4374
    %6287 = vmatpush1.bf16.msra.mxu0 %v4373
    %6288 = vmatprep.subr.bf16.mxu0 %v4378
    %6289 = vmatpush1.bf16.msra.mxu0 %v4377
    %6290 = vmatprep.subr.bf16.mxu0 %v4382
    %6291 = vmatpush1.bf16.msra.mxu0 %v4381
    %6292 = vmatprep.subr.bf16.mxu0 %v4386
    %6293 = vmatpush1.bf16.msra.mxu0 %v4385
    %6294 = vmatprep.subr.bf16.mxu0 %v4390
    %6295 = vmatpush1.bf16.msra.mxu0 %v4389
    %6296 = vmatprep.subr.bf16.mxu0 %v4394
    %6297 = vmatpush1.bf16.msra.mxu0 %v4393
    %6298 = vmatprep.subr.bf16.mxu0 %v4398
    %6299 = vmatpush1.bf16.msra.mxu0 %v4397
    %6300 = vmatprep.subr.bf16.mxu0 %v4402
    %6301 = vmatpush1.bf16.msra.mxu0 %v4401
    %6302 = vmatprep.subr.bf16.mxu0 %v4406
    %6303 = vmatpush1.bf16.msra.mxu0 %v4405
    %6304 = vmatprep.subr.bf16.mxu0 %v4410
    %6305 = vmatpush1.bf16.msra.mxu0 %v4409
    %6306 = vmatprep.subr.bf16.mxu0 %v4414
    %6307 = vmatpush1.bf16.msra.mxu0 %v4413
    %6308 = vmatprep.subr.bf16.mxu0 %v4418
    %6309 = vmatpush1.bf16.msra.mxu0 %v4417
    %6310 = vmatprep.subr.bf16.mxu0 %v4422
    %6311 = vmatpush1.bf16.msra.mxu0 %v4421
    %6312 = vmatprep.mubr.bf16.mxu0 %v1292
    %6313 = vmatmul.mubr.bf16.gmra.mrb[0].mxu0 %v1288
    %v6314 = vpop.f32.mrb[0].mxu0
    %v6315 = vadd.f32 %v6272, %v6314
    %v6316 = vpop.f32.mrb[0].mxu0
    %v6317 = vadd.f32 %v6274, %v6316
    %v6318 = vpop.f32.mrb[0].mxu0
    %v6319 = vadd.f32 %v6276, %v6318
    %v6320 = vpop.f32.mrb[0].mxu0
    %v6321 = vadd.f32 %v6278, %v6320
    %6322 = vdwg.mxu0
    %6323 = vmatprep.subr.bf16.mxu0 %v4426
    %6324 = vmatpush1.bf16.msra.mxu0 %v4425
    %6325 = vmatprep.subr.bf16.mxu0 %v4430
    %6326 = vmatpush1.bf16.msra.mxu0 %v4429
    %6327 = vmatprep.subr.bf16.mxu0 %v4434
    %6328 = vmatpush1.bf16.msra.mxu0 %v4433
    %6329 = vmatprep.subr.bf16.mxu0 %v4438
    %6330 = vmatpush1.bf16.msra.mxu0 %v4437
    %6331 = vmatprep.subr.bf16.mxu0 %v4442
    %6332 = vmatpush1.bf16.msra.mxu0 %v4441
    %6333 = vmatprep.subr.bf16.mxu0 %v4446
    %6334 = vmatpush1.bf16.msra.mxu0 %v4445
    %6335 = vmatprep.subr.bf16.mxu0 %v4450
    %6336 = vmatpush1.bf16.msra.mxu0 %v4449
    %6337 = vmatprep.subr.bf16.mxu0 %v4454
    %6338 = vmatpush1.bf16.msra.mxu0 %v4453
    %6339 = vmatprep.subr.bf16.mxu0 %v4458
    %6340 = vmatpush1.bf16.msra.mxu0 %v4457
    %6341 = vmatprep.subr.bf16.mxu0 %v4462
    %6342 = vmatpush1.bf16.msra.mxu0 %v4461
    %6343 = vmatprep.subr.bf16.mxu0 %v4466
    %6344 = vmatpush1.bf16.msra.mxu0 %v4465
    %6345 = vmatprep.subr.bf16.mxu0 %v4470
    %6346 = vmatpush1.bf16.msra.mxu0 %v4469
    %6347 = vmatprep.subr.bf16.mxu0 %v4474
    %6348 = vmatpush1.bf16.msra.mxu0 %v4473
    %6349 = vmatprep.subr.bf16.mxu0 %v4478
    %6350 = vmatpush1.bf16.msra.mxu0 %v4477
    %6351 = vmatprep.subr.bf16.mxu0 %v4482
    %6352 = vmatpush1.bf16.msra.mxu0 %v4481
    %6353 = vmatprep.subr.bf16.mxu0 %v4486
    %6354 = vmatpush1.bf16.msra.mxu0 %v4485
    %6355 = vmatprep.mubr.bf16.mxu0 %v1293
    %6356 = vmatmul.mubr.bf16.gmra.mrb[0].mxu0 %v1289
    %v6357 = vpop.f32.mrb[0].mxu0
    %v6358 = vadd.f32 %v6315, %v6357
    %v6359 = vpop.f32.mrb[0].mxu0
    %v6360 = vadd.f32 %v6317, %v6359
    %v6361 = vpop.f32.mrb[0].mxu0
    %v6362 = vadd.f32 %v6319, %v6361
    %v6363 = vpop.f32.mrb[0].mxu0
    %v6364 = vadd.f32 %v6321, %v6363
    %6365 = vdwg.mxu0
    %6366 = vmatprep.subr.bf16.mxu0 %v4490
    %6367 = vmatpush1.bf16.msra.mxu0 %v4489
    %6368 = vmatprep.subr.bf16.mxu0 %v4494
    %6369 = vmatpush1.bf16.msra.mxu0 %v4493
    %6370 = vmatprep.subr.bf16.mxu0 %v4498
    %6371 = vmatpush1.bf16.msra.mxu0 %v4497
    %6372 = vmatprep.subr.bf16.mxu0 %v4502
    %6373 = vmatpush1.bf16.msra.mxu0 %v4501
    %6374 = vmatprep.subr.bf16.mxu0 0
    %6375 = vmatpush1.bf16.msra.mxu0 0
    %6376 = vmatprep.subr.bf16.mxu0 0
    %6377 = vmatpush1.bf16.msra.mxu0 0
    %6378 = vmatprep.subr.bf16.mxu0 0
    %6379 = vmatpush1.bf16.msra.mxu0 0
    %6380 = vmatprep.subr.bf16.mxu0 0
    %6381 = vmatpush1.bf16.msra.mxu0 0
    %6382 = vmatprep.subr.bf16.mxu0 0
    %6383 = vmatpush1.bf16.msra.mxu0 0
    %6384 = vmatprep.subr.bf16.mxu0 0
    %6385 = vmatpush1.bf16.msra.mxu0 0
    %6386 = vmatprep.subr.bf16.mxu0 0
    %6387 = vmatpush1.bf16.msra.mxu0 0
    %6388 = vmatprep.subr.bf16.mxu0 0
    %6389 = vmatpush1.bf16.msra.mxu0 0
    %6390 = vmatprep.subr.bf16.mxu0 0
    %6391 = vmatpush1.bf16.msra.mxu0 0
    %6392 = vmatprep.subr.bf16.mxu0 0
    %6393 = vmatpush1.bf16.msra.mxu0 0
    %6394 = vmatprep.subr.bf16.mxu0 0
    %6395 = vmatpush1.bf16.msra.mxu0 0
    %6396 = vmatprep.subr.bf16.mxu0 0
    %6397 = vmatpush1.bf16.msra.mxu0 0
    %6398 = vmatprep.mubr.bf16.mxu0 0
    %6399 = vmatmul.mubr.bf16.gmra.mrb[0].mxu0 %v5289
    %v6400 = vpop.f32.mrb[0].mxu0
    %v6401 = vadd.f32 %v6358, %v6400
    %v6402 = vpop.f32.mrb[0].mxu0
    %v6403 = vadd.f32 %v6360, %v6402
    %v6404 = vpop.f32.mrb[0].mxu0
    %v6405 = vadd.f32 %v6362, %v6404
    %v6406 = vpop.f32.mrb[0].mxu0
    %v6407 = vadd.f32 %v6364, %v6406
    %6408 = vdwg.mxu0
    %v6409 = vmax.f32 %v5842, 0.0
    %v6410 = vmax.f32 %v5844, 0.0
    %v6411 = vmax.f32 %v6401, 0.0
    %v6412 = vmax.f32 %v6403, 0.0
    %v6413 = vmax.f32 %v5846, 0.0
    %v6414 = vmax.f32 %v5848, 0.0
    %v6415 = vmax.f32 %v6405, 0.0
    %v6416 = vmax.f32 %v6407, 0.0
    %v6425 = vcombine.low %v6409, %v6410
    %v6426 = vcombine.high %v6409, %v6410
    %v6427 = vcombine.low %v6411, %v6412
    %v6428 = vcombine.high %v6411, %v6412
    %v6430 = vunpack.c.l.s4 1983009808
    %v6431 = vunpack.c.0.s8 %v6430
    %v6432 = vlaneseq
    %v6433 = vshrl.u32 %v6432, 7
    %v6434 = vsub.s32 %v6431, %v6433
    %v6435 = vrot.slane %v6425, %v6434
    %v6437 = vunpack.c.l.s4 1983009808
    %v6438 = vunpack.c.0.s8 %v6437
    %v6439 = vlaneseq
    %v6440 = vshrl.u32 %v6439, 7
    %v6441 = vsub.s32 %v6438, %v6440
    %v6442 = vrot.slane %v6426, %v6441
    %v6444 = vunpack.c.l.s4 1983009808
    %v6445 = vunpack.c.0.s8 %v6444
    %v6446 = vlaneseq
    %v6447 = vshrl.u32 %v6446, 7
    %v6448 = vsub.s32 %v6445, %v6447
    %v6449 = vrot.slane %v6427, %v6448
    %v6451 = vunpack.c.l.s4 1983009808
    %v6452 = vunpack.c.0.s8 %v6451
    %v6453 = vlaneseq
    %v6454 = vshrl.u32 %v6453, 7
    %v6455 = vsub.s32 %v6452, %v6454
    %v6456 = vrot.slane %v6428, %v6455
    %v6457 = vcombine.low %v6435, %v6449
    %v6458 = vcombine.high %v6435, %v6449
    %v6459 = vcombine.low %v6442, %v6456
    %v6460 = vcombine.high %v6442, %v6456
    %v6461 = vcombine.low %v6413, %v6414
    %v6462 = vcombine.high %v6413, %v6414
    %v6463 = vcombine.low %v6415, %v6416
    %v6464 = vcombine.high %v6415, %v6416
    %v6466 = vunpack.c.l.s4 1983009808
    %v6467 = vunpack.c.0.s8 %v6466
    %v6468 = vlaneseq
    %v6469 = vshrl.u32 %v6468, 7
    %v6470 = vsub.s32 %v6467, %v6469
    %v6471 = vrot.slane %v6461, %v6470
    %v6473 = vunpack.c.l.s4 1983009808
    %v6474 = vunpack.c.0.s8 %v6473
    %v6475 = vlaneseq
    %v6476 = vshrl.u32 %v6475, 7
    %v6477 = vsub.s32 %v6474, %v6476
    %v6478 = vrot.slane %v6462, %v6477
    %v6480 = vunpack.c.l.s4 1983009808
    %v6481 = vunpack.c.0.s8 %v6480
    %v6482 = vlaneseq
    %v6483 = vshrl.u32 %v6482, 7
    %v6484 = vsub.s32 %v6481, %v6483
    %v6485 = vrot.slane %v6463, %v6484
    %v6487 = vunpack.c.l.s4 1983009808
    %v6488 = vunpack.c.0.s8 %v6487
    %v6489 = vlaneseq
    %v6490 = vshrl.u32 %v6489, 7
    %v6491 = vsub.s32 %v6488, %v6490
    %v6492 = vrot.slane %v6464, %v6491
    %v6493 = vcombine.low %v6471, %v6485
    %v6494 = vcombine.high %v6471, %v6485
    %v6495 = vcombine.low %v6478, %v6492
    %v6496 = vcombine.high %v6478, %v6492
    %6505 = vst [vmem:[#allocation2] sm:$0xff] %v6457
    %6506 = vst [vmem:[#allocation2 + $0x8] sm:$0xff] %v6458
    %6507 = vst [vmem:[#allocation2 + $0x10] sm:$0xff] %v6459
    %6508 = vst [vmem:[#allocation2 + $0x18] sm:$0xff] %v6460
    %6509 = vst [vmem:[#allocation2 + $0x20] sm:$0xff] %v6493
    %6510 = vst [vmem:[#allocation2 + $0x28] sm:$0xff] %v6494
    %6511 = vst [vmem:[#allocation2 + $0x30] sm:$0xff] %v6495
    %6512 = vst [vmem:[#allocation2 + $0x38] sm:$0xff] %v6496
    // Predicated region
    $region14: #{nature_conv_body_forward.7} parent=1 // pred_check
      _
    $region15: #{nature_conv_body_forward.7} parent=1 // pred_check_branch
      %6514 = sbr.rel (0) target = $region17
    $region16: #{nature_conv_body_forward.7} parent=1 // pred_region
      %s6516 = ssub.s32 1024, 128
      %6517 = vsyncadd [#allocation3], %s6516
      %s6518 = sshll.u32 [#allocation2], 4
      %s6519 = int_to_ptr.vmem [resolvable:$true] %s6518
      %6524 = dma.vmem_to_hbm [thread:$0]  %s6519, 128, %s3, [#allocation3], 128, 128, 8
    $region17: #{nature_conv_body_forward.7} parent=1 // pred_fallthru
      _
    // Predicated region
    $region18: #{nature_conv_body_forward.7} parent=1 // pred_check
      _
    $region19: #{nature_conv_body_forward.7} parent=1 // pred_check_branch
      %6526 = sbr.rel (0) target = $region21
    $region20: #{nature_conv_body_forward.7} parent=1 // pred_region
      %6527 = dma.done [#allocation3], 1024
    $region21: #{nature_conv_body_forward.7} parent=1 // pred_fallthru
      _
    %6528 = vsyncpa [#allocation3], 1

</llo_original>
